<compile_context>
chip_gen: v7x
topology: tpu7x:2x2x1
jax: 0.10.0
libtpu: 0.0.40
codegen_flags: <defaults>
</compile_context>

<pallas_src>
import functools

import jax
import jax.numpy as jnp
import numpy as np
from jax.experimental import pallas as pl
from jax.experimental.pallas import tpu as pltpu

_LANE = 128


def _round_up(v, m):
    return (v + m - 1) // m * m


# ---------------------------------------------------------------------------
# Pyramid pooling fusion (plain JAX glue).
# TODO(synk): the avg-pool + bilinear-upsample pyramid stays as JAX glue - it is
# memory-bound resampling with no MXU work; only the Bottleneck runs in Pallas.
# ---------------------------------------------------------------------------
def _avg_pool(x, k):
    n, c, h, w = x.shape
    return x.reshape(n, c, h // k, k, w // k, k).mean(axis=(3, 5))


def _upsample_bilinear(x, factor):
    """F.interpolate(scale_factor=factor, mode='bilinear', align_corners=False)."""
    n, c, h_in, w_in = x.shape

    def coords(in_size, out_size):
        u = jnp.arange(out_size, dtype=jnp.float32)
        src = jnp.maximum((u + 0.5) * (in_size / out_size) - 0.5, 0.0)
        i0 = jnp.minimum(jnp.floor(src).astype(jnp.int32), in_size - 1)
        i1 = jnp.minimum(i0 + 1, in_size - 1)
        t = src - i0.astype(jnp.float32)
        return i0, i1, t

    i0h, i1h, t_h = coords(h_in, h_in * factor)
    i0w, i1w, t_w = coords(w_in, w_in * factor)
    xh = (x[:, :, i0h, :] * (1.0 - t_h)[None, None, :, None]
          + x[:, :, i1h, :] * t_h[None, None, :, None])
    xw = (xh[:, :, :, i0w] * (1.0 - t_w)[None, None, None, :]
          + xh[:, :, :, i1w] * t_w[None, None, None, :])
    return xw


def _pyramid_fuse(x):
    _, _, h, w = x.shape
    assert h % 4 == 0 and w % 4 == 0, "FPymPool needs H, W divisible by 4"
    x2 = _upsample_bilinear(_avg_pool(x, 2), 2)
    x4 = _upsample_bilinear(_avg_pool(x, 4), 4)
    return x + x2 + x4


# ---------------------------------------------------------------------------
# BatchNorm folding (inference mode).
# TODO(synk): training-mode BatchNorm (global batch statistics) is not computed
# in-kernel; BN is applied as a folded per-channel scale/shift.
# ---------------------------------------------------------------------------
def _fold_bn(w, b, bn, eps=1e-5):
    gamma, beta, mean, var = bn
    s = gamma / jnp.sqrt(var + eps)
    return w * s[:, None, None, None], (b - mean) * s + beta


# ---------------------------------------------------------------------------
# Fused Bottleneck kernel.  One row-band per program.
#
# The z band arrives spatially pre-flattened as (pq, cin_a) bf16 with
#   pq = (th + 3) * w_t,  cin_a = cin + 1 ("ones" channel carries biases and
# makes padded positions come out exactly zero after conv1+ReLU).
# conv2 (3x3, pad=1) is computed at padded width: each tap is the contiguous
# flat row window h1[dy*w_t + dx : dy*w_t + dx + th*w_t]; the flat identity
# (r+dy)*w_t + (c+dx) = (dy*w_t + dx) + (r*w_t + c) makes this exact for the
# valid columns c < w (columns >= w are discarded by the wrapper).
# ---------------------------------------------------------------------------
def _bottleneck_kernel(z_ref, w1_ref, w2_ref, b2_ref, w3_ref, b3_ref, we_ref,
                       o_ref, zpad_ref, *, th, w_t, cin_a, cin_p, wd_p, cout,
                       cout_p):
    pq = (th + 3) * w_t
    L = th * w_t

    # Pad the contraction dim to 128 in VMEM only (HBM stays at cin_a channels).
    if cin_p > cin_a:
        zpad_ref[...] = jnp.zeros((pq, cin_p), jnp.bfloat16)
    zpad_ref[:, :cin_a] = z_ref[0]
    z2d = zpad_ref[...]                                   # (pq, cin_p) bf16

    # conv1 (1x1) + BN1 + ReLU.  Bias rides on the ones channel, so padded
    # positions are exactly zero (= conv2's zero padding ring).
    h1 = jnp.dot(z2d, w1_ref[...], preferred_element_type=jnp.float32)
    h1 = jnp.maximum(h1, 0.0).astype(jnp.bfloat16)        # (pq, wd_p)

    # conv2 (3x3, pad=1) + BN2 + ReLU: 9 accumulating MXU matmuls over
    # contiguous flat row windows (no sliced-reshape relayouts).
    acc = None
    for dy in range(3):
        for dx in range(3):
            start = dy * w_t + dx
            tap = h1[start:start + L, :]
            d = jnp.dot(tap, w2_ref[dy * 3 + dx],
                        preferred_element_type=jnp.float32)
            acc = d if acc is None else acc + d
    h2 = jnp.maximum(acc + b2_ref[...], 0.0).astype(jnp.bfloat16)   # (L, wd_p)

    # conv3 (1x1) + BN3.
    h3 = jnp.dot(h2, w3_ref[...], preferred_element_type=jnp.float32) + b3_ref[...]

    # identity / expand branch at the centered positions (flat offset w_t + 1).
    zc = zpad_ref[w_t + 1:w_t + 1 + L, :]                 # (L, cin_p) bf16
    idn = jnp.dot(zc, we_ref[...], preferred_element_type=jnp.float32)

    out = jnp.maximum(h3 + idn, 0.0)                      # (L, cout_p) f32
    # channel-major, lane-dense (cout, L) bf16 store -> contiguous band DMA.
    out_t = out.T                                         # (cout_p, L)
    o_ref[0] = out_t[:cout, :].astype(o_ref.dtype)


def fpympool_forward(x, params, *, band_rows=None):
    """FPymPool forward.  x: [N, Cin, H, W] (NCHW).  Returns [N, Cout, H, W] f32."""
    n, cin, h, w = x.shape
    cout = params["w3"].shape[0]
    wd = params["w1"].shape[0]

    # ---- stage 1: pyramid fusion (JAX glue), NHWC, bf16 before any copies ----
    z = jnp.transpose(_pyramid_fuse(x), (0, 2, 3, 1)).astype(jnp.bfloat16)

    # ---- stage 2: fold BN into the convs ----
    w1, b1 = _fold_bn(params["w1"], params["b1"], params["bn1"])
    w2, b2 = _fold_bn(params["w2"], params["b2"], params["bn2"])
    w3, b3 = _fold_bn(params["w3"], params["b3"], params["bn3"])
    has_expand = params.get("we") is not None
    if has_expand:
        we, be = _fold_bn(params["we"], params["be"], params["bne"])
        we_2d, be_1d = jnp.transpose(we[:, :, 0, 0]), be          # [cin, cout]
    else:
        assert cin == cout
        we_2d, be_1d = jnp.eye(cin, dtype=jnp.float32), jnp.zeros((cout,), jnp.float32)

    # ---- stage 3: lane-dense weight matrices (padded to 128 only here) ----
    cin_a = cin + 1                       # + ones indicator channel (carries biases)
    cin_p = _round_up(cin_a, _LANE)
    wd_p = _round_up(wd, _LANE)
    cout_p = _round_up(cout, _LANE)

    w1_mat = jnp.concatenate([jnp.transpose(w1[:, :, 0, 0]), b1[None, :]], axis=0)
    w1_mat = jnp.pad(w1_mat, ((0, cin_p - cin_a), (0, wd_p - wd))).astype(jnp.bfloat16)
    we_mat = jnp.concatenate([we_2d, be_1d[None, :]], axis=0)
    we_mat = jnp.pad(we_mat, ((0, cin_p - cin_a), (0, cout_p - cout))).astype(jnp.bfloat16)
    taps = [jnp.transpose(w2[:, :, dy, dx]) for dy in range(3) for dx in range(3)]
    w2_mat = jnp.pad(jnp.stack(taps, axis=0),
                     ((0, 0), (0, wd_p - wd), (0, wd_p - wd))).astype(jnp.bfloat16)
    b2_row = jnp.pad(b2, (0, wd_p - wd))[None, :].astype(jnp.float32)
    w3_mat = jnp.pad(jnp.transpose(w3[:, :, 0, 0]),
                     ((0, wd_p - wd), (0, cout_p - cout))).astype(jnp.bfloat16)
    b3_row = jnp.pad(b3, (0, cout_p - cout))[None, :].astype(jnp.float32)

    # ---- stage 4: row-band tiling (3-row halo, flattened spatial dims) ----
    w_t = _round_up(w + 2, 16)            # keep flat slices sublane-tile aligned
    if band_rows is None:
        # ~2 MiB per (rows x 128k) f32 intermediate, scaled by channel width.
        budget_rows = max(1024, (2 * 1024 * 1024) // (4 * max(wd_p, cout_p)))
        band_rows = max(1, budget_rows // w_t)
    th = max(1, min(band_rows, h))
    nb = -(-h // th)                      # cdiv
    # keep >= 2 programs in flight so dual-TensorCore parts (v7x) don't idle a core
    while n * nb < 2 and th > 1:
        th = max(1, (th + 1) // 2)
        nb = -(-h // th)
    h_t = nb * th
    pq = (th + 3) * w_t
    L = th * w_t

    ones = jnp.ones((n, h, w, 1), jnp.bfloat16)
    z_aug = jnp.concatenate([z, ones], axis=-1)           # (n, h, w, cin_a) bf16
    z_p = jnp.pad(z_aug, ((0, 0), (1, h_t - h + 2), (1, w_t - w - 1), (0, 0)))
    z_bands = jnp.stack([z_p[:, b * th:b * th + th + 3] for b in range(nb)], axis=1)
    z_bands = z_bands.reshape(n * nb, pq, cin_a)          # spatially flat, bf16

    kernel = functools.partial(_bottleneck_kernel, th=th, w_t=w_t, cin_a=cin_a,
                               cin_p=cin_p, wd_p=wd_p, cout=cout, cout_p=cout_p)

    flops = n * nb * (2 * pq * cin_p * wd_p
                      + L * (2 * 9 * wd_p * wd_p
                             + 2 * wd_p * cout_p
                             + 2 * cin_p * cout_p))
    bytes_accessed = (n * nb * (pq * cin_a * 2 + cout * L * 2)        # bf16 in/out
                      + 2 * (cin_p * wd_p + 9 * wd_p * wd_p
                             + wd_p * cout_p + cin_p * cout_p)        # bf16 weights
                      + 4 * (wd_p + cout_p))                          # f32 bias rows

    out_bands = pl.pallas_call(
        kernel,
        out_shape=jax.ShapeDtypeStruct((n * nb, cout, L), jnp.bfloat16),
        grid_spec=pltpu.PrefetchScalarGridSpec(
            num_scalar_prefetch=0,
            grid=(n, nb),
            in_specs=[
                pl.BlockSpec((1, pq, cin_a), lambda i, b: (i * nb + b, 0, 0)),
                pl.BlockSpec((cin_p, wd_p), lambda i, b: (0, 0)),
                pl.BlockSpec((9, wd_p, wd_p), lambda i, b: (0, 0, 0)),
                pl.BlockSpec((1, wd_p), lambda i, b: (0, 0)),
                pl.BlockSpec((wd_p, cout_p), lambda i, b: (0, 0)),
                pl.BlockSpec((1, cout_p), lambda i, b: (0, 0)),
                pl.BlockSpec((cin_p, cout_p), lambda i, b: (0, 0)),
            ],
            out_specs=pl.BlockSpec((1, cout, L), lambda i, b: (i * nb + b, 0, 0)),
            scratch_shapes=[pltpu.VMEM((pq, cin_p), jnp.bfloat16)],
        ),
        compiler_params=pltpu.CompilerParams(
            dimension_semantics=("parallel", "parallel"),
            vmem_limit_bytes=48 * 1024 * 1024),
        cost_estimate=pl.CostEstimate(flops=int(flops), transcendentals=0,
                                      bytes_accessed=int(bytes_accessed)),
    )(z_bands, w1_mat, w2_mat, b2_row, w3_mat, b3_row, we_mat)

    # flat band index j = r*w_t + c  ->  image (band_row r, col c); cols >= w and
    # rows >= h are padding and are dropped here (small, non-inflated tensors).
    out = out_bands.reshape(n, nb, cout, th, w_t)[..., :w]
    out = jnp.transpose(out, (0, 2, 1, 3, 4)).reshape(n, cout, h_t, w)[:, :, :h, :]
    return out.astype(jnp.float32)


# ---------------------------------------------------------------------------
# Pure-JAX reference (independent path: lax.conv + explicit inference-mode BN).
# ---------------------------------------------------------------------------
def fpympool_reference(x, params, eps=1e-5):
    z = _pyramid_fuse(x)
    dn = ("NCHW", "OIHW", "NCHW")

    def conv(v, wgt, b, pad):
        y = jax.lax.conv_general_dilated(v, wgt, (1, 1), [(pad, pad), (pad, pad)],
                                         dimension_numbers=dn)
        return y + b.reshape(1, -1, 1, 1)

    def bn(v, p):
        gamma, beta, mean, var = p
        s = (gamma / jnp.sqrt(var + eps)).reshape(1, -1, 1, 1)
        return (v - mean.reshape(1, -1, 1, 1)) * s + beta.reshape(1, -1, 1, 1)

    h = jax.nn.relu(bn(conv(z, params["w1"], params["b1"], 0), params["bn1"]))
    h = jax.nn.relu(bn(conv(h, params["w2"], params["b2"], 1), params["bn2"]))
    h = bn(conv(h, params["w3"], params["b3"], 0), params["bn3"])
    if params.get("we") is not None:
        idn = bn(conv(z, params["we"], params["be"], 0), params["bne"])
    else:
        idn = z
    return jax.nn.relu(h + idn)


if __name__ == "__main__":
    # Small deterministic setup: N=2, cin=4, H=W=16, cout=8  ->  width=4.
    N, Cin, H, W = 2, 4, 16, 16
    Cout = 8
    Wd = int(Cout * 0.5)

    key = jax.random.PRNGKey(0)
    ks = jax.random.split(key, 16)

    def conv_w(k, o, i, kh, kw):
        fan_out = o * kh * kw
        return jax.random.normal(k, (o, i, kh, kw), jnp.float32) * jnp.sqrt(2.0 / fan_out)

    def bn_params(k, c):
        k1, k2, k3, k4 = jax.random.split(k, 4)
        gamma = 1.0 + 0.2 * jax.random.normal(k1, (c,), jnp.float32)
        beta = 0.1 * jax.random.normal(k2, (c,), jnp.float32)
        mean = 0.1 * jax.random.normal(k3, (c,), jnp.float32)
        var = 1.0 + 0.2 * jax.random.uniform(k4, (c,), jnp.float32)
        return gamma, beta, mean, var

    x = jax.random.normal(ks[0], (N, Cin, H, W), jnp.float32)

    params = {
        "w1": conv_w(ks[1], Wd, Cin, 1, 1),
        "b1": 0.05 * jax.random.normal(ks[2], (Wd,), jnp.float32),
        "bn1": bn_params(ks[3], Wd),
        "w2": conv_w(ks[4], Wd, Wd, 3, 3),
        "b2": 0.05 * jax.random.normal(ks[5], (Wd,), jnp.float32),
        "bn2": bn_params(ks[6], Wd),
        "w3": conv_w(ks[7], Cout, Wd, 1, 1),
        "b3": 0.05 * jax.random.normal(ks[8], (Cout,), jnp.float32),
        "bn3": bn_params(ks[9], Cout),
        # cin != cout -> expand 1x1 conv + BN on the identity branch
        "we": conv_w(ks[10], Cout, Cin, 1, 1),
        "be": 0.05 * jax.random.normal(ks[11], (Cout,), jnp.float32),
        "bne": bn_params(ks[12], Cout),
    }

    out = jax.block_until_ready(fpympool_forward(x, params))
    ref = jax.block_until_ready(fpympool_reference(x, params))

    # bf16 MXU operands / bf16 output store (f32 accumulation) -> relaxed tolerance.
    if not np.allclose(np.asarray(out), np.asarray(ref), rtol=3e-2, atol=3e-2):
        max_err = float(jnp.max(jnp.abs(out - ref)))
        raise AssertionError(
            f"Pallas FPymPool result mismatch vs JAX reference (max abs err {max_err:.4e})")
    assert out.shape == (N, Cout, H, W)

    print("KERNEL_OK")
</pallas_src>

<mosaic_0001>
module attributes {stable_mosaic.version = 11 : i64} {
  func.func @_bottleneck_kernel(%arg0: i32, %arg1: i32, %arg2: memref<1x608x5xbf16, #tpu.memory_space<vmem>>, %arg3: memref<128x128xbf16, #tpu.memory_space<vmem>>, %arg4: memref<9x128x128xbf16, #tpu.memory_space<vmem>>, %arg5: memref<1x128xf32, #tpu.memory_space<vmem>>, %arg6: memref<128x128xbf16, #tpu.memory_space<vmem>>, %arg7: memref<1x128xf32, #tpu.memory_space<vmem>>, %arg8: memref<128x128xbf16, #tpu.memory_space<vmem>>, %arg9: memref<1x8x512xbf16, #tpu.memory_space<vmem>>, %arg10: memref<608x128xbf16, #tpu.memory_space<vmem>>) attributes {dimension_semantics = [#tpu.dimension_semantics<parallel>, #tpu.dimension_semantics<parallel>], iteration_bounds = array<i64: 2, 1>, scalar_prefetch = 0 : i64, scratch_operands = 1 : i64, tpu.core_type = #tpu.core_type<tc>, window_params = [{transform_indices = @transform_0, window_bounds = array<i64: 1, 608, 5>}, {pipeline_mode = #tpu.pipeline_mode<synchronous>, transform_indices = @transform_1, window_bounds = array<i64: 128, 128>}, {pipeline_mode = #tpu.pipeline_mode<synchronous>, transform_indices = @transform_2, window_bounds = array<i64: 9, 128, 128>}, {pipeline_mode = #tpu.pipeline_mode<synchronous>, transform_indices = @transform_3, window_bounds = array<i64: 1, 128>}, {pipeline_mode = #tpu.pipeline_mode<synchronous>, transform_indices = @transform_4, window_bounds = array<i64: 128, 128>}, {pipeline_mode = #tpu.pipeline_mode<synchronous>, transform_indices = @transform_5, window_bounds = array<i64: 1, 128>}, {pipeline_mode = #tpu.pipeline_mode<synchronous>, transform_indices = @transform_6, window_bounds = array<i64: 128, 128>}, {transform_indices = @transform_7, window_bounds = array<i64: 1, 8, 512>}]} {
    %cst = arith.constant 0.000000e+00 : bf16
    %0 = vector.broadcast %cst : bf16 to vector<608x128xbf16>
    %c0 = arith.constant 0 : index
    %c0_0 = arith.constant 0 : index
    %1 = vector.load %arg10[%c0, %c0_0] : memref<608x128xbf16, #tpu.memory_space<vmem>>, vector<608x128xbf16>
    tpu.vector_store %arg10[%c0, %c0_0], %0 {strides = array<i32>} : memref<608x128xbf16, #tpu.memory_space<vmem>>, vector<608x128xbf16>,
    %c0_1 = arith.constant 0 : index
    %c0_2 = arith.constant 0 : index
    %c0_3 = arith.constant 0 : index
    %2 = vector.load %arg2[%c0_1, %c0_2, %c0_3] : memref<1x608x5xbf16, #tpu.memory_space<vmem>>, vector<1x608x5xbf16>
    %3 = vector.shape_cast %2 : vector<1x608x5xbf16> to vector<608x5xbf16>
    %c0_4 = arith.constant 0 : index
    %c0_5 = arith.constant 0 : index
    %4 = vector.load %arg10[%c0_4, %c0_5] : memref<608x128xbf16, #tpu.memory_space<vmem>>, vector<608x5xbf16>
    tpu.vector_store %arg10[%c0_4, %c0_5], %3 {strides = array<i32>} : memref<608x128xbf16, #tpu.memory_space<vmem>>, vector<608x5xbf16>,
    %c0_6 = arith.constant 0 : index
    %c0_7 = arith.constant 0 : index
    %5 = vector.load %arg10[%c0_6, %c0_7] : memref<608x128xbf16, #tpu.memory_space<vmem>>, vector<608x128xbf16>
    %c0_8 = arith.constant 0 : index
    %c0_9 = arith.constant 0 : index
    %6 = vector.load %arg3[%c0_8, %c0_9] : memref<128x128xbf16, #tpu.memory_space<vmem>>, vector<128x128xbf16>
    %cst_10 = arith.constant dense<0.000000e+00> : vector<608x128xf32>
    %7 = tpu.matmul %5, %6, %cst_10 {dimension_numbers = #tpu.dot_dimension_numbers<[1], [0], [0], [1], [0, 0, 1, 1], [], []>} : vector<608x128xbf16>, vector<128x128xbf16>, vector<608x128xf32> -> vector<608x128xf32>
    %cst_11 = arith.constant 0.000000e+00 : f32
    %8 = vector.broadcast %cst_11 : f32 to vector<608x128xf32>
    %9 = arith.maximumf %7, %8 : vector<608x128xf32>
    %10 = arith.truncf %9 : vector<608x128xf32> to vector<608x128xbf16>
    %11 = vector.extract_strided_slice %10 {offsets = [0, 0], sizes = [512, 128], strides = [1, 1]} : vector<608x128xbf16> to vector<512x128xbf16>
    %c0_12 = arith.constant 0 : index
    %c0_13 = arith.constant 0 : index
    %c0_14 = arith.constant 0 : index
    %12 = vector.load %arg4[%c0_12, %c0_13, %c0_14] : memref<9x128x128xbf16, #tpu.memory_space<vmem>>, vector<1x128x128xbf16>
    %13 = vector.shape_cast %12 : vector<1x128x128xbf16> to vector<128x128xbf16>
    %cst_15 = arith.constant dense<0.000000e+00> : vector<512x128xf32>
    %14 = tpu.matmul %11, %13, %cst_15 {dimension_numbers = #tpu.dot_dimension_numbers<[1], [0], [0], [1], [0, 0, 1, 1], [], []>} : vector<512x128xbf16>, vector<128x128xbf16>, vector<512x128xf32> -> vector<512x128xf32>
    %15 = vector.extract_strided_slice %10 {offsets = [1, 0], sizes = [512, 128], strides = [1, 1]} : vector<608x128xbf16> to vector<512x128xbf16>
    %c1 = arith.constant 1 : index
    %c0_16 = arith.constant 0 : index
    %c0_17 = arith.constant 0 : index
    %16 = vector.load %arg4[%c1, %c0_16, %c0_17] : memref<9x128x128xbf16, #tpu.memory_space<vmem>>, vector<1x128x128xbf16>
    %17 = vector.shape_cast %16 : vector<1x128x128xbf16> to vector<128x128xbf16>
    %cst_18 = arith.constant dense<0.000000e+00> : vector<512x128xf32>
    %18 = tpu.matmul %15, %17, %cst_18 {dimension_numbers = #tpu.dot_dimension_numbers<[1], [0], [0], [1], [0, 0, 1, 1], [], []>} : vector<512x128xbf16>, vector<128x128xbf16>, vector<512x128xf32> -> vector<512x128xf32>
    %19 = arith.addf %14, %18 : vector<512x128xf32>
    %20 = vector.extract_strided_slice %10 {offsets = [2, 0], sizes = [512, 128], strides = [1, 1]} : vector<608x128xbf16> to vector<512x128xbf16>
    %c2 = arith.constant 2 : index
    %c0_19 = arith.constant 0 : index
    %c0_20 = arith.constant 0 : index
    %21 = vector.load %arg4[%c2, %c0_19, %c0_20] : memref<9x128x128xbf16, #tpu.memory_space<vmem>>, vector<1x128x128xbf16>
    %22 = vector.shape_cast %21 : vector<1x128x128xbf16> to vector<128x128xbf16>
    %cst_21 = arith.constant dense<0.000000e+00> : vector<512x128xf32>
    %23 = tpu.matmul %20, %22, %cst_21 {dimension_numbers = #tpu.dot_dimension_numbers<[1], [0], [0], [1], [0, 0, 1, 1], [], []>} : vector<512x128xbf16>, vector<128x128xbf16>, vector<512x128xf32> -> vector<512x128xf32>
    %24 = arith.addf %19, %23 : vector<512x128xf32>
    %25 = vector.extract_strided_slice %10 {offsets = [32, 0], sizes = [512, 128], strides = [1, 1]} : vector<608x128xbf16> to vector<512x128xbf16>
    %c3 = arith.constant 3 : index
    %c0_22 = arith.constant 0 : index
    %c0_23 = arith.constant 0 : index
    %26 = vector.load %arg4[%c3, %c0_22, %c0_23] : memref<9x128x128xbf16, #tpu.memory_space<vmem>>, vector<1x128x128xbf16>
    %27 = vector.shape_cast %26 : vector<1x128x128xbf16> to vector<128x128xbf16>
    %cst_24 = arith.constant dense<0.000000e+00> : vector<512x128xf32>
    %28 = tpu.matmul %25, %27, %cst_24 {dimension_numbers = #tpu.dot_dimension_numbers<[1], [0], [0], [1], [0, 0, 1, 1], [], []>} : vector<512x128xbf16>, vector<128x128xbf16>, vector<512x128xf32> -> vector<512x128xf32>
    %29 = arith.addf %24, %28 : vector<512x128xf32>
    %30 = vector.extract_strided_slice %10 {offsets = [33, 0], sizes = [512, 128], strides = [1, 1]} : vector<608x128xbf16> to vector<512x128xbf16>
    %c4 = arith.constant 4 : index
    %c0_25 = arith.constant 0 : index
    %c0_26 = arith.constant 0 : index
    %31 = vector.load %arg4[%c4, %c0_25, %c0_26] : memref<9x128x128xbf16, #tpu.memory_space<vmem>>, vector<1x128x128xbf16>
    %32 = vector.shape_cast %31 : vector<1x128x128xbf16> to vector<128x128xbf16>
    %cst_27 = arith.constant dense<0.000000e+00> : vector<512x128xf32>
    %33 = tpu.matmul %30, %32, %cst_27 {dimension_numbers = #tpu.dot_dimension_numbers<[1], [0], [0], [1], [0, 0, 1, 1], [], []>} : vector<512x128xbf16>, vector<128x128xbf16>, vector<512x128xf32> -> vector<512x128xf32>
    %34 = arith.addf %29, %33 : vector<512x128xf32>
    %35 = vector.extract_strided_slice %10 {offsets = [34, 0], sizes = [512, 128], strides = [1, 1]} : vector<608x128xbf16> to vector<512x128xbf16>
    %c5 = arith.constant 5 : index
    %c0_28 = arith.constant 0 : index
    %c0_29 = arith.constant 0 : index
    %36 = vector.load %arg4[%c5, %c0_28, %c0_29] : memref<9x128x128xbf16, #tpu.memory_space<vmem>>, vector<1x128x128xbf16>
    %37 = vector.shape_cast %36 : vector<1x128x128xbf16> to vector<128x128xbf16>
    %cst_30 = arith.constant dense<0.000000e+00> : vector<512x128xf32>
    %38 = tpu.matmul %35, %37, %cst_30 {dimension_numbers = #tpu.dot_dimension_numbers<[1], [0], [0], [1], [0, 0, 1, 1], [], []>} : vector<512x128xbf16>, vector<128x128xbf16>, vector<512x128xf32> -> vector<512x128xf32>
    %39 = arith.addf %34, %38 : vector<512x128xf32>
    %40 = vector.extract_strided_slice %10 {offsets = [64, 0], sizes = [512, 128], strides = [1, 1]} : vector<608x128xbf16> to vector<512x128xbf16>
    %c6 = arith.constant 6 : index
    %c0_31 = arith.constant 0 : index
    %c0_32 = arith.constant 0 : index
    %41 = vector.load %arg4[%c6, %c0_31, %c0_32] : memref<9x128x128xbf16, #tpu.memory_space<vmem>>, vector<1x128x128xbf16>
    %42 = vector.shape_cast %41 : vector<1x128x128xbf16> to vector<128x128xbf16>
    %cst_33 = arith.constant dense<0.000000e+00> : vector<512x128xf32>
    %43 = tpu.matmul %40, %42, %cst_33 {dimension_numbers = #tpu.dot_dimension_numbers<[1], [0], [0], [1], [0, 0, 1, 1], [], []>} : vector<512x128xbf16>, vector<128x128xbf16>, vector<512x128xf32> -> vector<512x128xf32>
    %44 = arith.addf %39, %43 : vector<512x128xf32>
    %45 = vector.extract_strided_slice %10 {offsets = [65, 0], sizes = [512, 128], strides = [1, 1]} : vector<608x128xbf16> to vector<512x128xbf16>
    %c7 = arith.constant 7 : index
    %c0_34 = arith.constant 0 : index
    %c0_35 = arith.constant 0 : index
    %46 = vector.load %arg4[%c7, %c0_34, %c0_35] : memref<9x128x128xbf16, #tpu.memory_space<vmem>>, vector<1x128x128xbf16>
    %47 = vector.shape_cast %46 : vector<1x128x128xbf16> to vector<128x128xbf16>
    %cst_36 = arith.constant dense<0.000000e+00> : vector<512x128xf32>
    %48 = tpu.matmul %45, %47, %cst_36 {dimension_numbers = #tpu.dot_dimension_numbers<[1], [0], [0], [1], [0, 0, 1, 1], [], []>} : vector<512x128xbf16>, vector<128x128xbf16>, vector<512x128xf32> -> vector<512x128xf32>
    %49 = arith.addf %44, %48 : vector<512x128xf32>
    %50 = vector.extract_strided_slice %10 {offsets = [66, 0], sizes = [512, 128], strides = [1, 1]} : vector<608x128xbf16> to vector<512x128xbf16>
    %c8 = arith.constant 8 : index
    %c0_37 = arith.constant 0 : index
    %c0_38 = arith.constant 0 : index
    %51 = vector.load %arg4[%c8, %c0_37, %c0_38] : memref<9x128x128xbf16, #tpu.memory_space<vmem>>, vector<1x128x128xbf16>
    %52 = vector.shape_cast %51 : vector<1x128x128xbf16> to vector<128x128xbf16>
    %cst_39 = arith.constant dense<0.000000e+00> : vector<512x128xf32>
    %53 = tpu.matmul %50, %52, %cst_39 {dimension_numbers = #tpu.dot_dimension_numbers<[1], [0], [0], [1], [0, 0, 1, 1], [], []>} : vector<512x128xbf16>, vector<128x128xbf16>, vector<512x128xf32> -> vector<512x128xf32>
    %54 = arith.addf %49, %53 : vector<512x128xf32>
    %c0_40 = arith.constant 0 : index
    %c0_41 = arith.constant 0 : index
    %55 = vector.load %arg5[%c0_40, %c0_41] : memref<1x128xf32, #tpu.memory_space<vmem>>, vector<1x128xf32>
    %56 = vector.broadcast %55 : vector<1x128xf32> to vector<512x128xf32>
    %57 = arith.addf %54, %56 : vector<512x128xf32>
    %cst_42 = arith.constant 0.000000e+00 : f32
    %58 = vector.broadcast %cst_42 : f32 to vector<512x128xf32>
    %59 = arith.maximumf %57, %58 : vector<512x128xf32>
    %60 = arith.truncf %59 : vector<512x128xf32> to vector<512x128xbf16>
    %c0_43 = arith.constant 0 : index
    %c0_44 = arith.constant 0 : index
    %61 = vector.load %arg6[%c0_43, %c0_44] : memref<128x128xbf16, #tpu.memory_space<vmem>>, vector<128x128xbf16>
    %cst_45 = arith.constant dense<0.000000e+00> : vector<512x128xf32>
    %62 = tpu.matmul %60, %61, %cst_45 {dimension_numbers = #tpu.dot_dimension_numbers<[1], [0], [0], [1], [0, 0, 1, 1], [], []>} : vector<512x128xbf16>, vector<128x128xbf16>, vector<512x128xf32> -> vector<512x128xf32>
    %c0_46 = arith.constant 0 : index
    %c0_47 = arith.constant 0 : index
    %63 = vector.load %arg7[%c0_46, %c0_47] : memref<1x128xf32, #tpu.memory_space<vmem>>, vector<1x128xf32>
    %64 = vector.broadcast %63 : vector<1x128xf32> to vector<512x128xf32>
    %65 = arith.addf %62, %64 : vector<512x128xf32>
    %c33 = arith.constant 33 : index
    %c0_48 = arith.constant 0 : index
    %66 = vector.load %arg10[%c33, %c0_48] : memref<608x128xbf16, #tpu.memory_space<vmem>>, vector<512x128xbf16>
    %c0_49 = arith.constant 0 : index
    %c0_50 = arith.constant 0 : index
    %67 = vector.load %arg8[%c0_49, %c0_50] : memref<128x128xbf16, #tpu.memory_space<vmem>>, vector<128x128xbf16>
    %cst_51 = arith.constant dense<0.000000e+00> : vector<512x128xf32>
    %68 = tpu.matmul %66, %67, %cst_51 {dimension_numbers = #tpu.dot_dimension_numbers<[1], [0], [0], [1], [0, 0, 1, 1], [], []>} : vector<512x128xbf16>, vector<128x128xbf16>, vector<512x128xf32> -> vector<512x128xf32>
    %69 = arith.addf %65, %68 : vector<512x128xf32>
    %cst_52 = arith.constant 0.000000e+00 : f32
    %70 = vector.broadcast %cst_52 : f32 to vector<512x128xf32>
    %71 = arith.maximumf %69, %70 : vector<512x128xf32>
    %72 = tpu.transpose %71, [1, 0] : vector<512x128xf32> -> vector<128x512xf32>
    %73 = vector.extract_strided_slice %72 {offsets = [0, 0], sizes = [8, 512], strides = [1, 1]} : vector<128x512xf32> to vector<8x512xf32>
    %74 = arith.truncf %73 : vector<8x512xf32> to vector<8x512xbf16>
    %c0_53 = arith.constant 0 : index
    %c0_54 = arith.constant 0 : index
    %c0_55 = arith.constant 0 : index
    %75 = vector.load %arg9[%c0_53, %c0_54, %c0_55] : memref<1x8x512xbf16, #tpu.memory_space<vmem>>, vector<1x8x512xbf16>
    %76 = vector.shape_cast %75 : vector<1x8x512xbf16> to vector<8x512xbf16>
    %77 = vector.shape_cast %74 : vector<8x512xbf16> to vector<1x8x512xbf16>
    tpu.vector_store %arg9[%c0_53, %c0_54, %c0_55], %77 {strides = array<i32>} : memref<1x8x512xbf16, #tpu.memory_space<vmem>>, vector<1x8x512xbf16>,
    return
  }
  func.func @transform_0(%arg0: i32, %arg1: i32) -> (i32, i32, i32) {
    %c1_i32 = arith.constant 1 : i32
    %0 = arith.muli %arg0, %c1_i32 : i32
    %1 = arith.addi %0, %arg1 : i32
    %c0_i32 = arith.constant 0 : i32
    %c0_i32_0 = arith.constant 0 : i32
    %c0_i32_1 = arith.constant 0 : i32
    return %1, %c0_i32, %c0_i32_0 : i32, i32, i32
  }
  func.func @transform_1(%arg0: i32, %arg1: i32) -> (i32, i32) {
    %c0_i32 = arith.constant 0 : i32
    %c0_i32_0 = arith.constant 0 : i32
    %c0_i32_1 = arith.constant 0 : i32
    return %c0_i32, %c0_i32_0 : i32, i32
  }
  func.func @transform_2(%arg0: i32, %arg1: i32) -> (i32, i32, i32) {
    %c0_i32 = arith.constant 0 : i32
    %c0_i32_0 = arith.constant 0 : i32
    %c0_i32_1 = arith.constant 0 : i32
    %c0_i32_2 = arith.constant 0 : i32
    return %c0_i32, %c0_i32_0, %c0_i32_1 : i32, i32, i32
  }
  func.func @transform_3(%arg0: i32, %arg1: i32) -> (i32, i32) {
    %c0_i32 = arith.constant 0 : i32
    %c0_i32_0 = arith.constant 0 : i32
    %c0_i32_1 = arith.constant 0 : i32
    return %c0_i32, %c0_i32_0 : i32, i32
  }
  func.func @transform_4(%arg0: i32, %arg1: i32) -> (i32, i32) {
    %c0_i32 = arith.constant 0 : i32
    %c0_i32_0 = arith.constant 0 : i32
    %c0_i32_1 = arith.constant 0 : i32
    return %c0_i32, %c0_i32_0 : i32, i32
  }
  func.func @transform_5(%arg0: i32, %arg1: i32) -> (i32, i32) {
    %c0_i32 = arith.constant 0 : i32
    %c0_i32_0 = arith.constant 0 : i32
    %c0_i32_1 = arith.constant 0 : i32
    return %c0_i32, %c0_i32_0 : i32, i32
  }
  func.func @transform_6(%arg0: i32, %arg1: i32) -> (i32, i32) {
    %c0_i32 = arith.constant 0 : i32
    %c0_i32_0 = arith.constant 0 : i32
    %c0_i32_1 = arith.constant 0 : i32
    return %c0_i32, %c0_i32_0 : i32, i32
  }
  func.func @transform_7(%arg0: i32, %arg1: i32) -> (i32, i32, i32) {
    %c1_i32 = arith.constant 1 : i32
    %0 = arith.muli %arg0, %c1_i32 : i32
    %1 = arith.addi %0, %arg1 : i32
    %c0_i32 = arith.constant 0 : i32
    %c0_i32_0 = arith.constant 0 : i32
    %c0_i32_1 = arith.constant 0 : i32
    return %1, %c0_i32, %c0_i32_0 : i32, i32, i32
  }
}

</mosaic_0001>

<llo_original>
// kernel: tpu_custom_call.1
$region0: #{tpu_custom_call.1}
  #allocation0 [shape = 'u32[]', space=smem, size = 0x4, offset = 0x4, fixed_abs, tag = 'smem constant byte address 0x4 - core index']
  #allocation1 [shape = 'u32[144,128]{1,0:T(1,128)}', space=vmem, size = 0x12000, scoped, tag = 'internal scratch']
  #allocation2 [shape = 'bf16[608,128]{1,0:T(16,128)(2,1)}', space=vmem, size = 0x26000, scoped, tag = 'scratch operand']
  %s0 = inlined_call_operand.vmem [shape: bf16[2,608,5], index: 0, kind: input, shape index: {}]
  %s1 = inlined_call_operand.vmem [shape: bf16[128,128], index: 1, kind: input, shape index: {}]
  %s2 = inlined_call_operand.vmem [shape: bf16[9,128,128], index: 2, kind: input, shape index: {}]
  %s3 = inlined_call_operand.hbm [shape: f32[1,128], index: 3, kind: input, shape index: {}]
  %s4 = inlined_call_operand.hbm [shape: bf16[128,128], index: 4, kind: input, shape index: {}]
  %s5 = inlined_call_operand.vmem [shape: f32[1,128], index: 5, kind: input, shape index: {}]
  %s6 = inlined_call_operand.hbm [shape: bf16[128,128], index: 6, kind: input, shape index: {}]
  %s7 = inlined_call_operand.hbm [shape: bf16[2,8,512], index: 7, kind: output, shape index: {}]
  %s8 = sld [smem:[#allocation0]]
  $region73: #{tpu_custom_call.1} parent=0
    _
  %s10 = ssub.s32 1, %s8
  %s11 = scalar_select 0, %s10, %s8
  $region1: #{tpu_custom_call.1} parent=0
    #allocation3 [shape = 'u8[512]{0}', space=vmem, size = 0x400, scoped, tag = 'input window, operand 3, single buffered']
    #allocation4 [shape = 's32[2]{0}', space=sflag, size = 0x8, scoped, tag = 'scoped memory for tpu_custom_call.1']
    #allocation5 [shape = 's32[2]{0}', space=sflag, size = 0x8, scoped, tag = 'scoped memory for tpu_custom_call.1']
    #allocation6 [shape = 'u8[32768]{0}', space=vmem, size = 0x8000, scoped, tag = 'input window, operand 4, single buffered']
    #allocation7 [shape = 's32[1]{0}', space=sflag, size = 0x4, scoped, tag = 'scoped memory for tpu_custom_call.1']
    #allocation8 [shape = 'u8[32768]{0}', space=vmem, size = 0x8000, scoped, tag = 'input window, operand 6, single buffered']
    #allocation9 [shape = 'u8[16384]{0}', space=vmem, size = 0x4000, scoped, tag = 'output window, operand 0']
    %12 = vsyncpa [#allocation4], 0
    %13 = vsyncpa [#allocation7], 0
    %14 = vsyncpa [#allocation5], 0
    %s15 = scalar_lea.sflag [#allocation5], 1
    %16 = vsyncpa %s15, 0
    loop: start=0, step=1, limit=4
    $region2: #{tpu_custom_call.1} parent=1 // loop_pre_header
      _
    $region3: #{tpu_custom_call.1} parent=1 // loop_header
      %s18 = sphi 0, %s22
      %p19 = scmp.ge.s32.totalorder %s18, 4
      %s25 = sphi 0, %s37
      %s26 = sphi 0, %s33
      %s27 = sphi 0, %s25
      %s28 = sphi 0, %s26
      %s29 = sphi 0, %s27
      %s30 = sphi 0, %s28
      %s42 = sphi 0, %s44
      %s45 = sphi 0, %s42
      %s46 = sphi 0, %s45
      %s62 = sphi 0, %s46
      %s66 = sphi 0, %s66
      %s68 = sphi 0, %s66
      %s69 = sphi 0, %s68
      %s83 = sphi 0, %s69
      %s87 = sphi 0, %s87
      %s89 = sphi 0, %s87
      %s90 = sphi 0, %s89
      %s104 = sphi 0, %s90
      %s108 = sphi 0, %s108
      %s110 = sphi 0, %s108
      %s111 = sphi 0, %s110
      %s125 = sphi 0, %s111
      %s129 = sphi 0, %s129
      %s131 = sphi 0, %s129
      %s132 = sphi 0, %s131
      %s146 = sphi 0, %s132
      %s150 = sphi 0, %s150
      %s152 = sphi 0, %s150
      %s153 = sphi 0, %s152
      %s167 = sphi 0, %s153
      %s171 = sphi 0, %s171
      %s173 = sphi 0, %s171
      %s174 = sphi 0, %s173
      %s188 = sphi 0, %s174
      %s196 = sphi 0, %s198
      %s199 = sphi 0, %s196
      %s200 = sphi 0, %s199
      %s216 = sphi 0, %s200
    $region4: #{tpu_custom_call.1} parent=1 // loop_header_branch
      %21 = sbr.rel (%p19) target = $region8
    $region5: #{tpu_custom_call.1} parent=1 // loop_body
      %s23 = ssub.s32 %s18, 1
      %s24 = ssub.s32 %s18, 2
      %s31 = sadd.s32 1, %s26
      %p32 = scmp.ge.s32.totalorder %s31, 1
      %s33 = scalar_select %p32, 0, %s31
      %s34 = sadd.s32 1, %s25
      %s35 = scalar_select %p32, %s34, %s25
      %p36 = scmp.ge.s32.totalorder %s35, 2
      %s37 = scalar_select %p36, 0, %s35
      %s38 = sadd.s32 %s25, %s26
      %s39 = sadd.s32 %s37, %s33
      %s40 = ssub.s32 %s38, %s39
      %p41 = scmp.eq.s32.totalorder %s40, 0
      %s43 = sadd.s32 %s42, 1
      %s44 = scalar_select %p41, %s42, %s43
      %p47 = pneg %p41
      %p48 = scmp.eq.s32.totalorder %s18, 1
      %p49 = por %p47, %p48
      %p50 = scmp.ne.s32.totalorder %s42, %s45
      %p51 = scmp.eq.s32.totalorder %s18, 0
      %p52 = por %p50, %p51
      %p53 = scmp.ne.s32.totalorder %s42, %s45
      %p54 = scmp.eq.s32.totalorder %s23, 1
      %p55 = por %p53, %p54
      %p56 = scmp.ne.s32.totalorder %s45, %s46
      %p57 = scmp.eq.s32.totalorder %s23, 0
      %p58 = por %p56, %p57
      %p59 = scmp.ne.s32.totalorder %s45, %s46
      %p60 = scmp.eq.s32.totalorder %s24, 1
      %p61 = por %p59, %p60
      %p63 = scmp.ne.s32.totalorder %s46, %s62
      %p64 = scmp.eq.s32.totalorder %s24, 0
      %p65 = por %p63, %p64
      %s67 = sadd.s32 %s66, 1
      %p70 = scmp.eq.s32.totalorder %s18, 1
      %p71 = scmp.ne.s32.totalorder %s66, %s68
      %p72 = scmp.eq.s32.totalorder %s18, 0
      %p73 = por %p71, %p72
      %p74 = scmp.ne.s32.totalorder %s66, %s68
      %p75 = scmp.eq.s32.totalorder %s23, 1
      %p76 = por %p74, %p75
      %p77 = scmp.ne.s32.totalorder %s68, %s69
      %p78 = scmp.eq.s32.totalorder %s23, 0
      %p79 = por %p77, %p78
      %p80 = scmp.ne.s32.totalorder %s68, %s69
      %p81 = scmp.eq.s32.totalorder %s24, 1
      %p82 = por %p80, %p81
      %p84 = scmp.ne.s32.totalorder %s69, %s83
      %p85 = scmp.eq.s32.totalorder %s24, 0
      %p86 = por %p84, %p85
      %s88 = sadd.s32 %s87, 1
      %p91 = scmp.eq.s32.totalorder %s18, 1
      %p92 = scmp.ne.s32.totalorder %s87, %s89
      %p93 = scmp.eq.s32.totalorder %s18, 0
      %p94 = por %p92, %p93
      %p95 = scmp.ne.s32.totalorder %s87, %s89
      %p96 = scmp.eq.s32.totalorder %s23, 1
      %p97 = por %p95, %p96
      %p98 = scmp.ne.s32.totalorder %s89, %s90
      %p99 = scmp.eq.s32.totalorder %s23, 0
      %p100 = por %p98, %p99
      %p101 = scmp.ne.s32.totalorder %s89, %s90
      %p102 = scmp.eq.s32.totalorder %s24, 1
      %p103 = por %p101, %p102
      %p105 = scmp.ne.s32.totalorder %s90, %s104
      %p106 = scmp.eq.s32.totalorder %s24, 0
      %p107 = por %p105, %p106
      %s109 = sadd.s32 %s108, 1
      %p112 = scmp.eq.s32.totalorder %s18, 1
      %p113 = scmp.ne.s32.totalorder %s108, %s110
      %p114 = scmp.eq.s32.totalorder %s18, 0
      %p115 = por %p113, %p114
      %p116 = scmp.ne.s32.totalorder %s108, %s110
      %p117 = scmp.eq.s32.totalorder %s23, 1
      %p118 = por %p116, %p117
      %p119 = scmp.ne.s32.totalorder %s110, %s111
      %p120 = scmp.eq.s32.totalorder %s23, 0
      %p121 = por %p119, %p120
      %p122 = scmp.ne.s32.totalorder %s110, %s111
      %p123 = scmp.eq.s32.totalorder %s24, 1
      %p124 = por %p122, %p123
      %p126 = scmp.ne.s32.totalorder %s111, %s125
      %p127 = scmp.eq.s32.totalorder %s24, 0
      %p128 = por %p126, %p127
      %s130 = sadd.s32 %s129, 1
      %p133 = scmp.eq.s32.totalorder %s18, 1
      %p134 = scmp.ne.s32.totalorder %s129, %s131
      %p135 = scmp.eq.s32.totalorder %s18, 0
      %p136 = por %p134, %p135
      %p137 = scmp.ne.s32.totalorder %s129, %s131
      %p138 = scmp.eq.s32.totalorder %s23, 1
      %p139 = por %p137, %p138
      %p140 = scmp.ne.s32.totalorder %s131, %s132
      %p141 = scmp.eq.s32.totalorder %s23, 0
      %p142 = por %p140, %p141
      %p143 = scmp.ne.s32.totalorder %s131, %s132
      %p144 = scmp.eq.s32.totalorder %s24, 1
      %p145 = por %p143, %p144
      %p147 = scmp.ne.s32.totalorder %s132, %s146
      %p148 = scmp.eq.s32.totalorder %s24, 0
      %p149 = por %p147, %p148
      %s151 = sadd.s32 %s150, 1
      %p154 = scmp.eq.s32.totalorder %s18, 1
      %p155 = scmp.ne.s32.totalorder %s150, %s152
      %p156 = scmp.eq.s32.totalorder %s18, 0
      %p157 = por %p155, %p156
      %p158 = scmp.ne.s32.totalorder %s150, %s152
      %p159 = scmp.eq.s32.totalorder %s23, 1
      %p160 = por %p158, %p159
      %p161 = scmp.ne.s32.totalorder %s152, %s153
      %p162 = scmp.eq.s32.totalorder %s23, 0
      %p163 = por %p161, %p162
      %p164 = scmp.ne.s32.totalorder %s152, %s153
      %p165 = scmp.eq.s32.totalorder %s24, 1
      %p166 = por %p164, %p165
      %p168 = scmp.ne.s32.totalorder %s153, %s167
      %p169 = scmp.eq.s32.totalorder %s24, 0
      %p170 = por %p168, %p169
      %s172 = sadd.s32 %s171, 1
      %p175 = scmp.eq.s32.totalorder %s18, 1
      %p176 = scmp.ne.s32.totalorder %s171, %s173
      %p177 = scmp.eq.s32.totalorder %s18, 0
      %p178 = por %p176, %p177
      %p179 = scmp.ne.s32.totalorder %s171, %s173
      %p180 = scmp.eq.s32.totalorder %s23, 1
      %p181 = por %p179, %p180
      %p182 = scmp.ne.s32.totalorder %s173, %s174
      %p183 = scmp.eq.s32.totalorder %s23, 0
      %p184 = por %p182, %p183
      %p185 = scmp.ne.s32.totalorder %s173, %s174
      %p186 = scmp.eq.s32.totalorder %s24, 1
      %p187 = por %p185, %p186
      %p189 = scmp.ne.s32.totalorder %s174, %s188
      %p190 = scmp.eq.s32.totalorder %s24, 0
      %p191 = por %p189, %p190
      %s192 = sadd.s32 %s25, %s26
      %s193 = sadd.s32 %s37, %s33
      %s194 = ssub.s32 %s192, %s193
      %p195 = scmp.eq.s32.totalorder %s194, 0
      %s197 = sadd.s32 %s196, 1
      %s198 = scalar_select %p195, %s196, %s197
      %p201 = pneg %p195
      %p202 = scmp.eq.s32.totalorder %s18, 1
      %p203 = por %p201, %p202
      %p204 = scmp.ne.s32.totalorder %s196, %s199
      %p205 = scmp.eq.s32.totalorder %s18, 0
      %p206 = por %p204, %p205
      %p207 = scmp.ne.s32.totalorder %s196, %s199
      %p208 = scmp.eq.s32.totalorder %s23, 1
      %p209 = por %p207, %p208
      %p210 = scmp.ne.s32.totalorder %s199, %s200
      %p211 = scmp.eq.s32.totalorder %s23, 0
      %p212 = por %p210, %p211
      %p213 = scmp.ne.s32.totalorder %s199, %s200
      %p214 = scmp.eq.s32.totalorder %s24, 1
      %p215 = por %p213, %p214
      %p217 = scmp.ne.s32.totalorder %s200, %s216
      %p218 = scmp.eq.s32.totalorder %s24, 0
      %p219 = por %p217, %p218
      %p220 = scmp.le.s32.totalorder 1, %s18
      %p221 = scmp.lt.s32.totalorder %s18, 3
      %p222 = pnand %p220, %p221
      %p223 = pneg %p222
      // Predicated region
      $region9: #{tpu_custom_call.1} parent=5 // pred_check
        _
      $region10: #{tpu_custom_call.1} parent=5 // pred_check_branch
        %225 = sbr.rel (%p222) target = $region12
      $region11: #{tpu_custom_call.1} parent=5 // pred_region
        %s226 = ssub.s32 %s18, 1
        // Predicated region
        $region13: #{tpu_custom_call.1} parent=11 // pred_check
          %p227 = pneg %p79
        $region14: #{tpu_custom_call.1} parent=11 // pred_check_branch
          %229 = sbr.rel (%p227) target = $region16
        $region15: #{tpu_custom_call.1} parent=11 // pred_region
          _
        $region16: #{tpu_custom_call.1} parent=11 // pred_fallthru
          _
        // Predicated region
        $region17: #{tpu_custom_call.1} parent=11 // pred_check
          %p230 = pneg %p100
        $region18: #{tpu_custom_call.1} parent=11 // pred_check_branch
          %232 = sbr.rel (%p230) target = $region20
        $region19: #{tpu_custom_call.1} parent=11 // pred_region
          _
        $region20: #{tpu_custom_call.1} parent=11 // pred_fallthru
          _
        // Predicated region
        $region21: #{tpu_custom_call.1} parent=11 // pred_check
          %p233 = pneg %p121
        $region22: #{tpu_custom_call.1} parent=11 // pred_check_branch
          %235 = sbr.rel (%p233) target = $region24
        $region23: #{tpu_custom_call.1} parent=11 // pred_region
          %s237 = ssub.s32 16, 16
          %238 = vsyncadd [#allocation4], %s237
          %s240 = sshll.u32 [#allocation3], 4
          %s241 = int_to_ptr.vmem [resolvable:$true] %s240
          %243 = dma.hbm_to_vmem [thread:$0]  %s3, 16, %s241, [#allocation4]
        $region24: #{tpu_custom_call.1} parent=11 // pred_fallthru
          _
        // Predicated region
        $region25: #{tpu_custom_call.1} parent=11 // pred_check
          %p244 = pneg %p142
        $region26: #{tpu_custom_call.1} parent=11 // pred_check_branch
          %246 = sbr.rel (%p244) target = $region28
        $region27: #{tpu_custom_call.1} parent=11 // pred_region
          %s248 = ssub.s32 1024, 1024
          %249 = vsyncadd [#allocation7], %s248
          %s250 = sshll.u32 [#allocation6], 4
          %s251 = int_to_ptr.vmem [resolvable:$true] %s250
          %256 = dma.hbm_to_vmem [thread:$0]  %s4, 1024, %s251, [#allocation7], 64, 64, 4
        $region28: #{tpu_custom_call.1} parent=11 // pred_fallthru
          _
        // Predicated region
        $region29: #{tpu_custom_call.1} parent=11 // pred_check
          %p257 = pneg %p163
        $region30: #{tpu_custom_call.1} parent=11 // pred_check_branch
          %259 = sbr.rel (%p257) target = $region32
        $region31: #{tpu_custom_call.1} parent=11 // pred_region
          _
        $region32: #{tpu_custom_call.1} parent=11 // pred_fallthru
          _
        // Predicated region
        $region33: #{tpu_custom_call.1} parent=11 // pred_check
          %p260 = pneg %p184
        $region34: #{tpu_custom_call.1} parent=11 // pred_check_branch
          %262 = sbr.rel (%p260) target = $region36
        $region35: #{tpu_custom_call.1} parent=11 // pred_region
          %s264 = ssub.s32 1024, 1024
          %265 = vsyncadd [#allocation7], %s264
          %s266 = sshll.u32 [#allocation8], 4
          %s267 = int_to_ptr.vmem [resolvable:$true] %s266
          %272 = dma.hbm_to_vmem [thread:$0]  %s6, 1024, %s267, [#allocation7], 64, 64, 4
        $region36: #{tpu_custom_call.1} parent=11 // pred_fallthru
          _
      $region12: #{tpu_custom_call.1} parent=5 // pred_fallthru
        _
      %p273 = scmp.lt.s32.totalorder %s18, 2
      // Predicated region
      $region37: #{tpu_custom_call.1} parent=5 // pred_check
        %p274 = pneg %p273
      $region38: #{tpu_custom_call.1} parent=5 // pred_check_branch
        %276 = sbr.rel (%p274) target = $region40
      $region39: #{tpu_custom_call.1} parent=5 // pred_region
        // Predicated region
        $region41: #{tpu_custom_call.1} parent=39 // pred_check
          %p277 = pneg %p52
        $region42: #{tpu_custom_call.1} parent=39 // pred_check_branch
          %279 = sbr.rel (%p277) target = $region44
        $region43: #{tpu_custom_call.1} parent=39 // pred_region
          %s280 = sadd.s32 %s25, %s26
          %p281 = scmp.lt.s32.totalorder %s280, 1
          %s282 = scalar_select %p281, %s280, 1
          %s283 = smul.addr %s282, 76
          %s284 = smul.addr %s283, 4
          %s285 = scalar_lea.vmem %s0, %s284
          %s286 = sadd.s32 %s25, %s26
        $region44: #{tpu_custom_call.1} parent=39 // pred_fallthru
          _
      $region40: #{tpu_custom_call.1} parent=5 // pred_fallthru
        _
      %p287 = scmp.le.s32.totalorder 1, %s18
      %p288 = scmp.lt.s32.totalorder %s18, 3
      %p289 = pnand %p287, %p288
      %p290 = pneg %p289
      // Predicated region
      $region45: #{tpu_custom_call.1} parent=5 // pred_check
        _
      $region46: #{tpu_custom_call.1} parent=5 // pred_check_branch
        %292 = sbr.rel (%p289) target = $region48
      $region47: #{tpu_custom_call.1} parent=5 // pred_region
        %s293 = ssub.s32 %s18, 1
        // Predicated region
        $region49: #{tpu_custom_call.1} parent=47 // pred_check
          %p294 = pneg %p121
        $region50: #{tpu_custom_call.1} parent=47 // pred_check_branch
          %296 = sbr.rel (%p294) target = $region52
        $region51: #{tpu_custom_call.1} parent=47 // pred_region
          %297 = dma.done [#allocation4], 16
        $region52: #{tpu_custom_call.1} parent=47 // pred_fallthru
          _
        // Predicated region
        $region53: #{tpu_custom_call.1} parent=47 // pred_check
          %p298 = pneg %p142
        $region54: #{tpu_custom_call.1} parent=47 // pred_check_branch
          %300 = sbr.rel (%p298) target = $region56
        $region55: #{tpu_custom_call.1} parent=47 // pred_region
          %301 = dma.done [#allocation7], 1024
        $region56: #{tpu_custom_call.1} parent=47 // pred_fallthru
          _
        // Predicated region
        $region57: #{tpu_custom_call.1} parent=47 // pred_check
          %p302 = pneg %p184
        $region58: #{tpu_custom_call.1} parent=47 // pred_check_branch
          %304 = sbr.rel (%p302) target = $region60
        $region59: #{tpu_custom_call.1} parent=47 // pred_region
          %305 = dma.done [#allocation7], 1024
        $region60: #{tpu_custom_call.1} parent=47 // pred_fallthru
          _
        %s306 = sadd.s32 %s27, %s28
        %p307 = scmp.lt.s32.totalorder %s306, 1
        %s308 = scalar_select %p307, %s306, 1
        %s309 = smul.addr %s308, 76
        %s310 = smul.addr %s309, 4
        %s311 = scalar_lea.vmem %s0, %s310
        %p312 = pneg %p58
        %p313 = pneg %p55
        %p314 = pneg %p79
        %p315 = pneg %p76
        %p316 = pneg %p100
        %p317 = pneg %p97
        %p318 = pneg %p121
        %p319 = pneg %p118
        %p320 = pneg %p142
        %p321 = pneg %p139
        %p322 = pneg %p163
        %p323 = pneg %p160
        %p324 = pneg %p184
        %p325 = pneg %p181
        %p326 = pneg %p212
        %p327 = pneg %p209
        %s328 = sand.u32 %s199, 1
        %s329 = scalar_lea.sflag [#allocation5], %s328
        %s330 = sand.u32 %s199, 1
        %s331 = smul.addr %s330, 16
        %s332 = scalar_lea.vmem [#allocation9], %s331
        %s333 = sadd.s32 %s27, %s28
        %p334 = scmp.lt.s32.totalorder %s333, 1
        %s335 = scalar_select %p334, %s333, 1
        %s336 = smul.addr %s335, 76
        %s337 = smul.addr %s336, 4
        %s338 = scalar_lea.vmem %s0, %s337
        %s339 = sadd.s32 %s27, %s28
        %s340 = sadd.s32 %s27, %s28
        %342 = vst [vmem:[#allocation2] sm:$0xff] 0
        %343 = vst [vmem:[#allocation2 + $0x8] sm:$0xff] 0
        %344 = vst [vmem:[#allocation2 + $0x10] sm:$0xff] 0
        %345 = vst [vmem:[#allocation2 + $0x18] sm:$0xff] 0
        %346 = vst [vmem:[#allocation2 + $0x20] sm:$0xff] 0
        %347 = vst [vmem:[#allocation2 + $0x28] sm:$0xff] 0
        %348 = vst [vmem:[#allocation2 + $0x30] sm:$0xff] 0
        %349 = vst [vmem:[#allocation2 + $0x38] sm:$0xff] 0
        %350 = vst [vmem:[#allocation2 + $0x40] sm:$0xff] 0
        %351 = vst [vmem:[#allocation2 + $0x48] sm:$0xff] 0
        %352 = vst [vmem:[#allocation2 + $0x50] sm:$0xff] 0
        %353 = vst [vmem:[#allocation2 + $0x58] sm:$0xff] 0
        %354 = vst [vmem:[#allocation2 + $0x60] sm:$0xff] 0
        %355 = vst [vmem:[#allocation2 + $0x68] sm:$0xff] 0
        %356 = vst [vmem:[#allocation2 + $0x70] sm:$0xff] 0
        %357 = vst [vmem:[#allocation2 + $0x78] sm:$0xff] 0
        %358 = vst [vmem:[#allocation2 + $0x80] sm:$0xff] 0
        %359 = vst [vmem:[#allocation2 + $0x88] sm:$0xff] 0
        %360 = vst [vmem:[#allocation2 + $0x90] sm:$0xff] 0
        %361 = vst [vmem:[#allocation2 + $0x98] sm:$0xff] 0
        %362 = vst [vmem:[#allocation2 + $0xa0] sm:$0xff] 0
        %363 = vst [vmem:[#allocation2 + $0xa8] sm:$0xff] 0
        %364 = vst [vmem:[#allocation2 + $0xb0] sm:$0xff] 0
        %365 = vst [vmem:[#allocation2 + $0xb8] sm:$0xff] 0
        %366 = vst [vmem:[#allocation2 + $0xc0] sm:$0xff] 0
        %367 = vst [vmem:[#allocation2 + $0xc8] sm:$0xff] 0
        %368 = vst [vmem:[#allocation2 + $0xd0] sm:$0xff] 0
        %369 = vst [vmem:[#allocation2 + $0xd8] sm:$0xff] 0
        %370 = vst [vmem:[#allocation2 + $0xe0] sm:$0xff] 0
        %371 = vst [vmem:[#allocation2 + $0xe8] sm:$0xff] 0
        %372 = vst [vmem:[#allocation2 + $0xf0] sm:$0xff] 0
        %373 = vst [vmem:[#allocation2 + $0xf8] sm:$0xff] 0
        %374 = vst [vmem:[#allocation2 + $0x100] sm:$0xff] 0
        %375 = vst [vmem:[#allocation2 + $0x108] sm:$0xff] 0
        %376 = vst [vmem:[#allocation2 + $0x110] sm:$0xff] 0
        %377 = vst [vmem:[#allocation2 + $0x118] sm:$0xff] 0
        %378 = vst [vmem:[#allocation2 + $0x120] sm:$0xff] 0
        %379 = vst [vmem:[#allocation2 + $0x128] sm:$0xff] 0
        %v380 = vld [vmem:[%s338] sm:$0xf]
        %v381 = vld [vmem:[%s338 + $0x4] sm:$0xf]
        %v382 = vld [vmem:[%s338 + $0x8] sm:$0xf]
        %v383 = vld [vmem:[%s338 + $0xc] sm:$0xf]
        %v384 = vld [vmem:[%s338 + $0x10] sm:$0xf]
        %v385 = vld [vmem:[%s338 + $0x14] sm:$0xf]
        %v386 = vld [vmem:[%s338 + $0x18] sm:$0xf]
        %v387 = vld [vmem:[%s338 + $0x1c] sm:$0xf]
        %v388 = vld [vmem:[%s338 + $0x20] sm:$0xf]
        %v389 = vld [vmem:[%s338 + $0x24] sm:$0xf]
        %v390 = vld [vmem:[%s338 + $0x28] sm:$0xf]
        %v391 = vld [vmem:[%s338 + $0x2c] sm:$0xf]
        %v392 = vld [vmem:[%s338 + $0x30] sm:$0xf]
        %v393 = vld [vmem:[%s338 + $0x34] sm:$0xf]
        %v394 = vld [vmem:[%s338 + $0x38] sm:$0xf]
        %v395 = vld [vmem:[%s338 + $0x3c] sm:$0xf]
        %v396 = vld [vmem:[%s338 + $0x40] sm:$0xf]
        %v397 = vld [vmem:[%s338 + $0x44] sm:$0xf]
        %v398 = vld [vmem:[%s338 + $0x48] sm:$0xf]
        %v399 = vld [vmem:[%s338 + $0x4c] sm:$0xf]
        %v400 = vld [vmem:[%s338 + $0x50] sm:$0xf]
        %v401 = vld [vmem:[%s338 + $0x54] sm:$0xf]
        %v402 = vld [vmem:[%s338 + $0x58] sm:$0xf]
        %v403 = vld [vmem:[%s338 + $0x5c] sm:$0xf]
        %v404 = vld [vmem:[%s338 + $0x60] sm:$0xf]
        %v405 = vld [vmem:[%s338 + $0x64] sm:$0xf]
        %v406 = vld [vmem:[%s338 + $0x68] sm:$0xf]
        %v407 = vld [vmem:[%s338 + $0x6c] sm:$0xf]
        %v408 = vld [vmem:[%s338 + $0x70] sm:$0xf]
        %v409 = vld [vmem:[%s338 + $0x74] sm:$0xf]
        %v410 = vld [vmem:[%s338 + $0x78] sm:$0xf]
        %v411 = vld [vmem:[%s338 + $0x7c] sm:$0xf]
        %v412 = vld [vmem:[%s338 + $0x80] sm:$0xf]
        %v413 = vld [vmem:[%s338 + $0x84] sm:$0xf]
        %v414 = vld [vmem:[%s338 + $0x88] sm:$0xf]
        %v415 = vld [vmem:[%s338 + $0x8c] sm:$0xf]
        %v416 = vld [vmem:[%s338 + $0x90] sm:$0xf]
        %v417 = vld [vmem:[%s338 + $0x94] sm:$0xf]
        %v418 = vld [vmem:[%s338 + $0x98] sm:$0xf]
        %v419 = vld [vmem:[%s338 + $0x9c] sm:$0xf]
        %v420 = vld [vmem:[%s338 + $0xa0] sm:$0xf]
        %v421 = vld [vmem:[%s338 + $0xa4] sm:$0xf]
        %v422 = vld [vmem:[%s338 + $0xa8] sm:$0xf]
        %v423 = vld [vmem:[%s338 + $0xac] sm:$0xf]
        %v424 = vld [vmem:[%s338 + $0xb0] sm:$0xf]
        %v425 = vld [vmem:[%s338 + $0xb4] sm:$0xf]
        %v426 = vld [vmem:[%s338 + $0xb8] sm:$0xf]
        %v427 = vld [vmem:[%s338 + $0xbc] sm:$0xf]
        %v428 = vld [vmem:[%s338 + $0xc0] sm:$0xf]
        %v429 = vld [vmem:[%s338 + $0xc4] sm:$0xf]
        %v430 = vld [vmem:[%s338 + $0xc8] sm:$0xf]
        %v431 = vld [vmem:[%s338 + $0xcc] sm:$0xf]
        %v432 = vld [vmem:[%s338 + $0xd0] sm:$0xf]
        %v433 = vld [vmem:[%s338 + $0xd4] sm:$0xf]
        %v434 = vld [vmem:[%s338 + $0xd8] sm:$0xf]
        %v435 = vld [vmem:[%s338 + $0xdc] sm:$0xf]
        %v436 = vld [vmem:[%s338 + $0xe0] sm:$0xf]
        %v437 = vld [vmem:[%s338 + $0xe4] sm:$0xf]
        %v438 = vld [vmem:[%s338 + $0xe8] sm:$0xf]
        %v439 = vld [vmem:[%s338 + $0xec] sm:$0xf]
        %v440 = vld [vmem:[%s338 + $0xf0] sm:$0xf]
        %v441 = vld [vmem:[%s338 + $0xf4] sm:$0xf]
        %v442 = vld [vmem:[%s338 + $0xf8] sm:$0xf]
        %v443 = vld [vmem:[%s338 + $0xfc] sm:$0xf]
        %v444 = vld [vmem:[%s338 + $0x100] sm:$0xf]
        %v445 = vld [vmem:[%s338 + $0x104] sm:$0xf]
        %v446 = vld [vmem:[%s338 + $0x108] sm:$0xf]
        %v447 = vld [vmem:[%s338 + $0x10c] sm:$0xf]
        %v448 = vld [vmem:[%s338 + $0x110] sm:$0xf]
        %v449 = vld [vmem:[%s338 + $0x114] sm:$0xf]
        %v450 = vld [vmem:[%s338 + $0x118] sm:$0xf]
        %v451 = vld [vmem:[%s338 + $0x11c] sm:$0xf]
        %v452 = vld [vmem:[%s338 + $0x120] sm:$0xf]
        %v453 = vld [vmem:[%s338 + $0x124] sm:$0xf]
        %v454 = vld [vmem:[%s338 + $0x128] sm:$0xf]
        %v455 = vld [vmem:[%s338 + $0x12c] sm:$0xf]
        %v532 = vunpack.c.l.b16 %v380
        %v533 = vunpack.c.l.b16 %v381
        %v534 = vunpack.c.l.b16 %v382
        %v535 = vunpack.c.l.b16 %v383
        %v536 = vunpack.c.l.b16 %v384
        %v537 = vunpack.c.l.b16 %v385
        %v538 = vunpack.c.l.b16 %v386
        %v539 = vunpack.c.l.b16 %v387
        %v540 = vunpack.c.l.b16 %v388
        %v541 = vunpack.c.l.b16 %v389
        %v542 = vunpack.c.l.b16 %v390
        %v543 = vunpack.c.l.b16 %v391
        %v544 = vunpack.c.l.b16 %v392
        %v545 = vunpack.c.l.b16 %v393
        %v546 = vunpack.c.l.b16 %v394
        %v547 = vunpack.c.l.b16 %v395
        %v548 = vunpack.c.l.b16 %v396
        %v549 = vunpack.c.l.b16 %v397
        %v550 = vunpack.c.l.b16 %v398
        %v551 = vunpack.c.l.b16 %v399
        %v552 = vunpack.c.l.b16 %v400
        %v553 = vunpack.c.l.b16 %v401
        %v554 = vunpack.c.l.b16 %v402
        %v555 = vunpack.c.l.b16 %v403
        %v556 = vunpack.c.l.b16 %v404
        %v557 = vunpack.c.l.b16 %v405
        %v558 = vunpack.c.l.b16 %v406
        %v559 = vunpack.c.l.b16 %v407
        %v560 = vunpack.c.l.b16 %v408
        %v561 = vunpack.c.l.b16 %v409
        %v562 = vunpack.c.l.b16 %v410
        %v563 = vunpack.c.l.b16 %v411
        %v564 = vunpack.c.l.b16 %v412
        %v565 = vunpack.c.l.b16 %v413
        %v566 = vunpack.c.l.b16 %v414
        %v567 = vunpack.c.l.b16 %v415
        %v568 = vunpack.c.l.b16 %v416
        %v569 = vunpack.c.l.b16 %v417
        %v570 = vunpack.c.l.b16 %v418
        %v571 = vunpack.c.l.b16 %v419
        %v572 = vunpack.c.l.b16 %v420
        %v573 = vunpack.c.l.b16 %v421
        %v574 = vunpack.c.l.b16 %v422
        %v575 = vunpack.c.l.b16 %v423
        %v576 = vunpack.c.l.b16 %v424
        %v577 = vunpack.c.l.b16 %v425
        %v578 = vunpack.c.l.b16 %v426
        %v579 = vunpack.c.l.b16 %v427
        %v580 = vunpack.c.l.b16 %v428
        %v581 = vunpack.c.l.b16 %v429
        %v582 = vunpack.c.l.b16 %v430
        %v583 = vunpack.c.l.b16 %v431
        %v584 = vunpack.c.l.b16 %v432
        %v585 = vunpack.c.l.b16 %v433
        %v586 = vunpack.c.l.b16 %v434
        %v587 = vunpack.c.l.b16 %v435
        %v588 = vunpack.c.l.b16 %v436
        %v589 = vunpack.c.l.b16 %v437
        %v590 = vunpack.c.l.b16 %v438
        %v591 = vunpack.c.l.b16 %v439
        %v592 = vunpack.c.l.b16 %v440
        %v593 = vunpack.c.l.b16 %v441
        %v594 = vunpack.c.l.b16 %v442
        %v595 = vunpack.c.l.b16 %v443
        %v596 = vunpack.c.l.b16 %v444
        %v597 = vunpack.c.l.b16 %v445
        %v598 = vunpack.c.l.b16 %v446
        %v599 = vunpack.c.l.b16 %v447
        %v600 = vunpack.c.l.b16 %v448
        %v601 = vunpack.c.l.b16 %v449
        %v602 = vunpack.c.l.b16 %v450
        %v603 = vunpack.c.l.b16 %v451
        %v604 = vunpack.c.l.b16 %v452
        %v605 = vunpack.c.l.b16 %v453
        %v606 = vunpack.c.l.b16 %v454
        %v607 = vunpack.c.l.b16 %v455
        %v608 = vpack.c.b16 %v533, %v532
        %v609 = vpack.c.b16 %v535, %v534
        %v610 = vpack.c.b16 %v537, %v536
        %v611 = vpack.c.b16 %v539, %v538
        %v612 = vpack.c.b16 %v541, %v540
        %v613 = vpack.c.b16 %v543, %v542
        %v614 = vpack.c.b16 %v545, %v544
        %v615 = vpack.c.b16 %v547, %v546
        %v616 = vpack.c.b16 %v549, %v548
        %v617 = vpack.c.b16 %v551, %v550
        %v618 = vpack.c.b16 %v553, %v552
        %v619 = vpack.c.b16 %v555, %v554
        %v620 = vpack.c.b16 %v557, %v556
        %v621 = vpack.c.b16 %v559, %v558
        %v622 = vpack.c.b16 %v561, %v560
        %v623 = vpack.c.b16 %v563, %v562
        %v624 = vpack.c.b16 %v565, %v564
        %v625 = vpack.c.b16 %v567, %v566
        %v626 = vpack.c.b16 %v569, %v568
        %v627 = vpack.c.b16 %v571, %v570
        %v628 = vpack.c.b16 %v573, %v572
        %v629 = vpack.c.b16 %v575, %v574
        %v630 = vpack.c.b16 %v577, %v576
        %v631 = vpack.c.b16 %v579, %v578
        %v632 = vpack.c.b16 %v581, %v580
        %v633 = vpack.c.b16 %v583, %v582
        %v634 = vpack.c.b16 %v585, %v584
        %v635 = vpack.c.b16 %v587, %v586
        %v636 = vpack.c.b16 %v589, %v588
        %v637 = vpack.c.b16 %v591, %v590
        %v638 = vpack.c.b16 %v593, %v592
        %v639 = vpack.c.b16 %v595, %v594
        %v640 = vpack.c.b16 %v597, %v596
        %v641 = vpack.c.b16 %v599, %v598
        %v642 = vpack.c.b16 %v601, %v600
        %v643 = vpack.c.b16 %v603, %v602
        %v644 = vpack.c.b16 %v605, %v604
        %v645 = vpack.c.b16 %v607, %v606
        %vm684 = vcmask 39936
        %685 = vst.msk [vmem:[#allocation2] sm:$0xff] %vm684, %v608
        %686 = vst.msk [vmem:[#allocation2 + $0x8] sm:$0xff] %vm684, %v609
        %687 = vst.msk [vmem:[#allocation2 + $0x10] sm:$0xff] %vm684, %v610
        %688 = vst.msk [vmem:[#allocation2 + $0x18] sm:$0xff] %vm684, %v611
        %689 = vst.msk [vmem:[#allocation2 + $0x20] sm:$0xff] %vm684, %v612
        %690 = vst.msk [vmem:[#allocation2 + $0x28] sm:$0xff] %vm684, %v613
        %691 = vst.msk [vmem:[#allocation2 + $0x30] sm:$0xff] %vm684, %v614
        %692 = vst.msk [vmem:[#allocation2 + $0x38] sm:$0xff] %vm684, %v615
        %693 = vst.msk [vmem:[#allocation2 + $0x40] sm:$0xff] %vm684, %v616
        %694 = vst.msk [vmem:[#allocation2 + $0x48] sm:$0xff] %vm684, %v617
        %695 = vst.msk [vmem:[#allocation2 + $0x50] sm:$0xff] %vm684, %v618
        %696 = vst.msk [vmem:[#allocation2 + $0x58] sm:$0xff] %vm684, %v619
        %697 = vst.msk [vmem:[#allocation2 + $0x60] sm:$0xff] %vm684, %v620
        %698 = vst.msk [vmem:[#allocation2 + $0x68] sm:$0xff] %vm684, %v621
        %699 = vst.msk [vmem:[#allocation2 + $0x70] sm:$0xff] %vm684, %v622
        %700 = vst.msk [vmem:[#allocation2 + $0x78] sm:$0xff] %vm684, %v623
        %701 = vst.msk [vmem:[#allocation2 + $0x80] sm:$0xff] %vm684, %v624
        %702 = vst.msk [vmem:[#allocation2 + $0x88] sm:$0xff] %vm684, %v625
        %703 = vst.msk [vmem:[#allocation2 + $0x90] sm:$0xff] %vm684, %v626
        %704 = vst.msk [vmem:[#allocation2 + $0x98] sm:$0xff] %vm684, %v627
        %705 = vst.msk [vmem:[#allocation2 + $0xa0] sm:$0xff] %vm684, %v628
        %706 = vst.msk [vmem:[#allocation2 + $0xa8] sm:$0xff] %vm684, %v629
        %707 = vst.msk [vmem:[#allocation2 + $0xb0] sm:$0xff] %vm684, %v630
        %708 = vst.msk [vmem:[#allocation2 + $0xb8] sm:$0xff] %vm684, %v631
        %709 = vst.msk [vmem:[#allocation2 + $0xc0] sm:$0xff] %vm684, %v632
        %710 = vst.msk [vmem:[#allocation2 + $0xc8] sm:$0xff] %vm684, %v633
        %711 = vst.msk [vmem:[#allocation2 + $0xd0] sm:$0xff] %vm684, %v634
        %712 = vst.msk [vmem:[#allocation2 + $0xd8] sm:$0xff] %vm684, %v635
        %713 = vst.msk [vmem:[#allocation2 + $0xe0] sm:$0xff] %vm684, %v636
        %714 = vst.msk [vmem:[#allocation2 + $0xe8] sm:$0xff] %vm684, %v637
        %715 = vst.msk [vmem:[#allocation2 + $0xf0] sm:$0xff] %vm684, %v638
        %716 = vst.msk [vmem:[#allocation2 + $0xf8] sm:$0xff] %vm684, %v639
        %717 = vst.msk [vmem:[#allocation2 + $0x100] sm:$0xff] %vm684, %v640
        %718 = vst.msk [vmem:[#allocation2 + $0x108] sm:$0xff] %vm684, %v641
        %719 = vst.msk [vmem:[#allocation2 + $0x110] sm:$0xff] %vm684, %v642
        %720 = vst.msk [vmem:[#allocation2 + $0x118] sm:$0xff] %vm684, %v643
        %721 = vst.msk [vmem:[#allocation2 + $0x120] sm:$0xff] %vm684, %v644
        %722 = vst.msk [vmem:[#allocation2 + $0x128] sm:$0xff] %vm684, %v645
        %v723 = vld [vmem:[#allocation2] sm:$0xff]
        %v724 = vld [vmem:[#allocation2 + $0x8] sm:$0xff]
        %v725 = vld [vmem:[#allocation2 + $0x10] sm:$0xff]
        %v726 = vld [vmem:[#allocation2 + $0x18] sm:$0xff]
        %v727 = vld [vmem:[#allocation2 + $0x20] sm:$0xff]
        %v728 = vld [vmem:[#allocation2 + $0x28] sm:$0xff]
        %v729 = vld [vmem:[#allocation2 + $0x30] sm:$0xff]
        %v730 = vld [vmem:[#allocation2 + $0x38] sm:$0xff]
        %v731 = vld [vmem:[#allocation2 + $0x40] sm:$0xff]
        %v732 = vld [vmem:[#allocation2 + $0x48] sm:$0xff]
        %v733 = vld [vmem:[#allocation2 + $0x50] sm:$0xff]
        %v734 = vld [vmem:[#allocation2 + $0x58] sm:$0xff]
        %v735 = vld [vmem:[#allocation2 + $0x60] sm:$0xff]
        %v736 = vld [vmem:[#allocation2 + $0x68] sm:$0xff]
        %v737 = vld [vmem:[#allocation2 + $0x70] sm:$0xff]
        %v738 = vld [vmem:[#allocation2 + $0x78] sm:$0xff]
        %v739 = vld [vmem:[#allocation2 + $0x80] sm:$0xff]
        %v740 = vld [vmem:[#allocation2 + $0x88] sm:$0xff]
        %v741 = vld [vmem:[#allocation2 + $0x90] sm:$0xff]
        %v742 = vld [vmem:[#allocation2 + $0x98] sm:$0xff]
        %v743 = vld [vmem:[#allocation2 + $0xa0] sm:$0xff]
        %v744 = vld [vmem:[#allocation2 + $0xa8] sm:$0xff]
        %v745 = vld [vmem:[#allocation2 + $0xb0] sm:$0xff]
        %v746 = vld [vmem:[#allocation2 + $0xb8] sm:$0xff]
        %v747 = vld [vmem:[#allocation2 + $0xc0] sm:$0xff]
        %v748 = vld [vmem:[#allocation2 + $0xc8] sm:$0xff]
        %v749 = vld [vmem:[#allocation2 + $0xd0] sm:$0xff]
        %v750 = vld [vmem:[#allocation2 + $0xd8] sm:$0xff]
        %v751 = vld [vmem:[#allocation2 + $0xe0] sm:$0xff]
        %v752 = vld [vmem:[#allocation2 + $0xe8] sm:$0xff]
        %v753 = vld [vmem:[#allocation2 + $0xf0] sm:$0xff]
        %v754 = vld [vmem:[#allocation2 + $0xf8] sm:$0xff]
        %v755 = vld [vmem:[#allocation2 + $0x100] sm:$0xff]
        %v756 = vld [vmem:[#allocation2 + $0x108] sm:$0xff]
        %v757 = vld [vmem:[#allocation2 + $0x110] sm:$0xff]
        %v758 = vld [vmem:[#allocation2 + $0x118] sm:$0xff]
        %v759 = vld [vmem:[#allocation2 + $0x120] sm:$0xff]
        %v760 = vld [vmem:[#allocation2 + $0x128] sm:$0xff]
        %v761 = vld [vmem:[%s1] sm:$0xf]
        %v762 = vld [vmem:[%s1 + $0x4] sm:$0xf]
        %v763 = vld [vmem:[%s1 + $0x8] sm:$0xf]
        %v764 = vld [vmem:[%s1 + $0xc] sm:$0xf]
        %v765 = vld [vmem:[%s1 + $0x10] sm:$0xf]
        %v766 = vld [vmem:[%s1 + $0x14] sm:$0xf]
        %v767 = vld [vmem:[%s1 + $0x18] sm:$0xf]
        %v768 = vld [vmem:[%s1 + $0x1c] sm:$0xf]
        %v769 = vld [vmem:[%s1 + $0x20] sm:$0xf]
        %v770 = vld [vmem:[%s1 + $0x24] sm:$0xf]
        %v771 = vld [vmem:[%s1 + $0x28] sm:$0xf]
        %v772 = vld [vmem:[%s1 + $0x2c] sm:$0xf]
        %v773 = vld [vmem:[%s1 + $0x30] sm:$0xf]
        %v774 = vld [vmem:[%s1 + $0x34] sm:$0xf]
        %v775 = vld [vmem:[%s1 + $0x38] sm:$0xf]
        %v776 = vld [vmem:[%s1 + $0x3c] sm:$0xf]
        %v793 = vunpack.c.l.b16 %v761
        %v794 = vunpack.c.l.b16 %v762
        %v795 = vunpack.c.l.b16 %v763
        %v796 = vunpack.c.l.b16 %v764
        %v797 = vunpack.c.l.b16 %v765
        %v798 = vunpack.c.l.b16 %v766
        %v799 = vunpack.c.l.b16 %v767
        %v800 = vunpack.c.l.b16 %v768
        %v801 = vunpack.c.l.b16 %v769
        %v802 = vunpack.c.l.b16 %v770
        %v803 = vunpack.c.l.b16 %v771
        %v804 = vunpack.c.l.b16 %v772
        %v805 = vunpack.c.l.b16 %v773
        %v806 = vunpack.c.l.b16 %v774
        %v807 = vunpack.c.l.b16 %v775
        %v808 = vunpack.c.l.b16 %v776
        %v809 = vpack.c.b16 %v794, %v793
        %v810 = vpack.c.b16 %v796, %v795
        %v811 = vpack.c.b16 %v798, %v797
        %v812 = vpack.c.b16 %v800, %v799
        %v813 = vpack.c.b16 %v802, %v801
        %v814 = vpack.c.b16 %v804, %v803
        %v815 = vpack.c.b16 %v806, %v805
        %v816 = vpack.c.b16 %v808, %v807
        %825 = vmatprep.subr.bf16.mxu0 0
        %826 = vmatpush1.bf16.msra.mxu0 %v809
        %827 = vmatprep.subr.bf16.mxu0 0
        %828 = vmatpush1.bf16.msra.mxu0 %v810
        %829 = vmatprep.subr.bf16.mxu0 0
        %830 = vmatpush1.bf16.msra.mxu0 %v811
        %831 = vmatprep.subr.bf16.mxu0 0
        %832 = vmatpush1.bf16.msra.mxu0 %v812
        %833 = vmatprep.subr.bf16.mxu0 0
        %834 = vmatpush1.bf16.msra.mxu0 %v813
        %835 = vmatprep.subr.bf16.mxu0 0
        %836 = vmatpush1.bf16.msra.mxu0 %v814
        %837 = vmatprep.subr.bf16.mxu0 0
        %838 = vmatpush1.bf16.msra.mxu0 %v815
        %839 = vmatprep.subr.bf16.mxu0 0
        %840 = vmatpush1.bf16.msra.mxu0 %v816
        %841 = vmatprep.subr.bf16.mxu0 0
        %842 = vmatpush1.bf16.msra.mxu0 0
        %843 = vmatprep.subr.bf16.mxu0 0
        %844 = vmatpush1.bf16.msra.mxu0 0
        %845 = vmatprep.subr.bf16.mxu0 0
        %846 = vmatpush1.bf16.msra.mxu0 0
        %847 = vmatprep.subr.bf16.mxu0 0
        %848 = vmatpush1.bf16.msra.mxu0 0
        %849 = vmatprep.subr.bf16.mxu0 0
        %850 = vmatpush1.bf16.msra.mxu0 0
        %851 = vmatprep.subr.bf16.mxu0 0
        %852 = vmatpush1.bf16.msra.mxu0 0
        %853 = vmatprep.subr.bf16.mxu0 0
        %854 = vmatpush1.bf16.msra.mxu0 0
        %855 = vmatprep.subr.bf16.mxu0 0
        %856 = vmatpush1.bf16.msra.mxu0 0
        %857 = vmatprep.mubr.bf16.mxu0 0
        %858 = vmatmul.mubr.bf16.gmra.mrb[0].mxu0 %v723
        %v859 = vpop.f32.mrb[0].mxu0
        %v860 = vadd.f32 0.0, %v859
        %v861 = vpop.f32.mrb[0].mxu0
        %v862 = vpop.f32.mrb[0].mxu0
        %v863 = vadd.f32 0.0, %v862
        %v864 = vpop.f32.mrb[0].mxu0
        %865 = vmatprep.mubr.bf16.mxu0 0
        %866 = vmatmul.mubr.bf16.gmra.mrb[0].mxu0 %v724
        %v867 = vpop.f32.mrb[0].mxu0
        %v868 = vadd.f32 0.0, %v867
        %v869 = vpop.f32.mrb[0].mxu0
        %v870 = vpop.f32.mrb[0].mxu0
        %v871 = vadd.f32 0.0, %v870
        %v872 = vpop.f32.mrb[0].mxu0
        %873 = vmatprep.mubr.bf16.mxu0 0
        %874 = vmatmul.mubr.bf16.gmra.mrb[0].mxu0 %v725
        %v875 = vpop.f32.mrb[0].mxu0
        %v876 = vadd.f32 0.0, %v875
        %v877 = vpop.f32.mrb[0].mxu0
        %v878 = vpop.f32.mrb[0].mxu0
        %v879 = vadd.f32 0.0, %v878
        %v880 = vpop.f32.mrb[0].mxu0
        %881 = vmatprep.mubr.bf16.mxu0 0
        %882 = vmatmul.mubr.bf16.gmra.mrb[0].mxu0 %v726
        %v883 = vpop.f32.mrb[0].mxu0
        %v884 = vadd.f32 0.0, %v883
        %v885 = vpop.f32.mrb[0].mxu0
        %v886 = vpop.f32.mrb[0].mxu0
        %v887 = vadd.f32 0.0, %v886
        %v888 = vpop.f32.mrb[0].mxu0
        %889 = vmatprep.mubr.bf16.mxu0 0
        %890 = vmatmul.mubr.bf16.gmra.mrb[0].mxu0 %v727
        %v891 = vpop.f32.mrb[0].mxu0
        %v892 = vadd.f32 0.0, %v891
        %v893 = vpop.f32.mrb[0].mxu0
        %v894 = vpop.f32.mrb[0].mxu0
        %v895 = vadd.f32 0.0, %v894
        %v896 = vpop.f32.mrb[0].mxu0
        %897 = vmatprep.mubr.bf16.mxu0 0
        %898 = vmatmul.mubr.bf16.gmra.mrb[0].mxu0 %v728
        %v899 = vpop.f32.mrb[0].mxu0
        %v900 = vadd.f32 0.0, %v899
        %v901 = vpop.f32.mrb[0].mxu0
        %v902 = vpop.f32.mrb[0].mxu0
        %v903 = vadd.f32 0.0, %v902
        %v904 = vpop.f32.mrb[0].mxu0
        %905 = vmatprep.mubr.bf16.mxu0 0
        %906 = vmatmul.mubr.bf16.gmra.mrb[0].mxu0 %v729
        %v907 = vpop.f32.mrb[0].mxu0
        %v908 = vadd.f32 0.0, %v907
        %v909 = vpop.f32.mrb[0].mxu0
        %v910 = vpop.f32.mrb[0].mxu0
        %v911 = vadd.f32 0.0, %v910
        %v912 = vpop.f32.mrb[0].mxu0
        %913 = vmatprep.mubr.bf16.mxu0 0
        %914 = vmatmul.mubr.bf16.gmra.mrb[0].mxu0 %v730
        %v915 = vpop.f32.mrb[0].mxu0
        %v916 = vadd.f32 0.0, %v915
        %v917 = vpop.f32.mrb[0].mxu0
        %v918 = vpop.f32.mrb[0].mxu0
        %v919 = vadd.f32 0.0, %v918
        %v920 = vpop.f32.mrb[0].mxu0
        %921 = vmatprep.mubr.bf16.mxu0 0
        %922 = vmatmul.mubr.bf16.gmra.mrb[0].mxu0 %v731
        %v923 = vpop.f32.mrb[0].mxu0
        %v924 = vadd.f32 0.0, %v923
        %v925 = vpop.f32.mrb[0].mxu0
        %v926 = vpop.f32.mrb[0].mxu0
        %v927 = vadd.f32 0.0, %v926
        %v928 = vpop.f32.mrb[0].mxu0
        %929 = vmatprep.mubr.bf16.mxu0 0
        %930 = vmatmul.mubr.bf16.gmra.mrb[0].mxu0 %v732
        %v931 = vpop.f32.mrb[0].mxu0
        %v932 = vadd.f32 0.0, %v931
        %v933 = vpop.f32.mrb[0].mxu0
        %v934 = vpop.f32.mrb[0].mxu0
        %v935 = vadd.f32 0.0, %v934
        %v936 = vpop.f32.mrb[0].mxu0
        %937 = vmatprep.mubr.bf16.mxu0 0
        %938 = vmatmul.mubr.bf16.gmra.mrb[0].mxu0 %v733
        %v939 = vpop.f32.mrb[0].mxu0
        %v940 = vadd.f32 0.0, %v939
        %v941 = vpop.f32.mrb[0].mxu0
        %v942 = vpop.f32.mrb[0].mxu0
        %v943 = vadd.f32 0.0, %v942
        %v944 = vpop.f32.mrb[0].mxu0
        %945 = vmatprep.mubr.bf16.mxu0 0
        %946 = vmatmul.mubr.bf16.gmra.mrb[0].mxu0 %v734
        %v947 = vpop.f32.mrb[0].mxu0
        %v948 = vadd.f32 0.0, %v947
        %v949 = vpop.f32.mrb[0].mxu0
        %v950 = vpop.f32.mrb[0].mxu0
        %v951 = vadd.f32 0.0, %v950
        %v952 = vpop.f32.mrb[0].mxu0
        %953 = vmatprep.mubr.bf16.mxu0 0
        %954 = vmatmul.mubr.bf16.gmra.mrb[0].mxu0 %v735
        %v955 = vpop.f32.mrb[0].mxu0
        %v956 = vadd.f32 0.0, %v955
        %v957 = vpop.f32.mrb[0].mxu0
        %v958 = vpop.f32.mrb[0].mxu0
        %v959 = vadd.f32 0.0, %v958
        %v960 = vpop.f32.mrb[0].mxu0
        %961 = vmatprep.mubr.bf16.mxu0 0
        %962 = vmatmul.mubr.bf16.gmra.mrb[0].mxu0 %v736
        %v963 = vpop.f32.mrb[0].mxu0
        %v964 = vadd.f32 0.0, %v963
        %v965 = vpop.f32.mrb[0].mxu0
        %v966 = vpop.f32.mrb[0].mxu0
        %v967 = vadd.f32 0.0, %v966
        %v968 = vpop.f32.mrb[0].mxu0
        %969 = vmatprep.mubr.bf16.mxu0 0
        %970 = vmatmul.mubr.bf16.gmra.mrb[0].mxu0 %v737
        %v971 = vpop.f32.mrb[0].mxu0
        %v972 = vadd.f32 0.0, %v971
        %v973 = vpop.f32.mrb[0].mxu0
        %v974 = vpop.f32.mrb[0].mxu0
        %v975 = vadd.f32 0.0, %v974
        %v976 = vpop.f32.mrb[0].mxu0
        %977 = vmatprep.mubr.bf16.mxu0 0
        %978 = vmatmul.mubr.bf16.gmra.mrb[0].mxu0 %v738
        %v979 = vpop.f32.mrb[0].mxu0
        %v980 = vadd.f32 0.0, %v979
        %v981 = vpop.f32.mrb[0].mxu0
        %v982 = vpop.f32.mrb[0].mxu0
        %v983 = vadd.f32 0.0, %v982
        %v984 = vpop.f32.mrb[0].mxu0
        %985 = vmatprep.mubr.bf16.mxu0 0
        %986 = vmatmul.mubr.bf16.gmra.mrb[0].mxu0 %v739
        %v987 = vpop.f32.mrb[0].mxu0
        %v988 = vadd.f32 0.0, %v987
        %v989 = vpop.f32.mrb[0].mxu0
        %v990 = vpop.f32.mrb[0].mxu0
        %v991 = vadd.f32 0.0, %v990
        %v992 = vpop.f32.mrb[0].mxu0
        %993 = vmatprep.mubr.bf16.mxu0 0
        %994 = vmatmul.mubr.bf16.gmra.mrb[0].mxu0 %v740
        %v995 = vpop.f32.mrb[0].mxu0
        %v996 = vadd.f32 0.0, %v995
        %v997 = vpop.f32.mrb[0].mxu0
        %v998 = vpop.f32.mrb[0].mxu0
        %v999 = vadd.f32 0.0, %v998
        %v1000 = vpop.f32.mrb[0].mxu0
        %1001 = vmatprep.mubr.bf16.mxu0 0
        %1002 = vmatmul.mubr.bf16.gmra.mrb[0].mxu0 %v741
        %v1003 = vpop.f32.mrb[0].mxu0
        %v1004 = vadd.f32 0.0, %v1003
        %v1005 = vpop.f32.mrb[0].mxu0
        %v1006 = vpop.f32.mrb[0].mxu0
        %v1007 = vadd.f32 0.0, %v1006
        %v1008 = vpop.f32.mrb[0].mxu0
        %1009 = vmatprep.mubr.bf16.mxu0 0
        %1010 = vmatmul.mubr.bf16.gmra.mrb[0].mxu0 %v742
        %v1011 = vpop.f32.mrb[0].mxu0
        %v1012 = vadd.f32 0.0, %v1011
        %v1013 = vpop.f32.mrb[0].mxu0
        %v1014 = vpop.f32.mrb[0].mxu0
        %v1015 = vadd.f32 0.0, %v1014
        %v1016 = vpop.f32.mrb[0].mxu0
        %1017 = vmatprep.mubr.bf16.mxu0 0
        %1018 = vmatmul.mubr.bf16.gmra.mrb[0].mxu0 %v743
        %v1019 = vpop.f32.mrb[0].mxu0
        %v1020 = vadd.f32 0.0, %v1019
        %v1021 = vpop.f32.mrb[0].mxu0
        %v1022 = vpop.f32.mrb[0].mxu0
        %v1023 = vadd.f32 0.0, %v1022
        %v1024 = vpop.f32.mrb[0].mxu0
        %1025 = vmatprep.mubr.bf16.mxu0 0
        %1026 = vmatmul.mubr.bf16.gmra.mrb[0].mxu0 %v744
        %v1027 = vpop.f32.mrb[0].mxu0
        %v1028 = vadd.f32 0.0, %v1027
        %v1029 = vpop.f32.mrb[0].mxu0
        %v1030 = vpop.f32.mrb[0].mxu0
        %v1031 = vadd.f32 0.0, %v1030
        %v1032 = vpop.f32.mrb[0].mxu0
        %1033 = vmatprep.mubr.bf16.mxu0 0
        %1034 = vmatmul.mubr.bf16.gmra.mrb[0].mxu0 %v745
        %v1035 = vpop.f32.mrb[0].mxu0
        %v1036 = vadd.f32 0.0, %v1035
        %v1037 = vpop.f32.mrb[0].mxu0
        %v1038 = vpop.f32.mrb[0].mxu0
        %v1039 = vadd.f32 0.0, %v1038
        %v1040 = vpop.f32.mrb[0].mxu0
        %1041 = vmatprep.mubr.bf16.mxu0 0
        %1042 = vmatmul.mubr.bf16.gmra.mrb[0].mxu0 %v746
        %v1043 = vpop.f32.mrb[0].mxu0
        %v1044 = vadd.f32 0.0, %v1043
        %v1045 = vpop.f32.mrb[0].mxu0
        %v1046 = vpop.f32.mrb[0].mxu0
        %v1047 = vadd.f32 0.0, %v1046
        %v1048 = vpop.f32.mrb[0].mxu0
        %1049 = vmatprep.mubr.bf16.mxu0 0
        %1050 = vmatmul.mubr.bf16.gmra.mrb[0].mxu0 %v747
        %v1051 = vpop.f32.mrb[0].mxu0
        %v1052 = vadd.f32 0.0, %v1051
        %v1053 = vpop.f32.mrb[0].mxu0
        %v1054 = vpop.f32.mrb[0].mxu0
        %v1055 = vadd.f32 0.0, %v1054
        %v1056 = vpop.f32.mrb[0].mxu0
        %1057 = vmatprep.mubr.bf16.mxu0 0
        %1058 = vmatmul.mubr.bf16.gmra.mrb[0].mxu0 %v748
        %v1059 = vpop.f32.mrb[0].mxu0
        %v1060 = vadd.f32 0.0, %v1059
        %v1061 = vpop.f32.mrb[0].mxu0
        %v1062 = vpop.f32.mrb[0].mxu0
        %v1063 = vadd.f32 0.0, %v1062
        %v1064 = vpop.f32.mrb[0].mxu0
        %1065 = vmatprep.mubr.bf16.mxu0 0
        %1066 = vmatmul.mubr.bf16.gmra.mrb[0].mxu0 %v749
        %v1067 = vpop.f32.mrb[0].mxu0
        %v1068 = vadd.f32 0.0, %v1067
        %v1069 = vpop.f32.mrb[0].mxu0
        %v1070 = vpop.f32.mrb[0].mxu0
        %v1071 = vadd.f32 0.0, %v1070
        %v1072 = vpop.f32.mrb[0].mxu0
        %1073 = vmatprep.mubr.bf16.mxu0 0
        %1074 = vmatmul.mubr.bf16.gmra.mrb[0].mxu0 %v750
        %v1075 = vpop.f32.mrb[0].mxu0
        %v1076 = vadd.f32 0.0, %v1075
        %v1077 = vpop.f32.mrb[0].mxu0
        %v1078 = vpop.f32.mrb[0].mxu0
        %v1079 = vadd.f32 0.0, %v1078
        %v1080 = vpop.f32.mrb[0].mxu0
        %1081 = vmatprep.mubr.bf16.mxu0 0
        %1082 = vmatmul.mubr.bf16.gmra.mrb[0].mxu0 %v751
        %v1083 = vpop.f32.mrb[0].mxu0
        %v1084 = vadd.f32 0.0, %v1083
        %v1085 = vpop.f32.mrb[0].mxu0
        %v1086 = vpop.f32.mrb[0].mxu0
        %v1087 = vadd.f32 0.0, %v1086
        %v1088 = vpop.f32.mrb[0].mxu0
        %1089 = vmatprep.mubr.bf16.mxu0 0
        %1090 = vmatmul.mubr.bf16.gmra.mrb[0].mxu0 %v752
        %v1091 = vpop.f32.mrb[0].mxu0
        %v1092 = vadd.f32 0.0, %v1091
        %v1093 = vpop.f32.mrb[0].mxu0
        %v1094 = vpop.f32.mrb[0].mxu0
        %v1095 = vadd.f32 0.0, %v1094
        %v1096 = vpop.f32.mrb[0].mxu0
        %1097 = vmatprep.mubr.bf16.mxu0 0
        %1098 = vmatmul.mubr.bf16.gmra.mrb[0].mxu0 %v753
        %v1099 = vpop.f32.mrb[0].mxu0
        %v1100 = vadd.f32 0.0, %v1099
        %v1101 = vpop.f32.mrb[0].mxu0
        %v1102 = vpop.f32.mrb[0].mxu0
        %v1103 = vadd.f32 0.0, %v1102
        %v1104 = vpop.f32.mrb[0].mxu0
        %1105 = vmatprep.mubr.bf16.mxu0 0
        %1106 = vmatmul.mubr.bf16.gmra.mrb[0].mxu0 %v754
        %v1107 = vpop.f32.mrb[0].mxu0
        %v1108 = vadd.f32 0.0, %v1107
        %v1109 = vpop.f32.mrb[0].mxu0
        %v1110 = vpop.f32.mrb[0].mxu0
        %v1111 = vadd.f32 0.0, %v1110
        %v1112 = vpop.f32.mrb[0].mxu0
        %1113 = vmatprep.mubr.bf16.mxu0 0
        %1114 = vmatmul.mubr.bf16.gmra.mrb[0].mxu0 %v755
        %v1115 = vpop.f32.mrb[0].mxu0
        %v1116 = vadd.f32 0.0, %v1115
        %v1117 = vpop.f32.mrb[0].mxu0
        %v1118 = vpop.f32.mrb[0].mxu0
        %v1119 = vadd.f32 0.0, %v1118
        %v1120 = vpop.f32.mrb[0].mxu0
        %1121 = vmatprep.mubr.bf16.mxu0 0
        %1122 = vmatmul.mubr.bf16.gmra.mrb[0].mxu0 %v756
        %v1123 = vpop.f32.mrb[0].mxu0
        %v1124 = vadd.f32 0.0, %v1123
        %v1125 = vpop.f32.mrb[0].mxu0
        %v1126 = vpop.f32.mrb[0].mxu0
        %v1127 = vadd.f32 0.0, %v1126
        %v1128 = vpop.f32.mrb[0].mxu0
        %1129 = vmatprep.mubr.bf16.mxu0 0
        %1130 = vmatmul.mubr.bf16.gmra.mrb[0].mxu0 %v757
        %v1131 = vpop.f32.mrb[0].mxu0
        %v1132 = vadd.f32 0.0, %v1131
        %v1133 = vpop.f32.mrb[0].mxu0
        %v1134 = vpop.f32.mrb[0].mxu0
        %v1135 = vadd.f32 0.0, %v1134
        %v1136 = vpop.f32.mrb[0].mxu0
        %1137 = vmatprep.mubr.bf16.mxu0 0
        %1138 = vmatmul.mubr.bf16.gmra.mrb[0].mxu0 %v758
        %v1139 = vpop.f32.mrb[0].mxu0
        %v1140 = vadd.f32 0.0, %v1139
        %v1141 = vpop.f32.mrb[0].mxu0
        %v1142 = vpop.f32.mrb[0].mxu0
        %v1143 = vadd.f32 0.0, %v1142
        %v1144 = vpop.f32.mrb[0].mxu0
        %1145 = vmatprep.mubr.bf16.mxu0 0
        %1146 = vmatmul.mubr.bf16.gmra.mrb[0].mxu0 %v759
        %v1147 = vpop.f32.mrb[0].mxu0
        %v1148 = vadd.f32 0.0, %v1147
        %v1149 = vpop.f32.mrb[0].mxu0
        %v1150 = vpop.f32.mrb[0].mxu0
        %v1151 = vadd.f32 0.0, %v1150
        %v1152 = vpop.f32.mrb[0].mxu0
        %1153 = vmatprep.mubr.bf16.mxu0 0
        %1154 = vmatmul.mubr.bf16.gmra.mrb[0].mxu0 %v760
        %v1155 = vpop.f32.mrb[0].mxu0
        %v1156 = vpop.f32.mrb[0].mxu0
        %v1157 = vpop.f32.mrb[0].mxu0
        %v1158 = vpop.f32.mrb[0].mxu0
        %1159 = vdwg.mxu0
        %v1160 = vmax.f32 %v860, 0.0
        %v1161 = vmax.f32 %v863, 0.0
        %v1162 = vmax.f32 %v868, 0.0
        %v1163 = vmax.f32 %v871, 0.0
        %v1164 = vmax.f32 %v876, 0.0
        %v1165 = vmax.f32 %v879, 0.0
        %v1166 = vmax.f32 %v884, 0.0
        %v1167 = vmax.f32 %v887, 0.0
        %v1168 = vmax.f32 %v892, 0.0
        %v1169 = vmax.f32 %v895, 0.0
        %v1170 = vmax.f32 %v900, 0.0
        %v1171 = vmax.f32 %v903, 0.0
        %v1172 = vmax.f32 %v908, 0.0
        %v1173 = vmax.f32 %v911, 0.0
        %v1174 = vmax.f32 %v916, 0.0
        %v1175 = vmax.f32 %v919, 0.0
        %v1176 = vmax.f32 %v924, 0.0
        %v1177 = vmax.f32 %v927, 0.0
        %v1178 = vmax.f32 %v932, 0.0
        %v1179 = vmax.f32 %v935, 0.0
        %v1180 = vmax.f32 %v940, 0.0
        %v1181 = vmax.f32 %v943, 0.0
        %v1182 = vmax.f32 %v948, 0.0
        %v1183 = vmax.f32 %v951, 0.0
        %v1184 = vmax.f32 %v956, 0.0
        %v1185 = vmax.f32 %v959, 0.0
        %v1186 = vmax.f32 %v964, 0.0
        %v1187 = vmax.f32 %v967, 0.0
        %v1188 = vmax.f32 %v972, 0.0
        %v1189 = vmax.f32 %v975, 0.0
        %v1190 = vmax.f32 %v980, 0.0
        %v1191 = vmax.f32 %v983, 0.0
        %v1192 = vmax.f32 %v988, 0.0
        %v1193 = vmax.f32 %v991, 0.0
        %v1194 = vmax.f32 %v996, 0.0
        %v1195 = vmax.f32 %v999, 0.0
        %v1196 = vmax.f32 %v1004, 0.0
        %v1197 = vmax.f32 %v1007, 0.0
        %v1198 = vmax.f32 %v1012, 0.0
        %v1199 = vmax.f32 %v1015, 0.0
        %v1200 = vmax.f32 %v1020, 0.0
        %v1201 = vmax.f32 %v1023, 0.0
        %v1202 = vmax.f32 %v1028, 0.0
        %v1203 = vmax.f32 %v1031, 0.0
        %v1204 = vmax.f32 %v1036, 0.0
        %v1205 = vmax.f32 %v1039, 0.0
        %v1206 = vmax.f32 %v1044, 0.0
        %v1207 = vmax.f32 %v1047, 0.0
        %v1208 = vmax.f32 %v1052, 0.0
        %v1209 = vmax.f32 %v1055, 0.0
        %v1210 = vmax.f32 %v1060, 0.0
        %v1211 = vmax.f32 %v1063, 0.0
        %v1212 = vmax.f32 %v1068, 0.0
        %v1213 = vmax.f32 %v1071, 0.0
        %v1214 = vmax.f32 %v1076, 0.0
        %v1215 = vmax.f32 %v1079, 0.0
        %v1216 = vmax.f32 %v1084, 0.0
        %v1217 = vmax.f32 %v1087, 0.0
        %v1218 = vmax.f32 %v1092, 0.0
        %v1219 = vmax.f32 %v1095, 0.0
        %v1220 = vmax.f32 %v1100, 0.0
        %v1221 = vmax.f32 %v1103, 0.0
        %v1222 = vmax.f32 %v1108, 0.0
        %v1223 = vmax.f32 %v1111, 0.0
        %v1224 = vmax.f32 %v1116, 0.0
        %v1225 = vmax.f32 %v1119, 0.0
        %v1226 = vmax.f32 %v1124, 0.0
        %v1227 = vmax.f32 %v1127, 0.0
        %v1228 = vmax.f32 %v1132, 0.0
        %v1229 = vmax.f32 %v1135, 0.0
        %v1230 = vmax.f32 %v1140, 0.0
        %v1231 = vmax.f32 %v1143, 0.0
        %v1232 = vmax.f32 %v1148, 0.0
        %v1233 = vmax.f32 %v1151, 0.0
        %v1234 = vpack.c.bf16 %v1161, %v1160
        %v1235 = vpack.c.bf16 %v1163, %v1162
        %v1236 = vpack.c.bf16 %v1165, %v1164
        %v1237 = vpack.c.bf16 %v1167, %v1166
        %v1238 = vpack.c.bf16 %v1169, %v1168
        %v1239 = vpack.c.bf16 %v1171, %v1170
        %v1240 = vpack.c.bf16 %v1173, %v1172
        %v1241 = vpack.c.bf16 %v1175, %v1174
        %v1242 = vpack.c.bf16 %v1177, %v1176
        %v1243 = vpack.c.bf16 %v1179, %v1178
        %v1244 = vpack.c.bf16 %v1181, %v1180
        %v1245 = vpack.c.bf16 %v1183, %v1182
        %v1246 = vpack.c.bf16 %v1185, %v1184
        %v1247 = vpack.c.bf16 %v1187, %v1186
        %v1248 = vpack.c.bf16 %v1189, %v1188
        %v1249 = vpack.c.bf16 %v1191, %v1190
        %v1250 = vpack.c.bf16 %v1193, %v1192
        %v1251 = vpack.c.bf16 %v1195, %v1194
        %v1252 = vpack.c.bf16 %v1197, %v1196
        %v1253 = vpack.c.bf16 %v1199, %v1198
        %v1254 = vpack.c.bf16 %v1201, %v1200
        %v1255 = vpack.c.bf16 %v1203, %v1202
        %v1256 = vpack.c.bf16 %v1205, %v1204
        %v1257 = vpack.c.bf16 %v1207, %v1206
        %v1258 = vpack.c.bf16 %v1209, %v1208
        %v1259 = vpack.c.bf16 %v1211, %v1210
        %v1260 = vpack.c.bf16 %v1213, %v1212
        %v1261 = vpack.c.bf16 %v1215, %v1214
        %v1262 = vpack.c.bf16 %v1217, %v1216
        %v1263 = vpack.c.bf16 %v1219, %v1218
        %v1264 = vpack.c.bf16 %v1221, %v1220
        %v1265 = vpack.c.bf16 %v1223, %v1222
        %v1266 = vpack.c.bf16 %v1225, %v1224
        %v1267 = vpack.c.bf16 %v1227, %v1226
        %v1268 = vpack.c.bf16 %v1229, %v1228
        %v1269 = vpack.c.bf16 %v1231, %v1230
        %v1270 = vpack.c.bf16 %v1233, %v1232
        %v1271 = vld [vmem:[%s2] sm:$0xf]
        %v1272 = vld [vmem:[%s2 + $0x4] sm:$0xf]
        %v1273 = vld [vmem:[%s2 + $0x8] sm:$0xf]
        %v1274 = vld [vmem:[%s2 + $0xc] sm:$0xf]
        %v1275 = vld [vmem:[%s2 + $0x10] sm:$0xf]
        %v1276 = vld [vmem:[%s2 + $0x14] sm:$0xf]
        %v1277 = vld [vmem:[%s2 + $0x18] sm:$0xf]
        %v1278 = vld [vmem:[%s2 + $0x1c] sm:$0xf]
        %v1279 = vld [vmem:[%s2 + $0x20] sm:$0xf]
        %v1280 = vld [vmem:[%s2 + $0x24] sm:$0xf]
        %v1281 = vld [vmem:[%s2 + $0x28] sm:$0xf]
        %v1282 = vld [vmem:[%s2 + $0x2c] sm:$0xf]
        %v1283 = vld [vmem:[%s2 + $0x30] sm:$0xf]
        %v1284 = vld [vmem:[%s2 + $0x34] sm:$0xf]
        %v1285 = vld [vmem:[%s2 + $0x38] sm:$0xf]
        %v1286 = vld [vmem:[%s2 + $0x3c] sm:$0xf]
        %s1287 = scalar_lea.vmem %s2, 64
        %v1288 = vld [vmem:[%s1287] sm:$0xf]
        %v1289 = vld [vmem:[%s1287 + $0x4] sm:$0xf]
        %v1290 = vld [vmem:[%s1287 + $0x8] sm:$0xf]
        %v1291 = vld [vmem:[%s1287 + $0xc] sm:$0xf]
        %v1292 = vld [vmem:[%s1287 + $0x10] sm:$0xf]
        %v1293 = vld [vmem:[%s1287 + $0x14] sm:$0xf]
        %v1294 = vld [vmem:[%s1287 + $0x18] sm:$0xf]
        %v1295 = vld [vmem:[%s1287 + $0x1c] sm:$0xf]
        %v1296 = vld [vmem:[%s1287 + $0x20] sm:$0xf]
        %v1297 = vld [vmem:[%s1287 + $0x24] sm:$0xf]
        %v1298 = vld [vmem:[%s1287 + $0x28] sm:$0xf]
        %v1299 = vld [vmem:[%s1287 + $0x2c] sm:$0xf]
        %v1300 = vld [vmem:[%s1287 + $0x30] sm:$0xf]
        %v1301 = vld [vmem:[%s1287 + $0x34] sm:$0xf]
        %v1302 = vld [vmem:[%s1287 + $0x38] sm:$0xf]
        %v1303 = vld [vmem:[%s1287 + $0x3c] sm:$0xf]
        %vm1304 = vsmask.f32 7424
        %v1306 = vshrl.u32 %v1234, 16
        %v1308 = vshll.u32 %v1234, 16
        %v1310 = vrot.slane %v1308, 1
        %v1311 = vor.u32 %v1306, %v1310
        %v1313 = vshll.u32 %v1235, 16
        %v1315 = vrot.slane %v1313, 1
        %v1316 = vsel %vm1304, %v1311, %v1315
        %v1317 = vshrl.u32 %v1235, 16
        %v1319 = vor.u32 %v1317, %v1315
        %v1321 = vshll.u32 %v1236, 16
        %v1323 = vrot.slane %v1321, 1
        %v1324 = vsel %vm1304, %v1319, %v1323
        %v1325 = vshrl.u32 %v1236, 16
        %v1327 = vor.u32 %v1325, %v1323
        %v1329 = vshll.u32 %v1237, 16
        %v1331 = vrot.slane %v1329, 1
        %v1332 = vsel %vm1304, %v1327, %v1331
        %v1333 = vshrl.u32 %v1237, 16
        %v1335 = vor.u32 %v1333, %v1331
        %v1337 = vshll.u32 %v1238, 16
        %v1339 = vrot.slane %v1337, 1
        %v1340 = vsel %vm1304, %v1335, %v1339
        %v1341 = vshrl.u32 %v1238, 16
        %v1343 = vor.u32 %v1341, %v1339
        %v1345 = vshll.u32 %v1239, 16
        %v1347 = vrot.slane %v1345, 1
        %v1348 = vsel %vm1304, %v1343, %v1347
        %v1349 = vshrl.u32 %v1239, 16
        %v1351 = vor.u32 %v1349, %v1347
        %v1353 = vshll.u32 %v1240, 16
        %v1355 = vrot.slane %v1353, 1
        %v1356 = vsel %vm1304, %v1351, %v1355
        %v1357 = vshrl.u32 %v1240, 16
        %v1359 = vor.u32 %v1357, %v1355
        %v1361 = vshll.u32 %v1241, 16
        %v1363 = vrot.slane %v1361, 1
        %v1364 = vsel %vm1304, %v1359, %v1363
        %v1365 = vshrl.u32 %v1241, 16
        %v1367 = vor.u32 %v1365, %v1363
        %v1369 = vshll.u32 %v1242, 16
        %v1371 = vrot.slane %v1369, 1
        %v1372 = vsel %vm1304, %v1367, %v1371
        %v1373 = vshrl.u32 %v1242, 16
        %v1375 = vor.u32 %v1373, %v1371
        %v1377 = vshll.u32 %v1243, 16
        %v1379 = vrot.slane %v1377, 1
        %v1380 = vsel %vm1304, %v1375, %v1379
        %v1381 = vshrl.u32 %v1243, 16
        %v1383 = vor.u32 %v1381, %v1379
        %v1385 = vshll.u32 %v1244, 16
        %v1387 = vrot.slane %v1385, 1
        %v1388 = vsel %vm1304, %v1383, %v1387
        %v1389 = vshrl.u32 %v1244, 16
        %v1391 = vor.u32 %v1389, %v1387
        %v1393 = vshll.u32 %v1245, 16
        %v1395 = vrot.slane %v1393, 1
        %v1396 = vsel %vm1304, %v1391, %v1395
        %v1397 = vshrl.u32 %v1245, 16
        %v1399 = vor.u32 %v1397, %v1395
        %v1401 = vshll.u32 %v1246, 16
        %v1403 = vrot.slane %v1401, 1
        %v1404 = vsel %vm1304, %v1399, %v1403
        %v1405 = vshrl.u32 %v1246, 16
        %v1407 = vor.u32 %v1405, %v1403
        %v1409 = vshll.u32 %v1247, 16
        %v1411 = vrot.slane %v1409, 1
        %v1412 = vsel %vm1304, %v1407, %v1411
        %v1413 = vshrl.u32 %v1247, 16
        %v1415 = vor.u32 %v1413, %v1411
        %v1417 = vshll.u32 %v1248, 16
        %v1419 = vrot.slane %v1417, 1
        %v1420 = vsel %vm1304, %v1415, %v1419
        %v1421 = vshrl.u32 %v1248, 16
        %v1423 = vor.u32 %v1421, %v1419
        %v1425 = vshll.u32 %v1249, 16
        %v1427 = vrot.slane %v1425, 1
        %v1428 = vsel %vm1304, %v1423, %v1427
        %v1429 = vshrl.u32 %v1249, 16
        %v1431 = vor.u32 %v1429, %v1427
        %v1433 = vshll.u32 %v1250, 16
        %v1435 = vrot.slane %v1433, 1
        %v1436 = vsel %vm1304, %v1431, %v1435
        %v1437 = vshrl.u32 %v1250, 16
        %v1439 = vor.u32 %v1437, %v1435
        %v1441 = vshll.u32 %v1251, 16
        %v1443 = vrot.slane %v1441, 1
        %v1444 = vsel %vm1304, %v1439, %v1443
        %v1445 = vshrl.u32 %v1251, 16
        %v1447 = vor.u32 %v1445, %v1443
        %v1449 = vshll.u32 %v1252, 16
        %v1451 = vrot.slane %v1449, 1
        %v1452 = vsel %vm1304, %v1447, %v1451
        %v1453 = vshrl.u32 %v1252, 16
        %v1455 = vor.u32 %v1453, %v1451
        %v1457 = vshll.u32 %v1253, 16
        %v1459 = vrot.slane %v1457, 1
        %v1460 = vsel %vm1304, %v1455, %v1459
        %v1461 = vshrl.u32 %v1253, 16
        %v1463 = vor.u32 %v1461, %v1459
        %v1465 = vshll.u32 %v1254, 16
        %v1467 = vrot.slane %v1465, 1
        %v1468 = vsel %vm1304, %v1463, %v1467
        %v1469 = vshrl.u32 %v1254, 16
        %v1471 = vor.u32 %v1469, %v1467
        %v1473 = vshll.u32 %v1255, 16
        %v1475 = vrot.slane %v1473, 1
        %v1476 = vsel %vm1304, %v1471, %v1475
        %v1477 = vshrl.u32 %v1255, 16
        %v1479 = vor.u32 %v1477, %v1475
        %v1481 = vshll.u32 %v1256, 16
        %v1483 = vrot.slane %v1481, 1
        %v1484 = vsel %vm1304, %v1479, %v1483
        %v1485 = vshrl.u32 %v1256, 16
        %v1487 = vor.u32 %v1485, %v1483
        %v1489 = vshll.u32 %v1257, 16
        %v1491 = vrot.slane %v1489, 1
        %v1492 = vsel %vm1304, %v1487, %v1491
        %v1493 = vshrl.u32 %v1257, 16
        %v1495 = vor.u32 %v1493, %v1491
        %v1497 = vshll.u32 %v1258, 16
        %v1499 = vrot.slane %v1497, 1
        %v1500 = vsel %vm1304, %v1495, %v1499
        %v1501 = vshrl.u32 %v1258, 16
        %v1503 = vor.u32 %v1501, %v1499
        %v1505 = vshll.u32 %v1259, 16
        %v1507 = vrot.slane %v1505, 1
        %v1508 = vsel %vm1304, %v1503, %v1507
        %v1509 = vshrl.u32 %v1259, 16
        %v1511 = vor.u32 %v1509, %v1507
        %v1513 = vshll.u32 %v1260, 16
        %v1515 = vrot.slane %v1513, 1
        %v1516 = vsel %vm1304, %v1511, %v1515
        %v1517 = vshrl.u32 %v1260, 16
        %v1519 = vor.u32 %v1517, %v1515
        %v1521 = vshll.u32 %v1261, 16
        %v1523 = vrot.slane %v1521, 1
        %v1524 = vsel %vm1304, %v1519, %v1523
        %v1525 = vshrl.u32 %v1261, 16
        %v1527 = vor.u32 %v1525, %v1523
        %v1529 = vshll.u32 %v1262, 16
        %v1531 = vrot.slane %v1529, 1
        %v1532 = vsel %vm1304, %v1527, %v1531
        %v1533 = vshrl.u32 %v1262, 16
        %v1535 = vor.u32 %v1533, %v1531
        %v1537 = vshll.u32 %v1263, 16
        %v1539 = vrot.slane %v1537, 1
        %v1540 = vsel %vm1304, %v1535, %v1539
        %v1541 = vshrl.u32 %v1263, 16
        %v1543 = vor.u32 %v1541, %v1539
        %v1545 = vshll.u32 %v1264, 16
        %v1547 = vrot.slane %v1545, 1
        %v1548 = vsel %vm1304, %v1543, %v1547
        %v1549 = vshrl.u32 %v1264, 16
        %v1551 = vor.u32 %v1549, %v1547
        %v1553 = vshll.u32 %v1265, 16
        %v1555 = vrot.slane %v1553, 1
        %v1556 = vsel %vm1304, %v1551, %v1555
        %v1557 = vshrl.u32 %v1265, 16
        %v1559 = vor.u32 %v1557, %v1555
        %v1561 = vshll.u32 %v1266, 16
        %v1563 = vrot.slane %v1561, 1
        %v1564 = vsel %vm1304, %v1559, %v1563
        %v1613 = vunpack.c.l.b16 %v1288
        %v1614 = vunpack.c.l.b16 %v1289
        %v1615 = vunpack.c.l.b16 %v1290
        %v1616 = vunpack.c.l.b16 %v1291
        %v1617 = vunpack.c.l.b16 %v1292
        %v1618 = vunpack.c.l.b16 %v1293
        %v1619 = vunpack.c.l.b16 %v1294
        %v1620 = vunpack.c.l.b16 %v1295
        %v1621 = vunpack.c.l.b16 %v1296
        %v1622 = vunpack.c.l.b16 %v1297
        %v1623 = vunpack.c.l.b16 %v1298
        %v1624 = vunpack.c.l.b16 %v1299
        %v1625 = vunpack.c.l.b16 %v1300
        %v1626 = vunpack.c.l.b16 %v1301
        %v1627 = vunpack.c.l.b16 %v1302
        %v1628 = vunpack.c.l.b16 %v1303
        %v1629 = vpack.c.b16 %v1614, %v1613
        %v1630 = vpack.c.b16 %v1616, %v1615
        %v1631 = vpack.c.b16 %v1618, %v1617
        %v1632 = vpack.c.b16 %v1620, %v1619
        %v1633 = vpack.c.b16 %v1622, %v1621
        %v1634 = vpack.c.b16 %v1624, %v1623
        %v1635 = vpack.c.b16 %v1626, %v1625
        %v1636 = vpack.c.b16 %v1628, %v1627
        %1645 = vmatprep.subr.bf16.mxu0 0
        %1646 = vmatpush1.bf16.msra.mxu0 %v1629
        %1647 = vmatprep.subr.bf16.mxu0 0
        %1648 = vmatpush1.bf16.msra.mxu0 %v1630
        %1649 = vmatprep.subr.bf16.mxu0 0
        %1650 = vmatpush1.bf16.msra.mxu0 %v1631
        %1651 = vmatprep.subr.bf16.mxu0 0
        %1652 = vmatpush1.bf16.msra.mxu0 %v1632
        %1653 = vmatprep.subr.bf16.mxu0 0
        %1654 = vmatpush1.bf16.msra.mxu0 %v1633
        %1655 = vmatprep.subr.bf16.mxu0 0
        %1656 = vmatpush1.bf16.msra.mxu0 %v1634
        %1657 = vmatprep.subr.bf16.mxu0 0
        %1658 = vmatpush1.bf16.msra.mxu0 %v1635
        %1659 = vmatprep.subr.bf16.mxu0 0
        %1660 = vmatpush1.bf16.msra.mxu0 %v1636
        %1661 = vmatprep.subr.bf16.mxu0 0
        %1662 = vmatpush1.bf16.msra.mxu0 0
        %1663 = vmatprep.subr.bf16.mxu0 0
        %1664 = vmatpush1.bf16.msra.mxu0 0
        %1665 = vmatprep.subr.bf16.mxu0 0
        %1666 = vmatpush1.bf16.msra.mxu0 0
        %1667 = vmatprep.subr.bf16.mxu0 0
        %1668 = vmatpush1.bf16.msra.mxu0 0
        %1669 = vmatprep.subr.bf16.mxu0 0
        %1670 = vmatpush1.bf16.msra.mxu0 0
        %1671 = vmatprep.subr.bf16.mxu0 0
        %1672 = vmatpush1.bf16.msra.mxu0 0
        %1673 = vmatprep.subr.bf16.mxu0 0
        %1674 = vmatpush1.bf16.msra.mxu0 0
        %1675 = vmatprep.subr.bf16.mxu0 0
        %1676 = vmatpush1.bf16.msra.mxu0 0
        %1677 = vmatprep.mubr.bf16.mxu0 0
        %1678 = vmatmul.mubr.bf16.gmra.mrb[0].mxu0 %v1316
        %v1679 = vpop.f32.mrb[0].mxu0
        %v1680 = vadd.f32 0.0, %v1679
        %v1681 = vpop.f32.mrb[0].mxu0
        %v1682 = vpop.f32.mrb[0].mxu0
        %v1683 = vadd.f32 0.0, %v1682
        %v1684 = vpop.f32.mrb[0].mxu0
        %1685 = vmatprep.mubr.bf16.mxu0 0
        %1686 = vmatmul.mubr.bf16.gmra.mrb[0].mxu0 %v1324
        %v1687 = vpop.f32.mrb[0].mxu0
        %v1688 = vadd.f32 0.0, %v1687
        %v1689 = vpop.f32.mrb[0].mxu0
        %v1690 = vpop.f32.mrb[0].mxu0
        %v1691 = vadd.f32 0.0, %v1690
        %v1692 = vpop.f32.mrb[0].mxu0
        %1693 = vmatprep.mubr.bf16.mxu0 0
        %1694 = vmatmul.mubr.bf16.gmra.mrb[0].mxu0 %v1332
        %v1695 = vpop.f32.mrb[0].mxu0
        %v1696 = vadd.f32 0.0, %v1695
        %v1697 = vpop.f32.mrb[0].mxu0
        %v1698 = vpop.f32.mrb[0].mxu0
        %v1699 = vadd.f32 0.0, %v1698
        %v1700 = vpop.f32.mrb[0].mxu0
        %1701 = vmatprep.mubr.bf16.mxu0 0
        %1702 = vmatmul.mubr.bf16.gmra.mrb[0].mxu0 %v1340
        %v1703 = vpop.f32.mrb[0].mxu0
        %v1704 = vadd.f32 0.0, %v1703
        %v1705 = vpop.f32.mrb[0].mxu0
        %v1706 = vpop.f32.mrb[0].mxu0
        %v1707 = vadd.f32 0.0, %v1706
        %v1708 = vpop.f32.mrb[0].mxu0
        %1709 = vmatprep.mubr.bf16.mxu0 0
        %1710 = vmatmul.mubr.bf16.gmra.mrb[0].mxu0 %v1348
        %v1711 = vpop.f32.mrb[0].mxu0
        %v1712 = vadd.f32 0.0, %v1711
        %v1713 = vpop.f32.mrb[0].mxu0
        %v1714 = vpop.f32.mrb[0].mxu0
        %v1715 = vadd.f32 0.0, %v1714
        %v1716 = vpop.f32.mrb[0].mxu0
        %1717 = vmatprep.mubr.bf16.mxu0 0
        %1718 = vmatmul.mubr.bf16.gmra.mrb[0].mxu0 %v1356
        %v1719 = vpop.f32.mrb[0].mxu0
        %v1720 = vadd.f32 0.0, %v1719
        %v1721 = vpop.f32.mrb[0].mxu0
        %v1722 = vpop.f32.mrb[0].mxu0
        %v1723 = vadd.f32 0.0, %v1722
        %v1724 = vpop.f32.mrb[0].mxu0
        %1725 = vmatprep.mubr.bf16.mxu0 0
        %1726 = vmatmul.mubr.bf16.gmra.mrb[0].mxu0 %v1364
        %v1727 = vpop.f32.mrb[0].mxu0
        %v1728 = vadd.f32 0.0, %v1727
        %v1729 = vpop.f32.mrb[0].mxu0
        %v1730 = vpop.f32.mrb[0].mxu0
        %v1731 = vadd.f32 0.0, %v1730
        %v1732 = vpop.f32.mrb[0].mxu0
        %1733 = vmatprep.mubr.bf16.mxu0 0
        %1734 = vmatmul.mubr.bf16.gmra.mrb[0].mxu0 %v1372
        %v1735 = vpop.f32.mrb[0].mxu0
        %v1736 = vadd.f32 0.0, %v1735
        %v1737 = vpop.f32.mrb[0].mxu0
        %v1738 = vpop.f32.mrb[0].mxu0
        %v1739 = vadd.f32 0.0, %v1738
        %v1740 = vpop.f32.mrb[0].mxu0
        %1741 = vmatprep.mubr.bf16.mxu0 0
        %1742 = vmatmul.mubr.bf16.gmra.mrb[0].mxu0 %v1380
        %v1743 = vpop.f32.mrb[0].mxu0
        %v1744 = vadd.f32 0.0, %v1743
        %v1745 = vpop.f32.mrb[0].mxu0
        %v1746 = vpop.f32.mrb[0].mxu0
        %v1747 = vadd.f32 0.0, %v1746
        %v1748 = vpop.f32.mrb[0].mxu0
        %1749 = vmatprep.mubr.bf16.mxu0 0
        %1750 = vmatmul.mubr.bf16.gmra.mrb[0].mxu0 %v1388
        %v1751 = vpop.f32.mrb[0].mxu0
        %v1752 = vadd.f32 0.0, %v1751
        %v1753 = vpop.f32.mrb[0].mxu0
        %v1754 = vpop.f32.mrb[0].mxu0
        %v1755 = vadd.f32 0.0, %v1754
        %v1756 = vpop.f32.mrb[0].mxu0
        %1757 = vmatprep.mubr.bf16.mxu0 0
        %1758 = vmatmul.mubr.bf16.gmra.mrb[0].mxu0 %v1396
        %v1759 = vpop.f32.mrb[0].mxu0
        %v1760 = vadd.f32 0.0, %v1759
        %v1761 = vpop.f32.mrb[0].mxu0
        %v1762 = vpop.f32.mrb[0].mxu0
        %v1763 = vadd.f32 0.0, %v1762
        %v1764 = vpop.f32.mrb[0].mxu0
        %1765 = vmatprep.mubr.bf16.mxu0 0
        %1766 = vmatmul.mubr.bf16.gmra.mrb[0].mxu0 %v1404
        %v1767 = vpop.f32.mrb[0].mxu0
        %v1768 = vadd.f32 0.0, %v1767
        %v1769 = vpop.f32.mrb[0].mxu0
        %v1770 = vpop.f32.mrb[0].mxu0
        %v1771 = vadd.f32 0.0, %v1770
        %v1772 = vpop.f32.mrb[0].mxu0
        %1773 = vmatprep.mubr.bf16.mxu0 0
        %1774 = vmatmul.mubr.bf16.gmra.mrb[0].mxu0 %v1412
        %v1775 = vpop.f32.mrb[0].mxu0
        %v1776 = vadd.f32 0.0, %v1775
        %v1777 = vpop.f32.mrb[0].mxu0
        %v1778 = vpop.f32.mrb[0].mxu0
        %v1779 = vadd.f32 0.0, %v1778
        %v1780 = vpop.f32.mrb[0].mxu0
        %1781 = vmatprep.mubr.bf16.mxu0 0
        %1782 = vmatmul.mubr.bf16.gmra.mrb[0].mxu0 %v1420
        %v1783 = vpop.f32.mrb[0].mxu0
        %v1784 = vadd.f32 0.0, %v1783
        %v1785 = vpop.f32.mrb[0].mxu0
        %v1786 = vpop.f32.mrb[0].mxu0
        %v1787 = vadd.f32 0.0, %v1786
        %v1788 = vpop.f32.mrb[0].mxu0
        %1789 = vmatprep.mubr.bf16.mxu0 0
        %1790 = vmatmul.mubr.bf16.gmra.mrb[0].mxu0 %v1428
        %v1791 = vpop.f32.mrb[0].mxu0
        %v1792 = vadd.f32 0.0, %v1791
        %v1793 = vpop.f32.mrb[0].mxu0
        %v1794 = vpop.f32.mrb[0].mxu0
        %v1795 = vadd.f32 0.0, %v1794
        %v1796 = vpop.f32.mrb[0].mxu0
        %1797 = vmatprep.mubr.bf16.mxu0 0
        %1798 = vmatmul.mubr.bf16.gmra.mrb[0].mxu0 %v1436
        %v1799 = vpop.f32.mrb[0].mxu0
        %v1800 = vadd.f32 0.0, %v1799
        %v1801 = vpop.f32.mrb[0].mxu0
        %v1802 = vpop.f32.mrb[0].mxu0
        %v1803 = vadd.f32 0.0, %v1802
        %v1804 = vpop.f32.mrb[0].mxu0
        %1805 = vmatprep.mubr.bf16.mxu0 0
        %1806 = vmatmul.mubr.bf16.gmra.mrb[0].mxu0 %v1444
        %v1807 = vpop.f32.mrb[0].mxu0
        %v1808 = vadd.f32 0.0, %v1807
        %v1809 = vpop.f32.mrb[0].mxu0
        %v1810 = vpop.f32.mrb[0].mxu0
        %v1811 = vadd.f32 0.0, %v1810
        %v1812 = vpop.f32.mrb[0].mxu0
        %1813 = vmatprep.mubr.bf16.mxu0 0
        %1814 = vmatmul.mubr.bf16.gmra.mrb[0].mxu0 %v1452
        %v1815 = vpop.f32.mrb[0].mxu0
        %v1816 = vadd.f32 0.0, %v1815
        %v1817 = vpop.f32.mrb[0].mxu0
        %v1818 = vpop.f32.mrb[0].mxu0
        %v1819 = vadd.f32 0.0, %v1818
        %v1820 = vpop.f32.mrb[0].mxu0
        %1821 = vmatprep.mubr.bf16.mxu0 0
        %1822 = vmatmul.mubr.bf16.gmra.mrb[0].mxu0 %v1460
        %v1823 = vpop.f32.mrb[0].mxu0
        %v1824 = vadd.f32 0.0, %v1823
        %v1825 = vpop.f32.mrb[0].mxu0
        %v1826 = vpop.f32.mrb[0].mxu0
        %v1827 = vadd.f32 0.0, %v1826
        %v1828 = vpop.f32.mrb[0].mxu0
        %1829 = vmatprep.mubr.bf16.mxu0 0
        %1830 = vmatmul.mubr.bf16.gmra.mrb[0].mxu0 %v1468
        %v1831 = vpop.f32.mrb[0].mxu0
        %v1832 = vadd.f32 0.0, %v1831
        %v1833 = vpop.f32.mrb[0].mxu0
        %v1834 = vpop.f32.mrb[0].mxu0
        %v1835 = vadd.f32 0.0, %v1834
        %v1836 = vpop.f32.mrb[0].mxu0
        %1837 = vmatprep.mubr.bf16.mxu0 0
        %1838 = vmatmul.mubr.bf16.gmra.mrb[0].mxu0 %v1476
        %v1839 = vpop.f32.mrb[0].mxu0
        %v1840 = vadd.f32 0.0, %v1839
        %v1841 = vpop.f32.mrb[0].mxu0
        %v1842 = vpop.f32.mrb[0].mxu0
        %v1843 = vadd.f32 0.0, %v1842
        %v1844 = vpop.f32.mrb[0].mxu0
        %1845 = vmatprep.mubr.bf16.mxu0 0
        %1846 = vmatmul.mubr.bf16.gmra.mrb[0].mxu0 %v1484
        %v1847 = vpop.f32.mrb[0].mxu0
        %v1848 = vadd.f32 0.0, %v1847
        %v1849 = vpop.f32.mrb[0].mxu0
        %v1850 = vpop.f32.mrb[0].mxu0
        %v1851 = vadd.f32 0.0, %v1850
        %v1852 = vpop.f32.mrb[0].mxu0
        %1853 = vmatprep.mubr.bf16.mxu0 0
        %1854 = vmatmul.mubr.bf16.gmra.mrb[0].mxu0 %v1492
        %v1855 = vpop.f32.mrb[0].mxu0
        %v1856 = vadd.f32 0.0, %v1855
        %v1857 = vpop.f32.mrb[0].mxu0
        %v1858 = vpop.f32.mrb[0].mxu0
        %v1859 = vadd.f32 0.0, %v1858
        %v1860 = vpop.f32.mrb[0].mxu0
        %1861 = vmatprep.mubr.bf16.mxu0 0
        %1862 = vmatmul.mubr.bf16.gmra.mrb[0].mxu0 %v1500
        %v1863 = vpop.f32.mrb[0].mxu0
        %v1864 = vadd.f32 0.0, %v1863
        %v1865 = vpop.f32.mrb[0].mxu0
        %v1866 = vpop.f32.mrb[0].mxu0
        %v1867 = vadd.f32 0.0, %v1866
        %v1868 = vpop.f32.mrb[0].mxu0
        %1869 = vmatprep.mubr.bf16.mxu0 0
        %1870 = vmatmul.mubr.bf16.gmra.mrb[0].mxu0 %v1508
        %v1871 = vpop.f32.mrb[0].mxu0
        %v1872 = vadd.f32 0.0, %v1871
        %v1873 = vpop.f32.mrb[0].mxu0
        %v1874 = vpop.f32.mrb[0].mxu0
        %v1875 = vadd.f32 0.0, %v1874
        %v1876 = vpop.f32.mrb[0].mxu0
        %1877 = vmatprep.mubr.bf16.mxu0 0
        %1878 = vmatmul.mubr.bf16.gmra.mrb[0].mxu0 %v1516
        %v1879 = vpop.f32.mrb[0].mxu0
        %v1880 = vadd.f32 0.0, %v1879
        %v1881 = vpop.f32.mrb[0].mxu0
        %v1882 = vpop.f32.mrb[0].mxu0
        %v1883 = vadd.f32 0.0, %v1882
        %v1884 = vpop.f32.mrb[0].mxu0
        %1885 = vmatprep.mubr.bf16.mxu0 0
        %1886 = vmatmul.mubr.bf16.gmra.mrb[0].mxu0 %v1524
        %v1887 = vpop.f32.mrb[0].mxu0
        %v1888 = vadd.f32 0.0, %v1887
        %v1889 = vpop.f32.mrb[0].mxu0
        %v1890 = vpop.f32.mrb[0].mxu0
        %v1891 = vadd.f32 0.0, %v1890
        %v1892 = vpop.f32.mrb[0].mxu0
        %1893 = vmatprep.mubr.bf16.mxu0 0
        %1894 = vmatmul.mubr.bf16.gmra.mrb[0].mxu0 %v1532
        %v1895 = vpop.f32.mrb[0].mxu0
        %v1896 = vadd.f32 0.0, %v1895
        %v1897 = vpop.f32.mrb[0].mxu0
        %v1898 = vpop.f32.mrb[0].mxu0
        %v1899 = vadd.f32 0.0, %v1898
        %v1900 = vpop.f32.mrb[0].mxu0
        %1901 = vmatprep.mubr.bf16.mxu0 0
        %1902 = vmatmul.mubr.bf16.gmra.mrb[0].mxu0 %v1540
        %v1903 = vpop.f32.mrb[0].mxu0
        %v1904 = vadd.f32 0.0, %v1903
        %v1905 = vpop.f32.mrb[0].mxu0
        %v1906 = vpop.f32.mrb[0].mxu0
        %v1907 = vadd.f32 0.0, %v1906
        %v1908 = vpop.f32.mrb[0].mxu0
        %1909 = vmatprep.mubr.bf16.mxu0 0
        %1910 = vmatmul.mubr.bf16.gmra.mrb[0].mxu0 %v1548
        %v1911 = vpop.f32.mrb[0].mxu0
        %v1912 = vadd.f32 0.0, %v1911
        %v1913 = vpop.f32.mrb[0].mxu0
        %v1914 = vpop.f32.mrb[0].mxu0
        %v1915 = vadd.f32 0.0, %v1914
        %v1916 = vpop.f32.mrb[0].mxu0
        %1917 = vmatprep.mubr.bf16.mxu0 0
        %1918 = vmatmul.mubr.bf16.gmra.mrb[0].mxu0 %v1556
        %v1919 = vpop.f32.mrb[0].mxu0
        %v1920 = vadd.f32 0.0, %v1919
        %v1921 = vpop.f32.mrb[0].mxu0
        %v1922 = vpop.f32.mrb[0].mxu0
        %v1923 = vadd.f32 0.0, %v1922
        %v1924 = vpop.f32.mrb[0].mxu0
        %1925 = vmatprep.mubr.bf16.mxu0 0
        %1926 = vmatmul.mubr.bf16.gmra.mrb[0].mxu0 %v1564
        %v1927 = vpop.f32.mrb[0].mxu0
        %v1928 = vadd.f32 0.0, %v1927
        %v1929 = vpop.f32.mrb[0].mxu0
        %v1930 = vpop.f32.mrb[0].mxu0
        %v1931 = vadd.f32 0.0, %v1930
        %v1932 = vpop.f32.mrb[0].mxu0
        %1933 = vdwg.mxu0
        %v1950 = vunpack.c.l.b16 %v1271
        %v1951 = vunpack.c.l.b16 %v1272
        %v1952 = vunpack.c.l.b16 %v1273
        %v1953 = vunpack.c.l.b16 %v1274
        %v1954 = vunpack.c.l.b16 %v1275
        %v1955 = vunpack.c.l.b16 %v1276
        %v1956 = vunpack.c.l.b16 %v1277
        %v1957 = vunpack.c.l.b16 %v1278
        %v1958 = vunpack.c.l.b16 %v1279
        %v1959 = vunpack.c.l.b16 %v1280
        %v1960 = vunpack.c.l.b16 %v1281
        %v1961 = vunpack.c.l.b16 %v1282
        %v1962 = vunpack.c.l.b16 %v1283
        %v1963 = vunpack.c.l.b16 %v1284
        %v1964 = vunpack.c.l.b16 %v1285
        %v1965 = vunpack.c.l.b16 %v1286
        %v1966 = vpack.c.b16 %v1951, %v1950
        %v1967 = vpack.c.b16 %v1953, %v1952
        %v1968 = vpack.c.b16 %v1955, %v1954
        %v1969 = vpack.c.b16 %v1957, %v1956
        %v1970 = vpack.c.b16 %v1959, %v1958
        %v1971 = vpack.c.b16 %v1961, %v1960
        %v1972 = vpack.c.b16 %v1963, %v1962
        %v1973 = vpack.c.b16 %v1965, %v1964
        %1982 = vmatprep.subr.bf16.mxu0 0
        %1983 = vmatpush1.bf16.msra.mxu0 %v1966
        %1984 = vmatprep.subr.bf16.mxu0 0
        %1985 = vmatpush1.bf16.msra.mxu0 %v1967
        %1986 = vmatprep.subr.bf16.mxu0 0
        %1987 = vmatpush1.bf16.msra.mxu0 %v1968
        %1988 = vmatprep.subr.bf16.mxu0 0
        %1989 = vmatpush1.bf16.msra.mxu0 %v1969
        %1990 = vmatprep.subr.bf16.mxu0 0
        %1991 = vmatpush1.bf16.msra.mxu0 %v1970
        %1992 = vmatprep.subr.bf16.mxu0 0
        %1993 = vmatpush1.bf16.msra.mxu0 %v1971
        %1994 = vmatprep.subr.bf16.mxu0 0
        %1995 = vmatpush1.bf16.msra.mxu0 %v1972
        %1996 = vmatprep.subr.bf16.mxu0 0
        %1997 = vmatpush1.bf16.msra.mxu0 %v1973
        %1998 = vmatprep.subr.bf16.mxu0 0
        %1999 = vmatpush1.bf16.msra.mxu0 0
        %2000 = vmatprep.subr.bf16.mxu0 0
        %2001 = vmatpush1.bf16.msra.mxu0 0
        %2002 = vmatprep.subr.bf16.mxu0 0
        %2003 = vmatpush1.bf16.msra.mxu0 0
        %2004 = vmatprep.subr.bf16.mxu0 0
        %2005 = vmatpush1.bf16.msra.mxu0 0
        %2006 = vmatprep.subr.bf16.mxu0 0
        %2007 = vmatpush1.bf16.msra.mxu0 0
        %2008 = vmatprep.subr.bf16.mxu0 0
        %2009 = vmatpush1.bf16.msra.mxu0 0
        %2010 = vmatprep.subr.bf16.mxu0 0
        %2011 = vmatpush1.bf16.msra.mxu0 0
        %2012 = vmatprep.subr.bf16.mxu0 0
        %2013 = vmatpush1.bf16.msra.mxu0 0
        %2014 = vmatprep.mubr.bf16.mxu0 0
        %2015 = vmatmul.mubr.bf16.gmra.mrb[0].mxu0 %v1234
        %v2016 = vpop.f32.mrb[0].mxu0
        %v2017 = vadd.f32 %v1680, %v2016
        %v2018 = vpop.f32.mrb[0].mxu0
        %v2019 = vpop.f32.mrb[0].mxu0
        %v2020 = vadd.f32 %v1683, %v2019
        %v2021 = vpop.f32.mrb[0].mxu0
        %2022 = vmatprep.mubr.bf16.mxu0 0
        %2023 = vmatmul.mubr.bf16.gmra.mrb[0].mxu0 %v1235
        %v2024 = vpop.f32.mrb[0].mxu0
        %v2025 = vadd.f32 %v1688, %v2024
        %v2026 = vpop.f32.mrb[0].mxu0
        %v2027 = vpop.f32.mrb[0].mxu0
        %v2028 = vadd.f32 %v1691, %v2027
        %v2029 = vpop.f32.mrb[0].mxu0
        %2030 = vmatprep.mubr.bf16.mxu0 0
        %2031 = vmatmul.mubr.bf16.gmra.mrb[0].mxu0 %v1236
        %v2032 = vpop.f32.mrb[0].mxu0
        %v2033 = vadd.f32 %v1696, %v2032
        %v2034 = vpop.f32.mrb[0].mxu0
        %v2035 = vpop.f32.mrb[0].mxu0
        %v2036 = vadd.f32 %v1699, %v2035
        %v2037 = vpop.f32.mrb[0].mxu0
        %2038 = vmatprep.mubr.bf16.mxu0 0
        %2039 = vmatmul.mubr.bf16.gmra.mrb[0].mxu0 %v1237
        %v2040 = vpop.f32.mrb[0].mxu0
        %v2041 = vadd.f32 %v1704, %v2040
        %v2042 = vpop.f32.mrb[0].mxu0
        %v2043 = vpop.f32.mrb[0].mxu0
        %v2044 = vadd.f32 %v1707, %v2043
        %v2045 = vpop.f32.mrb[0].mxu0
        %2046 = vmatprep.mubr.bf16.mxu0 0
        %2047 = vmatmul.mubr.bf16.gmra.mrb[0].mxu0 %v1238
        %v2048 = vpop.f32.mrb[0].mxu0
        %v2049 = vadd.f32 %v1712, %v2048
        %v2050 = vpop.f32.mrb[0].mxu0
        %v2051 = vpop.f32.mrb[0].mxu0
        %v2052 = vadd.f32 %v1715, %v2051
        %v2053 = vpop.f32.mrb[0].mxu0
        %2054 = vmatprep.mubr.bf16.mxu0 0
        %2055 = vmatmul.mubr.bf16.gmra.mrb[0].mxu0 %v1239
        %v2056 = vpop.f32.mrb[0].mxu0
        %v2057 = vadd.f32 %v1720, %v2056
        %v2058 = vpop.f32.mrb[0].mxu0
        %v2059 = vpop.f32.mrb[0].mxu0
        %v2060 = vadd.f32 %v1723, %v2059
        %v2061 = vpop.f32.mrb[0].mxu0
        %2062 = vmatprep.mubr.bf16.mxu0 0
        %2063 = vmatmul.mubr.bf16.gmra.mrb[0].mxu0 %v1240
        %v2064 = vpop.f32.mrb[0].mxu0
        %v2065 = vadd.f32 %v1728, %v2064
        %v2066 = vpop.f32.mrb[0].mxu0
        %v2067 = vpop.f32.mrb[0].mxu0
        %v2068 = vadd.f32 %v1731, %v2067
        %v2069 = vpop.f32.mrb[0].mxu0
        %2070 = vmatprep.mubr.bf16.mxu0 0
        %2071 = vmatmul.mubr.bf16.gmra.mrb[0].mxu0 %v1241
        %v2072 = vpop.f32.mrb[0].mxu0
        %v2073 = vadd.f32 %v1736, %v2072
        %v2074 = vpop.f32.mrb[0].mxu0
        %v2075 = vpop.f32.mrb[0].mxu0
        %v2076 = vadd.f32 %v1739, %v2075
        %v2077 = vpop.f32.mrb[0].mxu0
        %2078 = vmatprep.mubr.bf16.mxu0 0
        %2079 = vmatmul.mubr.bf16.gmra.mrb[0].mxu0 %v1242
        %v2080 = vpop.f32.mrb[0].mxu0
        %v2081 = vadd.f32 %v1744, %v2080
        %v2082 = vpop.f32.mrb[0].mxu0
        %v2083 = vpop.f32.mrb[0].mxu0
        %v2084 = vadd.f32 %v1747, %v2083
        %v2085 = vpop.f32.mrb[0].mxu0
        %2086 = vmatprep.mubr.bf16.mxu0 0
        %2087 = vmatmul.mubr.bf16.gmra.mrb[0].mxu0 %v1243
        %v2088 = vpop.f32.mrb[0].mxu0
        %v2089 = vadd.f32 %v1752, %v2088
        %v2090 = vpop.f32.mrb[0].mxu0
        %v2091 = vpop.f32.mrb[0].mxu0
        %v2092 = vadd.f32 %v1755, %v2091
        %v2093 = vpop.f32.mrb[0].mxu0
        %2094 = vmatprep.mubr.bf16.mxu0 0
        %2095 = vmatmul.mubr.bf16.gmra.mrb[0].mxu0 %v1244
        %v2096 = vpop.f32.mrb[0].mxu0
        %v2097 = vadd.f32 %v1760, %v2096
        %v2098 = vpop.f32.mrb[0].mxu0
        %v2099 = vpop.f32.mrb[0].mxu0
        %v2100 = vadd.f32 %v1763, %v2099
        %v2101 = vpop.f32.mrb[0].mxu0
        %2102 = vmatprep.mubr.bf16.mxu0 0
        %2103 = vmatmul.mubr.bf16.gmra.mrb[0].mxu0 %v1245
        %v2104 = vpop.f32.mrb[0].mxu0
        %v2105 = vadd.f32 %v1768, %v2104
        %v2106 = vpop.f32.mrb[0].mxu0
        %v2107 = vpop.f32.mrb[0].mxu0
        %v2108 = vadd.f32 %v1771, %v2107
        %v2109 = vpop.f32.mrb[0].mxu0
        %2110 = vmatprep.mubr.bf16.mxu0 0
        %2111 = vmatmul.mubr.bf16.gmra.mrb[0].mxu0 %v1246
        %v2112 = vpop.f32.mrb[0].mxu0
        %v2113 = vadd.f32 %v1776, %v2112
        %v2114 = vpop.f32.mrb[0].mxu0
        %v2115 = vpop.f32.mrb[0].mxu0
        %v2116 = vadd.f32 %v1779, %v2115
        %v2117 = vpop.f32.mrb[0].mxu0
        %2118 = vmatprep.mubr.bf16.mxu0 0
        %2119 = vmatmul.mubr.bf16.gmra.mrb[0].mxu0 %v1247
        %v2120 = vpop.f32.mrb[0].mxu0
        %v2121 = vadd.f32 %v1784, %v2120
        %v2122 = vpop.f32.mrb[0].mxu0
        %v2123 = vpop.f32.mrb[0].mxu0
        %v2124 = vadd.f32 %v1787, %v2123
        %v2125 = vpop.f32.mrb[0].mxu0
        %2126 = vmatprep.mubr.bf16.mxu0 0
        %2127 = vmatmul.mubr.bf16.gmra.mrb[0].mxu0 %v1248
        %v2128 = vpop.f32.mrb[0].mxu0
        %v2129 = vadd.f32 %v1792, %v2128
        %v2130 = vpop.f32.mrb[0].mxu0
        %v2131 = vpop.f32.mrb[0].mxu0
        %v2132 = vadd.f32 %v1795, %v2131
        %v2133 = vpop.f32.mrb[0].mxu0
        %2134 = vmatprep.mubr.bf16.mxu0 0
        %2135 = vmatmul.mubr.bf16.gmra.mrb[0].mxu0 %v1249
        %v2136 = vpop.f32.mrb[0].mxu0
        %v2137 = vadd.f32 %v1800, %v2136
        %v2138 = vpop.f32.mrb[0].mxu0
        %v2139 = vpop.f32.mrb[0].mxu0
        %v2140 = vadd.f32 %v1803, %v2139
        %v2141 = vpop.f32.mrb[0].mxu0
        %2142 = vmatprep.mubr.bf16.mxu0 0
        %2143 = vmatmul.mubr.bf16.gmra.mrb[0].mxu0 %v1250
        %v2144 = vpop.f32.mrb[0].mxu0
        %v2145 = vadd.f32 %v1808, %v2144
        %v2146 = vpop.f32.mrb[0].mxu0
        %v2147 = vpop.f32.mrb[0].mxu0
        %v2148 = vadd.f32 %v1811, %v2147
        %v2149 = vpop.f32.mrb[0].mxu0
        %2150 = vmatprep.mubr.bf16.mxu0 0
        %2151 = vmatmul.mubr.bf16.gmra.mrb[0].mxu0 %v1251
        %v2152 = vpop.f32.mrb[0].mxu0
        %v2153 = vadd.f32 %v1816, %v2152
        %v2154 = vpop.f32.mrb[0].mxu0
        %v2155 = vpop.f32.mrb[0].mxu0
        %v2156 = vadd.f32 %v1819, %v2155
        %v2157 = vpop.f32.mrb[0].mxu0
        %2158 = vmatprep.mubr.bf16.mxu0 0
        %2159 = vmatmul.mubr.bf16.gmra.mrb[0].mxu0 %v1252
        %v2160 = vpop.f32.mrb[0].mxu0
        %v2161 = vadd.f32 %v1824, %v2160
        %v2162 = vpop.f32.mrb[0].mxu0
        %v2163 = vpop.f32.mrb[0].mxu0
        %v2164 = vadd.f32 %v1827, %v2163
        %v2165 = vpop.f32.mrb[0].mxu0
        %2166 = vmatprep.mubr.bf16.mxu0 0
        %2167 = vmatmul.mubr.bf16.gmra.mrb[0].mxu0 %v1253
        %v2168 = vpop.f32.mrb[0].mxu0
        %v2169 = vadd.f32 %v1832, %v2168
        %v2170 = vpop.f32.mrb[0].mxu0
        %v2171 = vpop.f32.mrb[0].mxu0
        %v2172 = vadd.f32 %v1835, %v2171
        %v2173 = vpop.f32.mrb[0].mxu0
        %2174 = vmatprep.mubr.bf16.mxu0 0
        %2175 = vmatmul.mubr.bf16.gmra.mrb[0].mxu0 %v1254
        %v2176 = vpop.f32.mrb[0].mxu0
        %v2177 = vadd.f32 %v1840, %v2176
        %v2178 = vpop.f32.mrb[0].mxu0
        %v2179 = vpop.f32.mrb[0].mxu0
        %v2180 = vadd.f32 %v1843, %v2179
        %v2181 = vpop.f32.mrb[0].mxu0
        %2182 = vmatprep.mubr.bf16.mxu0 0
        %2183 = vmatmul.mubr.bf16.gmra.mrb[0].mxu0 %v1255
        %v2184 = vpop.f32.mrb[0].mxu0
        %v2185 = vadd.f32 %v1848, %v2184
        %v2186 = vpop.f32.mrb[0].mxu0
        %v2187 = vpop.f32.mrb[0].mxu0
        %v2188 = vadd.f32 %v1851, %v2187
        %v2189 = vpop.f32.mrb[0].mxu0
        %2190 = vmatprep.mubr.bf16.mxu0 0
        %2191 = vmatmul.mubr.bf16.gmra.mrb[0].mxu0 %v1256
        %v2192 = vpop.f32.mrb[0].mxu0
        %v2193 = vadd.f32 %v1856, %v2192
        %v2194 = vpop.f32.mrb[0].mxu0
        %v2195 = vpop.f32.mrb[0].mxu0
        %v2196 = vadd.f32 %v1859, %v2195
        %v2197 = vpop.f32.mrb[0].mxu0
        %2198 = vmatprep.mubr.bf16.mxu0 0
        %2199 = vmatmul.mubr.bf16.gmra.mrb[0].mxu0 %v1257
        %v2200 = vpop.f32.mrb[0].mxu0
        %v2201 = vadd.f32 %v1864, %v2200
        %v2202 = vpop.f32.mrb[0].mxu0
        %v2203 = vpop.f32.mrb[0].mxu0
        %v2204 = vadd.f32 %v1867, %v2203
        %v2205 = vpop.f32.mrb[0].mxu0
        %2206 = vmatprep.mubr.bf16.mxu0 0
        %2207 = vmatmul.mubr.bf16.gmra.mrb[0].mxu0 %v1258
        %v2208 = vpop.f32.mrb[0].mxu0
        %v2209 = vadd.f32 %v1872, %v2208
        %v2210 = vpop.f32.mrb[0].mxu0
        %v2211 = vpop.f32.mrb[0].mxu0
        %v2212 = vadd.f32 %v1875, %v2211
        %v2213 = vpop.f32.mrb[0].mxu0
        %2214 = vmatprep.mubr.bf16.mxu0 0
        %2215 = vmatmul.mubr.bf16.gmra.mrb[0].mxu0 %v1259
        %v2216 = vpop.f32.mrb[0].mxu0
        %v2217 = vadd.f32 %v1880, %v2216
        %v2218 = vpop.f32.mrb[0].mxu0
        %v2219 = vpop.f32.mrb[0].mxu0
        %v2220 = vadd.f32 %v1883, %v2219
        %v2221 = vpop.f32.mrb[0].mxu0
        %2222 = vmatprep.mubr.bf16.mxu0 0
        %2223 = vmatmul.mubr.bf16.gmra.mrb[0].mxu0 %v1260
        %v2224 = vpop.f32.mrb[0].mxu0
        %v2225 = vadd.f32 %v1888, %v2224
        %v2226 = vpop.f32.mrb[0].mxu0
        %v2227 = vpop.f32.mrb[0].mxu0
        %v2228 = vadd.f32 %v1891, %v2227
        %v2229 = vpop.f32.mrb[0].mxu0
        %2230 = vmatprep.mubr.bf16.mxu0 0
        %2231 = vmatmul.mubr.bf16.gmra.mrb[0].mxu0 %v1261
        %v2232 = vpop.f32.mrb[0].mxu0
        %v2233 = vadd.f32 %v1896, %v2232
        %v2234 = vpop.f32.mrb[0].mxu0
        %v2235 = vpop.f32.mrb[0].mxu0
        %v2236 = vadd.f32 %v1899, %v2235
        %v2237 = vpop.f32.mrb[0].mxu0
        %2238 = vmatprep.mubr.bf16.mxu0 0
        %2239 = vmatmul.mubr.bf16.gmra.mrb[0].mxu0 %v1262
        %v2240 = vpop.f32.mrb[0].mxu0
        %v2241 = vadd.f32 %v1904, %v2240
        %v2242 = vpop.f32.mrb[0].mxu0
        %v2243 = vpop.f32.mrb[0].mxu0
        %v2244 = vadd.f32 %v1907, %v2243
        %v2245 = vpop.f32.mrb[0].mxu0
        %2246 = vmatprep.mubr.bf16.mxu0 0
        %2247 = vmatmul.mubr.bf16.gmra.mrb[0].mxu0 %v1263
        %v2248 = vpop.f32.mrb[0].mxu0
        %v2249 = vadd.f32 %v1912, %v2248
        %v2250 = vpop.f32.mrb[0].mxu0
        %v2251 = vpop.f32.mrb[0].mxu0
        %v2252 = vadd.f32 %v1915, %v2251
        %v2253 = vpop.f32.mrb[0].mxu0
        %2254 = vmatprep.mubr.bf16.mxu0 0
        %2255 = vmatmul.mubr.bf16.gmra.mrb[0].mxu0 %v1264
        %v2256 = vpop.f32.mrb[0].mxu0
        %v2257 = vadd.f32 %v1920, %v2256
        %v2258 = vpop.f32.mrb[0].mxu0
        %v2259 = vpop.f32.mrb[0].mxu0
        %v2260 = vadd.f32 %v1923, %v2259
        %v2261 = vpop.f32.mrb[0].mxu0
        %2262 = vmatprep.mubr.bf16.mxu0 0
        %2263 = vmatmul.mubr.bf16.gmra.mrb[0].mxu0 %v1265
        %v2264 = vpop.f32.mrb[0].mxu0
        %v2265 = vadd.f32 %v1928, %v2264
        %v2266 = vpop.f32.mrb[0].mxu0
        %v2267 = vpop.f32.mrb[0].mxu0
        %v2268 = vadd.f32 %v1931, %v2267
        %v2269 = vpop.f32.mrb[0].mxu0
        %2270 = vdwg.mxu0
        %s2271 = scalar_lea.vmem %s2, 128
        %v2272 = vld [vmem:[%s2271] sm:$0xf]
        %v2273 = vld [vmem:[%s2271 + $0x4] sm:$0xf]
        %v2274 = vld [vmem:[%s2271 + $0x8] sm:$0xf]
        %v2275 = vld [vmem:[%s2271 + $0xc] sm:$0xf]
        %v2276 = vld [vmem:[%s2271 + $0x10] sm:$0xf]
        %v2277 = vld [vmem:[%s2271 + $0x14] sm:$0xf]
        %v2278 = vld [vmem:[%s2271 + $0x18] sm:$0xf]
        %v2279 = vld [vmem:[%s2271 + $0x1c] sm:$0xf]
        %v2280 = vld [vmem:[%s2271 + $0x20] sm:$0xf]
        %v2281 = vld [vmem:[%s2271 + $0x24] sm:$0xf]
        %v2282 = vld [vmem:[%s2271 + $0x28] sm:$0xf]
        %v2283 = vld [vmem:[%s2271 + $0x2c] sm:$0xf]
        %v2284 = vld [vmem:[%s2271 + $0x30] sm:$0xf]
        %v2285 = vld [vmem:[%s2271 + $0x34] sm:$0xf]
        %v2286 = vld [vmem:[%s2271 + $0x38] sm:$0xf]
        %v2287 = vld [vmem:[%s2271 + $0x3c] sm:$0xf]
        %vm2321 = vcmask 1046528
        %v2322 = vrot.slane %v1234, 1
        %v2323 = vrot.slane %v1235, 1
        %v2324 = vsel %vm2321, %v2322, %v2323
        %v2325 = vrot.slane %v1236, 1
        %v2326 = vsel %vm2321, %v2323, %v2325
        %v2327 = vrot.slane %v1237, 1
        %v2328 = vsel %vm2321, %v2325, %v2327
        %v2329 = vrot.slane %v1238, 1
        %v2330 = vsel %vm2321, %v2327, %v2329
        %v2331 = vrot.slane %v1239, 1
        %v2332 = vsel %vm2321, %v2329, %v2331
        %v2333 = vrot.slane %v1240, 1
        %v2334 = vsel %vm2321, %v2331, %v2333
        %v2335 = vrot.slane %v1241, 1
        %v2336 = vsel %vm2321, %v2333, %v2335
        %v2337 = vrot.slane %v1242, 1
        %v2338 = vsel %vm2321, %v2335, %v2337
        %v2339 = vrot.slane %v1243, 1
        %v2340 = vsel %vm2321, %v2337, %v2339
        %v2341 = vrot.slane %v1244, 1
        %v2342 = vsel %vm2321, %v2339, %v2341
        %v2343 = vrot.slane %v1245, 1
        %v2344 = vsel %vm2321, %v2341, %v2343
        %v2345 = vrot.slane %v1246, 1
        %v2346 = vsel %vm2321, %v2343, %v2345
        %v2347 = vrot.slane %v1247, 1
        %v2348 = vsel %vm2321, %v2345, %v2347
        %v2349 = vrot.slane %v1248, 1
        %v2350 = vsel %vm2321, %v2347, %v2349
        %v2351 = vrot.slane %v1249, 1
        %v2352 = vsel %vm2321, %v2349, %v2351
        %v2353 = vrot.slane %v1250, 1
        %v2354 = vsel %vm2321, %v2351, %v2353
        %v2355 = vrot.slane %v1251, 1
        %v2356 = vsel %vm2321, %v2353, %v2355
        %v2357 = vrot.slane %v1252, 1
        %v2358 = vsel %vm2321, %v2355, %v2357
        %v2359 = vrot.slane %v1253, 1
        %v2360 = vsel %vm2321, %v2357, %v2359
        %v2361 = vrot.slane %v1254, 1
        %v2362 = vsel %vm2321, %v2359, %v2361
        %v2363 = vrot.slane %v1255, 1
        %v2364 = vsel %vm2321, %v2361, %v2363
        %v2365 = vrot.slane %v1256, 1
        %v2366 = vsel %vm2321, %v2363, %v2365
        %v2367 = vrot.slane %v1257, 1
        %v2368 = vsel %vm2321, %v2365, %v2367
        %v2369 = vrot.slane %v1258, 1
        %v2370 = vsel %vm2321, %v2367, %v2369
        %v2371 = vrot.slane %v1259, 1
        %v2372 = vsel %vm2321, %v2369, %v2371
        %v2373 = vrot.slane %v1260, 1
        %v2374 = vsel %vm2321, %v2371, %v2373
        %v2375 = vrot.slane %v1261, 1
        %v2376 = vsel %vm2321, %v2373, %v2375
        %v2377 = vrot.slane %v1262, 1
        %v2378 = vsel %vm2321, %v2375, %v2377
        %v2379 = vrot.slane %v1263, 1
        %v2380 = vsel %vm2321, %v2377, %v2379
        %v2381 = vrot.slane %v1264, 1
        %v2382 = vsel %vm2321, %v2379, %v2381
        %v2383 = vrot.slane %v1265, 1
        %v2384 = vsel %vm2321, %v2381, %v2383
        %v2385 = vrot.slane %v1266, 1
        %v2386 = vsel %vm2321, %v2383, %v2385
        %v2435 = vunpack.c.l.b16 %v2272
        %v2436 = vunpack.c.l.b16 %v2273
        %v2437 = vunpack.c.l.b16 %v2274
        %v2438 = vunpack.c.l.b16 %v2275
        %v2439 = vunpack.c.l.b16 %v2276
        %v2440 = vunpack.c.l.b16 %v2277
        %v2441 = vunpack.c.l.b16 %v2278
        %v2442 = vunpack.c.l.b16 %v2279
        %v2443 = vunpack.c.l.b16 %v2280
        %v2444 = vunpack.c.l.b16 %v2281
        %v2445 = vunpack.c.l.b16 %v2282
        %v2446 = vunpack.c.l.b16 %v2283
        %v2447 = vunpack.c.l.b16 %v2284
        %v2448 = vunpack.c.l.b16 %v2285
        %v2449 = vunpack.c.l.b16 %v2286
        %v2450 = vunpack.c.l.b16 %v2287
        %v2451 = vpack.c.b16 %v2436, %v2435
        %v2452 = vpack.c.b16 %v2438, %v2437
        %v2453 = vpack.c.b16 %v2440, %v2439
        %v2454 = vpack.c.b16 %v2442, %v2441
        %v2455 = vpack.c.b16 %v2444, %v2443
        %v2456 = vpack.c.b16 %v2446, %v2445
        %v2457 = vpack.c.b16 %v2448, %v2447
        %v2458 = vpack.c.b16 %v2450, %v2449
        %2467 = vmatprep.subr.bf16.mxu0 0
        %2468 = vmatpush1.bf16.msra.mxu0 %v2451
        %2469 = vmatprep.subr.bf16.mxu0 0
        %2470 = vmatpush1.bf16.msra.mxu0 %v2452
        %2471 = vmatprep.subr.bf16.mxu0 0
        %2472 = vmatpush1.bf16.msra.mxu0 %v2453
        %2473 = vmatprep.subr.bf16.mxu0 0
        %2474 = vmatpush1.bf16.msra.mxu0 %v2454
        %2475 = vmatprep.subr.bf16.mxu0 0
        %2476 = vmatpush1.bf16.msra.mxu0 %v2455
        %2477 = vmatprep.subr.bf16.mxu0 0
        %2478 = vmatpush1.bf16.msra.mxu0 %v2456
        %2479 = vmatprep.subr.bf16.mxu0 0
        %2480 = vmatpush1.bf16.msra.mxu0 %v2457
        %2481 = vmatprep.subr.bf16.mxu0 0
        %2482 = vmatpush1.bf16.msra.mxu0 %v2458
        %2483 = vmatprep.subr.bf16.mxu0 0
        %2484 = vmatpush1.bf16.msra.mxu0 0
        %2485 = vmatprep.subr.bf16.mxu0 0
        %2486 = vmatpush1.bf16.msra.mxu0 0
        %2487 = vmatprep.subr.bf16.mxu0 0
        %2488 = vmatpush1.bf16.msra.mxu0 0
        %2489 = vmatprep.subr.bf16.mxu0 0
        %2490 = vmatpush1.bf16.msra.mxu0 0
        %2491 = vmatprep.subr.bf16.mxu0 0
        %2492 = vmatpush1.bf16.msra.mxu0 0
        %2493 = vmatprep.subr.bf16.mxu0 0
        %2494 = vmatpush1.bf16.msra.mxu0 0
        %2495 = vmatprep.subr.bf16.mxu0 0
        %2496 = vmatpush1.bf16.msra.mxu0 0
        %2497 = vmatprep.subr.bf16.mxu0 0
        %2498 = vmatpush1.bf16.msra.mxu0 0
        %2499 = vmatprep.mubr.bf16.mxu0 0
        %2500 = vmatmul.mubr.bf16.gmra.mrb[0].mxu0 %v2324
        %v2501 = vpop.f32.mrb[0].mxu0
        %v2502 = vadd.f32 0.0, %v2501
        %v2503 = vpop.f32.mrb[0].mxu0
        %v2504 = vpop.f32.mrb[0].mxu0
        %v2505 = vadd.f32 0.0, %v2504
        %v2506 = vpop.f32.mrb[0].mxu0
        %2507 = vmatprep.mubr.bf16.mxu0 0
        %2508 = vmatmul.mubr.bf16.gmra.mrb[0].mxu0 %v2326
        %v2509 = vpop.f32.mrb[0].mxu0
        %v2510 = vadd.f32 0.0, %v2509
        %v2511 = vpop.f32.mrb[0].mxu0
        %v2512 = vpop.f32.mrb[0].mxu0
        %v2513 = vadd.f32 0.0, %v2512
        %v2514 = vpop.f32.mrb[0].mxu0
        %2515 = vmatprep.mubr.bf16.mxu0 0
        %2516 = vmatmul.mubr.bf16.gmra.mrb[0].mxu0 %v2328
        %v2517 = vpop.f32.mrb[0].mxu0
        %v2518 = vadd.f32 0.0, %v2517
        %v2519 = vpop.f32.mrb[0].mxu0
        %v2520 = vpop.f32.mrb[0].mxu0
        %v2521 = vadd.f32 0.0, %v2520
        %v2522 = vpop.f32.mrb[0].mxu0
        %2523 = vmatprep.mubr.bf16.mxu0 0
        %2524 = vmatmul.mubr.bf16.gmra.mrb[0].mxu0 %v2330
        %v2525 = vpop.f32.mrb[0].mxu0
        %v2526 = vadd.f32 0.0, %v2525
        %v2527 = vpop.f32.mrb[0].mxu0
        %v2528 = vpop.f32.mrb[0].mxu0
        %v2529 = vadd.f32 0.0, %v2528
        %v2530 = vpop.f32.mrb[0].mxu0
        %2531 = vmatprep.mubr.bf16.mxu0 0
        %2532 = vmatmul.mubr.bf16.gmra.mrb[0].mxu0 %v2332
        %v2533 = vpop.f32.mrb[0].mxu0
        %v2534 = vadd.f32 0.0, %v2533
        %v2535 = vpop.f32.mrb[0].mxu0
        %v2536 = vpop.f32.mrb[0].mxu0
        %v2537 = vadd.f32 0.0, %v2536
        %v2538 = vpop.f32.mrb[0].mxu0
        %2539 = vmatprep.mubr.bf16.mxu0 0
        %2540 = vmatmul.mubr.bf16.gmra.mrb[0].mxu0 %v2334
        %v2541 = vpop.f32.mrb[0].mxu0
        %v2542 = vadd.f32 0.0, %v2541
        %v2543 = vpop.f32.mrb[0].mxu0
        %v2544 = vpop.f32.mrb[0].mxu0
        %v2545 = vadd.f32 0.0, %v2544
        %v2546 = vpop.f32.mrb[0].mxu0
        %2547 = vmatprep.mubr.bf16.mxu0 0
        %2548 = vmatmul.mubr.bf16.gmra.mrb[0].mxu0 %v2336
        %v2549 = vpop.f32.mrb[0].mxu0
        %v2550 = vadd.f32 0.0, %v2549
        %v2551 = vpop.f32.mrb[0].mxu0
        %v2552 = vpop.f32.mrb[0].mxu0
        %v2553 = vadd.f32 0.0, %v2552
        %v2554 = vpop.f32.mrb[0].mxu0
        %2555 = vmatprep.mubr.bf16.mxu0 0
        %2556 = vmatmul.mubr.bf16.gmra.mrb[0].mxu0 %v2338
        %v2557 = vpop.f32.mrb[0].mxu0
        %v2558 = vadd.f32 0.0, %v2557
        %v2559 = vpop.f32.mrb[0].mxu0
        %v2560 = vpop.f32.mrb[0].mxu0
        %v2561 = vadd.f32 0.0, %v2560
        %v2562 = vpop.f32.mrb[0].mxu0
        %2563 = vmatprep.mubr.bf16.mxu0 0
        %2564 = vmatmul.mubr.bf16.gmra.mrb[0].mxu0 %v2340
        %v2565 = vpop.f32.mrb[0].mxu0
        %v2566 = vadd.f32 0.0, %v2565
        %v2567 = vpop.f32.mrb[0].mxu0
        %v2568 = vpop.f32.mrb[0].mxu0
        %v2569 = vadd.f32 0.0, %v2568
        %v2570 = vpop.f32.mrb[0].mxu0
        %2571 = vmatprep.mubr.bf16.mxu0 0
        %2572 = vmatmul.mubr.bf16.gmra.mrb[0].mxu0 %v2342
        %v2573 = vpop.f32.mrb[0].mxu0
        %v2574 = vadd.f32 0.0, %v2573
        %v2575 = vpop.f32.mrb[0].mxu0
        %v2576 = vpop.f32.mrb[0].mxu0
        %v2577 = vadd.f32 0.0, %v2576
        %v2578 = vpop.f32.mrb[0].mxu0
        %2579 = vmatprep.mubr.bf16.mxu0 0
        %2580 = vmatmul.mubr.bf16.gmra.mrb[0].mxu0 %v2344
        %v2581 = vpop.f32.mrb[0].mxu0
        %v2582 = vadd.f32 0.0, %v2581
        %v2583 = vpop.f32.mrb[0].mxu0
        %v2584 = vpop.f32.mrb[0].mxu0
        %v2585 = vadd.f32 0.0, %v2584
        %v2586 = vpop.f32.mrb[0].mxu0
        %2587 = vmatprep.mubr.bf16.mxu0 0
        %2588 = vmatmul.mubr.bf16.gmra.mrb[0].mxu0 %v2346
        %v2589 = vpop.f32.mrb[0].mxu0
        %v2590 = vadd.f32 0.0, %v2589
        %v2591 = vpop.f32.mrb[0].mxu0
        %v2592 = vpop.f32.mrb[0].mxu0
        %v2593 = vadd.f32 0.0, %v2592
        %v2594 = vpop.f32.mrb[0].mxu0
        %2595 = vmatprep.mubr.bf16.mxu0 0
        %2596 = vmatmul.mubr.bf16.gmra.mrb[0].mxu0 %v2348
        %v2597 = vpop.f32.mrb[0].mxu0
        %v2598 = vadd.f32 0.0, %v2597
        %v2599 = vpop.f32.mrb[0].mxu0
        %v2600 = vpop.f32.mrb[0].mxu0
        %v2601 = vadd.f32 0.0, %v2600
        %v2602 = vpop.f32.mrb[0].mxu0
        %2603 = vmatprep.mubr.bf16.mxu0 0
        %2604 = vmatmul.mubr.bf16.gmra.mrb[0].mxu0 %v2350
        %v2605 = vpop.f32.mrb[0].mxu0
        %v2606 = vadd.f32 0.0, %v2605
        %v2607 = vpop.f32.mrb[0].mxu0
        %v2608 = vpop.f32.mrb[0].mxu0
        %v2609 = vadd.f32 0.0, %v2608
        %v2610 = vpop.f32.mrb[0].mxu0
        %2611 = vmatprep.mubr.bf16.mxu0 0
        %2612 = vmatmul.mubr.bf16.gmra.mrb[0].mxu0 %v2352
        %v2613 = vpop.f32.mrb[0].mxu0
        %v2614 = vadd.f32 0.0, %v2613
        %v2615 = vpop.f32.mrb[0].mxu0
        %v2616 = vpop.f32.mrb[0].mxu0
        %v2617 = vadd.f32 0.0, %v2616
        %v2618 = vpop.f32.mrb[0].mxu0
        %2619 = vmatprep.mubr.bf16.mxu0 0
        %2620 = vmatmul.mubr.bf16.gmra.mrb[0].mxu0 %v2354
        %v2621 = vpop.f32.mrb[0].mxu0
        %v2622 = vadd.f32 0.0, %v2621
        %v2623 = vpop.f32.mrb[0].mxu0
        %v2624 = vpop.f32.mrb[0].mxu0
        %v2625 = vadd.f32 0.0, %v2624
        %v2626 = vpop.f32.mrb[0].mxu0
        %2627 = vmatprep.mubr.bf16.mxu0 0
        %2628 = vmatmul.mubr.bf16.gmra.mrb[0].mxu0 %v2356
        %v2629 = vpop.f32.mrb[0].mxu0
        %v2630 = vadd.f32 0.0, %v2629
        %v2631 = vpop.f32.mrb[0].mxu0
        %v2632 = vpop.f32.mrb[0].mxu0
        %v2633 = vadd.f32 0.0, %v2632
        %v2634 = vpop.f32.mrb[0].mxu0
        %2635 = vmatprep.mubr.bf16.mxu0 0
        %2636 = vmatmul.mubr.bf16.gmra.mrb[0].mxu0 %v2358
        %v2637 = vpop.f32.mrb[0].mxu0
        %v2638 = vadd.f32 0.0, %v2637
        %v2639 = vpop.f32.mrb[0].mxu0
        %v2640 = vpop.f32.mrb[0].mxu0
        %v2641 = vadd.f32 0.0, %v2640
        %v2642 = vpop.f32.mrb[0].mxu0
        %2643 = vmatprep.mubr.bf16.mxu0 0
        %2644 = vmatmul.mubr.bf16.gmra.mrb[0].mxu0 %v2360
        %v2645 = vpop.f32.mrb[0].mxu0
        %v2646 = vadd.f32 0.0, %v2645
        %v2647 = vpop.f32.mrb[0].mxu0
        %v2648 = vpop.f32.mrb[0].mxu0
        %v2649 = vadd.f32 0.0, %v2648
        %v2650 = vpop.f32.mrb[0].mxu0
        %2651 = vmatprep.mubr.bf16.mxu0 0
        %2652 = vmatmul.mubr.bf16.gmra.mrb[0].mxu0 %v2362
        %v2653 = vpop.f32.mrb[0].mxu0
        %v2654 = vadd.f32 0.0, %v2653
        %v2655 = vpop.f32.mrb[0].mxu0
        %v2656 = vpop.f32.mrb[0].mxu0
        %v2657 = vadd.f32 0.0, %v2656
        %v2658 = vpop.f32.mrb[0].mxu0
        %2659 = vmatprep.mubr.bf16.mxu0 0
        %2660 = vmatmul.mubr.bf16.gmra.mrb[0].mxu0 %v2364
        %v2661 = vpop.f32.mrb[0].mxu0
        %v2662 = vadd.f32 0.0, %v2661
        %v2663 = vpop.f32.mrb[0].mxu0
        %v2664 = vpop.f32.mrb[0].mxu0
        %v2665 = vadd.f32 0.0, %v2664
        %v2666 = vpop.f32.mrb[0].mxu0
        %2667 = vmatprep.mubr.bf16.mxu0 0
        %2668 = vmatmul.mubr.bf16.gmra.mrb[0].mxu0 %v2366
        %v2669 = vpop.f32.mrb[0].mxu0
        %v2670 = vadd.f32 0.0, %v2669
        %v2671 = vpop.f32.mrb[0].mxu0
        %v2672 = vpop.f32.mrb[0].mxu0
        %v2673 = vadd.f32 0.0, %v2672
        %v2674 = vpop.f32.mrb[0].mxu0
        %2675 = vmatprep.mubr.bf16.mxu0 0
        %2676 = vmatmul.mubr.bf16.gmra.mrb[0].mxu0 %v2368
        %v2677 = vpop.f32.mrb[0].mxu0
        %v2678 = vadd.f32 0.0, %v2677
        %v2679 = vpop.f32.mrb[0].mxu0
        %v2680 = vpop.f32.mrb[0].mxu0
        %v2681 = vadd.f32 0.0, %v2680
        %v2682 = vpop.f32.mrb[0].mxu0
        %2683 = vmatprep.mubr.bf16.mxu0 0
        %2684 = vmatmul.mubr.bf16.gmra.mrb[0].mxu0 %v2370
        %v2685 = vpop.f32.mrb[0].mxu0
        %v2686 = vadd.f32 0.0, %v2685
        %v2687 = vpop.f32.mrb[0].mxu0
        %v2688 = vpop.f32.mrb[0].mxu0
        %v2689 = vadd.f32 0.0, %v2688
        %v2690 = vpop.f32.mrb[0].mxu0
        %2691 = vmatprep.mubr.bf16.mxu0 0
        %2692 = vmatmul.mubr.bf16.gmra.mrb[0].mxu0 %v2372
        %v2693 = vpop.f32.mrb[0].mxu0
        %v2694 = vadd.f32 0.0, %v2693
        %v2695 = vpop.f32.mrb[0].mxu0
        %v2696 = vpop.f32.mrb[0].mxu0
        %v2697 = vadd.f32 0.0, %v2696
        %v2698 = vpop.f32.mrb[0].mxu0
        %2699 = vmatprep.mubr.bf16.mxu0 0
        %2700 = vmatmul.mubr.bf16.gmra.mrb[0].mxu0 %v2374
        %v2701 = vpop.f32.mrb[0].mxu0
        %v2702 = vadd.f32 0.0, %v2701
        %v2703 = vpop.f32.mrb[0].mxu0
        %v2704 = vpop.f32.mrb[0].mxu0
        %v2705 = vadd.f32 0.0, %v2704
        %v2706 = vpop.f32.mrb[0].mxu0
        %2707 = vmatprep.mubr.bf16.mxu0 0
        %2708 = vmatmul.mubr.bf16.gmra.mrb[0].mxu0 %v2376
        %v2709 = vpop.f32.mrb[0].mxu0
        %v2710 = vadd.f32 0.0, %v2709
        %v2711 = vpop.f32.mrb[0].mxu0
        %v2712 = vpop.f32.mrb[0].mxu0
        %v2713 = vadd.f32 0.0, %v2712
        %v2714 = vpop.f32.mrb[0].mxu0
        %2715 = vmatprep.mubr.bf16.mxu0 0
        %2716 = vmatmul.mubr.bf16.gmra.mrb[0].mxu0 %v2378
        %v2717 = vpop.f32.mrb[0].mxu0
        %v2718 = vadd.f32 0.0, %v2717
        %v2719 = vpop.f32.mrb[0].mxu0
        %v2720 = vpop.f32.mrb[0].mxu0
        %v2721 = vadd.f32 0.0, %v2720
        %v2722 = vpop.f32.mrb[0].mxu0
        %2723 = vmatprep.mubr.bf16.mxu0 0
        %2724 = vmatmul.mubr.bf16.gmra.mrb[0].mxu0 %v2380
        %v2725 = vpop.f32.mrb[0].mxu0
        %v2726 = vadd.f32 0.0, %v2725
        %v2727 = vpop.f32.mrb[0].mxu0
        %v2728 = vpop.f32.mrb[0].mxu0
        %v2729 = vadd.f32 0.0, %v2728
        %v2730 = vpop.f32.mrb[0].mxu0
        %2731 = vmatprep.mubr.bf16.mxu0 0
        %2732 = vmatmul.mubr.bf16.gmra.mrb[0].mxu0 %v2382
        %v2733 = vpop.f32.mrb[0].mxu0
        %v2734 = vadd.f32 0.0, %v2733
        %v2735 = vpop.f32.mrb[0].mxu0
        %v2736 = vpop.f32.mrb[0].mxu0
        %v2737 = vadd.f32 0.0, %v2736
        %v2738 = vpop.f32.mrb[0].mxu0
        %2739 = vmatprep.mubr.bf16.mxu0 0
        %2740 = vmatmul.mubr.bf16.gmra.mrb[0].mxu0 %v2384
        %v2741 = vpop.f32.mrb[0].mxu0
        %v2742 = vadd.f32 0.0, %v2741
        %v2743 = vpop.f32.mrb[0].mxu0
        %v2744 = vpop.f32.mrb[0].mxu0
        %v2745 = vadd.f32 0.0, %v2744
        %v2746 = vpop.f32.mrb[0].mxu0
        %2747 = vmatprep.mubr.bf16.mxu0 0
        %2748 = vmatmul.mubr.bf16.gmra.mrb[0].mxu0 %v2386
        %v2749 = vpop.f32.mrb[0].mxu0
        %v2750 = vadd.f32 0.0, %v2749
        %v2751 = vpop.f32.mrb[0].mxu0
        %v2752 = vpop.f32.mrb[0].mxu0
        %v2753 = vadd.f32 0.0, %v2752
        %v2754 = vpop.f32.mrb[0].mxu0
        %2755 = vdwg.mxu0
        %v2756 = vadd.f32 %v2017, %v2502
        %v2757 = vadd.f32 %v2020, %v2505
        %v2758 = vadd.f32 %v2025, %v2510
        %v2759 = vadd.f32 %v2028, %v2513
        %v2760 = vadd.f32 %v2033, %v2518
        %v2761 = vadd.f32 %v2036, %v2521
        %v2762 = vadd.f32 %v2041, %v2526
        %v2763 = vadd.f32 %v2044, %v2529
        %v2764 = vadd.f32 %v2049, %v2534
        %v2765 = vadd.f32 %v2052, %v2537
        %v2766 = vadd.f32 %v2057, %v2542
        %v2767 = vadd.f32 %v2060, %v2545
        %v2768 = vadd.f32 %v2065, %v2550
        %v2769 = vadd.f32 %v2068, %v2553
        %v2770 = vadd.f32 %v2073, %v2558
        %v2771 = vadd.f32 %v2076, %v2561
        %v2772 = vadd.f32 %v2081, %v2566
        %v2773 = vadd.f32 %v2084, %v2569
        %v2774 = vadd.f32 %v2089, %v2574
        %v2775 = vadd.f32 %v2092, %v2577
        %v2776 = vadd.f32 %v2097, %v2582
        %v2777 = vadd.f32 %v2100, %v2585
        %v2778 = vadd.f32 %v2105, %v2590
        %v2779 = vadd.f32 %v2108, %v2593
        %v2780 = vadd.f32 %v2113, %v2598
        %v2781 = vadd.f32 %v2116, %v2601
        %v2782 = vadd.f32 %v2121, %v2606
        %v2783 = vadd.f32 %v2124, %v2609
        %v2784 = vadd.f32 %v2129, %v2614
        %v2785 = vadd.f32 %v2132, %v2617
        %v2786 = vadd.f32 %v2137, %v2622
        %v2787 = vadd.f32 %v2140, %v2625
        %v2788 = vadd.f32 %v2145, %v2630
        %v2789 = vadd.f32 %v2148, %v2633
        %v2790 = vadd.f32 %v2153, %v2638
        %v2791 = vadd.f32 %v2156, %v2641
        %v2792 = vadd.f32 %v2161, %v2646
        %v2793 = vadd.f32 %v2164, %v2649
        %v2794 = vadd.f32 %v2169, %v2654
        %v2795 = vadd.f32 %v2172, %v2657
        %v2796 = vadd.f32 %v2177, %v2662
        %v2797 = vadd.f32 %v2180, %v2665
        %v2798 = vadd.f32 %v2185, %v2670
        %v2799 = vadd.f32 %v2188, %v2673
        %v2800 = vadd.f32 %v2193, %v2678
        %v2801 = vadd.f32 %v2196, %v2681
        %v2802 = vadd.f32 %v2201, %v2686
        %v2803 = vadd.f32 %v2204, %v2689
        %v2804 = vadd.f32 %v2209, %v2694
        %v2805 = vadd.f32 %v2212, %v2697
        %v2806 = vadd.f32 %v2217, %v2702
        %v2807 = vadd.f32 %v2220, %v2705
        %v2808 = vadd.f32 %v2225, %v2710
        %v2809 = vadd.f32 %v2228, %v2713
        %v2810 = vadd.f32 %v2233, %v2718
        %v2811 = vadd.f32 %v2236, %v2721
        %v2812 = vadd.f32 %v2241, %v2726
        %v2813 = vadd.f32 %v2244, %v2729
        %v2814 = vadd.f32 %v2249, %v2734
        %v2815 = vadd.f32 %v2252, %v2737
        %v2816 = vadd.f32 %v2257, %v2742
        %v2817 = vadd.f32 %v2260, %v2745
        %v2818 = vadd.f32 %v2265, %v2750
        %v2819 = vadd.f32 %v2268, %v2753
        %s2820 = scalar_lea.vmem %s2, 192
        %v2821 = vld [vmem:[%s2820] sm:$0xf]
        %v2822 = vld [vmem:[%s2820 + $0x4] sm:$0xf]
        %v2823 = vld [vmem:[%s2820 + $0x8] sm:$0xf]
        %v2824 = vld [vmem:[%s2820 + $0xc] sm:$0xf]
        %v2825 = vld [vmem:[%s2820 + $0x10] sm:$0xf]
        %v2826 = vld [vmem:[%s2820 + $0x14] sm:$0xf]
        %v2827 = vld [vmem:[%s2820 + $0x18] sm:$0xf]
        %v2828 = vld [vmem:[%s2820 + $0x1c] sm:$0xf]
        %v2829 = vld [vmem:[%s2820 + $0x20] sm:$0xf]
        %v2830 = vld [vmem:[%s2820 + $0x24] sm:$0xf]
        %v2831 = vld [vmem:[%s2820 + $0x28] sm:$0xf]
        %v2832 = vld [vmem:[%s2820 + $0x2c] sm:$0xf]
        %v2833 = vld [vmem:[%s2820 + $0x30] sm:$0xf]
        %v2834 = vld [vmem:[%s2820 + $0x34] sm:$0xf]
        %v2835 = vld [vmem:[%s2820 + $0x38] sm:$0xf]
        %v2836 = vld [vmem:[%s2820 + $0x3c] sm:$0xf]
        %v2853 = vunpack.c.l.b16 %v2821
        %v2854 = vunpack.c.l.b16 %v2822
        %v2855 = vunpack.c.l.b16 %v2823
        %v2856 = vunpack.c.l.b16 %v2824
        %v2857 = vunpack.c.l.b16 %v2825
        %v2858 = vunpack.c.l.b16 %v2826
        %v2859 = vunpack.c.l.b16 %v2827
        %v2860 = vunpack.c.l.b16 %v2828
        %v2861 = vunpack.c.l.b16 %v2829
        %v2862 = vunpack.c.l.b16 %v2830
        %v2863 = vunpack.c.l.b16 %v2831
        %v2864 = vunpack.c.l.b16 %v2832
        %v2865 = vunpack.c.l.b16 %v2833
        %v2866 = vunpack.c.l.b16 %v2834
        %v2867 = vunpack.c.l.b16 %v2835
        %v2868 = vunpack.c.l.b16 %v2836
        %v2869 = vpack.c.b16 %v2854, %v2853
        %v2870 = vpack.c.b16 %v2856, %v2855
        %v2871 = vpack.c.b16 %v2858, %v2857
        %v2872 = vpack.c.b16 %v2860, %v2859
        %v2873 = vpack.c.b16 %v2862, %v2861
        %v2874 = vpack.c.b16 %v2864, %v2863
        %v2875 = vpack.c.b16 %v2866, %v2865
        %v2876 = vpack.c.b16 %v2868, %v2867
        %2885 = vmatprep.subr.bf16.mxu0 0
        %2886 = vmatpush1.bf16.msra.mxu0 %v2869
        %2887 = vmatprep.subr.bf16.mxu0 0
        %2888 = vmatpush1.bf16.msra.mxu0 %v2870
        %2889 = vmatprep.subr.bf16.mxu0 0
        %2890 = vmatpush1.bf16.msra.mxu0 %v2871
        %2891 = vmatprep.subr.bf16.mxu0 0
        %2892 = vmatpush1.bf16.msra.mxu0 %v2872
        %2893 = vmatprep.subr.bf16.mxu0 0
        %2894 = vmatpush1.bf16.msra.mxu0 %v2873
        %2895 = vmatprep.subr.bf16.mxu0 0
        %2896 = vmatpush1.bf16.msra.mxu0 %v2874
        %2897 = vmatprep.subr.bf16.mxu0 0
        %2898 = vmatpush1.bf16.msra.mxu0 %v2875
        %2899 = vmatprep.subr.bf16.mxu0 0
        %2900 = vmatpush1.bf16.msra.mxu0 %v2876
        %2901 = vmatprep.subr.bf16.mxu0 0
        %2902 = vmatpush1.bf16.msra.mxu0 0
        %2903 = vmatprep.subr.bf16.mxu0 0
        %2904 = vmatpush1.bf16.msra.mxu0 0
        %2905 = vmatprep.subr.bf16.mxu0 0
        %2906 = vmatpush1.bf16.msra.mxu0 0
        %2907 = vmatprep.subr.bf16.mxu0 0
        %2908 = vmatpush1.bf16.msra.mxu0 0
        %2909 = vmatprep.subr.bf16.mxu0 0
        %2910 = vmatpush1.bf16.msra.mxu0 0
        %2911 = vmatprep.subr.bf16.mxu0 0
        %2912 = vmatpush1.bf16.msra.mxu0 0
        %2913 = vmatprep.subr.bf16.mxu0 0
        %2914 = vmatpush1.bf16.msra.mxu0 0
        %2915 = vmatprep.subr.bf16.mxu0 0
        %2916 = vmatpush1.bf16.msra.mxu0 0
        %2917 = vmatprep.mubr.bf16.mxu0 0
        %2918 = vmatmul.mubr.bf16.gmra.mrb[0].mxu0 %v1236
        %v2919 = vpop.f32.mrb[0].mxu0
        %v2920 = vadd.f32 0.0, %v2919
        %v2921 = vpop.f32.mrb[0].mxu0
        %v2922 = vpop.f32.mrb[0].mxu0
        %v2923 = vadd.f32 0.0, %v2922
        %v2924 = vpop.f32.mrb[0].mxu0
        %2925 = vmatprep.mubr.bf16.mxu0 0
        %2926 = vmatmul.mubr.bf16.gmra.mrb[0].mxu0 %v1237
        %v2927 = vpop.f32.mrb[0].mxu0
        %v2928 = vadd.f32 0.0, %v2927
        %v2929 = vpop.f32.mrb[0].mxu0
        %v2930 = vpop.f32.mrb[0].mxu0
        %v2931 = vadd.f32 0.0, %v2930
        %v2932 = vpop.f32.mrb[0].mxu0
        %2933 = vmatprep.mubr.bf16.mxu0 0
        %2934 = vmatmul.mubr.bf16.gmra.mrb[0].mxu0 %v1238
        %v2935 = vpop.f32.mrb[0].mxu0
        %v2936 = vadd.f32 0.0, %v2935
        %v2937 = vpop.f32.mrb[0].mxu0
        %v2938 = vpop.f32.mrb[0].mxu0
        %v2939 = vadd.f32 0.0, %v2938
        %v2940 = vpop.f32.mrb[0].mxu0
        %2941 = vmatprep.mubr.bf16.mxu0 0
        %2942 = vmatmul.mubr.bf16.gmra.mrb[0].mxu0 %v1239
        %v2943 = vpop.f32.mrb[0].mxu0
        %v2944 = vadd.f32 0.0, %v2943
        %v2945 = vpop.f32.mrb[0].mxu0
        %v2946 = vpop.f32.mrb[0].mxu0
        %v2947 = vadd.f32 0.0, %v2946
        %v2948 = vpop.f32.mrb[0].mxu0
        %2949 = vmatprep.mubr.bf16.mxu0 0
        %2950 = vmatmul.mubr.bf16.gmra.mrb[0].mxu0 %v1240
        %v2951 = vpop.f32.mrb[0].mxu0
        %v2952 = vadd.f32 0.0, %v2951
        %v2953 = vpop.f32.mrb[0].mxu0
        %v2954 = vpop.f32.mrb[0].mxu0
        %v2955 = vadd.f32 0.0, %v2954
        %v2956 = vpop.f32.mrb[0].mxu0
        %2957 = vmatprep.mubr.bf16.mxu0 0
        %2958 = vmatmul.mubr.bf16.gmra.mrb[0].mxu0 %v1241
        %v2959 = vpop.f32.mrb[0].mxu0
        %v2960 = vadd.f32 0.0, %v2959
        %v2961 = vpop.f32.mrb[0].mxu0
        %v2962 = vpop.f32.mrb[0].mxu0
        %v2963 = vadd.f32 0.0, %v2962
        %v2964 = vpop.f32.mrb[0].mxu0
        %2965 = vmatprep.mubr.bf16.mxu0 0
        %2966 = vmatmul.mubr.bf16.gmra.mrb[0].mxu0 %v1242
        %v2967 = vpop.f32.mrb[0].mxu0
        %v2968 = vadd.f32 0.0, %v2967
        %v2969 = vpop.f32.mrb[0].mxu0
        %v2970 = vpop.f32.mrb[0].mxu0
        %v2971 = vadd.f32 0.0, %v2970
        %v2972 = vpop.f32.mrb[0].mxu0
        %2973 = vmatprep.mubr.bf16.mxu0 0
        %2974 = vmatmul.mubr.bf16.gmra.mrb[0].mxu0 %v1243
        %v2975 = vpop.f32.mrb[0].mxu0
        %v2976 = vadd.f32 0.0, %v2975
        %v2977 = vpop.f32.mrb[0].mxu0
        %v2978 = vpop.f32.mrb[0].mxu0
        %v2979 = vadd.f32 0.0, %v2978
        %v2980 = vpop.f32.mrb[0].mxu0
        %2981 = vmatprep.mubr.bf16.mxu0 0
        %2982 = vmatmul.mubr.bf16.gmra.mrb[0].mxu0 %v1244
        %v2983 = vpop.f32.mrb[0].mxu0
        %v2984 = vadd.f32 0.0, %v2983
        %v2985 = vpop.f32.mrb[0].mxu0
        %v2986 = vpop.f32.mrb[0].mxu0
        %v2987 = vadd.f32 0.0, %v2986
        %v2988 = vpop.f32.mrb[0].mxu0
        %2989 = vmatprep.mubr.bf16.mxu0 0
        %2990 = vmatmul.mubr.bf16.gmra.mrb[0].mxu0 %v1245
        %v2991 = vpop.f32.mrb[0].mxu0
        %v2992 = vadd.f32 0.0, %v2991
        %v2993 = vpop.f32.mrb[0].mxu0
        %v2994 = vpop.f32.mrb[0].mxu0
        %v2995 = vadd.f32 0.0, %v2994
        %v2996 = vpop.f32.mrb[0].mxu0
        %2997 = vmatprep.mubr.bf16.mxu0 0
        %2998 = vmatmul.mubr.bf16.gmra.mrb[0].mxu0 %v1246
        %v2999 = vpop.f32.mrb[0].mxu0
        %v3000 = vadd.f32 0.0, %v2999
        %v3001 = vpop.f32.mrb[0].mxu0
        %v3002 = vpop.f32.mrb[0].mxu0
        %v3003 = vadd.f32 0.0, %v3002
        %v3004 = vpop.f32.mrb[0].mxu0
        %3005 = vmatprep.mubr.bf16.mxu0 0
        %3006 = vmatmul.mubr.bf16.gmra.mrb[0].mxu0 %v1247
        %v3007 = vpop.f32.mrb[0].mxu0
        %v3008 = vadd.f32 0.0, %v3007
        %v3009 = vpop.f32.mrb[0].mxu0
        %v3010 = vpop.f32.mrb[0].mxu0
        %v3011 = vadd.f32 0.0, %v3010
        %v3012 = vpop.f32.mrb[0].mxu0
        %3013 = vmatprep.mubr.bf16.mxu0 0
        %3014 = vmatmul.mubr.bf16.gmra.mrb[0].mxu0 %v1248
        %v3015 = vpop.f32.mrb[0].mxu0
        %v3016 = vadd.f32 0.0, %v3015
        %v3017 = vpop.f32.mrb[0].mxu0
        %v3018 = vpop.f32.mrb[0].mxu0
        %v3019 = vadd.f32 0.0, %v3018
        %v3020 = vpop.f32.mrb[0].mxu0
        %3021 = vmatprep.mubr.bf16.mxu0 0
        %3022 = vmatmul.mubr.bf16.gmra.mrb[0].mxu0 %v1249
        %v3023 = vpop.f32.mrb[0].mxu0
        %v3024 = vadd.f32 0.0, %v3023
        %v3025 = vpop.f32.mrb[0].mxu0
        %v3026 = vpop.f32.mrb[0].mxu0
        %v3027 = vadd.f32 0.0, %v3026
        %v3028 = vpop.f32.mrb[0].mxu0
        %3029 = vmatprep.mubr.bf16.mxu0 0
        %3030 = vmatmul.mubr.bf16.gmra.mrb[0].mxu0 %v1250
        %v3031 = vpop.f32.mrb[0].mxu0
        %v3032 = vadd.f32 0.0, %v3031
        %v3033 = vpop.f32.mrb[0].mxu0
        %v3034 = vpop.f32.mrb[0].mxu0
        %v3035 = vadd.f32 0.0, %v3034
        %v3036 = vpop.f32.mrb[0].mxu0
        %3037 = vmatprep.mubr.bf16.mxu0 0
        %3038 = vmatmul.mubr.bf16.gmra.mrb[0].mxu0 %v1251
        %v3039 = vpop.f32.mrb[0].mxu0
        %v3040 = vadd.f32 0.0, %v3039
        %v3041 = vpop.f32.mrb[0].mxu0
        %v3042 = vpop.f32.mrb[0].mxu0
        %v3043 = vadd.f32 0.0, %v3042
        %v3044 = vpop.f32.mrb[0].mxu0
        %3045 = vmatprep.mubr.bf16.mxu0 0
        %3046 = vmatmul.mubr.bf16.gmra.mrb[0].mxu0 %v1252
        %v3047 = vpop.f32.mrb[0].mxu0
        %v3048 = vadd.f32 0.0, %v3047
        %v3049 = vpop.f32.mrb[0].mxu0
        %v3050 = vpop.f32.mrb[0].mxu0
        %v3051 = vadd.f32 0.0, %v3050
        %v3052 = vpop.f32.mrb[0].mxu0
        %3053 = vmatprep.mubr.bf16.mxu0 0
        %3054 = vmatmul.mubr.bf16.gmra.mrb[0].mxu0 %v1253
        %v3055 = vpop.f32.mrb[0].mxu0
        %v3056 = vadd.f32 0.0, %v3055
        %v3057 = vpop.f32.mrb[0].mxu0
        %v3058 = vpop.f32.mrb[0].mxu0
        %v3059 = vadd.f32 0.0, %v3058
        %v3060 = vpop.f32.mrb[0].mxu0
        %3061 = vmatprep.mubr.bf16.mxu0 0
        %3062 = vmatmul.mubr.bf16.gmra.mrb[0].mxu0 %v1254
        %v3063 = vpop.f32.mrb[0].mxu0
        %v3064 = vadd.f32 0.0, %v3063
        %v3065 = vpop.f32.mrb[0].mxu0
        %v3066 = vpop.f32.mrb[0].mxu0
        %v3067 = vadd.f32 0.0, %v3066
        %v3068 = vpop.f32.mrb[0].mxu0
        %3069 = vmatprep.mubr.bf16.mxu0 0
        %3070 = vmatmul.mubr.bf16.gmra.mrb[0].mxu0 %v1255
        %v3071 = vpop.f32.mrb[0].mxu0
        %v3072 = vadd.f32 0.0, %v3071
        %v3073 = vpop.f32.mrb[0].mxu0
        %v3074 = vpop.f32.mrb[0].mxu0
        %v3075 = vadd.f32 0.0, %v3074
        %v3076 = vpop.f32.mrb[0].mxu0
        %3077 = vmatprep.mubr.bf16.mxu0 0
        %3078 = vmatmul.mubr.bf16.gmra.mrb[0].mxu0 %v1256
        %v3079 = vpop.f32.mrb[0].mxu0
        %v3080 = vadd.f32 0.0, %v3079
        %v3081 = vpop.f32.mrb[0].mxu0
        %v3082 = vpop.f32.mrb[0].mxu0
        %v3083 = vadd.f32 0.0, %v3082
        %v3084 = vpop.f32.mrb[0].mxu0
        %3085 = vmatprep.mubr.bf16.mxu0 0
        %3086 = vmatmul.mubr.bf16.gmra.mrb[0].mxu0 %v1257
        %v3087 = vpop.f32.mrb[0].mxu0
        %v3088 = vadd.f32 0.0, %v3087
        %v3089 = vpop.f32.mrb[0].mxu0
        %v3090 = vpop.f32.mrb[0].mxu0
        %v3091 = vadd.f32 0.0, %v3090
        %v3092 = vpop.f32.mrb[0].mxu0
        %3093 = vmatprep.mubr.bf16.mxu0 0
        %3094 = vmatmul.mubr.bf16.gmra.mrb[0].mxu0 %v1258
        %v3095 = vpop.f32.mrb[0].mxu0
        %v3096 = vadd.f32 0.0, %v3095
        %v3097 = vpop.f32.mrb[0].mxu0
        %v3098 = vpop.f32.mrb[0].mxu0
        %v3099 = vadd.f32 0.0, %v3098
        %v3100 = vpop.f32.mrb[0].mxu0
        %3101 = vmatprep.mubr.bf16.mxu0 0
        %3102 = vmatmul.mubr.bf16.gmra.mrb[0].mxu0 %v1259
        %v3103 = vpop.f32.mrb[0].mxu0
        %v3104 = vadd.f32 0.0, %v3103
        %v3105 = vpop.f32.mrb[0].mxu0
        %v3106 = vpop.f32.mrb[0].mxu0
        %v3107 = vadd.f32 0.0, %v3106
        %v3108 = vpop.f32.mrb[0].mxu0
        %3109 = vmatprep.mubr.bf16.mxu0 0
        %3110 = vmatmul.mubr.bf16.gmra.mrb[0].mxu0 %v1260
        %v3111 = vpop.f32.mrb[0].mxu0
        %v3112 = vadd.f32 0.0, %v3111
        %v3113 = vpop.f32.mrb[0].mxu0
        %v3114 = vpop.f32.mrb[0].mxu0
        %v3115 = vadd.f32 0.0, %v3114
        %v3116 = vpop.f32.mrb[0].mxu0
        %3117 = vmatprep.mubr.bf16.mxu0 0
        %3118 = vmatmul.mubr.bf16.gmra.mrb[0].mxu0 %v1261
        %v3119 = vpop.f32.mrb[0].mxu0
        %v3120 = vadd.f32 0.0, %v3119
        %v3121 = vpop.f32.mrb[0].mxu0
        %v3122 = vpop.f32.mrb[0].mxu0
        %v3123 = vadd.f32 0.0, %v3122
        %v3124 = vpop.f32.mrb[0].mxu0
        %3125 = vmatprep.mubr.bf16.mxu0 0
        %3126 = vmatmul.mubr.bf16.gmra.mrb[0].mxu0 %v1262
        %v3127 = vpop.f32.mrb[0].mxu0
        %v3128 = vadd.f32 0.0, %v3127
        %v3129 = vpop.f32.mrb[0].mxu0
        %v3130 = vpop.f32.mrb[0].mxu0
        %v3131 = vadd.f32 0.0, %v3130
        %v3132 = vpop.f32.mrb[0].mxu0
        %3133 = vmatprep.mubr.bf16.mxu0 0
        %3134 = vmatmul.mubr.bf16.gmra.mrb[0].mxu0 %v1263
        %v3135 = vpop.f32.mrb[0].mxu0
        %v3136 = vadd.f32 0.0, %v3135
        %v3137 = vpop.f32.mrb[0].mxu0
        %v3138 = vpop.f32.mrb[0].mxu0
        %v3139 = vadd.f32 0.0, %v3138
        %v3140 = vpop.f32.mrb[0].mxu0
        %3141 = vmatprep.mubr.bf16.mxu0 0
        %3142 = vmatmul.mubr.bf16.gmra.mrb[0].mxu0 %v1264
        %v3143 = vpop.f32.mrb[0].mxu0
        %v3144 = vadd.f32 0.0, %v3143
        %v3145 = vpop.f32.mrb[0].mxu0
        %v3146 = vpop.f32.mrb[0].mxu0
        %v3147 = vadd.f32 0.0, %v3146
        %v3148 = vpop.f32.mrb[0].mxu0
        %3149 = vmatprep.mubr.bf16.mxu0 0
        %3150 = vmatmul.mubr.bf16.gmra.mrb[0].mxu0 %v1265
        %v3151 = vpop.f32.mrb[0].mxu0
        %v3152 = vadd.f32 0.0, %v3151
        %v3153 = vpop.f32.mrb[0].mxu0
        %v3154 = vpop.f32.mrb[0].mxu0
        %v3155 = vadd.f32 0.0, %v3154
        %v3156 = vpop.f32.mrb[0].mxu0
        %3157 = vmatprep.mubr.bf16.mxu0 0
        %3158 = vmatmul.mubr.bf16.gmra.mrb[0].mxu0 %v1266
        %v3159 = vpop.f32.mrb[0].mxu0
        %v3160 = vadd.f32 0.0, %v3159
        %v3161 = vpop.f32.mrb[0].mxu0
        %v3162 = vpop.f32.mrb[0].mxu0
        %v3163 = vadd.f32 0.0, %v3162
        %v3164 = vpop.f32.mrb[0].mxu0
        %3165 = vmatprep.mubr.bf16.mxu0 0
        %3166 = vmatmul.mubr.bf16.gmra.mrb[0].mxu0 %v1267
        %v3167 = vpop.f32.mrb[0].mxu0
        %v3168 = vadd.f32 0.0, %v3167
        %v3169 = vpop.f32.mrb[0].mxu0
        %v3170 = vpop.f32.mrb[0].mxu0
        %v3171 = vadd.f32 0.0, %v3170
        %v3172 = vpop.f32.mrb[0].mxu0
        %3173 = vdwg.mxu0
        %v3174 = vadd.f32 %v2756, %v2920
        %v3175 = vadd.f32 %v2757, %v2923
        %v3176 = vadd.f32 %v2758, %v2928
        %v3177 = vadd.f32 %v2759, %v2931
        %v3178 = vadd.f32 %v2760, %v2936
        %v3179 = vadd.f32 %v2761, %v2939
        %v3180 = vadd.f32 %v2762, %v2944
        %v3181 = vadd.f32 %v2763, %v2947
        %v3182 = vadd.f32 %v2764, %v2952
        %v3183 = vadd.f32 %v2765, %v2955
        %v3184 = vadd.f32 %v2766, %v2960
        %v3185 = vadd.f32 %v2767, %v2963
        %v3186 = vadd.f32 %v2768, %v2968
        %v3187 = vadd.f32 %v2769, %v2971
        %v3188 = vadd.f32 %v2770, %v2976
        %v3189 = vadd.f32 %v2771, %v2979
        %v3190 = vadd.f32 %v2772, %v2984
        %v3191 = vadd.f32 %v2773, %v2987
        %v3192 = vadd.f32 %v2774, %v2992
        %v3193 = vadd.f32 %v2775, %v2995
        %v3194 = vadd.f32 %v2776, %v3000
        %v3195 = vadd.f32 %v2777, %v3003
        %v3196 = vadd.f32 %v2778, %v3008
        %v3197 = vadd.f32 %v2779, %v3011
        %v3198 = vadd.f32 %v2780, %v3016
        %v3199 = vadd.f32 %v2781, %v3019
        %v3200 = vadd.f32 %v2782, %v3024
        %v3201 = vadd.f32 %v2783, %v3027
        %v3202 = vadd.f32 %v2784, %v3032
        %v3203 = vadd.f32 %v2785, %v3035
        %v3204 = vadd.f32 %v2786, %v3040
        %v3205 = vadd.f32 %v2787, %v3043
        %v3206 = vadd.f32 %v2788, %v3048
        %v3207 = vadd.f32 %v2789, %v3051
        %v3208 = vadd.f32 %v2790, %v3056
        %v3209 = vadd.f32 %v2791, %v3059
        %v3210 = vadd.f32 %v2792, %v3064
        %v3211 = vadd.f32 %v2793, %v3067
        %v3212 = vadd.f32 %v2794, %v3072
        %v3213 = vadd.f32 %v2795, %v3075
        %v3214 = vadd.f32 %v2796, %v3080
        %v3215 = vadd.f32 %v2797, %v3083
        %v3216 = vadd.f32 %v2798, %v3088
        %v3217 = vadd.f32 %v2799, %v3091
        %v3218 = vadd.f32 %v2800, %v3096
        %v3219 = vadd.f32 %v2801, %v3099
        %v3220 = vadd.f32 %v2802, %v3104
        %v3221 = vadd.f32 %v2803, %v3107
        %v3222 = vadd.f32 %v2804, %v3112
        %v3223 = vadd.f32 %v2805, %v3115
        %v3224 = vadd.f32 %v2806, %v3120
        %v3225 = vadd.f32 %v2807, %v3123
        %v3226 = vadd.f32 %v2808, %v3128
        %v3227 = vadd.f32 %v2809, %v3131
        %v3228 = vadd.f32 %v2810, %v3136
        %v3229 = vadd.f32 %v2811, %v3139
        %v3230 = vadd.f32 %v2812, %v3144
        %v3231 = vadd.f32 %v2813, %v3147
        %v3232 = vadd.f32 %v2814, %v3152
        %v3233 = vadd.f32 %v2815, %v3155
        %v3234 = vadd.f32 %v2816, %v3160
        %v3235 = vadd.f32 %v2817, %v3163
        %v3236 = vadd.f32 %v2818, %v3168
        %v3237 = vadd.f32 %v2819, %v3171
        %s3238 = scalar_lea.vmem %s2, 256
        %v3239 = vld [vmem:[%s3238] sm:$0xf]
        %v3240 = vld [vmem:[%s3238 + $0x4] sm:$0xf]
        %v3241 = vld [vmem:[%s3238 + $0x8] sm:$0xf]
        %v3242 = vld [vmem:[%s3238 + $0xc] sm:$0xf]
        %v3243 = vld [vmem:[%s3238 + $0x10] sm:$0xf]
        %v3244 = vld [vmem:[%s3238 + $0x14] sm:$0xf]
        %v3245 = vld [vmem:[%s3238 + $0x18] sm:$0xf]
        %v3246 = vld [vmem:[%s3238 + $0x1c] sm:$0xf]
        %v3247 = vld [vmem:[%s3238 + $0x20] sm:$0xf]
        %v3248 = vld [vmem:[%s3238 + $0x24] sm:$0xf]
        %v3249 = vld [vmem:[%s3238 + $0x28] sm:$0xf]
        %v3250 = vld [vmem:[%s3238 + $0x2c] sm:$0xf]
        %v3251 = vld [vmem:[%s3238 + $0x30] sm:$0xf]
        %v3252 = vld [vmem:[%s3238 + $0x34] sm:$0xf]
        %v3253 = vld [vmem:[%s3238 + $0x38] sm:$0xf]
        %v3254 = vld [vmem:[%s3238 + $0x3c] sm:$0xf]
        %v3255 = vshrl.u32 %v1266, 16
        %v3257 = vor.u32 %v3255, %v1563
        %v3259 = vshll.u32 %v1267, 16
        %v3261 = vrot.slane %v3259, 1
        %v3262 = vsel %vm1304, %v3257, %v3261
        %v3263 = vshrl.u32 %v1267, 16
        %v3265 = vor.u32 %v3263, %v3261
        %v3267 = vshll.u32 %v1268, 16
        %v3269 = vrot.slane %v3267, 1
        %v3270 = vsel %vm1304, %v3265, %v3269
        %v3289 = vunpack.c.l.b16 %v3239
        %v3290 = vunpack.c.l.b16 %v3240
        %v3291 = vunpack.c.l.b16 %v3241
        %v3292 = vunpack.c.l.b16 %v3242
        %v3293 = vunpack.c.l.b16 %v3243
        %v3294 = vunpack.c.l.b16 %v3244
        %v3295 = vunpack.c.l.b16 %v3245
        %v3296 = vunpack.c.l.b16 %v3246
        %v3297 = vunpack.c.l.b16 %v3247
        %v3298 = vunpack.c.l.b16 %v3248
        %v3299 = vunpack.c.l.b16 %v3249
        %v3300 = vunpack.c.l.b16 %v3250
        %v3301 = vunpack.c.l.b16 %v3251
        %v3302 = vunpack.c.l.b16 %v3252
        %v3303 = vunpack.c.l.b16 %v3253
        %v3304 = vunpack.c.l.b16 %v3254
        %v3305 = vpack.c.b16 %v3290, %v3289
        %v3306 = vpack.c.b16 %v3292, %v3291
        %v3307 = vpack.c.b16 %v3294, %v3293
        %v3308 = vpack.c.b16 %v3296, %v3295
        %v3309 = vpack.c.b16 %v3298, %v3297
        %v3310 = vpack.c.b16 %v3300, %v3299
        %v3311 = vpack.c.b16 %v3302, %v3301
        %v3312 = vpack.c.b16 %v3304, %v3303
        %3321 = vmatprep.subr.bf16.mxu0 0
        %3322 = vmatpush1.bf16.msra.mxu0 %v3305
        %3323 = vmatprep.subr.bf16.mxu0 0
        %3324 = vmatpush1.bf16.msra.mxu0 %v3306
        %3325 = vmatprep.subr.bf16.mxu0 0
        %3326 = vmatpush1.bf16.msra.mxu0 %v3307
        %3327 = vmatprep.subr.bf16.mxu0 0
        %3328 = vmatpush1.bf16.msra.mxu0 %v3308
        %3329 = vmatprep.subr.bf16.mxu0 0
        %3330 = vmatpush1.bf16.msra.mxu0 %v3309
        %3331 = vmatprep.subr.bf16.mxu0 0
        %3332 = vmatpush1.bf16.msra.mxu0 %v3310
        %3333 = vmatprep.subr.bf16.mxu0 0
        %3334 = vmatpush1.bf16.msra.mxu0 %v3311
        %3335 = vmatprep.subr.bf16.mxu0 0
        %3336 = vmatpush1.bf16.msra.mxu0 %v3312
        %3337 = vmatprep.subr.bf16.mxu0 0
        %3338 = vmatpush1.bf16.msra.mxu0 0
        %3339 = vmatprep.subr.bf16.mxu0 0
        %3340 = vmatpush1.bf16.msra.mxu0 0
        %3341 = vmatprep.subr.bf16.mxu0 0
        %3342 = vmatpush1.bf16.msra.mxu0 0
        %3343 = vmatprep.subr.bf16.mxu0 0
        %3344 = vmatpush1.bf16.msra.mxu0 0
        %3345 = vmatprep.subr.bf16.mxu0 0
        %3346 = vmatpush1.bf16.msra.mxu0 0
        %3347 = vmatprep.subr.bf16.mxu0 0
        %3348 = vmatpush1.bf16.msra.mxu0 0
        %3349 = vmatprep.subr.bf16.mxu0 0
        %3350 = vmatpush1.bf16.msra.mxu0 0
        %3351 = vmatprep.subr.bf16.mxu0 0
        %3352 = vmatpush1.bf16.msra.mxu0 0
        %3353 = vmatprep.mubr.bf16.mxu0 0
        %3354 = vmatmul.mubr.bf16.gmra.mrb[0].mxu0 %v1332
        %v3355 = vpop.f32.mrb[0].mxu0
        %v3356 = vadd.f32 0.0, %v3355
        %v3357 = vpop.f32.mrb[0].mxu0
        %v3358 = vpop.f32.mrb[0].mxu0
        %v3359 = vadd.f32 0.0, %v3358
        %v3360 = vpop.f32.mrb[0].mxu0
        %3361 = vmatprep.mubr.bf16.mxu0 0
        %3362 = vmatmul.mubr.bf16.gmra.mrb[0].mxu0 %v1340
        %v3363 = vpop.f32.mrb[0].mxu0
        %v3364 = vadd.f32 0.0, %v3363
        %v3365 = vpop.f32.mrb[0].mxu0
        %v3366 = vpop.f32.mrb[0].mxu0
        %v3367 = vadd.f32 0.0, %v3366
        %v3368 = vpop.f32.mrb[0].mxu0
        %3369 = vmatprep.mubr.bf16.mxu0 0
        %3370 = vmatmul.mubr.bf16.gmra.mrb[0].mxu0 %v1348
        %v3371 = vpop.f32.mrb[0].mxu0
        %v3372 = vadd.f32 0.0, %v3371
        %v3373 = vpop.f32.mrb[0].mxu0
        %v3374 = vpop.f32.mrb[0].mxu0
        %v3375 = vadd.f32 0.0, %v3374
        %v3376 = vpop.f32.mrb[0].mxu0
        %3377 = vmatprep.mubr.bf16.mxu0 0
        %3378 = vmatmul.mubr.bf16.gmra.mrb[0].mxu0 %v1356
        %v3379 = vpop.f32.mrb[0].mxu0
        %v3380 = vadd.f32 0.0, %v3379
        %v3381 = vpop.f32.mrb[0].mxu0
        %v3382 = vpop.f32.mrb[0].mxu0
        %v3383 = vadd.f32 0.0, %v3382
        %v3384 = vpop.f32.mrb[0].mxu0
        %3385 = vmatprep.mubr.bf16.mxu0 0
        %3386 = vmatmul.mubr.bf16.gmra.mrb[0].mxu0 %v1364
        %v3387 = vpop.f32.mrb[0].mxu0
        %v3388 = vadd.f32 0.0, %v3387
        %v3389 = vpop.f32.mrb[0].mxu0
        %v3390 = vpop.f32.mrb[0].mxu0
        %v3391 = vadd.f32 0.0, %v3390
        %v3392 = vpop.f32.mrb[0].mxu0
        %3393 = vmatprep.mubr.bf16.mxu0 0
        %3394 = vmatmul.mubr.bf16.gmra.mrb[0].mxu0 %v1372
        %v3395 = vpop.f32.mrb[0].mxu0
        %v3396 = vadd.f32 0.0, %v3395
        %v3397 = vpop.f32.mrb[0].mxu0
        %v3398 = vpop.f32.mrb[0].mxu0
        %v3399 = vadd.f32 0.0, %v3398
        %v3400 = vpop.f32.mrb[0].mxu0
        %3401 = vmatprep.mubr.bf16.mxu0 0
        %3402 = vmatmul.mubr.bf16.gmra.mrb[0].mxu0 %v1380
        %v3403 = vpop.f32.mrb[0].mxu0
        %v3404 = vadd.f32 0.0, %v3403
        %v3405 = vpop.f32.mrb[0].mxu0
        %v3406 = vpop.f32.mrb[0].mxu0
        %v3407 = vadd.f32 0.0, %v3406
        %v3408 = vpop.f32.mrb[0].mxu0
        %3409 = vmatprep.mubr.bf16.mxu0 0
        %3410 = vmatmul.mubr.bf16.gmra.mrb[0].mxu0 %v1388
        %v3411 = vpop.f32.mrb[0].mxu0
        %v3412 = vadd.f32 0.0, %v3411
        %v3413 = vpop.f32.mrb[0].mxu0
        %v3414 = vpop.f32.mrb[0].mxu0
        %v3415 = vadd.f32 0.0, %v3414
        %v3416 = vpop.f32.mrb[0].mxu0
        %3417 = vmatprep.mubr.bf16.mxu0 0
        %3418 = vmatmul.mubr.bf16.gmra.mrb[0].mxu0 %v1396
        %v3419 = vpop.f32.mrb[0].mxu0
        %v3420 = vadd.f32 0.0, %v3419
        %v3421 = vpop.f32.mrb[0].mxu0
        %v3422 = vpop.f32.mrb[0].mxu0
        %v3423 = vadd.f32 0.0, %v3422
        %v3424 = vpop.f32.mrb[0].mxu0
        %3425 = vmatprep.mubr.bf16.mxu0 0
        %3426 = vmatmul.mubr.bf16.gmra.mrb[0].mxu0 %v1404
        %v3427 = vpop.f32.mrb[0].mxu0
        %v3428 = vadd.f32 0.0, %v3427
        %v3429 = vpop.f32.mrb[0].mxu0
        %v3430 = vpop.f32.mrb[0].mxu0
        %v3431 = vadd.f32 0.0, %v3430
        %v3432 = vpop.f32.mrb[0].mxu0
        %3433 = vmatprep.mubr.bf16.mxu0 0
        %3434 = vmatmul.mubr.bf16.gmra.mrb[0].mxu0 %v1412
        %v3435 = vpop.f32.mrb[0].mxu0
        %v3436 = vadd.f32 0.0, %v3435
        %v3437 = vpop.f32.mrb[0].mxu0
        %v3438 = vpop.f32.mrb[0].mxu0
        %v3439 = vadd.f32 0.0, %v3438
        %v3440 = vpop.f32.mrb[0].mxu0
        %3441 = vmatprep.mubr.bf16.mxu0 0
        %3442 = vmatmul.mubr.bf16.gmra.mrb[0].mxu0 %v1420
        %v3443 = vpop.f32.mrb[0].mxu0
        %v3444 = vadd.f32 0.0, %v3443
        %v3445 = vpop.f32.mrb[0].mxu0
        %v3446 = vpop.f32.mrb[0].mxu0
        %v3447 = vadd.f32 0.0, %v3446
        %v3448 = vpop.f32.mrb[0].mxu0
        %3449 = vmatprep.mubr.bf16.mxu0 0
        %3450 = vmatmul.mubr.bf16.gmra.mrb[0].mxu0 %v1428
        %v3451 = vpop.f32.mrb[0].mxu0
        %v3452 = vadd.f32 0.0, %v3451
        %v3453 = vpop.f32.mrb[0].mxu0
        %v3454 = vpop.f32.mrb[0].mxu0
        %v3455 = vadd.f32 0.0, %v3454
        %v3456 = vpop.f32.mrb[0].mxu0
        %3457 = vmatprep.mubr.bf16.mxu0 0
        %3458 = vmatmul.mubr.bf16.gmra.mrb[0].mxu0 %v1436
        %v3459 = vpop.f32.mrb[0].mxu0
        %v3460 = vadd.f32 0.0, %v3459
        %v3461 = vpop.f32.mrb[0].mxu0
        %v3462 = vpop.f32.mrb[0].mxu0
        %v3463 = vadd.f32 0.0, %v3462
        %v3464 = vpop.f32.mrb[0].mxu0
        %3465 = vmatprep.mubr.bf16.mxu0 0
        %3466 = vmatmul.mubr.bf16.gmra.mrb[0].mxu0 %v1444
        %v3467 = vpop.f32.mrb[0].mxu0
        %v3468 = vadd.f32 0.0, %v3467
        %v3469 = vpop.f32.mrb[0].mxu0
        %v3470 = vpop.f32.mrb[0].mxu0
        %v3471 = vadd.f32 0.0, %v3470
        %v3472 = vpop.f32.mrb[0].mxu0
        %3473 = vmatprep.mubr.bf16.mxu0 0
        %3474 = vmatmul.mubr.bf16.gmra.mrb[0].mxu0 %v1452
        %v3475 = vpop.f32.mrb[0].mxu0
        %v3476 = vadd.f32 0.0, %v3475
        %v3477 = vpop.f32.mrb[0].mxu0
        %v3478 = vpop.f32.mrb[0].mxu0
        %v3479 = vadd.f32 0.0, %v3478
        %v3480 = vpop.f32.mrb[0].mxu0
        %3481 = vmatprep.mubr.bf16.mxu0 0
        %3482 = vmatmul.mubr.bf16.gmra.mrb[0].mxu0 %v1460
        %v3483 = vpop.f32.mrb[0].mxu0
        %v3484 = vadd.f32 0.0, %v3483
        %v3485 = vpop.f32.mrb[0].mxu0
        %v3486 = vpop.f32.mrb[0].mxu0
        %v3487 = vadd.f32 0.0, %v3486
        %v3488 = vpop.f32.mrb[0].mxu0
        %3489 = vmatprep.mubr.bf16.mxu0 0
        %3490 = vmatmul.mubr.bf16.gmra.mrb[0].mxu0 %v1468
        %v3491 = vpop.f32.mrb[0].mxu0
        %v3492 = vadd.f32 0.0, %v3491
        %v3493 = vpop.f32.mrb[0].mxu0
        %v3494 = vpop.f32.mrb[0].mxu0
        %v3495 = vadd.f32 0.0, %v3494
        %v3496 = vpop.f32.mrb[0].mxu0
        %3497 = vmatprep.mubr.bf16.mxu0 0
        %3498 = vmatmul.mubr.bf16.gmra.mrb[0].mxu0 %v1476
        %v3499 = vpop.f32.mrb[0].mxu0
        %v3500 = vadd.f32 0.0, %v3499
        %v3501 = vpop.f32.mrb[0].mxu0
        %v3502 = vpop.f32.mrb[0].mxu0
        %v3503 = vadd.f32 0.0, %v3502
        %v3504 = vpop.f32.mrb[0].mxu0
        %3505 = vmatprep.mubr.bf16.mxu0 0
        %3506 = vmatmul.mubr.bf16.gmra.mrb[0].mxu0 %v1484
        %v3507 = vpop.f32.mrb[0].mxu0
        %v3508 = vadd.f32 0.0, %v3507
        %v3509 = vpop.f32.mrb[0].mxu0
        %v3510 = vpop.f32.mrb[0].mxu0
        %v3511 = vadd.f32 0.0, %v3510
        %v3512 = vpop.f32.mrb[0].mxu0
        %3513 = vmatprep.mubr.bf16.mxu0 0
        %3514 = vmatmul.mubr.bf16.gmra.mrb[0].mxu0 %v1492
        %v3515 = vpop.f32.mrb[0].mxu0
        %v3516 = vadd.f32 0.0, %v3515
        %v3517 = vpop.f32.mrb[0].mxu0
        %v3518 = vpop.f32.mrb[0].mxu0
        %v3519 = vadd.f32 0.0, %v3518
        %v3520 = vpop.f32.mrb[0].mxu0
        %3521 = vmatprep.mubr.bf16.mxu0 0
        %3522 = vmatmul.mubr.bf16.gmra.mrb[0].mxu0 %v1500
        %v3523 = vpop.f32.mrb[0].mxu0
        %v3524 = vadd.f32 0.0, %v3523
        %v3525 = vpop.f32.mrb[0].mxu0
        %v3526 = vpop.f32.mrb[0].mxu0
        %v3527 = vadd.f32 0.0, %v3526
        %v3528 = vpop.f32.mrb[0].mxu0
        %3529 = vmatprep.mubr.bf16.mxu0 0
        %3530 = vmatmul.mubr.bf16.gmra.mrb[0].mxu0 %v1508
        %v3531 = vpop.f32.mrb[0].mxu0
        %v3532 = vadd.f32 0.0, %v3531
        %v3533 = vpop.f32.mrb[0].mxu0
        %v3534 = vpop.f32.mrb[0].mxu0
        %v3535 = vadd.f32 0.0, %v3534
        %v3536 = vpop.f32.mrb[0].mxu0
        %3537 = vmatprep.mubr.bf16.mxu0 0
        %3538 = vmatmul.mubr.bf16.gmra.mrb[0].mxu0 %v1516
        %v3539 = vpop.f32.mrb[0].mxu0
        %v3540 = vadd.f32 0.0, %v3539
        %v3541 = vpop.f32.mrb[0].mxu0
        %v3542 = vpop.f32.mrb[0].mxu0
        %v3543 = vadd.f32 0.0, %v3542
        %v3544 = vpop.f32.mrb[0].mxu0
        %3545 = vmatprep.mubr.bf16.mxu0 0
        %3546 = vmatmul.mubr.bf16.gmra.mrb[0].mxu0 %v1524
        %v3547 = vpop.f32.mrb[0].mxu0
        %v3548 = vadd.f32 0.0, %v3547
        %v3549 = vpop.f32.mrb[0].mxu0
        %v3550 = vpop.f32.mrb[0].mxu0
        %v3551 = vadd.f32 0.0, %v3550
        %v3552 = vpop.f32.mrb[0].mxu0
        %3553 = vmatprep.mubr.bf16.mxu0 0
        %3554 = vmatmul.mubr.bf16.gmra.mrb[0].mxu0 %v1532
        %v3555 = vpop.f32.mrb[0].mxu0
        %v3556 = vadd.f32 0.0, %v3555
        %v3557 = vpop.f32.mrb[0].mxu0
        %v3558 = vpop.f32.mrb[0].mxu0
        %v3559 = vadd.f32 0.0, %v3558
        %v3560 = vpop.f32.mrb[0].mxu0
        %3561 = vmatprep.mubr.bf16.mxu0 0
        %3562 = vmatmul.mubr.bf16.gmra.mrb[0].mxu0 %v1540
        %v3563 = vpop.f32.mrb[0].mxu0
        %v3564 = vadd.f32 0.0, %v3563
        %v3565 = vpop.f32.mrb[0].mxu0
        %v3566 = vpop.f32.mrb[0].mxu0
        %v3567 = vadd.f32 0.0, %v3566
        %v3568 = vpop.f32.mrb[0].mxu0
        %3569 = vmatprep.mubr.bf16.mxu0 0
        %3570 = vmatmul.mubr.bf16.gmra.mrb[0].mxu0 %v1548
        %v3571 = vpop.f32.mrb[0].mxu0
        %v3572 = vadd.f32 0.0, %v3571
        %v3573 = vpop.f32.mrb[0].mxu0
        %v3574 = vpop.f32.mrb[0].mxu0
        %v3575 = vadd.f32 0.0, %v3574
        %v3576 = vpop.f32.mrb[0].mxu0
        %3577 = vmatprep.mubr.bf16.mxu0 0
        %3578 = vmatmul.mubr.bf16.gmra.mrb[0].mxu0 %v1556
        %v3579 = vpop.f32.mrb[0].mxu0
        %v3580 = vadd.f32 0.0, %v3579
        %v3581 = vpop.f32.mrb[0].mxu0
        %v3582 = vpop.f32.mrb[0].mxu0
        %v3583 = vadd.f32 0.0, %v3582
        %v3584 = vpop.f32.mrb[0].mxu0
        %3585 = vmatprep.mubr.bf16.mxu0 0
        %3586 = vmatmul.mubr.bf16.gmra.mrb[0].mxu0 %v1564
        %v3587 = vpop.f32.mrb[0].mxu0
        %v3588 = vadd.f32 0.0, %v3587
        %v3589 = vpop.f32.mrb[0].mxu0
        %v3590 = vpop.f32.mrb[0].mxu0
        %v3591 = vadd.f32 0.0, %v3590
        %v3592 = vpop.f32.mrb[0].mxu0
        %3593 = vmatprep.mubr.bf16.mxu0 0
        %3594 = vmatmul.mubr.bf16.gmra.mrb[0].mxu0 %v3262
        %v3595 = vpop.f32.mrb[0].mxu0
        %v3596 = vadd.f32 0.0, %v3595
        %v3597 = vpop.f32.mrb[0].mxu0
        %v3598 = vpop.f32.mrb[0].mxu0
        %v3599 = vadd.f32 0.0, %v3598
        %v3600 = vpop.f32.mrb[0].mxu0
        %3601 = vmatprep.mubr.bf16.mxu0 0
        %3602 = vmatmul.mubr.bf16.gmra.mrb[0].mxu0 %v3270
        %v3603 = vpop.f32.mrb[0].mxu0
        %v3604 = vadd.f32 0.0, %v3603
        %v3605 = vpop.f32.mrb[0].mxu0
        %v3606 = vpop.f32.mrb[0].mxu0
        %v3607 = vadd.f32 0.0, %v3606
        %v3608 = vpop.f32.mrb[0].mxu0
        %3609 = vdwg.mxu0
        %v3610 = vadd.f32 %v3174, %v3356
        %v3611 = vadd.f32 %v3175, %v3359
        %v3612 = vadd.f32 %v3176, %v3364
        %v3613 = vadd.f32 %v3177, %v3367
        %v3614 = vadd.f32 %v3178, %v3372
        %v3615 = vadd.f32 %v3179, %v3375
        %v3616 = vadd.f32 %v3180, %v3380
        %v3617 = vadd.f32 %v3181, %v3383
        %v3618 = vadd.f32 %v3182, %v3388
        %v3619 = vadd.f32 %v3183, %v3391
        %v3620 = vadd.f32 %v3184, %v3396
        %v3621 = vadd.f32 %v3185, %v3399
        %v3622 = vadd.f32 %v3186, %v3404
        %v3623 = vadd.f32 %v3187, %v3407
        %v3624 = vadd.f32 %v3188, %v3412
        %v3625 = vadd.f32 %v3189, %v3415
        %v3626 = vadd.f32 %v3190, %v3420
        %v3627 = vadd.f32 %v3191, %v3423
        %v3628 = vadd.f32 %v3192, %v3428
        %v3629 = vadd.f32 %v3193, %v3431
        %v3630 = vadd.f32 %v3194, %v3436
        %v3631 = vadd.f32 %v3195, %v3439
        %v3632 = vadd.f32 %v3196, %v3444
        %v3633 = vadd.f32 %v3197, %v3447
        %v3634 = vadd.f32 %v3198, %v3452
        %v3635 = vadd.f32 %v3199, %v3455
        %v3636 = vadd.f32 %v3200, %v3460
        %v3637 = vadd.f32 %v3201, %v3463
        %v3638 = vadd.f32 %v3202, %v3468
        %v3639 = vadd.f32 %v3203, %v3471
        %v3640 = vadd.f32 %v3204, %v3476
        %v3641 = vadd.f32 %v3205, %v3479
        %v3642 = vadd.f32 %v3206, %v3484
        %v3643 = vadd.f32 %v3207, %v3487
        %v3644 = vadd.f32 %v3208, %v3492
        %v3645 = vadd.f32 %v3209, %v3495
        %v3646 = vadd.f32 %v3210, %v3500
        %v3647 = vadd.f32 %v3211, %v3503
        %v3648 = vadd.f32 %v3212, %v3508
        %v3649 = vadd.f32 %v3213, %v3511
        %v3650 = vadd.f32 %v3214, %v3516
        %v3651 = vadd.f32 %v3215, %v3519
        %v3652 = vadd.f32 %v3216, %v3524
        %v3653 = vadd.f32 %v3217, %v3527
        %v3654 = vadd.f32 %v3218, %v3532
        %v3655 = vadd.f32 %v3219, %v3535
        %v3656 = vadd.f32 %v3220, %v3540
        %v3657 = vadd.f32 %v3221, %v3543
        %v3658 = vadd.f32 %v3222, %v3548
        %v3659 = vadd.f32 %v3223, %v3551
        %v3660 = vadd.f32 %v3224, %v3556
        %v3661 = vadd.f32 %v3225, %v3559
        %v3662 = vadd.f32 %v3226, %v3564
        %v3663 = vadd.f32 %v3227, %v3567
        %v3664 = vadd.f32 %v3228, %v3572
        %v3665 = vadd.f32 %v3229, %v3575
        %v3666 = vadd.f32 %v3230, %v3580
        %v3667 = vadd.f32 %v3231, %v3583
        %v3668 = vadd.f32 %v3232, %v3588
        %v3669 = vadd.f32 %v3233, %v3591
        %v3670 = vadd.f32 %v3234, %v3596
        %v3671 = vadd.f32 %v3235, %v3599
        %v3672 = vadd.f32 %v3236, %v3604
        %v3673 = vadd.f32 %v3237, %v3607
        %s3674 = scalar_lea.vmem %s2, 320
        %v3675 = vld [vmem:[%s3674] sm:$0xf]
        %v3676 = vld [vmem:[%s3674 + $0x4] sm:$0xf]
        %v3677 = vld [vmem:[%s3674 + $0x8] sm:$0xf]
        %v3678 = vld [vmem:[%s3674 + $0xc] sm:$0xf]
        %v3679 = vld [vmem:[%s3674 + $0x10] sm:$0xf]
        %v3680 = vld [vmem:[%s3674 + $0x14] sm:$0xf]
        %v3681 = vld [vmem:[%s3674 + $0x18] sm:$0xf]
        %v3682 = vld [vmem:[%s3674 + $0x1c] sm:$0xf]
        %v3683 = vld [vmem:[%s3674 + $0x20] sm:$0xf]
        %v3684 = vld [vmem:[%s3674 + $0x24] sm:$0xf]
        %v3685 = vld [vmem:[%s3674 + $0x28] sm:$0xf]
        %v3686 = vld [vmem:[%s3674 + $0x2c] sm:$0xf]
        %v3687 = vld [vmem:[%s3674 + $0x30] sm:$0xf]
        %v3688 = vld [vmem:[%s3674 + $0x34] sm:$0xf]
        %v3689 = vld [vmem:[%s3674 + $0x38] sm:$0xf]
        %v3690 = vld [vmem:[%s3674 + $0x3c] sm:$0xf]
        %v3693 = vrot.slane %v1267, 1
        %v3694 = vsel %vm2321, %v2385, %v3693
        %v3695 = vrot.slane %v1268, 1
        %v3696 = vsel %vm2321, %v3693, %v3695
        %v3715 = vunpack.c.l.b16 %v3675
        %v3716 = vunpack.c.l.b16 %v3676
        %v3717 = vunpack.c.l.b16 %v3677
        %v3718 = vunpack.c.l.b16 %v3678
        %v3719 = vunpack.c.l.b16 %v3679
        %v3720 = vunpack.c.l.b16 %v3680
        %v3721 = vunpack.c.l.b16 %v3681
        %v3722 = vunpack.c.l.b16 %v3682
        %v3723 = vunpack.c.l.b16 %v3683
        %v3724 = vunpack.c.l.b16 %v3684
        %v3725 = vunpack.c.l.b16 %v3685
        %v3726 = vunpack.c.l.b16 %v3686
        %v3727 = vunpack.c.l.b16 %v3687
        %v3728 = vunpack.c.l.b16 %v3688
        %v3729 = vunpack.c.l.b16 %v3689
        %v3730 = vunpack.c.l.b16 %v3690
        %v3731 = vpack.c.b16 %v3716, %v3715
        %v3732 = vpack.c.b16 %v3718, %v3717
        %v3733 = vpack.c.b16 %v3720, %v3719
        %v3734 = vpack.c.b16 %v3722, %v3721
        %v3735 = vpack.c.b16 %v3724, %v3723
        %v3736 = vpack.c.b16 %v3726, %v3725
        %v3737 = vpack.c.b16 %v3728, %v3727
        %v3738 = vpack.c.b16 %v3730, %v3729
        %3747 = vmatprep.subr.bf16.mxu0 0
        %3748 = vmatpush1.bf16.msra.mxu0 %v3731
        %3749 = vmatprep.subr.bf16.mxu0 0
        %3750 = vmatpush1.bf16.msra.mxu0 %v3732
        %3751 = vmatprep.subr.bf16.mxu0 0
        %3752 = vmatpush1.bf16.msra.mxu0 %v3733
        %3753 = vmatprep.subr.bf16.mxu0 0
        %3754 = vmatpush1.bf16.msra.mxu0 %v3734
        %3755 = vmatprep.subr.bf16.mxu0 0
        %3756 = vmatpush1.bf16.msra.mxu0 %v3735
        %3757 = vmatprep.subr.bf16.mxu0 0
        %3758 = vmatpush1.bf16.msra.mxu0 %v3736
        %3759 = vmatprep.subr.bf16.mxu0 0
        %3760 = vmatpush1.bf16.msra.mxu0 %v3737
        %3761 = vmatprep.subr.bf16.mxu0 0
        %3762 = vmatpush1.bf16.msra.mxu0 %v3738
        %3763 = vmatprep.subr.bf16.mxu0 0
        %3764 = vmatpush1.bf16.msra.mxu0 0
        %3765 = vmatprep.subr.bf16.mxu0 0
        %3766 = vmatpush1.bf16.msra.mxu0 0
        %3767 = vmatprep.subr.bf16.mxu0 0
        %3768 = vmatpush1.bf16.msra.mxu0 0
        %3769 = vmatprep.subr.bf16.mxu0 0
        %3770 = vmatpush1.bf16.msra.mxu0 0
        %3771 = vmatprep.subr.bf16.mxu0 0
        %3772 = vmatpush1.bf16.msra.mxu0 0
        %3773 = vmatprep.subr.bf16.mxu0 0
        %3774 = vmatpush1.bf16.msra.mxu0 0
        %3775 = vmatprep.subr.bf16.mxu0 0
        %3776 = vmatpush1.bf16.msra.mxu0 0
        %3777 = vmatprep.subr.bf16.mxu0 0
        %3778 = vmatpush1.bf16.msra.mxu0 0
        %3779 = vmatprep.mubr.bf16.mxu0 0
        %3780 = vmatmul.mubr.bf16.gmra.mrb[0].mxu0 %v2328
        %v3781 = vpop.f32.mrb[0].mxu0
        %v3782 = vadd.f32 0.0, %v3781
        %v3783 = vpop.f32.mrb[0].mxu0
        %v3784 = vpop.f32.mrb[0].mxu0
        %v3785 = vadd.f32 0.0, %v3784
        %v3786 = vpop.f32.mrb[0].mxu0
        %3787 = vmatprep.mubr.bf16.mxu0 0
        %3788 = vmatmul.mubr.bf16.gmra.mrb[0].mxu0 %v2330
        %v3789 = vpop.f32.mrb[0].mxu0
        %v3790 = vadd.f32 0.0, %v3789
        %v3791 = vpop.f32.mrb[0].mxu0
        %v3792 = vpop.f32.mrb[0].mxu0
        %v3793 = vadd.f32 0.0, %v3792
        %v3794 = vpop.f32.mrb[0].mxu0
        %3795 = vmatprep.mubr.bf16.mxu0 0
        %3796 = vmatmul.mubr.bf16.gmra.mrb[0].mxu0 %v2332
        %v3797 = vpop.f32.mrb[0].mxu0
        %v3798 = vadd.f32 0.0, %v3797
        %v3799 = vpop.f32.mrb[0].mxu0
        %v3800 = vpop.f32.mrb[0].mxu0
        %v3801 = vadd.f32 0.0, %v3800
        %v3802 = vpop.f32.mrb[0].mxu0
        %3803 = vmatprep.mubr.bf16.mxu0 0
        %3804 = vmatmul.mubr.bf16.gmra.mrb[0].mxu0 %v2334
        %v3805 = vpop.f32.mrb[0].mxu0
        %v3806 = vadd.f32 0.0, %v3805
        %v3807 = vpop.f32.mrb[0].mxu0
        %v3808 = vpop.f32.mrb[0].mxu0
        %v3809 = vadd.f32 0.0, %v3808
        %v3810 = vpop.f32.mrb[0].mxu0
        %3811 = vmatprep.mubr.bf16.mxu0 0
        %3812 = vmatmul.mubr.bf16.gmra.mrb[0].mxu0 %v2336
        %v3813 = vpop.f32.mrb[0].mxu0
        %v3814 = vadd.f32 0.0, %v3813
        %v3815 = vpop.f32.mrb[0].mxu0
        %v3816 = vpop.f32.mrb[0].mxu0
        %v3817 = vadd.f32 0.0, %v3816
        %v3818 = vpop.f32.mrb[0].mxu0
        %3819 = vmatprep.mubr.bf16.mxu0 0
        %3820 = vmatmul.mubr.bf16.gmra.mrb[0].mxu0 %v2338
        %v3821 = vpop.f32.mrb[0].mxu0
        %v3822 = vadd.f32 0.0, %v3821
        %v3823 = vpop.f32.mrb[0].mxu0
        %v3824 = vpop.f32.mrb[0].mxu0
        %v3825 = vadd.f32 0.0, %v3824
        %v3826 = vpop.f32.mrb[0].mxu0
        %3827 = vmatprep.mubr.bf16.mxu0 0
        %3828 = vmatmul.mubr.bf16.gmra.mrb[0].mxu0 %v2340
        %v3829 = vpop.f32.mrb[0].mxu0
        %v3830 = vadd.f32 0.0, %v3829
        %v3831 = vpop.f32.mrb[0].mxu0
        %v3832 = vpop.f32.mrb[0].mxu0
        %v3833 = vadd.f32 0.0, %v3832
        %v3834 = vpop.f32.mrb[0].mxu0
        %3835 = vmatprep.mubr.bf16.mxu0 0
        %3836 = vmatmul.mubr.bf16.gmra.mrb[0].mxu0 %v2342
        %v3837 = vpop.f32.mrb[0].mxu0
        %v3838 = vadd.f32 0.0, %v3837
        %v3839 = vpop.f32.mrb[0].mxu0
        %v3840 = vpop.f32.mrb[0].mxu0
        %v3841 = vadd.f32 0.0, %v3840
        %v3842 = vpop.f32.mrb[0].mxu0
        %3843 = vmatprep.mubr.bf16.mxu0 0
        %3844 = vmatmul.mubr.bf16.gmra.mrb[0].mxu0 %v2344
        %v3845 = vpop.f32.mrb[0].mxu0
        %v3846 = vadd.f32 0.0, %v3845
        %v3847 = vpop.f32.mrb[0].mxu0
        %v3848 = vpop.f32.mrb[0].mxu0
        %v3849 = vadd.f32 0.0, %v3848
        %v3850 = vpop.f32.mrb[0].mxu0
        %3851 = vmatprep.mubr.bf16.mxu0 0
        %3852 = vmatmul.mubr.bf16.gmra.mrb[0].mxu0 %v2346
        %v3853 = vpop.f32.mrb[0].mxu0
        %v3854 = vadd.f32 0.0, %v3853
        %v3855 = vpop.f32.mrb[0].mxu0
        %v3856 = vpop.f32.mrb[0].mxu0
        %v3857 = vadd.f32 0.0, %v3856
        %v3858 = vpop.f32.mrb[0].mxu0
        %3859 = vmatprep.mubr.bf16.mxu0 0
        %3860 = vmatmul.mubr.bf16.gmra.mrb[0].mxu0 %v2348
        %v3861 = vpop.f32.mrb[0].mxu0
        %v3862 = vadd.f32 0.0, %v3861
        %v3863 = vpop.f32.mrb[0].mxu0
        %v3864 = vpop.f32.mrb[0].mxu0
        %v3865 = vadd.f32 0.0, %v3864
        %v3866 = vpop.f32.mrb[0].mxu0
        %3867 = vmatprep.mubr.bf16.mxu0 0
        %3868 = vmatmul.mubr.bf16.gmra.mrb[0].mxu0 %v2350
        %v3869 = vpop.f32.mrb[0].mxu0
        %v3870 = vadd.f32 0.0, %v3869
        %v3871 = vpop.f32.mrb[0].mxu0
        %v3872 = vpop.f32.mrb[0].mxu0
        %v3873 = vadd.f32 0.0, %v3872
        %v3874 = vpop.f32.mrb[0].mxu0
        %3875 = vmatprep.mubr.bf16.mxu0 0
        %3876 = vmatmul.mubr.bf16.gmra.mrb[0].mxu0 %v2352
        %v3877 = vpop.f32.mrb[0].mxu0
        %v3878 = vadd.f32 0.0, %v3877
        %v3879 = vpop.f32.mrb[0].mxu0
        %v3880 = vpop.f32.mrb[0].mxu0
        %v3881 = vadd.f32 0.0, %v3880
        %v3882 = vpop.f32.mrb[0].mxu0
        %3883 = vmatprep.mubr.bf16.mxu0 0
        %3884 = vmatmul.mubr.bf16.gmra.mrb[0].mxu0 %v2354
        %v3885 = vpop.f32.mrb[0].mxu0
        %v3886 = vadd.f32 0.0, %v3885
        %v3887 = vpop.f32.mrb[0].mxu0
        %v3888 = vpop.f32.mrb[0].mxu0
        %v3889 = vadd.f32 0.0, %v3888
        %v3890 = vpop.f32.mrb[0].mxu0
        %3891 = vmatprep.mubr.bf16.mxu0 0
        %3892 = vmatmul.mubr.bf16.gmra.mrb[0].mxu0 %v2356
        %v3893 = vpop.f32.mrb[0].mxu0
        %v3894 = vadd.f32 0.0, %v3893
        %v3895 = vpop.f32.mrb[0].mxu0
        %v3896 = vpop.f32.mrb[0].mxu0
        %v3897 = vadd.f32 0.0, %v3896
        %v3898 = vpop.f32.mrb[0].mxu0
        %3899 = vmatprep.mubr.bf16.mxu0 0
        %3900 = vmatmul.mubr.bf16.gmra.mrb[0].mxu0 %v2358
        %v3901 = vpop.f32.mrb[0].mxu0
        %v3902 = vadd.f32 0.0, %v3901
        %v3903 = vpop.f32.mrb[0].mxu0
        %v3904 = vpop.f32.mrb[0].mxu0
        %v3905 = vadd.f32 0.0, %v3904
        %v3906 = vpop.f32.mrb[0].mxu0
        %3907 = vmatprep.mubr.bf16.mxu0 0
        %3908 = vmatmul.mubr.bf16.gmra.mrb[0].mxu0 %v2360
        %v3909 = vpop.f32.mrb[0].mxu0
        %v3910 = vadd.f32 0.0, %v3909
        %v3911 = vpop.f32.mrb[0].mxu0
        %v3912 = vpop.f32.mrb[0].mxu0
        %v3913 = vadd.f32 0.0, %v3912
        %v3914 = vpop.f32.mrb[0].mxu0
        %3915 = vmatprep.mubr.bf16.mxu0 0
        %3916 = vmatmul.mubr.bf16.gmra.mrb[0].mxu0 %v2362
        %v3917 = vpop.f32.mrb[0].mxu0
        %v3918 = vadd.f32 0.0, %v3917
        %v3919 = vpop.f32.mrb[0].mxu0
        %v3920 = vpop.f32.mrb[0].mxu0
        %v3921 = vadd.f32 0.0, %v3920
        %v3922 = vpop.f32.mrb[0].mxu0
        %3923 = vmatprep.mubr.bf16.mxu0 0
        %3924 = vmatmul.mubr.bf16.gmra.mrb[0].mxu0 %v2364
        %v3925 = vpop.f32.mrb[0].mxu0
        %v3926 = vadd.f32 0.0, %v3925
        %v3927 = vpop.f32.mrb[0].mxu0
        %v3928 = vpop.f32.mrb[0].mxu0
        %v3929 = vadd.f32 0.0, %v3928
        %v3930 = vpop.f32.mrb[0].mxu0
        %3931 = vmatprep.mubr.bf16.mxu0 0
        %3932 = vmatmul.mubr.bf16.gmra.mrb[0].mxu0 %v2366
        %v3933 = vpop.f32.mrb[0].mxu0
        %v3934 = vadd.f32 0.0, %v3933
        %v3935 = vpop.f32.mrb[0].mxu0
        %v3936 = vpop.f32.mrb[0].mxu0
        %v3937 = vadd.f32 0.0, %v3936
        %v3938 = vpop.f32.mrb[0].mxu0
        %3939 = vmatprep.mubr.bf16.mxu0 0
        %3940 = vmatmul.mubr.bf16.gmra.mrb[0].mxu0 %v2368
        %v3941 = vpop.f32.mrb[0].mxu0
        %v3942 = vadd.f32 0.0, %v3941
        %v3943 = vpop.f32.mrb[0].mxu0
        %v3944 = vpop.f32.mrb[0].mxu0
        %v3945 = vadd.f32 0.0, %v3944
        %v3946 = vpop.f32.mrb[0].mxu0
        %3947 = vmatprep.mubr.bf16.mxu0 0
        %3948 = vmatmul.mubr.bf16.gmra.mrb[0].mxu0 %v2370
        %v3949 = vpop.f32.mrb[0].mxu0
        %v3950 = vadd.f32 0.0, %v3949
        %v3951 = vpop.f32.mrb[0].mxu0
        %v3952 = vpop.f32.mrb[0].mxu0
        %v3953 = vadd.f32 0.0, %v3952
        %v3954 = vpop.f32.mrb[0].mxu0
        %3955 = vmatprep.mubr.bf16.mxu0 0
        %3956 = vmatmul.mubr.bf16.gmra.mrb[0].mxu0 %v2372
        %v3957 = vpop.f32.mrb[0].mxu0
        %v3958 = vadd.f32 0.0, %v3957
        %v3959 = vpop.f32.mrb[0].mxu0
        %v3960 = vpop.f32.mrb[0].mxu0
        %v3961 = vadd.f32 0.0, %v3960
        %v3962 = vpop.f32.mrb[0].mxu0
        %3963 = vmatprep.mubr.bf16.mxu0 0
        %3964 = vmatmul.mubr.bf16.gmra.mrb[0].mxu0 %v2374
        %v3965 = vpop.f32.mrb[0].mxu0
        %v3966 = vadd.f32 0.0, %v3965
        %v3967 = vpop.f32.mrb[0].mxu0
        %v3968 = vpop.f32.mrb[0].mxu0
        %v3969 = vadd.f32 0.0, %v3968
        %v3970 = vpop.f32.mrb[0].mxu0
        %3971 = vmatprep.mubr.bf16.mxu0 0
        %3972 = vmatmul.mubr.bf16.gmra.mrb[0].mxu0 %v2376
        %v3973 = vpop.f32.mrb[0].mxu0
        %v3974 = vadd.f32 0.0, %v3973
        %v3975 = vpop.f32.mrb[0].mxu0
        %v3976 = vpop.f32.mrb[0].mxu0
        %v3977 = vadd.f32 0.0, %v3976
        %v3978 = vpop.f32.mrb[0].mxu0
        %3979 = vmatprep.mubr.bf16.mxu0 0
        %3980 = vmatmul.mubr.bf16.gmra.mrb[0].mxu0 %v2378
        %v3981 = vpop.f32.mrb[0].mxu0
        %v3982 = vadd.f32 0.0, %v3981
        %v3983 = vpop.f32.mrb[0].mxu0
        %v3984 = vpop.f32.mrb[0].mxu0
        %v3985 = vadd.f32 0.0, %v3984
        %v3986 = vpop.f32.mrb[0].mxu0
        %3987 = vmatprep.mubr.bf16.mxu0 0
        %3988 = vmatmul.mubr.bf16.gmra.mrb[0].mxu0 %v2380
        %v3989 = vpop.f32.mrb[0].mxu0
        %v3990 = vadd.f32 0.0, %v3989
        %v3991 = vpop.f32.mrb[0].mxu0
        %v3992 = vpop.f32.mrb[0].mxu0
        %v3993 = vadd.f32 0.0, %v3992
        %v3994 = vpop.f32.mrb[0].mxu0
        %3995 = vmatprep.mubr.bf16.mxu0 0
        %3996 = vmatmul.mubr.bf16.gmra.mrb[0].mxu0 %v2382
        %v3997 = vpop.f32.mrb[0].mxu0
        %v3998 = vadd.f32 0.0, %v3997
        %v3999 = vpop.f32.mrb[0].mxu0
        %v4000 = vpop.f32.mrb[0].mxu0
        %v4001 = vadd.f32 0.0, %v4000
        %v4002 = vpop.f32.mrb[0].mxu0
        %4003 = vmatprep.mubr.bf16.mxu0 0
        %4004 = vmatmul.mubr.bf16.gmra.mrb[0].mxu0 %v2384
        %v4005 = vpop.f32.mrb[0].mxu0
        %v4006 = vadd.f32 0.0, %v4005
        %v4007 = vpop.f32.mrb[0].mxu0
        %v4008 = vpop.f32.mrb[0].mxu0
        %v4009 = vadd.f32 0.0, %v4008
        %v4010 = vpop.f32.mrb[0].mxu0
        %4011 = vmatprep.mubr.bf16.mxu0 0
        %4012 = vmatmul.mubr.bf16.gmra.mrb[0].mxu0 %v2386
        %v4013 = vpop.f32.mrb[0].mxu0
        %v4014 = vadd.f32 0.0, %v4013
        %v4015 = vpop.f32.mrb[0].mxu0
        %v4016 = vpop.f32.mrb[0].mxu0
        %v4017 = vadd.f32 0.0, %v4016
        %v4018 = vpop.f32.mrb[0].mxu0
        %4019 = vmatprep.mubr.bf16.mxu0 0
        %4020 = vmatmul.mubr.bf16.gmra.mrb[0].mxu0 %v3694
        %v4021 = vpop.f32.mrb[0].mxu0
        %v4022 = vadd.f32 0.0, %v4021
        %v4023 = vpop.f32.mrb[0].mxu0
        %v4024 = vpop.f32.mrb[0].mxu0
        %v4025 = vadd.f32 0.0, %v4024
        %v4026 = vpop.f32.mrb[0].mxu0
        %4027 = vmatprep.mubr.bf16.mxu0 0
        %4028 = vmatmul.mubr.bf16.gmra.mrb[0].mxu0 %v3696
        %v4029 = vpop.f32.mrb[0].mxu0
        %v4030 = vadd.f32 0.0, %v4029
        %v4031 = vpop.f32.mrb[0].mxu0
        %v4032 = vpop.f32.mrb[0].mxu0
        %v4033 = vadd.f32 0.0, %v4032
        %v4034 = vpop.f32.mrb[0].mxu0
        %4035 = vdwg.mxu0
        %v4036 = vadd.f32 %v3610, %v3782
        %v4037 = vadd.f32 %v3611, %v3785
        %v4038 = vadd.f32 %v3612, %v3790
        %v4039 = vadd.f32 %v3613, %v3793
        %v4040 = vadd.f32 %v3614, %v3798
        %v4041 = vadd.f32 %v3615, %v3801
        %v4042 = vadd.f32 %v3616, %v3806
        %v4043 = vadd.f32 %v3617, %v3809
        %v4044 = vadd.f32 %v3618, %v3814
        %v4045 = vadd.f32 %v3619, %v3817
        %v4046 = vadd.f32 %v3620, %v3822
        %v4047 = vadd.f32 %v3621, %v3825
        %v4048 = vadd.f32 %v3622, %v3830
        %v4049 = vadd.f32 %v3623, %v3833
        %v4050 = vadd.f32 %v3624, %v3838
        %v4051 = vadd.f32 %v3625, %v3841
        %v4052 = vadd.f32 %v3626, %v3846
        %v4053 = vadd.f32 %v3627, %v3849
        %v4054 = vadd.f32 %v3628, %v3854
        %v4055 = vadd.f32 %v3629, %v3857
        %v4056 = vadd.f32 %v3630, %v3862
        %v4057 = vadd.f32 %v3631, %v3865
        %v4058 = vadd.f32 %v3632, %v3870
        %v4059 = vadd.f32 %v3633, %v3873
        %v4060 = vadd.f32 %v3634, %v3878
        %v4061 = vadd.f32 %v3635, %v3881
        %v4062 = vadd.f32 %v3636, %v3886
        %v4063 = vadd.f32 %v3637, %v3889
        %v4064 = vadd.f32 %v3638, %v3894
        %v4065 = vadd.f32 %v3639, %v3897
        %v4066 = vadd.f32 %v3640, %v3902
        %v4067 = vadd.f32 %v3641, %v3905
        %v4068 = vadd.f32 %v3642, %v3910
        %v4069 = vadd.f32 %v3643, %v3913
        %v4070 = vadd.f32 %v3644, %v3918
        %v4071 = vadd.f32 %v3645, %v3921
        %v4072 = vadd.f32 %v3646, %v3926
        %v4073 = vadd.f32 %v3647, %v3929
        %v4074 = vadd.f32 %v3648, %v3934
        %v4075 = vadd.f32 %v3649, %v3937
        %v4076 = vadd.f32 %v3650, %v3942
        %v4077 = vadd.f32 %v3651, %v3945
        %v4078 = vadd.f32 %v3652, %v3950
        %v4079 = vadd.f32 %v3653, %v3953
        %v4080 = vadd.f32 %v3654, %v3958
        %v4081 = vadd.f32 %v3655, %v3961
        %v4082 = vadd.f32 %v3656, %v3966
        %v4083 = vadd.f32 %v3657, %v3969
        %v4084 = vadd.f32 %v3658, %v3974
        %v4085 = vadd.f32 %v3659, %v3977
        %v4086 = vadd.f32 %v3660, %v3982
        %v4087 = vadd.f32 %v3661, %v3985
        %v4088 = vadd.f32 %v3662, %v3990
        %v4089 = vadd.f32 %v3663, %v3993
        %v4090 = vadd.f32 %v3664, %v3998
        %v4091 = vadd.f32 %v3665, %v4001
        %v4092 = vadd.f32 %v3666, %v4006
        %v4093 = vadd.f32 %v3667, %v4009
        %v4094 = vadd.f32 %v3668, %v4014
        %v4095 = vadd.f32 %v3669, %v4017
        %v4096 = vadd.f32 %v3670, %v4022
        %v4097 = vadd.f32 %v3671, %v4025
        %v4098 = vadd.f32 %v3672, %v4030
        %v4099 = vadd.f32 %v3673, %v4033
        %s4100 = scalar_lea.vmem %s2, 384
        %v4101 = vld [vmem:[%s4100] sm:$0xf]
        %v4102 = vld [vmem:[%s4100 + $0x4] sm:$0xf]
        %v4103 = vld [vmem:[%s4100 + $0x8] sm:$0xf]
        %v4104 = vld [vmem:[%s4100 + $0xc] sm:$0xf]
        %v4105 = vld [vmem:[%s4100 + $0x10] sm:$0xf]
        %v4106 = vld [vmem:[%s4100 + $0x14] sm:$0xf]
        %v4107 = vld [vmem:[%s4100 + $0x18] sm:$0xf]
        %v4108 = vld [vmem:[%s4100 + $0x1c] sm:$0xf]
        %v4109 = vld [vmem:[%s4100 + $0x20] sm:$0xf]
        %v4110 = vld [vmem:[%s4100 + $0x24] sm:$0xf]
        %v4111 = vld [vmem:[%s4100 + $0x28] sm:$0xf]
        %v4112 = vld [vmem:[%s4100 + $0x2c] sm:$0xf]
        %v4113 = vld [vmem:[%s4100 + $0x30] sm:$0xf]
        %v4114 = vld [vmem:[%s4100 + $0x34] sm:$0xf]
        %v4115 = vld [vmem:[%s4100 + $0x38] sm:$0xf]
        %v4116 = vld [vmem:[%s4100 + $0x3c] sm:$0xf]
        %v4133 = vunpack.c.l.b16 %v4101
        %v4134 = vunpack.c.l.b16 %v4102
        %v4135 = vunpack.c.l.b16 %v4103
        %v4136 = vunpack.c.l.b16 %v4104
        %v4137 = vunpack.c.l.b16 %v4105
        %v4138 = vunpack.c.l.b16 %v4106
        %v4139 = vunpack.c.l.b16 %v4107
        %v4140 = vunpack.c.l.b16 %v4108
        %v4141 = vunpack.c.l.b16 %v4109
        %v4142 = vunpack.c.l.b16 %v4110
        %v4143 = vunpack.c.l.b16 %v4111
        %v4144 = vunpack.c.l.b16 %v4112
        %v4145 = vunpack.c.l.b16 %v4113
        %v4146 = vunpack.c.l.b16 %v4114
        %v4147 = vunpack.c.l.b16 %v4115
        %v4148 = vunpack.c.l.b16 %v4116
        %v4149 = vpack.c.b16 %v4134, %v4133
        %v4150 = vpack.c.b16 %v4136, %v4135
        %v4151 = vpack.c.b16 %v4138, %v4137
        %v4152 = vpack.c.b16 %v4140, %v4139
        %v4153 = vpack.c.b16 %v4142, %v4141
        %v4154 = vpack.c.b16 %v4144, %v4143
        %v4155 = vpack.c.b16 %v4146, %v4145
        %v4156 = vpack.c.b16 %v4148, %v4147
        %4165 = vmatprep.subr.bf16.mxu0 0
        %4166 = vmatpush1.bf16.msra.mxu0 %v4149
        %4167 = vmatprep.subr.bf16.mxu0 0
        %4168 = vmatpush1.bf16.msra.mxu0 %v4150
        %4169 = vmatprep.subr.bf16.mxu0 0
        %4170 = vmatpush1.bf16.msra.mxu0 %v4151
        %4171 = vmatprep.subr.bf16.mxu0 0
        %4172 = vmatpush1.bf16.msra.mxu0 %v4152
        %4173 = vmatprep.subr.bf16.mxu0 0
        %4174 = vmatpush1.bf16.msra.mxu0 %v4153
        %4175 = vmatprep.subr.bf16.mxu0 0
        %4176 = vmatpush1.bf16.msra.mxu0 %v4154
        %4177 = vmatprep.subr.bf16.mxu0 0
        %4178 = vmatpush1.bf16.msra.mxu0 %v4155
        %4179 = vmatprep.subr.bf16.mxu0 0
        %4180 = vmatpush1.bf16.msra.mxu0 %v4156
        %4181 = vmatprep.subr.bf16.mxu0 0
        %4182 = vmatpush1.bf16.msra.mxu0 0
        %4183 = vmatprep.subr.bf16.mxu0 0
        %4184 = vmatpush1.bf16.msra.mxu0 0
        %4185 = vmatprep.subr.bf16.mxu0 0
        %4186 = vmatpush1.bf16.msra.mxu0 0
        %4187 = vmatprep.subr.bf16.mxu0 0
        %4188 = vmatpush1.bf16.msra.mxu0 0
        %4189 = vmatprep.subr.bf16.mxu0 0
        %4190 = vmatpush1.bf16.msra.mxu0 0
        %4191 = vmatprep.subr.bf16.mxu0 0
        %4192 = vmatpush1.bf16.msra.mxu0 0
        %4193 = vmatprep.subr.bf16.mxu0 0
        %4194 = vmatpush1.bf16.msra.mxu0 0
        %4195 = vmatprep.subr.bf16.mxu0 0
        %4196 = vmatpush1.bf16.msra.mxu0 0
        %4197 = vmatprep.mubr.bf16.mxu0 0
        %4198 = vmatmul.mubr.bf16.gmra.mrb[0].mxu0 %v1238
        %v4199 = vpop.f32.mrb[0].mxu0
        %v4200 = vadd.f32 0.0, %v4199
        %v4201 = vpop.f32.mrb[0].mxu0
        %v4202 = vpop.f32.mrb[0].mxu0
        %v4203 = vadd.f32 0.0, %v4202
        %v4204 = vpop.f32.mrb[0].mxu0
        %4205 = vmatprep.mubr.bf16.mxu0 0
        %4206 = vmatmul.mubr.bf16.gmra.mrb[0].mxu0 %v1239
        %v4207 = vpop.f32.mrb[0].mxu0
        %v4208 = vadd.f32 0.0, %v4207
        %v4209 = vpop.f32.mrb[0].mxu0
        %v4210 = vpop.f32.mrb[0].mxu0
        %v4211 = vadd.f32 0.0, %v4210
        %v4212 = vpop.f32.mrb[0].mxu0
        %4213 = vmatprep.mubr.bf16.mxu0 0
        %4214 = vmatmul.mubr.bf16.gmra.mrb[0].mxu0 %v1240
        %v4215 = vpop.f32.mrb[0].mxu0
        %v4216 = vadd.f32 0.0, %v4215
        %v4217 = vpop.f32.mrb[0].mxu0
        %v4218 = vpop.f32.mrb[0].mxu0
        %v4219 = vadd.f32 0.0, %v4218
        %v4220 = vpop.f32.mrb[0].mxu0
        %4221 = vmatprep.mubr.bf16.mxu0 0
        %4222 = vmatmul.mubr.bf16.gmra.mrb[0].mxu0 %v1241
        %v4223 = vpop.f32.mrb[0].mxu0
        %v4224 = vadd.f32 0.0, %v4223
        %v4225 = vpop.f32.mrb[0].mxu0
        %v4226 = vpop.f32.mrb[0].mxu0
        %v4227 = vadd.f32 0.0, %v4226
        %v4228 = vpop.f32.mrb[0].mxu0
        %4229 = vmatprep.mubr.bf16.mxu0 0
        %4230 = vmatmul.mubr.bf16.gmra.mrb[0].mxu0 %v1242
        %v4231 = vpop.f32.mrb[0].mxu0
        %v4232 = vadd.f32 0.0, %v4231
        %v4233 = vpop.f32.mrb[0].mxu0
        %v4234 = vpop.f32.mrb[0].mxu0
        %v4235 = vadd.f32 0.0, %v4234
        %v4236 = vpop.f32.mrb[0].mxu0
        %4237 = vmatprep.mubr.bf16.mxu0 0
        %4238 = vmatmul.mubr.bf16.gmra.mrb[0].mxu0 %v1243
        %v4239 = vpop.f32.mrb[0].mxu0
        %v4240 = vadd.f32 0.0, %v4239
        %v4241 = vpop.f32.mrb[0].mxu0
        %v4242 = vpop.f32.mrb[0].mxu0
        %v4243 = vadd.f32 0.0, %v4242
        %v4244 = vpop.f32.mrb[0].mxu0
        %4245 = vmatprep.mubr.bf16.mxu0 0
        %4246 = vmatmul.mubr.bf16.gmra.mrb[0].mxu0 %v1244
        %v4247 = vpop.f32.mrb[0].mxu0
        %v4248 = vadd.f32 0.0, %v4247
        %v4249 = vpop.f32.mrb[0].mxu0
        %v4250 = vpop.f32.mrb[0].mxu0
        %v4251 = vadd.f32 0.0, %v4250
        %v4252 = vpop.f32.mrb[0].mxu0
        %4253 = vmatprep.mubr.bf16.mxu0 0
        %4254 = vmatmul.mubr.bf16.gmra.mrb[0].mxu0 %v1245
        %v4255 = vpop.f32.mrb[0].mxu0
        %v4256 = vadd.f32 0.0, %v4255
        %v4257 = vpop.f32.mrb[0].mxu0
        %v4258 = vpop.f32.mrb[0].mxu0
        %v4259 = vadd.f32 0.0, %v4258
        %v4260 = vpop.f32.mrb[0].mxu0
        %4261 = vmatprep.mubr.bf16.mxu0 0
        %4262 = vmatmul.mubr.bf16.gmra.mrb[0].mxu0 %v1246
        %v4263 = vpop.f32.mrb[0].mxu0
        %v4264 = vadd.f32 0.0, %v4263
        %v4265 = vpop.f32.mrb[0].mxu0
        %v4266 = vpop.f32.mrb[0].mxu0
        %v4267 = vadd.f32 0.0, %v4266
        %v4268 = vpop.f32.mrb[0].mxu0
        %4269 = vmatprep.mubr.bf16.mxu0 0
        %4270 = vmatmul.mubr.bf16.gmra.mrb[0].mxu0 %v1247
        %v4271 = vpop.f32.mrb[0].mxu0
        %v4272 = vadd.f32 0.0, %v4271
        %v4273 = vpop.f32.mrb[0].mxu0
        %v4274 = vpop.f32.mrb[0].mxu0
        %v4275 = vadd.f32 0.0, %v4274
        %v4276 = vpop.f32.mrb[0].mxu0
        %4277 = vmatprep.mubr.bf16.mxu0 0
        %4278 = vmatmul.mubr.bf16.gmra.mrb[0].mxu0 %v1248
        %v4279 = vpop.f32.mrb[0].mxu0
        %v4280 = vadd.f32 0.0, %v4279
        %v4281 = vpop.f32.mrb[0].mxu0
        %v4282 = vpop.f32.mrb[0].mxu0
        %v4283 = vadd.f32 0.0, %v4282
        %v4284 = vpop.f32.mrb[0].mxu0
        %4285 = vmatprep.mubr.bf16.mxu0 0
        %4286 = vmatmul.mubr.bf16.gmra.mrb[0].mxu0 %v1249
        %v4287 = vpop.f32.mrb[0].mxu0
        %v4288 = vadd.f32 0.0, %v4287
        %v4289 = vpop.f32.mrb[0].mxu0
        %v4290 = vpop.f32.mrb[0].mxu0
        %v4291 = vadd.f32 0.0, %v4290
        %v4292 = vpop.f32.mrb[0].mxu0
        %4293 = vmatprep.mubr.bf16.mxu0 0
        %4294 = vmatmul.mubr.bf16.gmra.mrb[0].mxu0 %v1250
        %v4295 = vpop.f32.mrb[0].mxu0
        %v4296 = vadd.f32 0.0, %v4295
        %v4297 = vpop.f32.mrb[0].mxu0
        %v4298 = vpop.f32.mrb[0].mxu0
        %v4299 = vadd.f32 0.0, %v4298
        %v4300 = vpop.f32.mrb[0].mxu0
        %4301 = vmatprep.mubr.bf16.mxu0 0
        %4302 = vmatmul.mubr.bf16.gmra.mrb[0].mxu0 %v1251
        %v4303 = vpop.f32.mrb[0].mxu0
        %v4304 = vadd.f32 0.0, %v4303
        %v4305 = vpop.f32.mrb[0].mxu0
        %v4306 = vpop.f32.mrb[0].mxu0
        %v4307 = vadd.f32 0.0, %v4306
        %v4308 = vpop.f32.mrb[0].mxu0
        %4309 = vmatprep.mubr.bf16.mxu0 0
        %4310 = vmatmul.mubr.bf16.gmra.mrb[0].mxu0 %v1252
        %v4311 = vpop.f32.mrb[0].mxu0
        %v4312 = vadd.f32 0.0, %v4311
        %v4313 = vpop.f32.mrb[0].mxu0
        %v4314 = vpop.f32.mrb[0].mxu0
        %v4315 = vadd.f32 0.0, %v4314
        %v4316 = vpop.f32.mrb[0].mxu0
        %4317 = vmatprep.mubr.bf16.mxu0 0
        %4318 = vmatmul.mubr.bf16.gmra.mrb[0].mxu0 %v1253
        %v4319 = vpop.f32.mrb[0].mxu0
        %v4320 = vadd.f32 0.0, %v4319
        %v4321 = vpop.f32.mrb[0].mxu0
        %v4322 = vpop.f32.mrb[0].mxu0
        %v4323 = vadd.f32 0.0, %v4322
        %v4324 = vpop.f32.mrb[0].mxu0
        %4325 = vmatprep.mubr.bf16.mxu0 0
        %4326 = vmatmul.mubr.bf16.gmra.mrb[0].mxu0 %v1254
        %v4327 = vpop.f32.mrb[0].mxu0
        %v4328 = vadd.f32 0.0, %v4327
        %v4329 = vpop.f32.mrb[0].mxu0
        %v4330 = vpop.f32.mrb[0].mxu0
        %v4331 = vadd.f32 0.0, %v4330
        %v4332 = vpop.f32.mrb[0].mxu0
        %4333 = vmatprep.mubr.bf16.mxu0 0
        %4334 = vmatmul.mubr.bf16.gmra.mrb[0].mxu0 %v1255
        %v4335 = vpop.f32.mrb[0].mxu0
        %v4336 = vadd.f32 0.0, %v4335
        %v4337 = vpop.f32.mrb[0].mxu0
        %v4338 = vpop.f32.mrb[0].mxu0
        %v4339 = vadd.f32 0.0, %v4338
        %v4340 = vpop.f32.mrb[0].mxu0
        %4341 = vmatprep.mubr.bf16.mxu0 0
        %4342 = vmatmul.mubr.bf16.gmra.mrb[0].mxu0 %v1256
        %v4343 = vpop.f32.mrb[0].mxu0
        %v4344 = vadd.f32 0.0, %v4343
        %v4345 = vpop.f32.mrb[0].mxu0
        %v4346 = vpop.f32.mrb[0].mxu0
        %v4347 = vadd.f32 0.0, %v4346
        %v4348 = vpop.f32.mrb[0].mxu0
        %4349 = vmatprep.mubr.bf16.mxu0 0
        %4350 = vmatmul.mubr.bf16.gmra.mrb[0].mxu0 %v1257
        %v4351 = vpop.f32.mrb[0].mxu0
        %v4352 = vadd.f32 0.0, %v4351
        %v4353 = vpop.f32.mrb[0].mxu0
        %v4354 = vpop.f32.mrb[0].mxu0
        %v4355 = vadd.f32 0.0, %v4354
        %v4356 = vpop.f32.mrb[0].mxu0
        %4357 = vmatprep.mubr.bf16.mxu0 0
        %4358 = vmatmul.mubr.bf16.gmra.mrb[0].mxu0 %v1258
        %v4359 = vpop.f32.mrb[0].mxu0
        %v4360 = vadd.f32 0.0, %v4359
        %v4361 = vpop.f32.mrb[0].mxu0
        %v4362 = vpop.f32.mrb[0].mxu0
        %v4363 = vadd.f32 0.0, %v4362
        %v4364 = vpop.f32.mrb[0].mxu0
        %4365 = vmatprep.mubr.bf16.mxu0 0
        %4366 = vmatmul.mubr.bf16.gmra.mrb[0].mxu0 %v1259
        %v4367 = vpop.f32.mrb[0].mxu0
        %v4368 = vadd.f32 0.0, %v4367
        %v4369 = vpop.f32.mrb[0].mxu0
        %v4370 = vpop.f32.mrb[0].mxu0
        %v4371 = vadd.f32 0.0, %v4370
        %v4372 = vpop.f32.mrb[0].mxu0
        %4373 = vmatprep.mubr.bf16.mxu0 0
        %4374 = vmatmul.mubr.bf16.gmra.mrb[0].mxu0 %v1260
        %v4375 = vpop.f32.mrb[0].mxu0
        %v4376 = vadd.f32 0.0, %v4375
        %v4377 = vpop.f32.mrb[0].mxu0
        %v4378 = vpop.f32.mrb[0].mxu0
        %v4379 = vadd.f32 0.0, %v4378
        %v4380 = vpop.f32.mrb[0].mxu0
        %4381 = vmatprep.mubr.bf16.mxu0 0
        %4382 = vmatmul.mubr.bf16.gmra.mrb[0].mxu0 %v1261
        %v4383 = vpop.f32.mrb[0].mxu0
        %v4384 = vadd.f32 0.0, %v4383
        %v4385 = vpop.f32.mrb[0].mxu0
        %v4386 = vpop.f32.mrb[0].mxu0
        %v4387 = vadd.f32 0.0, %v4386
        %v4388 = vpop.f32.mrb[0].mxu0
        %4389 = vmatprep.mubr.bf16.mxu0 0
        %4390 = vmatmul.mubr.bf16.gmra.mrb[0].mxu0 %v1262
        %v4391 = vpop.f32.mrb[0].mxu0
        %v4392 = vadd.f32 0.0, %v4391
        %v4393 = vpop.f32.mrb[0].mxu0
        %v4394 = vpop.f32.mrb[0].mxu0
        %v4395 = vadd.f32 0.0, %v4394
        %v4396 = vpop.f32.mrb[0].mxu0
        %4397 = vmatprep.mubr.bf16.mxu0 0
        %4398 = vmatmul.mubr.bf16.gmra.mrb[0].mxu0 %v1263
        %v4399 = vpop.f32.mrb[0].mxu0
        %v4400 = vadd.f32 0.0, %v4399
        %v4401 = vpop.f32.mrb[0].mxu0
        %v4402 = vpop.f32.mrb[0].mxu0
        %v4403 = vadd.f32 0.0, %v4402
        %v4404 = vpop.f32.mrb[0].mxu0
        %4405 = vmatprep.mubr.bf16.mxu0 0
        %4406 = vmatmul.mubr.bf16.gmra.mrb[0].mxu0 %v1264
        %v4407 = vpop.f32.mrb[0].mxu0
        %v4408 = vadd.f32 0.0, %v4407
        %v4409 = vpop.f32.mrb[0].mxu0
        %v4410 = vpop.f32.mrb[0].mxu0
        %v4411 = vadd.f32 0.0, %v4410
        %v4412 = vpop.f32.mrb[0].mxu0
        %4413 = vmatprep.mubr.bf16.mxu0 0
        %4414 = vmatmul.mubr.bf16.gmra.mrb[0].mxu0 %v1265
        %v4415 = vpop.f32.mrb[0].mxu0
        %v4416 = vadd.f32 0.0, %v4415
        %v4417 = vpop.f32.mrb[0].mxu0
        %v4418 = vpop.f32.mrb[0].mxu0
        %v4419 = vadd.f32 0.0, %v4418
        %v4420 = vpop.f32.mrb[0].mxu0
        %4421 = vmatprep.mubr.bf16.mxu0 0
        %4422 = vmatmul.mubr.bf16.gmra.mrb[0].mxu0 %v1266
        %v4423 = vpop.f32.mrb[0].mxu0
        %v4424 = vadd.f32 0.0, %v4423
        %v4425 = vpop.f32.mrb[0].mxu0
        %v4426 = vpop.f32.mrb[0].mxu0
        %v4427 = vadd.f32 0.0, %v4426
        %v4428 = vpop.f32.mrb[0].mxu0
        %4429 = vmatprep.mubr.bf16.mxu0 0
        %4430 = vmatmul.mubr.bf16.gmra.mrb[0].mxu0 %v1267
        %v4431 = vpop.f32.mrb[0].mxu0
        %v4432 = vadd.f32 0.0, %v4431
        %v4433 = vpop.f32.mrb[0].mxu0
        %v4434 = vpop.f32.mrb[0].mxu0
        %v4435 = vadd.f32 0.0, %v4434
        %v4436 = vpop.f32.mrb[0].mxu0
        %4437 = vmatprep.mubr.bf16.mxu0 0
        %4438 = vmatmul.mubr.bf16.gmra.mrb[0].mxu0 %v1268
        %v4439 = vpop.f32.mrb[0].mxu0
        %v4440 = vadd.f32 0.0, %v4439
        %v4441 = vpop.f32.mrb[0].mxu0
        %v4442 = vpop.f32.mrb[0].mxu0
        %v4443 = vadd.f32 0.0, %v4442
        %v4444 = vpop.f32.mrb[0].mxu0
        %4445 = vmatprep.mubr.bf16.mxu0 0
        %4446 = vmatmul.mubr.bf16.gmra.mrb[0].mxu0 %v1269
        %v4447 = vpop.f32.mrb[0].mxu0
        %v4448 = vadd.f32 0.0, %v4447
        %v4449 = vpop.f32.mrb[0].mxu0
        %v4450 = vpop.f32.mrb[0].mxu0
        %v4451 = vadd.f32 0.0, %v4450
        %v4452 = vpop.f32.mrb[0].mxu0
        %4453 = vdwg.mxu0
        %v4454 = vadd.f32 %v4036, %v4200
        %v4455 = vadd.f32 %v4037, %v4203
        %v4456 = vadd.f32 %v4038, %v4208
        %v4457 = vadd.f32 %v4039, %v4211
        %v4458 = vadd.f32 %v4040, %v4216
        %v4459 = vadd.f32 %v4041, %v4219
        %v4460 = vadd.f32 %v4042, %v4224
        %v4461 = vadd.f32 %v4043, %v4227
        %v4462 = vadd.f32 %v4044, %v4232
        %v4463 = vadd.f32 %v4045, %v4235
        %v4464 = vadd.f32 %v4046, %v4240
        %v4465 = vadd.f32 %v4047, %v4243
        %v4466 = vadd.f32 %v4048, %v4248
        %v4467 = vadd.f32 %v4049, %v4251
        %v4468 = vadd.f32 %v4050, %v4256
        %v4469 = vadd.f32 %v4051, %v4259
        %v4470 = vadd.f32 %v4052, %v4264
        %v4471 = vadd.f32 %v4053, %v4267
        %v4472 = vadd.f32 %v4054, %v4272
        %v4473 = vadd.f32 %v4055, %v4275
        %v4474 = vadd.f32 %v4056, %v4280
        %v4475 = vadd.f32 %v4057, %v4283
        %v4476 = vadd.f32 %v4058, %v4288
        %v4477 = vadd.f32 %v4059, %v4291
        %v4478 = vadd.f32 %v4060, %v4296
        %v4479 = vadd.f32 %v4061, %v4299
        %v4480 = vadd.f32 %v4062, %v4304
        %v4481 = vadd.f32 %v4063, %v4307
        %v4482 = vadd.f32 %v4064, %v4312
        %v4483 = vadd.f32 %v4065, %v4315
        %v4484 = vadd.f32 %v4066, %v4320
        %v4485 = vadd.f32 %v4067, %v4323
        %v4486 = vadd.f32 %v4068, %v4328
        %v4487 = vadd.f32 %v4069, %v4331
        %v4488 = vadd.f32 %v4070, %v4336
        %v4489 = vadd.f32 %v4071, %v4339
        %v4490 = vadd.f32 %v4072, %v4344
        %v4491 = vadd.f32 %v4073, %v4347
        %v4492 = vadd.f32 %v4074, %v4352
        %v4493 = vadd.f32 %v4075, %v4355
        %v4494 = vadd.f32 %v4076, %v4360
        %v4495 = vadd.f32 %v4077, %v4363
        %v4496 = vadd.f32 %v4078, %v4368
        %v4497 = vadd.f32 %v4079, %v4371
        %v4498 = vadd.f32 %v4080, %v4376
        %v4499 = vadd.f32 %v4081, %v4379
        %v4500 = vadd.f32 %v4082, %v4384
        %v4501 = vadd.f32 %v4083, %v4387
        %v4502 = vadd.f32 %v4084, %v4392
        %v4503 = vadd.f32 %v4085, %v4395
        %v4504 = vadd.f32 %v4086, %v4400
        %v4505 = vadd.f32 %v4087, %v4403
        %v4506 = vadd.f32 %v4088, %v4408
        %v4507 = vadd.f32 %v4089, %v4411
        %v4508 = vadd.f32 %v4090, %v4416
        %v4509 = vadd.f32 %v4091, %v4419
        %v4510 = vadd.f32 %v4092, %v4424
        %v4511 = vadd.f32 %v4093, %v4427
        %v4512 = vadd.f32 %v4094, %v4432
        %v4513 = vadd.f32 %v4095, %v4435
        %v4514 = vadd.f32 %v4096, %v4440
        %v4515 = vadd.f32 %v4097, %v4443
        %v4516 = vadd.f32 %v4098, %v4448
        %v4517 = vadd.f32 %v4099, %v4451
        %s4518 = scalar_lea.vmem %s2, 448
        %v4519 = vld [vmem:[%s4518] sm:$0xf]
        %v4520 = vld [vmem:[%s4518 + $0x4] sm:$0xf]
        %v4521 = vld [vmem:[%s4518 + $0x8] sm:$0xf]
        %v4522 = vld [vmem:[%s4518 + $0xc] sm:$0xf]
        %v4523 = vld [vmem:[%s4518 + $0x10] sm:$0xf]
        %v4524 = vld [vmem:[%s4518 + $0x14] sm:$0xf]
        %v4525 = vld [vmem:[%s4518 + $0x18] sm:$0xf]
        %v4526 = vld [vmem:[%s4518 + $0x1c] sm:$0xf]
        %v4527 = vld [vmem:[%s4518 + $0x20] sm:$0xf]
        %v4528 = vld [vmem:[%s4518 + $0x24] sm:$0xf]
        %v4529 = vld [vmem:[%s4518 + $0x28] sm:$0xf]
        %v4530 = vld [vmem:[%s4518 + $0x2c] sm:$0xf]
        %v4531 = vld [vmem:[%s4518 + $0x30] sm:$0xf]
        %v4532 = vld [vmem:[%s4518 + $0x34] sm:$0xf]
        %v4533 = vld [vmem:[%s4518 + $0x38] sm:$0xf]
        %v4534 = vld [vmem:[%s4518 + $0x3c] sm:$0xf]
        %v4535 = vshrl.u32 %v1268, 16
        %v4537 = vor.u32 %v4535, %v3269
        %v4539 = vshll.u32 %v1269, 16
        %v4541 = vrot.slane %v4539, 1
        %v4542 = vsel %vm1304, %v4537, %v4541
        %v4543 = vshrl.u32 %v1269, 16
        %v4545 = vor.u32 %v4543, %v4541
        %v4547 = vshll.u32 %v1270, 16
        %v4549 = vrot.slane %v4547, 1
        %v4550 = vsel %vm1304, %v4545, %v4549
        %v4569 = vunpack.c.l.b16 %v4519
        %v4570 = vunpack.c.l.b16 %v4520
        %v4571 = vunpack.c.l.b16 %v4521
        %v4572 = vunpack.c.l.b16 %v4522
        %v4573 = vunpack.c.l.b16 %v4523
        %v4574 = vunpack.c.l.b16 %v4524
        %v4575 = vunpack.c.l.b16 %v4525
        %v4576 = vunpack.c.l.b16 %v4526
        %v4577 = vunpack.c.l.b16 %v4527
        %v4578 = vunpack.c.l.b16 %v4528
        %v4579 = vunpack.c.l.b16 %v4529
        %v4580 = vunpack.c.l.b16 %v4530
        %v4581 = vunpack.c.l.b16 %v4531
        %v4582 = vunpack.c.l.b16 %v4532
        %v4583 = vunpack.c.l.b16 %v4533
        %v4584 = vunpack.c.l.b16 %v4534
        %v4585 = vpack.c.b16 %v4570, %v4569
        %v4586 = vpack.c.b16 %v4572, %v4571
        %v4587 = vpack.c.b16 %v4574, %v4573
        %v4588 = vpack.c.b16 %v4576, %v4575
        %v4589 = vpack.c.b16 %v4578, %v4577
        %v4590 = vpack.c.b16 %v4580, %v4579
        %v4591 = vpack.c.b16 %v4582, %v4581
        %v4592 = vpack.c.b16 %v4584, %v4583
        %4601 = vmatprep.subr.bf16.mxu0 0
        %4602 = vmatpush1.bf16.msra.mxu0 %v4585
        %4603 = vmatprep.subr.bf16.mxu0 0
        %4604 = vmatpush1.bf16.msra.mxu0 %v4586
        %4605 = vmatprep.subr.bf16.mxu0 0
        %4606 = vmatpush1.bf16.msra.mxu0 %v4587
        %4607 = vmatprep.subr.bf16.mxu0 0
        %4608 = vmatpush1.bf16.msra.mxu0 %v4588
        %4609 = vmatprep.subr.bf16.mxu0 0
        %4610 = vmatpush1.bf16.msra.mxu0 %v4589
        %4611 = vmatprep.subr.bf16.mxu0 0
        %4612 = vmatpush1.bf16.msra.mxu0 %v4590
        %4613 = vmatprep.subr.bf16.mxu0 0
        %4614 = vmatpush1.bf16.msra.mxu0 %v4591
        %4615 = vmatprep.subr.bf16.mxu0 0
        %4616 = vmatpush1.bf16.msra.mxu0 %v4592
        %4617 = vmatprep.subr.bf16.mxu0 0
        %4618 = vmatpush1.bf16.msra.mxu0 0
        %4619 = vmatprep.subr.bf16.mxu0 0
        %4620 = vmatpush1.bf16.msra.mxu0 0
        %4621 = vmatprep.subr.bf16.mxu0 0
        %4622 = vmatpush1.bf16.msra.mxu0 0
        %4623 = vmatprep.subr.bf16.mxu0 0
        %4624 = vmatpush1.bf16.msra.mxu0 0
        %4625 = vmatprep.subr.bf16.mxu0 0
        %4626 = vmatpush1.bf16.msra.mxu0 0
        %4627 = vmatprep.subr.bf16.mxu0 0
        %4628 = vmatpush1.bf16.msra.mxu0 0
        %4629 = vmatprep.subr.bf16.mxu0 0
        %4630 = vmatpush1.bf16.msra.mxu0 0
        %4631 = vmatprep.subr.bf16.mxu0 0
        %4632 = vmatpush1.bf16.msra.mxu0 0
        %4633 = vmatprep.mubr.bf16.mxu0 0
        %4634 = vmatmul.mubr.bf16.gmra.mrb[0].mxu0 %v1348
        %v4635 = vpop.f32.mrb[0].mxu0
        %v4636 = vadd.f32 0.0, %v4635
        %v4637 = vpop.f32.mrb[0].mxu0
        %v4638 = vpop.f32.mrb[0].mxu0
        %v4639 = vadd.f32 0.0, %v4638
        %v4640 = vpop.f32.mrb[0].mxu0
        %4641 = vmatprep.mubr.bf16.mxu0 0
        %4642 = vmatmul.mubr.bf16.gmra.mrb[0].mxu0 %v1356
        %v4643 = vpop.f32.mrb[0].mxu0
        %v4644 = vadd.f32 0.0, %v4643
        %v4645 = vpop.f32.mrb[0].mxu0
        %v4646 = vpop.f32.mrb[0].mxu0
        %v4647 = vadd.f32 0.0, %v4646
        %v4648 = vpop.f32.mrb[0].mxu0
        %4649 = vmatprep.mubr.bf16.mxu0 0
        %4650 = vmatmul.mubr.bf16.gmra.mrb[0].mxu0 %v1364
        %v4651 = vpop.f32.mrb[0].mxu0
        %v4652 = vadd.f32 0.0, %v4651
        %v4653 = vpop.f32.mrb[0].mxu0
        %v4654 = vpop.f32.mrb[0].mxu0
        %v4655 = vadd.f32 0.0, %v4654
        %v4656 = vpop.f32.mrb[0].mxu0
        %4657 = vmatprep.mubr.bf16.mxu0 0
        %4658 = vmatmul.mubr.bf16.gmra.mrb[0].mxu0 %v1372
        %v4659 = vpop.f32.mrb[0].mxu0
        %v4660 = vadd.f32 0.0, %v4659
        %v4661 = vpop.f32.mrb[0].mxu0
        %v4662 = vpop.f32.mrb[0].mxu0
        %v4663 = vadd.f32 0.0, %v4662
        %v4664 = vpop.f32.mrb[0].mxu0
        %4665 = vmatprep.mubr.bf16.mxu0 0
        %4666 = vmatmul.mubr.bf16.gmra.mrb[0].mxu0 %v1380
        %v4667 = vpop.f32.mrb[0].mxu0
        %v4668 = vadd.f32 0.0, %v4667
        %v4669 = vpop.f32.mrb[0].mxu0
        %v4670 = vpop.f32.mrb[0].mxu0
        %v4671 = vadd.f32 0.0, %v4670
        %v4672 = vpop.f32.mrb[0].mxu0
        %4673 = vmatprep.mubr.bf16.mxu0 0
        %4674 = vmatmul.mubr.bf16.gmra.mrb[0].mxu0 %v1388
        %v4675 = vpop.f32.mrb[0].mxu0
        %v4676 = vadd.f32 0.0, %v4675
        %v4677 = vpop.f32.mrb[0].mxu0
        %v4678 = vpop.f32.mrb[0].mxu0
        %v4679 = vadd.f32 0.0, %v4678
        %v4680 = vpop.f32.mrb[0].mxu0
        %4681 = vmatprep.mubr.bf16.mxu0 0
        %4682 = vmatmul.mubr.bf16.gmra.mrb[0].mxu0 %v1396
        %v4683 = vpop.f32.mrb[0].mxu0
        %v4684 = vadd.f32 0.0, %v4683
        %v4685 = vpop.f32.mrb[0].mxu0
        %v4686 = vpop.f32.mrb[0].mxu0
        %v4687 = vadd.f32 0.0, %v4686
        %v4688 = vpop.f32.mrb[0].mxu0
        %4689 = vmatprep.mubr.bf16.mxu0 0
        %4690 = vmatmul.mubr.bf16.gmra.mrb[0].mxu0 %v1404
        %v4691 = vpop.f32.mrb[0].mxu0
        %v4692 = vadd.f32 0.0, %v4691
        %v4693 = vpop.f32.mrb[0].mxu0
        %v4694 = vpop.f32.mrb[0].mxu0
        %v4695 = vadd.f32 0.0, %v4694
        %v4696 = vpop.f32.mrb[0].mxu0
        %4697 = vmatprep.mubr.bf16.mxu0 0
        %4698 = vmatmul.mubr.bf16.gmra.mrb[0].mxu0 %v1412
        %v4699 = vpop.f32.mrb[0].mxu0
        %v4700 = vadd.f32 0.0, %v4699
        %v4701 = vpop.f32.mrb[0].mxu0
        %v4702 = vpop.f32.mrb[0].mxu0
        %v4703 = vadd.f32 0.0, %v4702
        %v4704 = vpop.f32.mrb[0].mxu0
        %4705 = vmatprep.mubr.bf16.mxu0 0
        %4706 = vmatmul.mubr.bf16.gmra.mrb[0].mxu0 %v1420
        %v4707 = vpop.f32.mrb[0].mxu0
        %v4708 = vadd.f32 0.0, %v4707
        %v4709 = vpop.f32.mrb[0].mxu0
        %v4710 = vpop.f32.mrb[0].mxu0
        %v4711 = vadd.f32 0.0, %v4710
        %v4712 = vpop.f32.mrb[0].mxu0
        %4713 = vmatprep.mubr.bf16.mxu0 0
        %4714 = vmatmul.mubr.bf16.gmra.mrb[0].mxu0 %v1428
        %v4715 = vpop.f32.mrb[0].mxu0
        %v4716 = vadd.f32 0.0, %v4715
        %v4717 = vpop.f32.mrb[0].mxu0
        %v4718 = vpop.f32.mrb[0].mxu0
        %v4719 = vadd.f32 0.0, %v4718
        %v4720 = vpop.f32.mrb[0].mxu0
        %4721 = vmatprep.mubr.bf16.mxu0 0
        %4722 = vmatmul.mubr.bf16.gmra.mrb[0].mxu0 %v1436
        %v4723 = vpop.f32.mrb[0].mxu0
        %v4724 = vadd.f32 0.0, %v4723
        %v4725 = vpop.f32.mrb[0].mxu0
        %v4726 = vpop.f32.mrb[0].mxu0
        %v4727 = vadd.f32 0.0, %v4726
        %v4728 = vpop.f32.mrb[0].mxu0
        %4729 = vmatprep.mubr.bf16.mxu0 0
        %4730 = vmatmul.mubr.bf16.gmra.mrb[0].mxu0 %v1444
        %v4731 = vpop.f32.mrb[0].mxu0
        %v4732 = vadd.f32 0.0, %v4731
        %v4733 = vpop.f32.mrb[0].mxu0
        %v4734 = vpop.f32.mrb[0].mxu0
        %v4735 = vadd.f32 0.0, %v4734
        %v4736 = vpop.f32.mrb[0].mxu0
        %4737 = vmatprep.mubr.bf16.mxu0 0
        %4738 = vmatmul.mubr.bf16.gmra.mrb[0].mxu0 %v1452
        %v4739 = vpop.f32.mrb[0].mxu0
        %v4740 = vadd.f32 0.0, %v4739
        %v4741 = vpop.f32.mrb[0].mxu0
        %v4742 = vpop.f32.mrb[0].mxu0
        %v4743 = vadd.f32 0.0, %v4742
        %v4744 = vpop.f32.mrb[0].mxu0
        %4745 = vmatprep.mubr.bf16.mxu0 0
        %4746 = vmatmul.mubr.bf16.gmra.mrb[0].mxu0 %v1460
        %v4747 = vpop.f32.mrb[0].mxu0
        %v4748 = vadd.f32 0.0, %v4747
        %v4749 = vpop.f32.mrb[0].mxu0
        %v4750 = vpop.f32.mrb[0].mxu0
        %v4751 = vadd.f32 0.0, %v4750
        %v4752 = vpop.f32.mrb[0].mxu0
        %4753 = vmatprep.mubr.bf16.mxu0 0
        %4754 = vmatmul.mubr.bf16.gmra.mrb[0].mxu0 %v1468
        %v4755 = vpop.f32.mrb[0].mxu0
        %v4756 = vadd.f32 0.0, %v4755
        %v4757 = vpop.f32.mrb[0].mxu0
        %v4758 = vpop.f32.mrb[0].mxu0
        %v4759 = vadd.f32 0.0, %v4758
        %v4760 = vpop.f32.mrb[0].mxu0
        %4761 = vmatprep.mubr.bf16.mxu0 0
        %4762 = vmatmul.mubr.bf16.gmra.mrb[0].mxu0 %v1476
        %v4763 = vpop.f32.mrb[0].mxu0
        %v4764 = vadd.f32 0.0, %v4763
        %v4765 = vpop.f32.mrb[0].mxu0
        %v4766 = vpop.f32.mrb[0].mxu0
        %v4767 = vadd.f32 0.0, %v4766
        %v4768 = vpop.f32.mrb[0].mxu0
        %4769 = vmatprep.mubr.bf16.mxu0 0
        %4770 = vmatmul.mubr.bf16.gmra.mrb[0].mxu0 %v1484
        %v4771 = vpop.f32.mrb[0].mxu0
        %v4772 = vadd.f32 0.0, %v4771
        %v4773 = vpop.f32.mrb[0].mxu0
        %v4774 = vpop.f32.mrb[0].mxu0
        %v4775 = vadd.f32 0.0, %v4774
        %v4776 = vpop.f32.mrb[0].mxu0
        %4777 = vmatprep.mubr.bf16.mxu0 0
        %4778 = vmatmul.mubr.bf16.gmra.mrb[0].mxu0 %v1492
        %v4779 = vpop.f32.mrb[0].mxu0
        %v4780 = vadd.f32 0.0, %v4779
        %v4781 = vpop.f32.mrb[0].mxu0
        %v4782 = vpop.f32.mrb[0].mxu0
        %v4783 = vadd.f32 0.0, %v4782
        %v4784 = vpop.f32.mrb[0].mxu0
        %4785 = vmatprep.mubr.bf16.mxu0 0
        %4786 = vmatmul.mubr.bf16.gmra.mrb[0].mxu0 %v1500
        %v4787 = vpop.f32.mrb[0].mxu0
        %v4788 = vadd.f32 0.0, %v4787
        %v4789 = vpop.f32.mrb[0].mxu0
        %v4790 = vpop.f32.mrb[0].mxu0
        %v4791 = vadd.f32 0.0, %v4790
        %v4792 = vpop.f32.mrb[0].mxu0
        %4793 = vmatprep.mubr.bf16.mxu0 0
        %4794 = vmatmul.mubr.bf16.gmra.mrb[0].mxu0 %v1508
        %v4795 = vpop.f32.mrb[0].mxu0
        %v4796 = vadd.f32 0.0, %v4795
        %v4797 = vpop.f32.mrb[0].mxu0
        %v4798 = vpop.f32.mrb[0].mxu0
        %v4799 = vadd.f32 0.0, %v4798
        %v4800 = vpop.f32.mrb[0].mxu0
        %4801 = vmatprep.mubr.bf16.mxu0 0
        %4802 = vmatmul.mubr.bf16.gmra.mrb[0].mxu0 %v1516
        %v4803 = vpop.f32.mrb[0].mxu0
        %v4804 = vadd.f32 0.0, %v4803
        %v4805 = vpop.f32.mrb[0].mxu0
        %v4806 = vpop.f32.mrb[0].mxu0
        %v4807 = vadd.f32 0.0, %v4806
        %v4808 = vpop.f32.mrb[0].mxu0
        %4809 = vmatprep.mubr.bf16.mxu0 0
        %4810 = vmatmul.mubr.bf16.gmra.mrb[0].mxu0 %v1524
        %v4811 = vpop.f32.mrb[0].mxu0
        %v4812 = vadd.f32 0.0, %v4811
        %v4813 = vpop.f32.mrb[0].mxu0
        %v4814 = vpop.f32.mrb[0].mxu0
        %v4815 = vadd.f32 0.0, %v4814
        %v4816 = vpop.f32.mrb[0].mxu0
        %4817 = vmatprep.mubr.bf16.mxu0 0
        %4818 = vmatmul.mubr.bf16.gmra.mrb[0].mxu0 %v1532
        %v4819 = vpop.f32.mrb[0].mxu0
        %v4820 = vadd.f32 0.0, %v4819
        %v4821 = vpop.f32.mrb[0].mxu0
        %v4822 = vpop.f32.mrb[0].mxu0
        %v4823 = vadd.f32 0.0, %v4822
        %v4824 = vpop.f32.mrb[0].mxu0
        %4825 = vmatprep.mubr.bf16.mxu0 0
        %4826 = vmatmul.mubr.bf16.gmra.mrb[0].mxu0 %v1540
        %v4827 = vpop.f32.mrb[0].mxu0
        %v4828 = vadd.f32 0.0, %v4827
        %v4829 = vpop.f32.mrb[0].mxu0
        %v4830 = vpop.f32.mrb[0].mxu0
        %v4831 = vadd.f32 0.0, %v4830
        %v4832 = vpop.f32.mrb[0].mxu0
        %4833 = vmatprep.mubr.bf16.mxu0 0
        %4834 = vmatmul.mubr.bf16.gmra.mrb[0].mxu0 %v1548
        %v4835 = vpop.f32.mrb[0].mxu0
        %v4836 = vadd.f32 0.0, %v4835
        %v4837 = vpop.f32.mrb[0].mxu0
        %v4838 = vpop.f32.mrb[0].mxu0
        %v4839 = vadd.f32 0.0, %v4838
        %v4840 = vpop.f32.mrb[0].mxu0
        %4841 = vmatprep.mubr.bf16.mxu0 0
        %4842 = vmatmul.mubr.bf16.gmra.mrb[0].mxu0 %v1556
        %v4843 = vpop.f32.mrb[0].mxu0
        %v4844 = vadd.f32 0.0, %v4843
        %v4845 = vpop.f32.mrb[0].mxu0
        %v4846 = vpop.f32.mrb[0].mxu0
        %v4847 = vadd.f32 0.0, %v4846
        %v4848 = vpop.f32.mrb[0].mxu0
        %4849 = vmatprep.mubr.bf16.mxu0 0
        %4850 = vmatmul.mubr.bf16.gmra.mrb[0].mxu0 %v1564
        %v4851 = vpop.f32.mrb[0].mxu0
        %v4852 = vadd.f32 0.0, %v4851
        %v4853 = vpop.f32.mrb[0].mxu0
        %v4854 = vpop.f32.mrb[0].mxu0
        %v4855 = vadd.f32 0.0, %v4854
        %v4856 = vpop.f32.mrb[0].mxu0
        %4857 = vmatprep.mubr.bf16.mxu0 0
        %4858 = vmatmul.mubr.bf16.gmra.mrb[0].mxu0 %v3262
        %v4859 = vpop.f32.mrb[0].mxu0
        %v4860 = vadd.f32 0.0, %v4859
        %v4861 = vpop.f32.mrb[0].mxu0
        %v4862 = vpop.f32.mrb[0].mxu0
        %v4863 = vadd.f32 0.0, %v4862
        %v4864 = vpop.f32.mrb[0].mxu0
        %4865 = vmatprep.mubr.bf16.mxu0 0
        %4866 = vmatmul.mubr.bf16.gmra.mrb[0].mxu0 %v3270
        %v4867 = vpop.f32.mrb[0].mxu0
        %v4868 = vadd.f32 0.0, %v4867
        %v4869 = vpop.f32.mrb[0].mxu0
        %v4870 = vpop.f32.mrb[0].mxu0
        %v4871 = vadd.f32 0.0, %v4870
        %v4872 = vpop.f32.mrb[0].mxu0
        %4873 = vmatprep.mubr.bf16.mxu0 0
        %4874 = vmatmul.mubr.bf16.gmra.mrb[0].mxu0 %v4542
        %v4875 = vpop.f32.mrb[0].mxu0
        %v4876 = vadd.f32 0.0, %v4875
        %v4877 = vpop.f32.mrb[0].mxu0
        %v4878 = vpop.f32.mrb[0].mxu0
        %v4879 = vadd.f32 0.0, %v4878
        %v4880 = vpop.f32.mrb[0].mxu0
        %4881 = vmatprep.mubr.bf16.mxu0 0
        %4882 = vmatmul.mubr.bf16.gmra.mrb[0].mxu0 %v4550
        %v4883 = vpop.f32.mrb[0].mxu0
        %v4884 = vadd.f32 0.0, %v4883
        %v4885 = vpop.f32.mrb[0].mxu0
        %v4886 = vpop.f32.mrb[0].mxu0
        %v4887 = vadd.f32 0.0, %v4886
        %v4888 = vpop.f32.mrb[0].mxu0
        %4889 = vdwg.mxu0
        %v4890 = vadd.f32 %v4454, %v4636
        %v4891 = vadd.f32 %v4455, %v4639
        %v4892 = vadd.f32 %v4456, %v4644
        %v4893 = vadd.f32 %v4457, %v4647
        %v4894 = vadd.f32 %v4458, %v4652
        %v4895 = vadd.f32 %v4459, %v4655
        %v4896 = vadd.f32 %v4460, %v4660
        %v4897 = vadd.f32 %v4461, %v4663
        %v4898 = vadd.f32 %v4462, %v4668
        %v4899 = vadd.f32 %v4463, %v4671
        %v4900 = vadd.f32 %v4464, %v4676
        %v4901 = vadd.f32 %v4465, %v4679
        %v4902 = vadd.f32 %v4466, %v4684
        %v4903 = vadd.f32 %v4467, %v4687
        %v4904 = vadd.f32 %v4468, %v4692
        %v4905 = vadd.f32 %v4469, %v4695
        %v4906 = vadd.f32 %v4470, %v4700
        %v4907 = vadd.f32 %v4471, %v4703
        %v4908 = vadd.f32 %v4472, %v4708
        %v4909 = vadd.f32 %v4473, %v4711
        %v4910 = vadd.f32 %v4474, %v4716
        %v4911 = vadd.f32 %v4475, %v4719
        %v4912 = vadd.f32 %v4476, %v4724
        %v4913 = vadd.f32 %v4477, %v4727
        %v4914 = vadd.f32 %v4478, %v4732
        %v4915 = vadd.f32 %v4479, %v4735
        %v4916 = vadd.f32 %v4480, %v4740
        %v4917 = vadd.f32 %v4481, %v4743
        %v4918 = vadd.f32 %v4482, %v4748
        %v4919 = vadd.f32 %v4483, %v4751
        %v4920 = vadd.f32 %v4484, %v4756
        %v4921 = vadd.f32 %v4485, %v4759
        %v4922 = vadd.f32 %v4486, %v4764
        %v4923 = vadd.f32 %v4487, %v4767
        %v4924 = vadd.f32 %v4488, %v4772
        %v4925 = vadd.f32 %v4489, %v4775
        %v4926 = vadd.f32 %v4490, %v4780
        %v4927 = vadd.f32 %v4491, %v4783
        %v4928 = vadd.f32 %v4492, %v4788
        %v4929 = vadd.f32 %v4493, %v4791
        %v4930 = vadd.f32 %v4494, %v4796
        %v4931 = vadd.f32 %v4495, %v4799
        %v4932 = vadd.f32 %v4496, %v4804
        %v4933 = vadd.f32 %v4497, %v4807
        %v4934 = vadd.f32 %v4498, %v4812
        %v4935 = vadd.f32 %v4499, %v4815
        %v4936 = vadd.f32 %v4500, %v4820
        %v4937 = vadd.f32 %v4501, %v4823
        %v4938 = vadd.f32 %v4502, %v4828
        %v4939 = vadd.f32 %v4503, %v4831
        %v4940 = vadd.f32 %v4504, %v4836
        %v4941 = vadd.f32 %v4505, %v4839
        %v4942 = vadd.f32 %v4506, %v4844
        %v4943 = vadd.f32 %v4507, %v4847
        %v4944 = vadd.f32 %v4508, %v4852
        %v4945 = vadd.f32 %v4509, %v4855
        %v4946 = vadd.f32 %v4510, %v4860
        %v4947 = vadd.f32 %v4511, %v4863
        %v4948 = vadd.f32 %v4512, %v4868
        %v4949 = vadd.f32 %v4513, %v4871
        %v4950 = vadd.f32 %v4514, %v4876
        %v4951 = vadd.f32 %v4515, %v4879
        %v4952 = vadd.f32 %v4516, %v4884
        %v4953 = vadd.f32 %v4517, %v4887
        %s4954 = scalar_lea.vmem %s2, 512
        %v4955 = vld [vmem:[%s4954] sm:$0xf]
        %v4956 = vld [vmem:[%s4954 + $0x4] sm:$0xf]
        %v4957 = vld [vmem:[%s4954 + $0x8] sm:$0xf]
        %v4958 = vld [vmem:[%s4954 + $0xc] sm:$0xf]
        %v4959 = vld [vmem:[%s4954 + $0x10] sm:$0xf]
        %v4960 = vld [vmem:[%s4954 + $0x14] sm:$0xf]
        %v4961 = vld [vmem:[%s4954 + $0x18] sm:$0xf]
        %v4962 = vld [vmem:[%s4954 + $0x1c] sm:$0xf]
        %v4963 = vld [vmem:[%s4954 + $0x20] sm:$0xf]
        %v4964 = vld [vmem:[%s4954 + $0x24] sm:$0xf]
        %v4965 = vld [vmem:[%s4954 + $0x28] sm:$0xf]
        %v4966 = vld [vmem:[%s4954 + $0x2c] sm:$0xf]
        %v4967 = vld [vmem:[%s4954 + $0x30] sm:$0xf]
        %v4968 = vld [vmem:[%s4954 + $0x34] sm:$0xf]
        %v4969 = vld [vmem:[%s4954 + $0x38] sm:$0xf]
        %v4970 = vld [vmem:[%s4954 + $0x3c] sm:$0xf]
        %v4973 = vrot.slane %v1269, 1
        %v4974 = vsel %vm2321, %v3695, %v4973
        %v4975 = vrot.slane %v1270, 1
        %v4976 = vsel %vm2321, %v4973, %v4975
        %v4995 = vunpack.c.l.b16 %v4955
        %v4996 = vunpack.c.l.b16 %v4956
        %v4997 = vunpack.c.l.b16 %v4957
        %v4998 = vunpack.c.l.b16 %v4958
        %v4999 = vunpack.c.l.b16 %v4959
        %v5000 = vunpack.c.l.b16 %v4960
        %v5001 = vunpack.c.l.b16 %v4961
        %v5002 = vunpack.c.l.b16 %v4962
        %v5003 = vunpack.c.l.b16 %v4963
        %v5004 = vunpack.c.l.b16 %v4964
        %v5005 = vunpack.c.l.b16 %v4965
        %v5006 = vunpack.c.l.b16 %v4966
        %v5007 = vunpack.c.l.b16 %v4967
        %v5008 = vunpack.c.l.b16 %v4968
        %v5009 = vunpack.c.l.b16 %v4969
        %v5010 = vunpack.c.l.b16 %v4970
        %v5011 = vpack.c.b16 %v4996, %v4995
        %v5012 = vpack.c.b16 %v4998, %v4997
        %v5013 = vpack.c.b16 %v5000, %v4999
        %v5014 = vpack.c.b16 %v5002, %v5001
        %v5015 = vpack.c.b16 %v5004, %v5003
        %v5016 = vpack.c.b16 %v5006, %v5005
        %v5017 = vpack.c.b16 %v5008, %v5007
        %v5018 = vpack.c.b16 %v5010, %v5009
        %5027 = vmatprep.subr.bf16.mxu0 0
        %5028 = vmatpush1.bf16.msra.mxu0 %v5011
        %5029 = vmatprep.subr.bf16.mxu0 0
        %5030 = vmatpush1.bf16.msra.mxu0 %v5012
        %5031 = vmatprep.subr.bf16.mxu0 0
        %5032 = vmatpush1.bf16.msra.mxu0 %v5013
        %5033 = vmatprep.subr.bf16.mxu0 0
        %5034 = vmatpush1.bf16.msra.mxu0 %v5014
        %5035 = vmatprep.subr.bf16.mxu0 0
        %5036 = vmatpush1.bf16.msra.mxu0 %v5015
        %5037 = vmatprep.subr.bf16.mxu0 0
        %5038 = vmatpush1.bf16.msra.mxu0 %v5016
        %5039 = vmatprep.subr.bf16.mxu0 0
        %5040 = vmatpush1.bf16.msra.mxu0 %v5017
        %5041 = vmatprep.subr.bf16.mxu0 0
        %5042 = vmatpush1.bf16.msra.mxu0 %v5018
        %5043 = vmatprep.subr.bf16.mxu0 0
        %5044 = vmatpush1.bf16.msra.mxu0 0
        %5045 = vmatprep.subr.bf16.mxu0 0
        %5046 = vmatpush1.bf16.msra.mxu0 0
        %5047 = vmatprep.subr.bf16.mxu0 0
        %5048 = vmatpush1.bf16.msra.mxu0 0
        %5049 = vmatprep.subr.bf16.mxu0 0
        %5050 = vmatpush1.bf16.msra.mxu0 0
        %5051 = vmatprep.subr.bf16.mxu0 0
        %5052 = vmatpush1.bf16.msra.mxu0 0
        %5053 = vmatprep.subr.bf16.mxu0 0
        %5054 = vmatpush1.bf16.msra.mxu0 0
        %5055 = vmatprep.subr.bf16.mxu0 0
        %5056 = vmatpush1.bf16.msra.mxu0 0
        %5057 = vmatprep.subr.bf16.mxu0 0
        %5058 = vmatpush1.bf16.msra.mxu0 0
        %5059 = vmatprep.mubr.bf16.mxu0 0
        %5060 = vmatmul.mubr.bf16.gmra.mrb[0].mxu0 %v2332
        %v5061 = vpop.f32.mrb[0].mxu0
        %v5062 = vadd.f32 0.0, %v5061
        %v5063 = vpop.f32.mrb[0].mxu0
        %v5064 = vpop.f32.mrb[0].mxu0
        %v5065 = vadd.f32 0.0, %v5064
        %v5066 = vpop.f32.mrb[0].mxu0
        %5067 = vmatprep.mubr.bf16.mxu0 0
        %5068 = vmatmul.mubr.bf16.gmra.mrb[0].mxu0 %v2334
        %v5069 = vpop.f32.mrb[0].mxu0
        %v5070 = vadd.f32 0.0, %v5069
        %v5071 = vpop.f32.mrb[0].mxu0
        %v5072 = vpop.f32.mrb[0].mxu0
        %v5073 = vadd.f32 0.0, %v5072
        %v5074 = vpop.f32.mrb[0].mxu0
        %5075 = vmatprep.mubr.bf16.mxu0 0
        %5076 = vmatmul.mubr.bf16.gmra.mrb[0].mxu0 %v2336
        %v5077 = vpop.f32.mrb[0].mxu0
        %v5078 = vadd.f32 0.0, %v5077
        %v5079 = vpop.f32.mrb[0].mxu0
        %v5080 = vpop.f32.mrb[0].mxu0
        %v5081 = vadd.f32 0.0, %v5080
        %v5082 = vpop.f32.mrb[0].mxu0
        %5083 = vmatprep.mubr.bf16.mxu0 0
        %5084 = vmatmul.mubr.bf16.gmra.mrb[0].mxu0 %v2338
        %v5085 = vpop.f32.mrb[0].mxu0
        %v5086 = vadd.f32 0.0, %v5085
        %v5087 = vpop.f32.mrb[0].mxu0
        %v5088 = vpop.f32.mrb[0].mxu0
        %v5089 = vadd.f32 0.0, %v5088
        %v5090 = vpop.f32.mrb[0].mxu0
        %5091 = vmatprep.mubr.bf16.mxu0 0
        %5092 = vmatmul.mubr.bf16.gmra.mrb[0].mxu0 %v2340
        %v5093 = vpop.f32.mrb[0].mxu0
        %v5094 = vadd.f32 0.0, %v5093
        %v5095 = vpop.f32.mrb[0].mxu0
        %v5096 = vpop.f32.mrb[0].mxu0
        %v5097 = vadd.f32 0.0, %v5096
        %v5098 = vpop.f32.mrb[0].mxu0
        %5099 = vmatprep.mubr.bf16.mxu0 0
        %5100 = vmatmul.mubr.bf16.gmra.mrb[0].mxu0 %v2342
        %v5101 = vpop.f32.mrb[0].mxu0
        %v5102 = vadd.f32 0.0, %v5101
        %v5103 = vpop.f32.mrb[0].mxu0
        %v5104 = vpop.f32.mrb[0].mxu0
        %v5105 = vadd.f32 0.0, %v5104
        %v5106 = vpop.f32.mrb[0].mxu0
        %5107 = vmatprep.mubr.bf16.mxu0 0
        %5108 = vmatmul.mubr.bf16.gmra.mrb[0].mxu0 %v2344
        %v5109 = vpop.f32.mrb[0].mxu0
        %v5110 = vadd.f32 0.0, %v5109
        %v5111 = vpop.f32.mrb[0].mxu0
        %v5112 = vpop.f32.mrb[0].mxu0
        %v5113 = vadd.f32 0.0, %v5112
        %v5114 = vpop.f32.mrb[0].mxu0
        %5115 = vmatprep.mubr.bf16.mxu0 0
        %5116 = vmatmul.mubr.bf16.gmra.mrb[0].mxu0 %v2346
        %v5117 = vpop.f32.mrb[0].mxu0
        %v5118 = vadd.f32 0.0, %v5117
        %v5119 = vpop.f32.mrb[0].mxu0
        %v5120 = vpop.f32.mrb[0].mxu0
        %v5121 = vadd.f32 0.0, %v5120
        %v5122 = vpop.f32.mrb[0].mxu0
        %5123 = vmatprep.mubr.bf16.mxu0 0
        %5124 = vmatmul.mubr.bf16.gmra.mrb[0].mxu0 %v2348
        %v5125 = vpop.f32.mrb[0].mxu0
        %v5126 = vadd.f32 0.0, %v5125
        %v5127 = vpop.f32.mrb[0].mxu0
        %v5128 = vpop.f32.mrb[0].mxu0
        %v5129 = vadd.f32 0.0, %v5128
        %v5130 = vpop.f32.mrb[0].mxu0
        %5131 = vmatprep.mubr.bf16.mxu0 0
        %5132 = vmatmul.mubr.bf16.gmra.mrb[0].mxu0 %v2350
        %v5133 = vpop.f32.mrb[0].mxu0
        %v5134 = vadd.f32 0.0, %v5133
        %v5135 = vpop.f32.mrb[0].mxu0
        %v5136 = vpop.f32.mrb[0].mxu0
        %v5137 = vadd.f32 0.0, %v5136
        %v5138 = vpop.f32.mrb[0].mxu0
        %5139 = vmatprep.mubr.bf16.mxu0 0
        %5140 = vmatmul.mubr.bf16.gmra.mrb[0].mxu0 %v2352
        %v5141 = vpop.f32.mrb[0].mxu0
        %v5142 = vadd.f32 0.0, %v5141
        %v5143 = vpop.f32.mrb[0].mxu0
        %v5144 = vpop.f32.mrb[0].mxu0
        %v5145 = vadd.f32 0.0, %v5144
        %v5146 = vpop.f32.mrb[0].mxu0
        %5147 = vmatprep.mubr.bf16.mxu0 0
        %5148 = vmatmul.mubr.bf16.gmra.mrb[0].mxu0 %v2354
        %v5149 = vpop.f32.mrb[0].mxu0
        %v5150 = vadd.f32 0.0, %v5149
        %v5151 = vpop.f32.mrb[0].mxu0
        %v5152 = vpop.f32.mrb[0].mxu0
        %v5153 = vadd.f32 0.0, %v5152
        %v5154 = vpop.f32.mrb[0].mxu0
        %5155 = vmatprep.mubr.bf16.mxu0 0
        %5156 = vmatmul.mubr.bf16.gmra.mrb[0].mxu0 %v2356
        %v5157 = vpop.f32.mrb[0].mxu0
        %v5158 = vadd.f32 0.0, %v5157
        %v5159 = vpop.f32.mrb[0].mxu0
        %v5160 = vpop.f32.mrb[0].mxu0
        %v5161 = vadd.f32 0.0, %v5160
        %v5162 = vpop.f32.mrb[0].mxu0
        %5163 = vmatprep.mubr.bf16.mxu0 0
        %5164 = vmatmul.mubr.bf16.gmra.mrb[0].mxu0 %v2358
        %v5165 = vpop.f32.mrb[0].mxu0
        %v5166 = vadd.f32 0.0, %v5165
        %v5167 = vpop.f32.mrb[0].mxu0
        %v5168 = vpop.f32.mrb[0].mxu0
        %v5169 = vadd.f32 0.0, %v5168
        %v5170 = vpop.f32.mrb[0].mxu0
        %5171 = vmatprep.mubr.bf16.mxu0 0
        %5172 = vmatmul.mubr.bf16.gmra.mrb[0].mxu0 %v2360
        %v5173 = vpop.f32.mrb[0].mxu0
        %v5174 = vadd.f32 0.0, %v5173
        %v5175 = vpop.f32.mrb[0].mxu0
        %v5176 = vpop.f32.mrb[0].mxu0
        %v5177 = vadd.f32 0.0, %v5176
        %v5178 = vpop.f32.mrb[0].mxu0
        %5179 = vmatprep.mubr.bf16.mxu0 0
        %5180 = vmatmul.mubr.bf16.gmra.mrb[0].mxu0 %v2362
        %v5181 = vpop.f32.mrb[0].mxu0
        %v5182 = vadd.f32 0.0, %v5181
        %v5183 = vpop.f32.mrb[0].mxu0
        %v5184 = vpop.f32.mrb[0].mxu0
        %v5185 = vadd.f32 0.0, %v5184
        %v5186 = vpop.f32.mrb[0].mxu0
        %5187 = vmatprep.mubr.bf16.mxu0 0
        %5188 = vmatmul.mubr.bf16.gmra.mrb[0].mxu0 %v2364
        %v5189 = vpop.f32.mrb[0].mxu0
        %v5190 = vadd.f32 0.0, %v5189
        %v5191 = vpop.f32.mrb[0].mxu0
        %v5192 = vpop.f32.mrb[0].mxu0
        %v5193 = vadd.f32 0.0, %v5192
        %v5194 = vpop.f32.mrb[0].mxu0
        %5195 = vmatprep.mubr.bf16.mxu0 0
        %5196 = vmatmul.mubr.bf16.gmra.mrb[0].mxu0 %v2366
        %v5197 = vpop.f32.mrb[0].mxu0
        %v5198 = vadd.f32 0.0, %v5197
        %v5199 = vpop.f32.mrb[0].mxu0
        %v5200 = vpop.f32.mrb[0].mxu0
        %v5201 = vadd.f32 0.0, %v5200
        %v5202 = vpop.f32.mrb[0].mxu0
        %5203 = vmatprep.mubr.bf16.mxu0 0
        %5204 = vmatmul.mubr.bf16.gmra.mrb[0].mxu0 %v2368
        %v5205 = vpop.f32.mrb[0].mxu0
        %v5206 = vadd.f32 0.0, %v5205
        %v5207 = vpop.f32.mrb[0].mxu0
        %v5208 = vpop.f32.mrb[0].mxu0
        %v5209 = vadd.f32 0.0, %v5208
        %v5210 = vpop.f32.mrb[0].mxu0
        %5211 = vmatprep.mubr.bf16.mxu0 0
        %5212 = vmatmul.mubr.bf16.gmra.mrb[0].mxu0 %v2370
        %v5213 = vpop.f32.mrb[0].mxu0
        %v5214 = vadd.f32 0.0, %v5213
        %v5215 = vpop.f32.mrb[0].mxu0
        %v5216 = vpop.f32.mrb[0].mxu0
        %v5217 = vadd.f32 0.0, %v5216
        %v5218 = vpop.f32.mrb[0].mxu0
        %5219 = vmatprep.mubr.bf16.mxu0 0
        %5220 = vmatmul.mubr.bf16.gmra.mrb[0].mxu0 %v2372
        %v5221 = vpop.f32.mrb[0].mxu0
        %v5222 = vadd.f32 0.0, %v5221
        %v5223 = vpop.f32.mrb[0].mxu0
        %v5224 = vpop.f32.mrb[0].mxu0
        %v5225 = vadd.f32 0.0, %v5224
        %v5226 = vpop.f32.mrb[0].mxu0
        %5227 = vmatprep.mubr.bf16.mxu0 0
        %5228 = vmatmul.mubr.bf16.gmra.mrb[0].mxu0 %v2374
        %v5229 = vpop.f32.mrb[0].mxu0
        %v5230 = vadd.f32 0.0, %v5229
        %v5231 = vpop.f32.mrb[0].mxu0
        %v5232 = vpop.f32.mrb[0].mxu0
        %v5233 = vadd.f32 0.0, %v5232
        %v5234 = vpop.f32.mrb[0].mxu0
        %5235 = vmatprep.mubr.bf16.mxu0 0
        %5236 = vmatmul.mubr.bf16.gmra.mrb[0].mxu0 %v2376
        %v5237 = vpop.f32.mrb[0].mxu0
        %v5238 = vadd.f32 0.0, %v5237
        %v5239 = vpop.f32.mrb[0].mxu0
        %v5240 = vpop.f32.mrb[0].mxu0
        %v5241 = vadd.f32 0.0, %v5240
        %v5242 = vpop.f32.mrb[0].mxu0
        %5243 = vmatprep.mubr.bf16.mxu0 0
        %5244 = vmatmul.mubr.bf16.gmra.mrb[0].mxu0 %v2378
        %v5245 = vpop.f32.mrb[0].mxu0
        %v5246 = vadd.f32 0.0, %v5245
        %v5247 = vpop.f32.mrb[0].mxu0
        %v5248 = vpop.f32.mrb[0].mxu0
        %v5249 = vadd.f32 0.0, %v5248
        %v5250 = vpop.f32.mrb[0].mxu0
        %5251 = vmatprep.mubr.bf16.mxu0 0
        %5252 = vmatmul.mubr.bf16.gmra.mrb[0].mxu0 %v2380
        %v5253 = vpop.f32.mrb[0].mxu0
        %v5254 = vadd.f32 0.0, %v5253
        %v5255 = vpop.f32.mrb[0].mxu0
        %v5256 = vpop.f32.mrb[0].mxu0
        %v5257 = vadd.f32 0.0, %v5256
        %v5258 = vpop.f32.mrb[0].mxu0
        %5259 = vmatprep.mubr.bf16.mxu0 0
        %5260 = vmatmul.mubr.bf16.gmra.mrb[0].mxu0 %v2382
        %v5261 = vpop.f32.mrb[0].mxu0
        %v5262 = vadd.f32 0.0, %v5261
        %v5263 = vpop.f32.mrb[0].mxu0
        %v5264 = vpop.f32.mrb[0].mxu0
        %v5265 = vadd.f32 0.0, %v5264
        %v5266 = vpop.f32.mrb[0].mxu0
        %5267 = vmatprep.mubr.bf16.mxu0 0
        %5268 = vmatmul.mubr.bf16.gmra.mrb[0].mxu0 %v2384
        %v5269 = vpop.f32.mrb[0].mxu0
        %v5270 = vadd.f32 0.0, %v5269
        %v5271 = vpop.f32.mrb[0].mxu0
        %v5272 = vpop.f32.mrb[0].mxu0
        %v5273 = vadd.f32 0.0, %v5272
        %v5274 = vpop.f32.mrb[0].mxu0
        %5275 = vmatprep.mubr.bf16.mxu0 0
        %5276 = vmatmul.mubr.bf16.gmra.mrb[0].mxu0 %v2386
        %v5277 = vpop.f32.mrb[0].mxu0
        %v5278 = vadd.f32 0.0, %v5277
        %v5279 = vpop.f32.mrb[0].mxu0
        %v5280 = vpop.f32.mrb[0].mxu0
        %v5281 = vadd.f32 0.0, %v5280
        %v5282 = vpop.f32.mrb[0].mxu0
        %5283 = vmatprep.mubr.bf16.mxu0 0
        %5284 = vmatmul.mubr.bf16.gmra.mrb[0].mxu0 %v3694
        %v5285 = vpop.f32.mrb[0].mxu0
        %v5286 = vadd.f32 0.0, %v5285
        %v5287 = vpop.f32.mrb[0].mxu0
        %v5288 = vpop.f32.mrb[0].mxu0
        %v5289 = vadd.f32 0.0, %v5288
        %v5290 = vpop.f32.mrb[0].mxu0
        %5291 = vmatprep.mubr.bf16.mxu0 0
        %5292 = vmatmul.mubr.bf16.gmra.mrb[0].mxu0 %v3696
        %v5293 = vpop.f32.mrb[0].mxu0
        %v5294 = vadd.f32 0.0, %v5293
        %v5295 = vpop.f32.mrb[0].mxu0
        %v5296 = vpop.f32.mrb[0].mxu0
        %v5297 = vadd.f32 0.0, %v5296
        %v5298 = vpop.f32.mrb[0].mxu0
        %5299 = vmatprep.mubr.bf16.mxu0 0
        %5300 = vmatmul.mubr.bf16.gmra.mrb[0].mxu0 %v4974
        %v5301 = vpop.f32.mrb[0].mxu0
        %v5302 = vadd.f32 0.0, %v5301
        %v5303 = vpop.f32.mrb[0].mxu0
        %v5304 = vpop.f32.mrb[0].mxu0
        %v5305 = vadd.f32 0.0, %v5304
        %v5306 = vpop.f32.mrb[0].mxu0
        %5307 = vmatprep.mubr.bf16.mxu0 0
        %5308 = vmatmul.mubr.bf16.gmra.mrb[0].mxu0 %v4976
        %v5309 = vpop.f32.mrb[0].mxu0
        %v5310 = vadd.f32 0.0, %v5309
        %v5311 = vpop.f32.mrb[0].mxu0
        %v5312 = vpop.f32.mrb[0].mxu0
        %v5313 = vadd.f32 0.0, %v5312
        %v5314 = vpop.f32.mrb[0].mxu0
        %5315 = vdwg.mxu0
        %v5316 = vadd.f32 %v4890, %v5062
        %v5317 = vadd.f32 %v4891, %v5065
        %v5318 = vadd.f32 %v4892, %v5070
        %v5319 = vadd.f32 %v4893, %v5073
        %v5320 = vadd.f32 %v4894, %v5078
        %v5321 = vadd.f32 %v4895, %v5081
        %v5322 = vadd.f32 %v4896, %v5086
        %v5323 = vadd.f32 %v4897, %v5089
        %v5324 = vadd.f32 %v4898, %v5094
        %v5325 = vadd.f32 %v4899, %v5097
        %v5326 = vadd.f32 %v4900, %v5102
        %v5327 = vadd.f32 %v4901, %v5105
        %v5328 = vadd.f32 %v4902, %v5110
        %v5329 = vadd.f32 %v4903, %v5113
        %v5330 = vadd.f32 %v4904, %v5118
        %v5331 = vadd.f32 %v4905, %v5121
        %v5332 = vadd.f32 %v4906, %v5126
        %v5333 = vadd.f32 %v4907, %v5129
        %v5334 = vadd.f32 %v4908, %v5134
        %v5335 = vadd.f32 %v4909, %v5137
        %v5336 = vadd.f32 %v4910, %v5142
        %v5337 = vadd.f32 %v4911, %v5145
        %v5338 = vadd.f32 %v4912, %v5150
        %v5339 = vadd.f32 %v4913, %v5153
        %v5340 = vadd.f32 %v4914, %v5158
        %v5341 = vadd.f32 %v4915, %v5161
        %v5342 = vadd.f32 %v4916, %v5166
        %v5343 = vadd.f32 %v4917, %v5169
        %v5344 = vadd.f32 %v4918, %v5174
        %v5345 = vadd.f32 %v4919, %v5177
        %v5346 = vadd.f32 %v4920, %v5182
        %v5347 = vadd.f32 %v4921, %v5185
        %v5348 = vadd.f32 %v4922, %v5190
        %v5349 = vadd.f32 %v4923, %v5193
        %v5350 = vadd.f32 %v4924, %v5198
        %v5351 = vadd.f32 %v4925, %v5201
        %v5352 = vadd.f32 %v4926, %v5206
        %v5353 = vadd.f32 %v4927, %v5209
        %v5354 = vadd.f32 %v4928, %v5214
        %v5355 = vadd.f32 %v4929, %v5217
        %v5356 = vadd.f32 %v4930, %v5222
        %v5357 = vadd.f32 %v4931, %v5225
        %v5358 = vadd.f32 %v4932, %v5230
        %v5359 = vadd.f32 %v4933, %v5233
        %v5360 = vadd.f32 %v4934, %v5238
        %v5361 = vadd.f32 %v4935, %v5241
        %v5362 = vadd.f32 %v4936, %v5246
        %v5363 = vadd.f32 %v4937, %v5249
        %v5364 = vadd.f32 %v4938, %v5254
        %v5365 = vadd.f32 %v4939, %v5257
        %v5366 = vadd.f32 %v4940, %v5262
        %v5367 = vadd.f32 %v4941, %v5265
        %v5368 = vadd.f32 %v4942, %v5270
        %v5369 = vadd.f32 %v4943, %v5273
        %v5370 = vadd.f32 %v4944, %v5278
        %v5371 = vadd.f32 %v4945, %v5281
        %v5372 = vadd.f32 %v4946, %v5286
        %v5373 = vadd.f32 %v4947, %v5289
        %v5374 = vadd.f32 %v4948, %v5294
        %v5375 = vadd.f32 %v4949, %v5297
        %v5376 = vadd.f32 %v4950, %v5302
        %v5377 = vadd.f32 %v4951, %v5305
        %v5378 = vadd.f32 %v4952, %v5310
        %v5379 = vadd.f32 %v4953, %v5313
        %v5380 = vld [vmem:[#allocation3] sm:$0x1]
        %v5382 = vlaneseq
        %v5383 = vshrl.u32 %v5382, 7
        %v5384 = vsub.s32 0, %v5383
        %v5385 = vrot.slane %v5380, %v5384
        %v5387 = vadd.f32 %v5316, %v5385
        %v5388 = vadd.f32 %v5317, %v5385
        %v5389 = vadd.f32 %v5318, %v5385
        %v5390 = vadd.f32 %v5319, %v5385
        %v5391 = vadd.f32 %v5320, %v5385
        %v5392 = vadd.f32 %v5321, %v5385
        %v5393 = vadd.f32 %v5322, %v5385
        %v5394 = vadd.f32 %v5323, %v5385
        %v5395 = vadd.f32 %v5324, %v5385
        %v5396 = vadd.f32 %v5325, %v5385
        %v5397 = vadd.f32 %v5326, %v5385
        %v5398 = vadd.f32 %v5327, %v5385
        %v5399 = vadd.f32 %v5328, %v5385
        %v5400 = vadd.f32 %v5329, %v5385
        %v5401 = vadd.f32 %v5330, %v5385
        %v5402 = vadd.f32 %v5331, %v5385
        %v5403 = vadd.f32 %v5332, %v5385
        %v5404 = vadd.f32 %v5333, %v5385
        %v5405 = vadd.f32 %v5334, %v5385
        %v5406 = vadd.f32 %v5335, %v5385
        %v5407 = vadd.f32 %v5336, %v5385
        %v5408 = vadd.f32 %v5337, %v5385
        %v5409 = vadd.f32 %v5338, %v5385
        %v5410 = vadd.f32 %v5339, %v5385
        %v5411 = vadd.f32 %v5340, %v5385
        %v5412 = vadd.f32 %v5341, %v5385
        %v5413 = vadd.f32 %v5342, %v5385
        %v5414 = vadd.f32 %v5343, %v5385
        %v5415 = vadd.f32 %v5344, %v5385
        %v5416 = vadd.f32 %v5345, %v5385
        %v5417 = vadd.f32 %v5346, %v5385
        %v5418 = vadd.f32 %v5347, %v5385
        %v5419 = vadd.f32 %v5348, %v5385
        %v5420 = vadd.f32 %v5349, %v5385
        %v5421 = vadd.f32 %v5350, %v5385
        %v5422 = vadd.f32 %v5351, %v5385
        %v5423 = vadd.f32 %v5352, %v5385
        %v5424 = vadd.f32 %v5353, %v5385
        %v5425 = vadd.f32 %v5354, %v5385
        %v5426 = vadd.f32 %v5355, %v5385
        %v5427 = vadd.f32 %v5356, %v5385
        %v5428 = vadd.f32 %v5357, %v5385
        %v5429 = vadd.f32 %v5358, %v5385
        %v5430 = vadd.f32 %v5359, %v5385
        %v5431 = vadd.f32 %v5360, %v5385
        %v5432 = vadd.f32 %v5361, %v5385
        %v5433 = vadd.f32 %v5362, %v5385
        %v5434 = vadd.f32 %v5363, %v5385
        %v5435 = vadd.f32 %v5364, %v5385
        %v5436 = vadd.f32 %v5365, %v5385
        %v5437 = vadd.f32 %v5366, %v5385
        %v5438 = vadd.f32 %v5367, %v5385
        %v5439 = vadd.f32 %v5368, %v5385
        %v5440 = vadd.f32 %v5369, %v5385
        %v5441 = vadd.f32 %v5370, %v5385
        %v5442 = vadd.f32 %v5371, %v5385
        %v5443 = vadd.f32 %v5372, %v5385
        %v5444 = vadd.f32 %v5373, %v5385
        %v5445 = vadd.f32 %v5374, %v5385
        %v5446 = vadd.f32 %v5375, %v5385
        %v5447 = vadd.f32 %v5376, %v5385
        %v5448 = vadd.f32 %v5377, %v5385
        %v5449 = vadd.f32 %v5378, %v5385
        %v5450 = vadd.f32 %v5379, %v5385
        %v5451 = vmax.f32 %v5387, 0.0
        %v5452 = vmax.f32 %v5388, 0.0
        %v5453 = vmax.f32 %v5389, 0.0
        %v5454 = vmax.f32 %v5390, 0.0
        %v5455 = vmax.f32 %v5391, 0.0
        %v5456 = vmax.f32 %v5392, 0.0
        %v5457 = vmax.f32 %v5393, 0.0
        %v5458 = vmax.f32 %v5394, 0.0
        %v5459 = vmax.f32 %v5395, 0.0
        %v5460 = vmax.f32 %v5396, 0.0
        %v5461 = vmax.f32 %v5397, 0.0
        %v5462 = vmax.f32 %v5398, 0.0
        %v5463 = vmax.f32 %v5399, 0.0
        %v5464 = vmax.f32 %v5400, 0.0
        %v5465 = vmax.f32 %v5401, 0.0
        %v5466 = vmax.f32 %v5402, 0.0
        %v5467 = vmax.f32 %v5403, 0.0
        %v5468 = vmax.f32 %v5404, 0.0
        %v5469 = vmax.f32 %v5405, 0.0
        %v5470 = vmax.f32 %v5406, 0.0
        %v5471 = vmax.f32 %v5407, 0.0
        %v5472 = vmax.f32 %v5408, 0.0
        %v5473 = vmax.f32 %v5409, 0.0
        %v5474 = vmax.f32 %v5410, 0.0
        %v5475 = vmax.f32 %v5411, 0.0
        %v5476 = vmax.f32 %v5412, 0.0
        %v5477 = vmax.f32 %v5413, 0.0
        %v5478 = vmax.f32 %v5414, 0.0
        %v5479 = vmax.f32 %v5415, 0.0
        %v5480 = vmax.f32 %v5416, 0.0
        %v5481 = vmax.f32 %v5417, 0.0
        %v5482 = vmax.f32 %v5418, 0.0
        %v5483 = vmax.f32 %v5419, 0.0
        %v5484 = vmax.f32 %v5420, 0.0
        %v5485 = vmax.f32 %v5421, 0.0
        %v5486 = vmax.f32 %v5422, 0.0
        %v5487 = vmax.f32 %v5423, 0.0
        %v5488 = vmax.f32 %v5424, 0.0
        %v5489 = vmax.f32 %v5425, 0.0
        %v5490 = vmax.f32 %v5426, 0.0
        %v5491 = vmax.f32 %v5427, 0.0
        %v5492 = vmax.f32 %v5428, 0.0
        %v5493 = vmax.f32 %v5429, 0.0
        %v5494 = vmax.f32 %v5430, 0.0
        %v5495 = vmax.f32 %v5431, 0.0
        %v5496 = vmax.f32 %v5432, 0.0
        %v5497 = vmax.f32 %v5433, 0.0
        %v5498 = vmax.f32 %v5434, 0.0
        %v5499 = vmax.f32 %v5435, 0.0
        %v5500 = vmax.f32 %v5436, 0.0
        %v5501 = vmax.f32 %v5437, 0.0
        %v5502 = vmax.f32 %v5438, 0.0
        %v5503 = vmax.f32 %v5439, 0.0
        %v5504 = vmax.f32 %v5440, 0.0
        %v5505 = vmax.f32 %v5441, 0.0
        %v5506 = vmax.f32 %v5442, 0.0
        %v5507 = vmax.f32 %v5443, 0.0
        %v5508 = vmax.f32 %v5444, 0.0
        %v5509 = vmax.f32 %v5445, 0.0
        %v5510 = vmax.f32 %v5446, 0.0
        %v5511 = vmax.f32 %v5447, 0.0
        %v5512 = vmax.f32 %v5448, 0.0
        %v5513 = vmax.f32 %v5449, 0.0
        %v5514 = vmax.f32 %v5450, 0.0
        %v5515 = vpack.c.bf16 %v5452, %v5451
        %v5516 = vpack.c.bf16 %v5454, %v5453
        %v5517 = vpack.c.bf16 %v5456, %v5455
        %v5518 = vpack.c.bf16 %v5458, %v5457
        %v5519 = vpack.c.bf16 %v5460, %v5459
        %v5520 = vpack.c.bf16 %v5462, %v5461
        %v5521 = vpack.c.bf16 %v5464, %v5463
        %v5522 = vpack.c.bf16 %v5466, %v5465
        %v5523 = vpack.c.bf16 %v5468, %v5467
        %v5524 = vpack.c.bf16 %v5470, %v5469
        %v5525 = vpack.c.bf16 %v5472, %v5471
        %v5526 = vpack.c.bf16 %v5474, %v5473
        %v5527 = vpack.c.bf16 %v5476, %v5475
        %v5528 = vpack.c.bf16 %v5478, %v5477
        %v5529 = vpack.c.bf16 %v5480, %v5479
        %v5530 = vpack.c.bf16 %v5482, %v5481
        %v5531 = vpack.c.bf16 %v5484, %v5483
        %v5532 = vpack.c.bf16 %v5486, %v5485
        %v5533 = vpack.c.bf16 %v5488, %v5487
        %v5534 = vpack.c.bf16 %v5490, %v5489
        %v5535 = vpack.c.bf16 %v5492, %v5491
        %v5536 = vpack.c.bf16 %v5494, %v5493
        %v5537 = vpack.c.bf16 %v5496, %v5495
        %v5538 = vpack.c.bf16 %v5498, %v5497
        %v5539 = vpack.c.bf16 %v5500, %v5499
        %v5540 = vpack.c.bf16 %v5502, %v5501
        %v5541 = vpack.c.bf16 %v5504, %v5503
        %v5542 = vpack.c.bf16 %v5506, %v5505
        %v5543 = vpack.c.bf16 %v5508, %v5507
        %v5544 = vpack.c.bf16 %v5510, %v5509
        %v5545 = vpack.c.bf16 %v5512, %v5511
        %v5546 = vpack.c.bf16 %v5514, %v5513
        %v5547 = vld [vmem:[#allocation6] sm:$0xf]
        %v5548 = vld [vmem:[#allocation6 + $0x4] sm:$0xf]
        %v5549 = vld [vmem:[#allocation6 + $0x8] sm:$0xf]
        %v5550 = vld [vmem:[#allocation6 + $0xc] sm:$0xf]
        %v5551 = vld [vmem:[#allocation6 + $0x10] sm:$0xf]
        %v5552 = vld [vmem:[#allocation6 + $0x14] sm:$0xf]
        %v5553 = vld [vmem:[#allocation6 + $0x18] sm:$0xf]
        %v5554 = vld [vmem:[#allocation6 + $0x1c] sm:$0xf]
        %v5555 = vld [vmem:[#allocation6 + $0x20] sm:$0xf]
        %v5556 = vld [vmem:[#allocation6 + $0x24] sm:$0xf]
        %v5557 = vld [vmem:[#allocation6 + $0x28] sm:$0xf]
        %v5558 = vld [vmem:[#allocation6 + $0x2c] sm:$0xf]
        %v5559 = vld [vmem:[#allocation6 + $0x30] sm:$0xf]
        %v5560 = vld [vmem:[#allocation6 + $0x34] sm:$0xf]
        %v5561 = vld [vmem:[#allocation6 + $0x38] sm:$0xf]
        %v5562 = vld [vmem:[#allocation6 + $0x3c] sm:$0xf]
        %v5563 = vld [vmem:[%s5] sm:$0x1]
        %v5565 = vlaneseq
        %v5566 = vshrl.u32 %v5565, 7
        %v5567 = vsub.s32 0, %v5566
        %v5568 = vrot.slane %v5563, %v5567
        %v5586 = vunpack.c.l.b16 %v5547
        %v5587 = vunpack.c.l.b16 %v5548
        %v5588 = vunpack.c.l.b16 %v5549
        %v5589 = vunpack.c.l.b16 %v5550
        %v5590 = vunpack.c.l.b16 %v5551
        %v5591 = vunpack.c.l.b16 %v5552
        %v5592 = vunpack.c.l.b16 %v5553
        %v5593 = vunpack.c.l.b16 %v5554
        %v5594 = vunpack.c.l.b16 %v5555
        %v5595 = vunpack.c.l.b16 %v5556
        %v5596 = vunpack.c.l.b16 %v5557
        %v5597 = vunpack.c.l.b16 %v5558
        %v5598 = vunpack.c.l.b16 %v5559
        %v5599 = vunpack.c.l.b16 %v5560
        %v5600 = vunpack.c.l.b16 %v5561
        %v5601 = vunpack.c.l.b16 %v5562
        %v5602 = vpack.c.b16 %v5587, %v5586
        %v5603 = vpack.c.b16 %v5589, %v5588
        %v5604 = vpack.c.b16 %v5591, %v5590
        %v5605 = vpack.c.b16 %v5593, %v5592
        %v5606 = vpack.c.b16 %v5595, %v5594
        %v5607 = vpack.c.b16 %v5597, %v5596
        %v5608 = vpack.c.b16 %v5599, %v5598
        %v5609 = vpack.c.b16 %v5601, %v5600
        %5618 = vmatprep.subr.bf16.mxu0 0
        %5619 = vmatpush1.bf16.msra.mxu0 %v5602
        %5620 = vmatprep.subr.bf16.mxu0 0
        %5621 = vmatpush1.bf16.msra.mxu0 %v5603
        %5622 = vmatprep.subr.bf16.mxu0 0
        %5623 = vmatpush1.bf16.msra.mxu0 %v5604
        %5624 = vmatprep.subr.bf16.mxu0 0
        %5625 = vmatpush1.bf16.msra.mxu0 %v5605
        %5626 = vmatprep.subr.bf16.mxu0 0
        %5627 = vmatpush1.bf16.msra.mxu0 %v5606
        %5628 = vmatprep.subr.bf16.mxu0 0
        %5629 = vmatpush1.bf16.msra.mxu0 %v5607
        %5630 = vmatprep.subr.bf16.mxu0 0
        %5631 = vmatpush1.bf16.msra.mxu0 %v5608
        %5632 = vmatprep.subr.bf16.mxu0 0
        %5633 = vmatpush1.bf16.msra.mxu0 %v5609
        %5634 = vmatprep.subr.bf16.mxu0 0
        %5635 = vmatpush1.bf16.msra.mxu0 0
        %5636 = vmatprep.subr.bf16.mxu0 0
        %5637 = vmatpush1.bf16.msra.mxu0 0
        %5638 = vmatprep.subr.bf16.mxu0 0
        %5639 = vmatpush1.bf16.msra.mxu0 0
        %5640 = vmatprep.subr.bf16.mxu0 0
        %5641 = vmatpush1.bf16.msra.mxu0 0
        %5642 = vmatprep.subr.bf16.mxu0 0
        %5643 = vmatpush1.bf16.msra.mxu0 0
        %5644 = vmatprep.subr.bf16.mxu0 0
        %5645 = vmatpush1.bf16.msra.mxu0 0
        %5646 = vmatprep.subr.bf16.mxu0 0
        %5647 = vmatpush1.bf16.msra.mxu0 0
        %5648 = vmatprep.subr.bf16.mxu0 0
        %5649 = vmatpush1.bf16.msra.mxu0 0
        %5650 = vmatprep.mubr.bf16.mxu0 0
        %5651 = vmatmul.mubr.bf16.gmra.mrb[0].mxu0 %v5515
        %v5652 = vpop.f32.mrb[0].mxu0
        %v5653 = vadd.f32 %v5568, %v5652
        %v5654 = vpop.f32.mrb[0].mxu0
        %v5655 = vpop.f32.mrb[0].mxu0
        %v5656 = vadd.f32 %v5568, %v5655
        %v5657 = vpop.f32.mrb[0].mxu0
        %5658 = vmatprep.mubr.bf16.mxu0 0
        %5659 = vmatmul.mubr.bf16.gmra.mrb[0].mxu0 %v5516
        %v5660 = vpop.f32.mrb[0].mxu0
        %v5661 = vadd.f32 %v5568, %v5660
        %v5662 = vpop.f32.mrb[0].mxu0
        %v5663 = vpop.f32.mrb[0].mxu0
        %v5664 = vadd.f32 %v5568, %v5663
        %v5665 = vpop.f32.mrb[0].mxu0
        %5666 = vmatprep.mubr.bf16.mxu0 0
        %5667 = vmatmul.mubr.bf16.gmra.mrb[0].mxu0 %v5517
        %v5668 = vpop.f32.mrb[0].mxu0
        %v5669 = vadd.f32 %v5568, %v5668
        %v5670 = vpop.f32.mrb[0].mxu0
        %v5671 = vpop.f32.mrb[0].mxu0
        %v5672 = vadd.f32 %v5568, %v5671
        %v5673 = vpop.f32.mrb[0].mxu0
        %5674 = vmatprep.mubr.bf16.mxu0 0
        %5675 = vmatmul.mubr.bf16.gmra.mrb[0].mxu0 %v5518
        %v5676 = vpop.f32.mrb[0].mxu0
        %v5677 = vadd.f32 %v5568, %v5676
        %v5678 = vpop.f32.mrb[0].mxu0
        %v5679 = vpop.f32.mrb[0].mxu0
        %v5680 = vadd.f32 %v5568, %v5679
        %v5681 = vpop.f32.mrb[0].mxu0
        %5682 = vmatprep.mubr.bf16.mxu0 0
        %5683 = vmatmul.mubr.bf16.gmra.mrb[0].mxu0 %v5519
        %v5684 = vpop.f32.mrb[0].mxu0
        %v5685 = vadd.f32 %v5568, %v5684
        %v5686 = vpop.f32.mrb[0].mxu0
        %v5687 = vpop.f32.mrb[0].mxu0
        %v5688 = vadd.f32 %v5568, %v5687
        %v5689 = vpop.f32.mrb[0].mxu0
        %5690 = vmatprep.mubr.bf16.mxu0 0
        %5691 = vmatmul.mubr.bf16.gmra.mrb[0].mxu0 %v5520
        %v5692 = vpop.f32.mrb[0].mxu0
        %v5693 = vadd.f32 %v5568, %v5692
        %v5694 = vpop.f32.mrb[0].mxu0
        %v5695 = vpop.f32.mrb[0].mxu0
        %v5696 = vadd.f32 %v5568, %v5695
        %v5697 = vpop.f32.mrb[0].mxu0
        %5698 = vmatprep.mubr.bf16.mxu0 0
        %5699 = vmatmul.mubr.bf16.gmra.mrb[0].mxu0 %v5521
        %v5700 = vpop.f32.mrb[0].mxu0
        %v5701 = vadd.f32 %v5568, %v5700
        %v5702 = vpop.f32.mrb[0].mxu0
        %v5703 = vpop.f32.mrb[0].mxu0
        %v5704 = vadd.f32 %v5568, %v5703
        %v5705 = vpop.f32.mrb[0].mxu0
        %5706 = vmatprep.mubr.bf16.mxu0 0
        %5707 = vmatmul.mubr.bf16.gmra.mrb[0].mxu0 %v5522
        %v5708 = vpop.f32.mrb[0].mxu0
        %v5709 = vadd.f32 %v5568, %v5708
        %v5710 = vpop.f32.mrb[0].mxu0
        %v5711 = vpop.f32.mrb[0].mxu0
        %v5712 = vadd.f32 %v5568, %v5711
        %v5713 = vpop.f32.mrb[0].mxu0
        %5714 = vmatprep.mubr.bf16.mxu0 0
        %5715 = vmatmul.mubr.bf16.gmra.mrb[0].mxu0 %v5523
        %v5716 = vpop.f32.mrb[0].mxu0
        %v5717 = vadd.f32 %v5568, %v5716
        %v5718 = vpop.f32.mrb[0].mxu0
        %v5719 = vpop.f32.mrb[0].mxu0
        %v5720 = vadd.f32 %v5568, %v5719
        %v5721 = vpop.f32.mrb[0].mxu0
        %5722 = vmatprep.mubr.bf16.mxu0 0
        %5723 = vmatmul.mubr.bf16.gmra.mrb[0].mxu0 %v5524
        %v5724 = vpop.f32.mrb[0].mxu0
        %v5725 = vadd.f32 %v5568, %v5724
        %v5726 = vpop.f32.mrb[0].mxu0
        %v5727 = vpop.f32.mrb[0].mxu0
        %v5728 = vadd.f32 %v5568, %v5727
        %v5729 = vpop.f32.mrb[0].mxu0
        %5730 = vmatprep.mubr.bf16.mxu0 0
        %5731 = vmatmul.mubr.bf16.gmra.mrb[0].mxu0 %v5525
        %v5732 = vpop.f32.mrb[0].mxu0
        %v5733 = vadd.f32 %v5568, %v5732
        %v5734 = vpop.f32.mrb[0].mxu0
        %v5735 = vpop.f32.mrb[0].mxu0
        %v5736 = vadd.f32 %v5568, %v5735
        %v5737 = vpop.f32.mrb[0].mxu0
        %5738 = vmatprep.mubr.bf16.mxu0 0
        %5739 = vmatmul.mubr.bf16.gmra.mrb[0].mxu0 %v5526
        %v5740 = vpop.f32.mrb[0].mxu0
        %v5741 = vadd.f32 %v5568, %v5740
        %v5742 = vpop.f32.mrb[0].mxu0
        %v5743 = vpop.f32.mrb[0].mxu0
        %v5744 = vadd.f32 %v5568, %v5743
        %v5745 = vpop.f32.mrb[0].mxu0
        %5746 = vmatprep.mubr.bf16.mxu0 0
        %5747 = vmatmul.mubr.bf16.gmra.mrb[0].mxu0 %v5527
        %v5748 = vpop.f32.mrb[0].mxu0
        %v5749 = vadd.f32 %v5568, %v5748
        %v5750 = vpop.f32.mrb[0].mxu0
        %v5751 = vpop.f32.mrb[0].mxu0
        %v5752 = vadd.f32 %v5568, %v5751
        %v5753 = vpop.f32.mrb[0].mxu0
        %5754 = vmatprep.mubr.bf16.mxu0 0
        %5755 = vmatmul.mubr.bf16.gmra.mrb[0].mxu0 %v5528
        %v5756 = vpop.f32.mrb[0].mxu0
        %v5757 = vadd.f32 %v5568, %v5756
        %v5758 = vpop.f32.mrb[0].mxu0
        %v5759 = vpop.f32.mrb[0].mxu0
        %v5760 = vadd.f32 %v5568, %v5759
        %v5761 = vpop.f32.mrb[0].mxu0
        %5762 = vmatprep.mubr.bf16.mxu0 0
        %5763 = vmatmul.mubr.bf16.gmra.mrb[0].mxu0 %v5529
        %v5764 = vpop.f32.mrb[0].mxu0
        %v5765 = vadd.f32 %v5568, %v5764
        %v5766 = vpop.f32.mrb[0].mxu0
        %v5767 = vpop.f32.mrb[0].mxu0
        %v5768 = vadd.f32 %v5568, %v5767
        %v5769 = vpop.f32.mrb[0].mxu0
        %5770 = vmatprep.mubr.bf16.mxu0 0
        %5771 = vmatmul.mubr.bf16.gmra.mrb[0].mxu0 %v5530
        %v5772 = vpop.f32.mrb[0].mxu0
        %v5773 = vadd.f32 %v5568, %v5772
        %v5774 = vpop.f32.mrb[0].mxu0
        %v5775 = vpop.f32.mrb[0].mxu0
        %v5776 = vadd.f32 %v5568, %v5775
        %v5777 = vpop.f32.mrb[0].mxu0
        %5778 = vmatprep.mubr.bf16.mxu0 0
        %5779 = vmatmul.mubr.bf16.gmra.mrb[0].mxu0 %v5531
        %v5780 = vpop.f32.mrb[0].mxu0
        %v5781 = vadd.f32 %v5568, %v5780
        %v5782 = vpop.f32.mrb[0].mxu0
        %v5783 = vpop.f32.mrb[0].mxu0
        %v5784 = vadd.f32 %v5568, %v5783
        %v5785 = vpop.f32.mrb[0].mxu0
        %5786 = vmatprep.mubr.bf16.mxu0 0
        %5787 = vmatmul.mubr.bf16.gmra.mrb[0].mxu0 %v5532
        %v5788 = vpop.f32.mrb[0].mxu0
        %v5789 = vadd.f32 %v5568, %v5788
        %v5790 = vpop.f32.mrb[0].mxu0
        %v5791 = vpop.f32.mrb[0].mxu0
        %v5792 = vadd.f32 %v5568, %v5791
        %v5793 = vpop.f32.mrb[0].mxu0
        %5794 = vmatprep.mubr.bf16.mxu0 0
        %5795 = vmatmul.mubr.bf16.gmra.mrb[0].mxu0 %v5533
        %v5796 = vpop.f32.mrb[0].mxu0
        %v5797 = vadd.f32 %v5568, %v5796
        %v5798 = vpop.f32.mrb[0].mxu0
        %v5799 = vpop.f32.mrb[0].mxu0
        %v5800 = vadd.f32 %v5568, %v5799
        %v5801 = vpop.f32.mrb[0].mxu0
        %5802 = vmatprep.mubr.bf16.mxu0 0
        %5803 = vmatmul.mubr.bf16.gmra.mrb[0].mxu0 %v5534
        %v5804 = vpop.f32.mrb[0].mxu0
        %v5805 = vadd.f32 %v5568, %v5804
        %v5806 = vpop.f32.mrb[0].mxu0
        %v5807 = vpop.f32.mrb[0].mxu0
        %v5808 = vadd.f32 %v5568, %v5807
        %v5809 = vpop.f32.mrb[0].mxu0
        %5810 = vmatprep.mubr.bf16.mxu0 0
        %5811 = vmatmul.mubr.bf16.gmra.mrb[0].mxu0 %v5535
        %v5812 = vpop.f32.mrb[0].mxu0
        %v5813 = vadd.f32 %v5568, %v5812
        %v5814 = vpop.f32.mrb[0].mxu0
        %v5815 = vpop.f32.mrb[0].mxu0
        %v5816 = vadd.f32 %v5568, %v5815
        %v5817 = vpop.f32.mrb[0].mxu0
        %5818 = vmatprep.mubr.bf16.mxu0 0
        %5819 = vmatmul.mubr.bf16.gmra.mrb[0].mxu0 %v5536
        %v5820 = vpop.f32.mrb[0].mxu0
        %v5821 = vadd.f32 %v5568, %v5820
        %v5822 = vpop.f32.mrb[0].mxu0
        %v5823 = vpop.f32.mrb[0].mxu0
        %v5824 = vadd.f32 %v5568, %v5823
        %v5825 = vpop.f32.mrb[0].mxu0
        %5826 = vmatprep.mubr.bf16.mxu0 0
        %5827 = vmatmul.mubr.bf16.gmra.mrb[0].mxu0 %v5537
        %v5828 = vpop.f32.mrb[0].mxu0
        %v5829 = vadd.f32 %v5568, %v5828
        %v5830 = vpop.f32.mrb[0].mxu0
        %v5831 = vpop.f32.mrb[0].mxu0
        %v5832 = vadd.f32 %v5568, %v5831
        %v5833 = vpop.f32.mrb[0].mxu0
        %5834 = vmatprep.mubr.bf16.mxu0 0
        %5835 = vmatmul.mubr.bf16.gmra.mrb[0].mxu0 %v5538
        %v5836 = vpop.f32.mrb[0].mxu0
        %v5837 = vadd.f32 %v5568, %v5836
        %v5838 = vpop.f32.mrb[0].mxu0
        %v5839 = vpop.f32.mrb[0].mxu0
        %v5840 = vadd.f32 %v5568, %v5839
        %v5841 = vpop.f32.mrb[0].mxu0
        %5842 = vmatprep.mubr.bf16.mxu0 0
        %5843 = vmatmul.mubr.bf16.gmra.mrb[0].mxu0 %v5539
        %v5844 = vpop.f32.mrb[0].mxu0
        %v5845 = vadd.f32 %v5568, %v5844
        %v5846 = vpop.f32.mrb[0].mxu0
        %v5847 = vpop.f32.mrb[0].mxu0
        %v5848 = vadd.f32 %v5568, %v5847
        %v5849 = vpop.f32.mrb[0].mxu0
        %5850 = vmatprep.mubr.bf16.mxu0 0
        %5851 = vmatmul.mubr.bf16.gmra.mrb[0].mxu0 %v5540
        %v5852 = vpop.f32.mrb[0].mxu0
        %v5853 = vadd.f32 %v5568, %v5852
        %v5854 = vpop.f32.mrb[0].mxu0
        %v5855 = vpop.f32.mrb[0].mxu0
        %v5856 = vadd.f32 %v5568, %v5855
        %v5857 = vpop.f32.mrb[0].mxu0
        %5858 = vmatprep.mubr.bf16.mxu0 0
        %5859 = vmatmul.mubr.bf16.gmra.mrb[0].mxu0 %v5541
        %v5860 = vpop.f32.mrb[0].mxu0
        %v5861 = vadd.f32 %v5568, %v5860
        %v5862 = vpop.f32.mrb[0].mxu0
        %v5863 = vpop.f32.mrb[0].mxu0
        %v5864 = vadd.f32 %v5568, %v5863
        %v5865 = vpop.f32.mrb[0].mxu0
        %5866 = vmatprep.mubr.bf16.mxu0 0
        %5867 = vmatmul.mubr.bf16.gmra.mrb[0].mxu0 %v5542
        %v5868 = vpop.f32.mrb[0].mxu0
        %v5869 = vadd.f32 %v5568, %v5868
        %v5870 = vpop.f32.mrb[0].mxu0
        %v5871 = vpop.f32.mrb[0].mxu0
        %v5872 = vadd.f32 %v5568, %v5871
        %v5873 = vpop.f32.mrb[0].mxu0
        %5874 = vmatprep.mubr.bf16.mxu0 0
        %5875 = vmatmul.mubr.bf16.gmra.mrb[0].mxu0 %v5543
        %v5876 = vpop.f32.mrb[0].mxu0
        %v5877 = vadd.f32 %v5568, %v5876
        %v5878 = vpop.f32.mrb[0].mxu0
        %v5879 = vpop.f32.mrb[0].mxu0
        %v5880 = vadd.f32 %v5568, %v5879
        %v5881 = vpop.f32.mrb[0].mxu0
        %5882 = vmatprep.mubr.bf16.mxu0 0
        %5883 = vmatmul.mubr.bf16.gmra.mrb[0].mxu0 %v5544
        %v5884 = vpop.f32.mrb[0].mxu0
        %v5885 = vadd.f32 %v5568, %v5884
        %v5886 = vpop.f32.mrb[0].mxu0
        %v5887 = vpop.f32.mrb[0].mxu0
        %v5888 = vadd.f32 %v5568, %v5887
        %v5889 = vpop.f32.mrb[0].mxu0
        %5890 = vmatprep.mubr.bf16.mxu0 0
        %5891 = vmatmul.mubr.bf16.gmra.mrb[0].mxu0 %v5545
        %v5892 = vpop.f32.mrb[0].mxu0
        %v5893 = vadd.f32 %v5568, %v5892
        %v5894 = vpop.f32.mrb[0].mxu0
        %v5895 = vpop.f32.mrb[0].mxu0
        %v5896 = vadd.f32 %v5568, %v5895
        %v5897 = vpop.f32.mrb[0].mxu0
        %5898 = vmatprep.mubr.bf16.mxu0 0
        %5899 = vmatmul.mubr.bf16.gmra.mrb[0].mxu0 %v5546
        %v5900 = vpop.f32.mrb[0].mxu0
        %v5901 = vadd.f32 %v5568, %v5900
        %v5902 = vpop.f32.mrb[0].mxu0
        %v5903 = vpop.f32.mrb[0].mxu0
        %v5904 = vadd.f32 %v5568, %v5903
        %v5905 = vpop.f32.mrb[0].mxu0
        %5906 = vdwg.mxu0
        %v5907 = vld [vmem:[#allocation2 + $0x10] sm:$0xff]
        %v5908 = vld [vmem:[#allocation2 + $0x18] sm:$0xff]
        %v5909 = vld [vmem:[#allocation2 + $0x20] sm:$0xff]
        %v5910 = vld [vmem:[#allocation2 + $0x28] sm:$0xff]
        %v5911 = vld [vmem:[#allocation2 + $0x30] sm:$0xff]
        %v5912 = vld [vmem:[#allocation2 + $0x38] sm:$0xff]
        %v5913 = vld [vmem:[#allocation2 + $0x40] sm:$0xff]
        %v5914 = vld [vmem:[#allocation2 + $0x48] sm:$0xff]
        %v5915 = vld [vmem:[#allocation2 + $0x50] sm:$0xff]
        %v5916 = vld [vmem:[#allocation2 + $0x58] sm:$0xff]
        %v5917 = vld [vmem:[#allocation2 + $0x60] sm:$0xff]
        %v5918 = vld [vmem:[#allocation2 + $0x68] sm:$0xff]
        %v5919 = vld [vmem:[#allocation2 + $0x70] sm:$0xff]
        %v5920 = vld [vmem:[#allocation2 + $0x78] sm:$0xff]
        %v5921 = vld [vmem:[#allocation2 + $0x80] sm:$0xff]
        %v5922 = vld [vmem:[#allocation2 + $0x88] sm:$0xff]
        %v5923 = vld [vmem:[#allocation2 + $0x90] sm:$0xff]
        %v5924 = vld [vmem:[#allocation2 + $0x98] sm:$0xff]
        %v5925 = vld [vmem:[#allocation2 + $0xa0] sm:$0xff]
        %v5926 = vld [vmem:[#allocation2 + $0xa8] sm:$0xff]
        %v5927 = vld [vmem:[#allocation2 + $0xb0] sm:$0xff]
        %v5928 = vld [vmem:[#allocation2 + $0xb8] sm:$0xff]
        %v5929 = vld [vmem:[#allocation2 + $0xc0] sm:$0xff]
        %v5930 = vld [vmem:[#allocation2 + $0xc8] sm:$0xff]
        %v5931 = vld [vmem:[#allocation2 + $0xd0] sm:$0xff]
        %v5932 = vld [vmem:[#allocation2 + $0xd8] sm:$0xff]
        %v5933 = vld [vmem:[#allocation2 + $0xe0] sm:$0xff]
        %v5934 = vld [vmem:[#allocation2 + $0xe8] sm:$0xff]
        %v5935 = vld [vmem:[#allocation2 + $0xf0] sm:$0xff]
        %v5936 = vld [vmem:[#allocation2 + $0xf8] sm:$0xff]
        %v5937 = vld [vmem:[#allocation2 + $0x100] sm:$0xff]
        %v5938 = vld [vmem:[#allocation2 + $0x108] sm:$0xff]
        %v5939 = vld [vmem:[#allocation2 + $0x110] sm:$0x1]
        %v5940 = vld [vmem:[#allocation8] sm:$0xf]
        %v5941 = vld [vmem:[#allocation8 + $0x4] sm:$0xf]
        %v5942 = vld [vmem:[#allocation8 + $0x8] sm:$0xf]
        %v5943 = vld [vmem:[#allocation8 + $0xc] sm:$0xf]
        %v5944 = vld [vmem:[#allocation8 + $0x10] sm:$0xf]
        %v5945 = vld [vmem:[#allocation8 + $0x14] sm:$0xf]
        %v5946 = vld [vmem:[#allocation8 + $0x18] sm:$0xf]
        %v5947 = vld [vmem:[#allocation8 + $0x1c] sm:$0xf]
        %v5948 = vld [vmem:[#allocation8 + $0x20] sm:$0xf]
        %v5949 = vld [vmem:[#allocation8 + $0x24] sm:$0xf]
        %v5950 = vld [vmem:[#allocation8 + $0x28] sm:$0xf]
        %v5951 = vld [vmem:[#allocation8 + $0x2c] sm:$0xf]
        %v5952 = vld [vmem:[#allocation8 + $0x30] sm:$0xf]
        %v5953 = vld [vmem:[#allocation8 + $0x34] sm:$0xf]
        %v5954 = vld [vmem:[#allocation8 + $0x38] sm:$0xf]
        %v5955 = vld [vmem:[#allocation8 + $0x3c] sm:$0xf]
        %v5957 = vshrl.u32 %v5907, 16
        %v5959 = vshll.u32 %v5907, 16
        %v5961 = vrot.slane %v5959, 1
        %v5962 = vor.u32 %v5957, %v5961
        %v5964 = vshll.u32 %v5908, 16
        %v5966 = vrot.slane %v5964, 1
        %v5967 = vsel %vm1304, %v5962, %v5966
        %v5968 = vshrl.u32 %v5908, 16
        %v5970 = vor.u32 %v5968, %v5966
        %v5972 = vshll.u32 %v5909, 16
        %v5974 = vrot.slane %v5972, 1
        %v5975 = vsel %vm1304, %v5970, %v5974
        %v5976 = vshrl.u32 %v5909, 16
        %v5978 = vor.u32 %v5976, %v5974
        %v5980 = vshll.u32 %v5910, 16
        %v5982 = vrot.slane %v5980, 1
        %v5983 = vsel %vm1304, %v5978, %v5982
        %v5984 = vshrl.u32 %v5910, 16
        %v5986 = vor.u32 %v5984, %v5982
        %v5988 = vshll.u32 %v5911, 16
        %v5990 = vrot.slane %v5988, 1
        %v5991 = vsel %vm1304, %v5986, %v5990
        %v5992 = vshrl.u32 %v5911, 16
        %v5994 = vor.u32 %v5992, %v5990
        %v5996 = vshll.u32 %v5912, 16
        %v5998 = vrot.slane %v5996, 1
        %v5999 = vsel %vm1304, %v5994, %v5998
        %v6000 = vshrl.u32 %v5912, 16
        %v6002 = vor.u32 %v6000, %v5998
        %v6004 = vshll.u32 %v5913, 16
        %v6006 = vrot.slane %v6004, 1
        %v6007 = vsel %vm1304, %v6002, %v6006
        %v6008 = vshrl.u32 %v5913, 16
        %v6010 = vor.u32 %v6008, %v6006
        %v6012 = vshll.u32 %v5914, 16
        %v6014 = vrot.slane %v6012, 1
        %v6015 = vsel %vm1304, %v6010, %v6014
        %v6016 = vshrl.u32 %v5914, 16
        %v6018 = vor.u32 %v6016, %v6014
        %v6020 = vshll.u32 %v5915, 16
        %v6022 = vrot.slane %v6020, 1
        %v6023 = vsel %vm1304, %v6018, %v6022
        %v6024 = vshrl.u32 %v5915, 16
        %v6026 = vor.u32 %v6024, %v6022
        %v6028 = vshll.u32 %v5916, 16
        %v6030 = vrot.slane %v6028, 1
        %v6031 = vsel %vm1304, %v6026, %v6030
        %v6032 = vshrl.u32 %v5916, 16
        %v6034 = vor.u32 %v6032, %v6030
        %v6036 = vshll.u32 %v5917, 16
        %v6038 = vrot.slane %v6036, 1
        %v6039 = vsel %vm1304, %v6034, %v6038
        %v6040 = vshrl.u32 %v5917, 16
        %v6042 = vor.u32 %v6040, %v6038
        %v6044 = vshll.u32 %v5918, 16
        %v6046 = vrot.slane %v6044, 1
        %v6047 = vsel %vm1304, %v6042, %v6046
        %v6048 = vshrl.u32 %v5918, 16
        %v6050 = vor.u32 %v6048, %v6046
        %v6052 = vshll.u32 %v5919, 16
        %v6054 = vrot.slane %v6052, 1
        %v6055 = vsel %vm1304, %v6050, %v6054
        %v6056 = vshrl.u32 %v5919, 16
        %v6058 = vor.u32 %v6056, %v6054
        %v6060 = vshll.u32 %v5920, 16
        %v6062 = vrot.slane %v6060, 1
        %v6063 = vsel %vm1304, %v6058, %v6062
        %v6064 = vshrl.u32 %v5920, 16
        %v6066 = vor.u32 %v6064, %v6062
        %v6068 = vshll.u32 %v5921, 16
        %v6070 = vrot.slane %v6068, 1
        %v6071 = vsel %vm1304, %v6066, %v6070
        %v6072 = vshrl.u32 %v5921, 16
        %v6074 = vor.u32 %v6072, %v6070
        %v6076 = vshll.u32 %v5922, 16
        %v6078 = vrot.slane %v6076, 1
        %v6079 = vsel %vm1304, %v6074, %v6078
        %v6080 = vshrl.u32 %v5922, 16
        %v6082 = vor.u32 %v6080, %v6078
        %v6084 = vshll.u32 %v5923, 16
        %v6086 = vrot.slane %v6084, 1
        %v6087 = vsel %vm1304, %v6082, %v6086
        %v6088 = vshrl.u32 %v5923, 16
        %v6090 = vor.u32 %v6088, %v6086
        %v6092 = vshll.u32 %v5924, 16
        %v6094 = vrot.slane %v6092, 1
        %v6095 = vsel %vm1304, %v6090, %v6094
        %v6096 = vshrl.u32 %v5924, 16
        %v6098 = vor.u32 %v6096, %v6094
        %v6100 = vshll.u32 %v5925, 16
        %v6102 = vrot.slane %v6100, 1
        %v6103 = vsel %vm1304, %v6098, %v6102
        %v6104 = vshrl.u32 %v5925, 16
        %v6106 = vor.u32 %v6104, %v6102
        %v6108 = vshll.u32 %v5926, 16
        %v6110 = vrot.slane %v6108, 1
        %v6111 = vsel %vm1304, %v6106, %v6110
        %v6112 = vshrl.u32 %v5926, 16
        %v6114 = vor.u32 %v6112, %v6110
        %v6116 = vshll.u32 %v5927, 16
        %v6118 = vrot.slane %v6116, 1
        %v6119 = vsel %vm1304, %v6114, %v6118
        %v6120 = vshrl.u32 %v5927, 16
        %v6122 = vor.u32 %v6120, %v6118
        %v6124 = vshll.u32 %v5928, 16
        %v6126 = vrot.slane %v6124, 1
        %v6127 = vsel %vm1304, %v6122, %v6126
        %v6128 = vshrl.u32 %v5928, 16
        %v6130 = vor.u32 %v6128, %v6126
        %v6132 = vshll.u32 %v5929, 16
        %v6134 = vrot.slane %v6132, 1
        %v6135 = vsel %vm1304, %v6130, %v6134
        %v6136 = vshrl.u32 %v5929, 16
        %v6138 = vor.u32 %v6136, %v6134
        %v6140 = vshll.u32 %v5930, 16
        %v6142 = vrot.slane %v6140, 1
        %v6143 = vsel %vm1304, %v6138, %v6142
        %v6144 = vshrl.u32 %v5930, 16
        %v6146 = vor.u32 %v6144, %v6142
        %v6148 = vshll.u32 %v5931, 16
        %v6150 = vrot.slane %v6148, 1
        %v6151 = vsel %vm1304, %v6146, %v6150
        %v6152 = vshrl.u32 %v5931, 16
        %v6154 = vor.u32 %v6152, %v6150
        %v6156 = vshll.u32 %v5932, 16
        %v6158 = vrot.slane %v6156, 1
        %v6159 = vsel %vm1304, %v6154, %v6158
        %v6160 = vshrl.u32 %v5932, 16
        %v6162 = vor.u32 %v6160, %v6158
        %v6164 = vshll.u32 %v5933, 16
        %v6166 = vrot.slane %v6164, 1
        %v6167 = vsel %vm1304, %v6162, %v6166
        %v6168 = vshrl.u32 %v5933, 16
        %v6170 = vor.u32 %v6168, %v6166
        %v6172 = vshll.u32 %v5934, 16
        %v6174 = vrot.slane %v6172, 1
        %v6175 = vsel %vm1304, %v6170, %v6174
        %v6176 = vshrl.u32 %v5934, 16
        %v6178 = vor.u32 %v6176, %v6174
        %v6180 = vshll.u32 %v5935, 16
        %v6182 = vrot.slane %v6180, 1
        %v6183 = vsel %vm1304, %v6178, %v6182
        %v6184 = vshrl.u32 %v5935, 16
        %v6186 = vor.u32 %v6184, %v6182
        %v6188 = vshll.u32 %v5936, 16
        %v6190 = vrot.slane %v6188, 1
        %v6191 = vsel %vm1304, %v6186, %v6190
        %v6192 = vshrl.u32 %v5936, 16
        %v6194 = vor.u32 %v6192, %v6190
        %v6196 = vshll.u32 %v5937, 16
        %v6198 = vrot.slane %v6196, 1
        %v6199 = vsel %vm1304, %v6194, %v6198
        %v6200 = vshrl.u32 %v5937, 16
        %v6202 = vor.u32 %v6200, %v6198
        %v6204 = vshll.u32 %v5938, 16
        %v6206 = vrot.slane %v6204, 1
        %v6207 = vsel %vm1304, %v6202, %v6206
        %v6208 = vshrl.u32 %v5938, 16
        %v6210 = vor.u32 %v6208, %v6206
        %v6212 = vshll.u32 %v5939, 16
        %v6214 = vrot.slane %v6212, 1
        %v6215 = vsel %vm1304, %v6210, %v6214
        %v6264 = vunpack.c.l.b16 %v5940
        %v6265 = vunpack.c.l.b16 %v5941
        %v6266 = vunpack.c.l.b16 %v5942
        %v6267 = vunpack.c.l.b16 %v5943
        %v6268 = vunpack.c.l.b16 %v5944
        %v6269 = vunpack.c.l.b16 %v5945
        %v6270 = vunpack.c.l.b16 %v5946
        %v6271 = vunpack.c.l.b16 %v5947
        %v6272 = vunpack.c.l.b16 %v5948
        %v6273 = vunpack.c.l.b16 %v5949
        %v6274 = vunpack.c.l.b16 %v5950
        %v6275 = vunpack.c.l.b16 %v5951
        %v6276 = vunpack.c.l.b16 %v5952
        %v6277 = vunpack.c.l.b16 %v5953
        %v6278 = vunpack.c.l.b16 %v5954
        %v6279 = vunpack.c.l.b16 %v5955
        %v6280 = vpack.c.b16 %v6265, %v6264
        %v6281 = vpack.c.b16 %v6267, %v6266
        %v6282 = vpack.c.b16 %v6269, %v6268
        %v6283 = vpack.c.b16 %v6271, %v6270
        %v6284 = vpack.c.b16 %v6273, %v6272
        %v6285 = vpack.c.b16 %v6275, %v6274
        %v6286 = vpack.c.b16 %v6277, %v6276
        %v6287 = vpack.c.b16 %v6279, %v6278
        %6296 = vmatprep.subr.bf16.mxu0 0
        %6297 = vmatpush1.bf16.msra.mxu0 %v6280
        %6298 = vmatprep.subr.bf16.mxu0 0
        %6299 = vmatpush1.bf16.msra.mxu0 %v6281
        %6300 = vmatprep.subr.bf16.mxu0 0
        %6301 = vmatpush1.bf16.msra.mxu0 %v6282
        %6302 = vmatprep.subr.bf16.mxu0 0
        %6303 = vmatpush1.bf16.msra.mxu0 %v6283
        %6304 = vmatprep.subr.bf16.mxu0 0
        %6305 = vmatpush1.bf16.msra.mxu0 %v6284
        %6306 = vmatprep.subr.bf16.mxu0 0
        %6307 = vmatpush1.bf16.msra.mxu0 %v6285
        %6308 = vmatprep.subr.bf16.mxu0 0
        %6309 = vmatpush1.bf16.msra.mxu0 %v6286
        %6310 = vmatprep.subr.bf16.mxu0 0
        %6311 = vmatpush1.bf16.msra.mxu0 %v6287
        %6312 = vmatprep.subr.bf16.mxu0 0
        %6313 = vmatpush1.bf16.msra.mxu0 0
        %6314 = vmatprep.subr.bf16.mxu0 0
        %6315 = vmatpush1.bf16.msra.mxu0 0
        %6316 = vmatprep.subr.bf16.mxu0 0
        %6317 = vmatpush1.bf16.msra.mxu0 0
        %6318 = vmatprep.subr.bf16.mxu0 0
        %6319 = vmatpush1.bf16.msra.mxu0 0
        %6320 = vmatprep.subr.bf16.mxu0 0
        %6321 = vmatpush1.bf16.msra.mxu0 0
        %6322 = vmatprep.subr.bf16.mxu0 0
        %6323 = vmatpush1.bf16.msra.mxu0 0
        %6324 = vmatprep.subr.bf16.mxu0 0
        %6325 = vmatpush1.bf16.msra.mxu0 0
        %6326 = vmatprep.subr.bf16.mxu0 0
        %6327 = vmatpush1.bf16.msra.mxu0 0
        %6328 = vmatprep.mubr.bf16.mxu0 0
        %6329 = vmatmul.mubr.bf16.gmra.mrb[0].mxu0 %v5967
        %v6330 = vpop.f32.mrb[0].mxu0
        %v6331 = vadd.f32 0.0, %v6330
        %v6332 = vpop.f32.mrb[0].mxu0
        %v6333 = vpop.f32.mrb[0].mxu0
        %v6334 = vadd.f32 0.0, %v6333
        %v6335 = vpop.f32.mrb[0].mxu0
        %6336 = vmatprep.mubr.bf16.mxu0 0
        %6337 = vmatmul.mubr.bf16.gmra.mrb[0].mxu0 %v5975
        %v6338 = vpop.f32.mrb[0].mxu0
        %v6339 = vadd.f32 0.0, %v6338
        %v6340 = vpop.f32.mrb[0].mxu0
        %v6341 = vpop.f32.mrb[0].mxu0
        %v6342 = vadd.f32 0.0, %v6341
        %v6343 = vpop.f32.mrb[0].mxu0
        %6344 = vmatprep.mubr.bf16.mxu0 0
        %6345 = vmatmul.mubr.bf16.gmra.mrb[0].mxu0 %v5983
        %v6346 = vpop.f32.mrb[0].mxu0
        %v6347 = vadd.f32 0.0, %v6346
        %v6348 = vpop.f32.mrb[0].mxu0
        %v6349 = vpop.f32.mrb[0].mxu0
        %v6350 = vadd.f32 0.0, %v6349
        %v6351 = vpop.f32.mrb[0].mxu0
        %6352 = vmatprep.mubr.bf16.mxu0 0
        %6353 = vmatmul.mubr.bf16.gmra.mrb[0].mxu0 %v5991
        %v6354 = vpop.f32.mrb[0].mxu0
        %v6355 = vadd.f32 0.0, %v6354
        %v6356 = vpop.f32.mrb[0].mxu0
        %v6357 = vpop.f32.mrb[0].mxu0
        %v6358 = vadd.f32 0.0, %v6357
        %v6359 = vpop.f32.mrb[0].mxu0
        %6360 = vmatprep.mubr.bf16.mxu0 0
        %6361 = vmatmul.mubr.bf16.gmra.mrb[0].mxu0 %v5999
        %v6362 = vpop.f32.mrb[0].mxu0
        %v6363 = vadd.f32 0.0, %v6362
        %v6364 = vpop.f32.mrb[0].mxu0
        %v6365 = vpop.f32.mrb[0].mxu0
        %v6366 = vadd.f32 0.0, %v6365
        %v6367 = vpop.f32.mrb[0].mxu0
        %6368 = vmatprep.mubr.bf16.mxu0 0
        %6369 = vmatmul.mubr.bf16.gmra.mrb[0].mxu0 %v6007
        %v6370 = vpop.f32.mrb[0].mxu0
        %v6371 = vadd.f32 0.0, %v6370
        %v6372 = vpop.f32.mrb[0].mxu0
        %v6373 = vpop.f32.mrb[0].mxu0
        %v6374 = vadd.f32 0.0, %v6373
        %v6375 = vpop.f32.mrb[0].mxu0
        %6376 = vmatprep.mubr.bf16.mxu0 0
        %6377 = vmatmul.mubr.bf16.gmra.mrb[0].mxu0 %v6015
        %v6378 = vpop.f32.mrb[0].mxu0
        %v6379 = vadd.f32 0.0, %v6378
        %v6380 = vpop.f32.mrb[0].mxu0
        %v6381 = vpop.f32.mrb[0].mxu0
        %v6382 = vadd.f32 0.0, %v6381
        %v6383 = vpop.f32.mrb[0].mxu0
        %6384 = vmatprep.mubr.bf16.mxu0 0
        %6385 = vmatmul.mubr.bf16.gmra.mrb[0].mxu0 %v6023
        %v6386 = vpop.f32.mrb[0].mxu0
        %v6387 = vadd.f32 0.0, %v6386
        %v6388 = vpop.f32.mrb[0].mxu0
        %v6389 = vpop.f32.mrb[0].mxu0
        %v6390 = vadd.f32 0.0, %v6389
        %v6391 = vpop.f32.mrb[0].mxu0
        %6392 = vmatprep.mubr.bf16.mxu0 0
        %6393 = vmatmul.mubr.bf16.gmra.mrb[0].mxu0 %v6031
        %v6394 = vpop.f32.mrb[0].mxu0
        %v6395 = vadd.f32 0.0, %v6394
        %v6396 = vpop.f32.mrb[0].mxu0
        %v6397 = vpop.f32.mrb[0].mxu0
        %v6398 = vadd.f32 0.0, %v6397
        %v6399 = vpop.f32.mrb[0].mxu0
        %6400 = vmatprep.mubr.bf16.mxu0 0
        %6401 = vmatmul.mubr.bf16.gmra.mrb[0].mxu0 %v6039
        %v6402 = vpop.f32.mrb[0].mxu0
        %v6403 = vadd.f32 0.0, %v6402
        %v6404 = vpop.f32.mrb[0].mxu0
        %v6405 = vpop.f32.mrb[0].mxu0
        %v6406 = vadd.f32 0.0, %v6405
        %v6407 = vpop.f32.mrb[0].mxu0
        %6408 = vmatprep.mubr.bf16.mxu0 0
        %6409 = vmatmul.mubr.bf16.gmra.mrb[0].mxu0 %v6047
        %v6410 = vpop.f32.mrb[0].mxu0
        %v6411 = vadd.f32 0.0, %v6410
        %v6412 = vpop.f32.mrb[0].mxu0
        %v6413 = vpop.f32.mrb[0].mxu0
        %v6414 = vadd.f32 0.0, %v6413
        %v6415 = vpop.f32.mrb[0].mxu0
        %6416 = vmatprep.mubr.bf16.mxu0 0
        %6417 = vmatmul.mubr.bf16.gmra.mrb[0].mxu0 %v6055
        %v6418 = vpop.f32.mrb[0].mxu0
        %v6419 = vadd.f32 0.0, %v6418
        %v6420 = vpop.f32.mrb[0].mxu0
        %v6421 = vpop.f32.mrb[0].mxu0
        %v6422 = vadd.f32 0.0, %v6421
        %v6423 = vpop.f32.mrb[0].mxu0
        %6424 = vmatprep.mubr.bf16.mxu0 0
        %6425 = vmatmul.mubr.bf16.gmra.mrb[0].mxu0 %v6063
        %v6426 = vpop.f32.mrb[0].mxu0
        %v6427 = vadd.f32 0.0, %v6426
        %v6428 = vpop.f32.mrb[0].mxu0
        %v6429 = vpop.f32.mrb[0].mxu0
        %v6430 = vadd.f32 0.0, %v6429
        %v6431 = vpop.f32.mrb[0].mxu0
        %6432 = vmatprep.mubr.bf16.mxu0 0
        %6433 = vmatmul.mubr.bf16.gmra.mrb[0].mxu0 %v6071
        %v6434 = vpop.f32.mrb[0].mxu0
        %v6435 = vadd.f32 0.0, %v6434
        %v6436 = vpop.f32.mrb[0].mxu0
        %v6437 = vpop.f32.mrb[0].mxu0
        %v6438 = vadd.f32 0.0, %v6437
        %v6439 = vpop.f32.mrb[0].mxu0
        %6440 = vmatprep.mubr.bf16.mxu0 0
        %6441 = vmatmul.mubr.bf16.gmra.mrb[0].mxu0 %v6079
        %v6442 = vpop.f32.mrb[0].mxu0
        %v6443 = vadd.f32 0.0, %v6442
        %v6444 = vpop.f32.mrb[0].mxu0
        %v6445 = vpop.f32.mrb[0].mxu0
        %v6446 = vadd.f32 0.0, %v6445
        %v6447 = vpop.f32.mrb[0].mxu0
        %6448 = vmatprep.mubr.bf16.mxu0 0
        %6449 = vmatmul.mubr.bf16.gmra.mrb[0].mxu0 %v6087
        %v6450 = vpop.f32.mrb[0].mxu0
        %v6451 = vadd.f32 0.0, %v6450
        %v6452 = vpop.f32.mrb[0].mxu0
        %v6453 = vpop.f32.mrb[0].mxu0
        %v6454 = vadd.f32 0.0, %v6453
        %v6455 = vpop.f32.mrb[0].mxu0
        %6456 = vmatprep.mubr.bf16.mxu0 0
        %6457 = vmatmul.mubr.bf16.gmra.mrb[0].mxu0 %v6095
        %v6458 = vpop.f32.mrb[0].mxu0
        %v6459 = vadd.f32 0.0, %v6458
        %v6460 = vpop.f32.mrb[0].mxu0
        %v6461 = vpop.f32.mrb[0].mxu0
        %v6462 = vadd.f32 0.0, %v6461
        %v6463 = vpop.f32.mrb[0].mxu0
        %6464 = vmatprep.mubr.bf16.mxu0 0
        %6465 = vmatmul.mubr.bf16.gmra.mrb[0].mxu0 %v6103
        %v6466 = vpop.f32.mrb[0].mxu0
        %v6467 = vadd.f32 0.0, %v6466
        %v6468 = vpop.f32.mrb[0].mxu0
        %v6469 = vpop.f32.mrb[0].mxu0
        %v6470 = vadd.f32 0.0, %v6469
        %v6471 = vpop.f32.mrb[0].mxu0
        %6472 = vmatprep.mubr.bf16.mxu0 0
        %6473 = vmatmul.mubr.bf16.gmra.mrb[0].mxu0 %v6111
        %v6474 = vpop.f32.mrb[0].mxu0
        %v6475 = vadd.f32 0.0, %v6474
        %v6476 = vpop.f32.mrb[0].mxu0
        %v6477 = vpop.f32.mrb[0].mxu0
        %v6478 = vadd.f32 0.0, %v6477
        %v6479 = vpop.f32.mrb[0].mxu0
        %6480 = vmatprep.mubr.bf16.mxu0 0
        %6481 = vmatmul.mubr.bf16.gmra.mrb[0].mxu0 %v6119
        %v6482 = vpop.f32.mrb[0].mxu0
        %v6483 = vadd.f32 0.0, %v6482
        %v6484 = vpop.f32.mrb[0].mxu0
        %v6485 = vpop.f32.mrb[0].mxu0
        %v6486 = vadd.f32 0.0, %v6485
        %v6487 = vpop.f32.mrb[0].mxu0
        %6488 = vmatprep.mubr.bf16.mxu0 0
        %6489 = vmatmul.mubr.bf16.gmra.mrb[0].mxu0 %v6127
        %v6490 = vpop.f32.mrb[0].mxu0
        %v6491 = vadd.f32 0.0, %v6490
        %v6492 = vpop.f32.mrb[0].mxu0
        %v6493 = vpop.f32.mrb[0].mxu0
        %v6494 = vadd.f32 0.0, %v6493
        %v6495 = vpop.f32.mrb[0].mxu0
        %6496 = vmatprep.mubr.bf16.mxu0 0
        %6497 = vmatmul.mubr.bf16.gmra.mrb[0].mxu0 %v6135
        %v6498 = vpop.f32.mrb[0].mxu0
        %v6499 = vadd.f32 0.0, %v6498
        %v6500 = vpop.f32.mrb[0].mxu0
        %v6501 = vpop.f32.mrb[0].mxu0
        %v6502 = vadd.f32 0.0, %v6501
        %v6503 = vpop.f32.mrb[0].mxu0
        %6504 = vmatprep.mubr.bf16.mxu0 0
        %6505 = vmatmul.mubr.bf16.gmra.mrb[0].mxu0 %v6143
        %v6506 = vpop.f32.mrb[0].mxu0
        %v6507 = vadd.f32 0.0, %v6506
        %v6508 = vpop.f32.mrb[0].mxu0
        %v6509 = vpop.f32.mrb[0].mxu0
        %v6510 = vadd.f32 0.0, %v6509
        %v6511 = vpop.f32.mrb[0].mxu0
        %6512 = vmatprep.mubr.bf16.mxu0 0
        %6513 = vmatmul.mubr.bf16.gmra.mrb[0].mxu0 %v6151
        %v6514 = vpop.f32.mrb[0].mxu0
        %v6515 = vadd.f32 0.0, %v6514
        %v6516 = vpop.f32.mrb[0].mxu0
        %v6517 = vpop.f32.mrb[0].mxu0
        %v6518 = vadd.f32 0.0, %v6517
        %v6519 = vpop.f32.mrb[0].mxu0
        %6520 = vmatprep.mubr.bf16.mxu0 0
        %6521 = vmatmul.mubr.bf16.gmra.mrb[0].mxu0 %v6159
        %v6522 = vpop.f32.mrb[0].mxu0
        %v6523 = vadd.f32 0.0, %v6522
        %v6524 = vpop.f32.mrb[0].mxu0
        %v6525 = vpop.f32.mrb[0].mxu0
        %v6526 = vadd.f32 0.0, %v6525
        %v6527 = vpop.f32.mrb[0].mxu0
        %6528 = vmatprep.mubr.bf16.mxu0 0
        %6529 = vmatmul.mubr.bf16.gmra.mrb[0].mxu0 %v6167
        %v6530 = vpop.f32.mrb[0].mxu0
        %v6531 = vadd.f32 0.0, %v6530
        %v6532 = vpop.f32.mrb[0].mxu0
        %v6533 = vpop.f32.mrb[0].mxu0
        %v6534 = vadd.f32 0.0, %v6533
        %v6535 = vpop.f32.mrb[0].mxu0
        %6536 = vmatprep.mubr.bf16.mxu0 0
        %6537 = vmatmul.mubr.bf16.gmra.mrb[0].mxu0 %v6175
        %v6538 = vpop.f32.mrb[0].mxu0
        %v6539 = vadd.f32 0.0, %v6538
        %v6540 = vpop.f32.mrb[0].mxu0
        %v6541 = vpop.f32.mrb[0].mxu0
        %v6542 = vadd.f32 0.0, %v6541
        %v6543 = vpop.f32.mrb[0].mxu0
        %6544 = vmatprep.mubr.bf16.mxu0 0
        %6545 = vmatmul.mubr.bf16.gmra.mrb[0].mxu0 %v6183
        %v6546 = vpop.f32.mrb[0].mxu0
        %v6547 = vadd.f32 0.0, %v6546
        %v6548 = vpop.f32.mrb[0].mxu0
        %v6549 = vpop.f32.mrb[0].mxu0
        %v6550 = vadd.f32 0.0, %v6549
        %v6551 = vpop.f32.mrb[0].mxu0
        %6552 = vmatprep.mubr.bf16.mxu0 0
        %6553 = vmatmul.mubr.bf16.gmra.mrb[0].mxu0 %v6191
        %v6554 = vpop.f32.mrb[0].mxu0
        %v6555 = vadd.f32 0.0, %v6554
        %v6556 = vpop.f32.mrb[0].mxu0
        %v6557 = vpop.f32.mrb[0].mxu0
        %v6558 = vadd.f32 0.0, %v6557
        %v6559 = vpop.f32.mrb[0].mxu0
        %6560 = vmatprep.mubr.bf16.mxu0 0
        %6561 = vmatmul.mubr.bf16.gmra.mrb[0].mxu0 %v6199
        %v6562 = vpop.f32.mrb[0].mxu0
        %v6563 = vadd.f32 0.0, %v6562
        %v6564 = vpop.f32.mrb[0].mxu0
        %v6565 = vpop.f32.mrb[0].mxu0
        %v6566 = vadd.f32 0.0, %v6565
        %v6567 = vpop.f32.mrb[0].mxu0
        %6568 = vmatprep.mubr.bf16.mxu0 0
        %6569 = vmatmul.mubr.bf16.gmra.mrb[0].mxu0 %v6207
        %v6570 = vpop.f32.mrb[0].mxu0
        %v6571 = vadd.f32 0.0, %v6570
        %v6572 = vpop.f32.mrb[0].mxu0
        %v6573 = vpop.f32.mrb[0].mxu0
        %v6574 = vadd.f32 0.0, %v6573
        %v6575 = vpop.f32.mrb[0].mxu0
        %6576 = vmatprep.mubr.bf16.mxu0 0
        %6577 = vmatmul.mubr.bf16.gmra.mrb[0].mxu0 %v6215
        %v6578 = vpop.f32.mrb[0].mxu0
        %v6579 = vadd.f32 0.0, %v6578
        %v6580 = vpop.f32.mrb[0].mxu0
        %v6581 = vpop.f32.mrb[0].mxu0
        %v6582 = vadd.f32 0.0, %v6581
        %v6583 = vpop.f32.mrb[0].mxu0
        %6584 = vdwg.mxu0
        %v6585 = vadd.f32 %v5653, %v6331
        %v6586 = vadd.f32 %v5656, %v6334
        %v6587 = vadd.f32 %v5661, %v6339
        %v6588 = vadd.f32 %v5664, %v6342
        %v6589 = vadd.f32 %v5669, %v6347
        %v6590 = vadd.f32 %v5672, %v6350
        %v6591 = vadd.f32 %v5677, %v6355
        %v6592 = vadd.f32 %v5680, %v6358
        %v6593 = vadd.f32 %v5685, %v6363
        %v6594 = vadd.f32 %v5688, %v6366
        %v6595 = vadd.f32 %v5693, %v6371
        %v6596 = vadd.f32 %v5696, %v6374
        %v6597 = vadd.f32 %v5701, %v6379
        %v6598 = vadd.f32 %v5704, %v6382
        %v6599 = vadd.f32 %v5709, %v6387
        %v6600 = vadd.f32 %v5712, %v6390
        %v6601 = vadd.f32 %v5717, %v6395
        %v6602 = vadd.f32 %v5720, %v6398
        %v6603 = vadd.f32 %v5725, %v6403
        %v6604 = vadd.f32 %v5728, %v6406
        %v6605 = vadd.f32 %v5733, %v6411
        %v6606 = vadd.f32 %v5736, %v6414
        %v6607 = vadd.f32 %v5741, %v6419
        %v6608 = vadd.f32 %v5744, %v6422
        %v6609 = vadd.f32 %v5749, %v6427
        %v6610 = vadd.f32 %v5752, %v6430
        %v6611 = vadd.f32 %v5757, %v6435
        %v6612 = vadd.f32 %v5760, %v6438
        %v6613 = vadd.f32 %v5765, %v6443
        %v6614 = vadd.f32 %v5768, %v6446
        %v6615 = vadd.f32 %v5773, %v6451
        %v6616 = vadd.f32 %v5776, %v6454
        %v6617 = vadd.f32 %v5781, %v6459
        %v6618 = vadd.f32 %v5784, %v6462
        %v6619 = vadd.f32 %v5789, %v6467
        %v6620 = vadd.f32 %v5792, %v6470
        %v6621 = vadd.f32 %v5797, %v6475
        %v6622 = vadd.f32 %v5800, %v6478
        %v6623 = vadd.f32 %v5805, %v6483
        %v6624 = vadd.f32 %v5808, %v6486
        %v6625 = vadd.f32 %v5813, %v6491
        %v6626 = vadd.f32 %v5816, %v6494
        %v6627 = vadd.f32 %v5821, %v6499
        %v6628 = vadd.f32 %v5824, %v6502
        %v6629 = vadd.f32 %v5829, %v6507
        %v6630 = vadd.f32 %v5832, %v6510
        %v6631 = vadd.f32 %v5837, %v6515
        %v6632 = vadd.f32 %v5840, %v6518
        %v6633 = vadd.f32 %v5845, %v6523
        %v6634 = vadd.f32 %v5848, %v6526
        %v6635 = vadd.f32 %v5853, %v6531
        %v6636 = vadd.f32 %v5856, %v6534
        %v6637 = vadd.f32 %v5861, %v6539
        %v6638 = vadd.f32 %v5864, %v6542
        %v6639 = vadd.f32 %v5869, %v6547
        %v6640 = vadd.f32 %v5872, %v6550
        %v6641 = vadd.f32 %v5877, %v6555
        %v6642 = vadd.f32 %v5880, %v6558
        %v6643 = vadd.f32 %v5885, %v6563
        %v6644 = vadd.f32 %v5888, %v6566
        %v6645 = vadd.f32 %v5893, %v6571
        %v6646 = vadd.f32 %v5896, %v6574
        %v6647 = vadd.f32 %v5901, %v6579
        %v6648 = vadd.f32 %v5904, %v6582
        %v6649 = vmax.f32 %v6585, 0.0
        %v6650 = vmax.f32 %v6586, 0.0
        %v6651 = vmax.f32 %v6587, 0.0
        %v6652 = vmax.f32 %v6588, 0.0
        %v6653 = vmax.f32 %v6589, 0.0
        %v6654 = vmax.f32 %v6590, 0.0
        %v6655 = vmax.f32 %v6591, 0.0
        %v6656 = vmax.f32 %v6592, 0.0
        %v6657 = vmax.f32 %v6593, 0.0
        %v6658 = vmax.f32 %v6594, 0.0
        %v6659 = vmax.f32 %v6595, 0.0
        %v6660 = vmax.f32 %v6596, 0.0
        %v6661 = vmax.f32 %v6597, 0.0
        %v6662 = vmax.f32 %v6598, 0.0
        %v6663 = vmax.f32 %v6599, 0.0
        %v6664 = vmax.f32 %v6600, 0.0
        %v6665 = vmax.f32 %v6601, 0.0
        %v6666 = vmax.f32 %v6602, 0.0
        %v6667 = vmax.f32 %v6603, 0.0
        %v6668 = vmax.f32 %v6604, 0.0
        %v6669 = vmax.f32 %v6605, 0.0
        %v6670 = vmax.f32 %v6606, 0.0
        %v6671 = vmax.f32 %v6607, 0.0
        %v6672 = vmax.f32 %v6608, 0.0
        %v6673 = vmax.f32 %v6609, 0.0
        %v6674 = vmax.f32 %v6610, 0.0
        %v6675 = vmax.f32 %v6611, 0.0
        %v6676 = vmax.f32 %v6612, 0.0
        %v6677 = vmax.f32 %v6613, 0.0
        %v6678 = vmax.f32 %v6614, 0.0
        %v6679 = vmax.f32 %v6615, 0.0
        %v6680 = vmax.f32 %v6616, 0.0
        %v6681 = vmax.f32 %v6617, 0.0
        %v6682 = vmax.f32 %v6618, 0.0
        %v6683 = vmax.f32 %v6619, 0.0
        %v6684 = vmax.f32 %v6620, 0.0
        %v6685 = vmax.f32 %v6621, 0.0
        %v6686 = vmax.f32 %v6622, 0.0
        %v6687 = vmax.f32 %v6623, 0.0
        %v6688 = vmax.f32 %v6624, 0.0
        %v6689 = vmax.f32 %v6625, 0.0
        %v6690 = vmax.f32 %v6626, 0.0
        %v6691 = vmax.f32 %v6627, 0.0
        %v6692 = vmax.f32 %v6628, 0.0
        %v6693 = vmax.f32 %v6629, 0.0
        %v6694 = vmax.f32 %v6630, 0.0
        %v6695 = vmax.f32 %v6631, 0.0
        %v6696 = vmax.f32 %v6632, 0.0
        %v6697 = vmax.f32 %v6633, 0.0
        %v6698 = vmax.f32 %v6634, 0.0
        %v6699 = vmax.f32 %v6635, 0.0
        %v6700 = vmax.f32 %v6636, 0.0
        %v6701 = vmax.f32 %v6637, 0.0
        %v6702 = vmax.f32 %v6638, 0.0
        %v6703 = vmax.f32 %v6639, 0.0
        %v6704 = vmax.f32 %v6640, 0.0
        %v6705 = vmax.f32 %v6641, 0.0
        %v6706 = vmax.f32 %v6642, 0.0
        %v6707 = vmax.f32 %v6643, 0.0
        %v6708 = vmax.f32 %v6644, 0.0
        %v6709 = vmax.f32 %v6645, 0.0
        %v6710 = vmax.f32 %v6646, 0.0
        %v6711 = vmax.f32 %v6647, 0.0
        %v6712 = vmax.f32 %v6648, 0.0
        %6713 = vxpose.xlu0.b32.start [1/16] %v6649, 128
        %6714 = vxpose.xlu0.b32.cont [2/16] %v6650, 128
        %6715 = vxpose.xlu0.b32.cont [3/16] %v6651, 128
        %6716 = vxpose.xlu0.b32.cont [4/16] %v6652, 128
        %6717 = vxpose.xlu0.b32.cont [5/16] %v6653, 128
        %6718 = vxpose.xlu0.b32.cont [6/16] %v6654, 128
        %6719 = vxpose.xlu0.b32.cont [7/16] %v6655, 128
        %6720 = vxpose.xlu0.b32.cont [8/16] %v6656, 128
        %6721 = vxpose.xlu0.b32.cont [9/16] %v6657, 128
        %6722 = vxpose.xlu0.b32.cont [10/16] %v6658, 128
        %6723 = vxpose.xlu0.b32.cont [11/16] %v6659, 128
        %6724 = vxpose.xlu0.b32.cont [12/16] %v6660, 128
        %6725 = vxpose.xlu0.b32.cont [13/16] %v6661, 128
        %6726 = vxpose.xlu0.b32.cont [14/16] %v6662, 128
        %6727 = vxpose.xlu0.b32.cont [15/16] %v6663, 128
        %6728 = vxpose.xlu0.b32.end [16/16] %v6664, 128
        %v6729 = vpop.trf.xlu0
        %v6730 = vpop.trf.xlu0
        %v6731 = vpop.trf.xlu0
        %v6732 = vpop.trf.xlu0
        %v6733 = vpop.trf.xlu0
        %v6734 = vpop.trf.xlu0
        %v6735 = vpop.trf.xlu0
        %v6736 = vpop.trf.xlu0
        %v6737 = vpop.trf.xlu0
        %v6738 = vpop.trf.xlu0
        %v6739 = vpop.trf.xlu0
        %v6740 = vpop.trf.xlu0
        %v6741 = vpop.trf.xlu0
        %v6742 = vpop.trf.xlu0
        %v6743 = vpop.trf.xlu0
        %v6744 = vpop.trf.xlu0
        %6745 = vxpose.xlu0.b32.start [1/16] %v6665, 128
        %6746 = vxpose.xlu0.b32.cont [2/16] %v6666, 128
        %6747 = vxpose.xlu0.b32.cont [3/16] %v6667, 128
        %6748 = vxpose.xlu0.b32.cont [4/16] %v6668, 128
        %6749 = vxpose.xlu0.b32.cont [5/16] %v6669, 128
        %6750 = vxpose.xlu0.b32.cont [6/16] %v6670, 128
        %6751 = vxpose.xlu0.b32.cont [7/16] %v6671, 128
        %6752 = vxpose.xlu0.b32.cont [8/16] %v6672, 128
        %6753 = vxpose.xlu0.b32.cont [9/16] %v6673, 128
        %6754 = vxpose.xlu0.b32.cont [10/16] %v6674, 128
        %6755 = vxpose.xlu0.b32.cont [11/16] %v6675, 128
        %6756 = vxpose.xlu0.b32.cont [12/16] %v6676, 128
        %6757 = vxpose.xlu0.b32.cont [13/16] %v6677, 128
        %6758 = vxpose.xlu0.b32.cont [14/16] %v6678, 128
        %6759 = vxpose.xlu0.b32.cont [15/16] %v6679, 128
        %6760 = vxpose.xlu0.b32.end [16/16] %v6680, 128
        %v6761 = vpop.trf.xlu0
        %v6762 = vpop.trf.xlu0
        %v6763 = vpop.trf.xlu0
        %v6764 = vpop.trf.xlu0
        %v6765 = vpop.trf.xlu0
        %v6766 = vpop.trf.xlu0
        %v6767 = vpop.trf.xlu0
        %v6768 = vpop.trf.xlu0
        %v6769 = vpop.trf.xlu0
        %v6770 = vpop.trf.xlu0
        %v6771 = vpop.trf.xlu0
        %v6772 = vpop.trf.xlu0
        %v6773 = vpop.trf.xlu0
        %v6774 = vpop.trf.xlu0
        %v6775 = vpop.trf.xlu0
        %v6776 = vpop.trf.xlu0
        %6777 = vxpose.xlu0.b32.start [1/16] %v6681, 128
        %6778 = vxpose.xlu0.b32.cont [2/16] %v6682, 128
        %6779 = vxpose.xlu0.b32.cont [3/16] %v6683, 128
        %6780 = vxpose.xlu0.b32.cont [4/16] %v6684, 128
        %6781 = vxpose.xlu0.b32.cont [5/16] %v6685, 128
        %6782 = vxpose.xlu0.b32.cont [6/16] %v6686, 128
        %6783 = vxpose.xlu0.b32.cont [7/16] %v6687, 128
        %6784 = vxpose.xlu0.b32.cont [8/16] %v6688, 128
        %6785 = vxpose.xlu0.b32.cont [9/16] %v6689, 128
        %6786 = vxpose.xlu0.b32.cont [10/16] %v6690, 128
        %6787 = vxpose.xlu0.b32.cont [11/16] %v6691, 128
        %6788 = vxpose.xlu0.b32.cont [12/16] %v6692, 128
        %6789 = vxpose.xlu0.b32.cont [13/16] %v6693, 128
        %6790 = vxpose.xlu0.b32.cont [14/16] %v6694, 128
        %6791 = vxpose.xlu0.b32.cont [15/16] %v6695, 128
        %6792 = vxpose.xlu0.b32.end [16/16] %v6696, 128
        %v6793 = vpop.trf.xlu0
        %v6794 = vpop.trf.xlu0
        %v6795 = vpop.trf.xlu0
        %v6796 = vpop.trf.xlu0
        %v6797 = vpop.trf.xlu0
        %v6798 = vpop.trf.xlu0
        %v6799 = vpop.trf.xlu0
        %v6800 = vpop.trf.xlu0
        %v6801 = vpop.trf.xlu0
        %v6802 = vpop.trf.xlu0
        %v6803 = vpop.trf.xlu0
        %v6804 = vpop.trf.xlu0
        %v6805 = vpop.trf.xlu0
        %v6806 = vpop.trf.xlu0
        %v6807 = vpop.trf.xlu0
        %v6808 = vpop.trf.xlu0
        %6809 = vxpose.xlu0.b32.start [1/16] %v6697, 128
        %6810 = vxpose.xlu0.b32.cont [2/16] %v6698, 128
        %6811 = vxpose.xlu0.b32.cont [3/16] %v6699, 128
        %6812 = vxpose.xlu0.b32.cont [4/16] %v6700, 128
        %6813 = vxpose.xlu0.b32.cont [5/16] %v6701, 128
        %6814 = vxpose.xlu0.b32.cont [6/16] %v6702, 128
        %6815 = vxpose.xlu0.b32.cont [7/16] %v6703, 128
        %6816 = vxpose.xlu0.b32.cont [8/16] %v6704, 128
        %6817 = vxpose.xlu0.b32.cont [9/16] %v6705, 128
        %6818 = vxpose.xlu0.b32.cont [10/16] %v6706, 128
        %6819 = vxpose.xlu0.b32.cont [11/16] %v6707, 128
        %6820 = vxpose.xlu0.b32.cont [12/16] %v6708, 128
        %6821 = vxpose.xlu0.b32.cont [13/16] %v6709, 128
        %6822 = vxpose.xlu0.b32.cont [14/16] %v6710, 128
        %6823 = vxpose.xlu0.b32.cont [15/16] %v6711, 128
        %6824 = vxpose.xlu0.b32.end [16/16] %v6712, 128
        %v6825 = vpop.trf.xlu0
        %v6826 = vpop.trf.xlu0
        %v6827 = vpop.trf.xlu0
        %v6828 = vpop.trf.xlu0
        %v6829 = vpop.trf.xlu0
        %v6830 = vpop.trf.xlu0
        %v6831 = vpop.trf.xlu0
        %v6832 = vpop.trf.xlu0
        %v6833 = vpop.trf.xlu0
        %v6834 = vpop.trf.xlu0
        %v6835 = vpop.trf.xlu0
        %v6836 = vpop.trf.xlu0
        %v6837 = vpop.trf.xlu0
        %v6838 = vpop.trf.xlu0
        %v6839 = vpop.trf.xlu0
        %v6840 = vpop.trf.xlu0
        %v6841 = vpack.c.bf16 %v6729, %v6729
        %v6842 = vpack.c.bf16 %v6761, %v6761
        %v6843 = vpack.c.bf16 %v6793, %v6793
        %v6844 = vpack.c.bf16 %v6825, %v6825
        %v6849 = vunpack.c.l.b16 %v6841
        %v6850 = vunpack.c.l.b16 %v6842
        %v6851 = vunpack.c.l.b16 %v6843
        %v6852 = vunpack.c.l.b16 %v6844
        %v6853 = vpack.c.b16 %v6850, %v6849
        %v6854 = vpack.c.b16 %v6852, %v6851
        %6857 = vst [vmem:[%s332] sm:$0xff] %v6853
        %6858 = vst [vmem:[%s332 + $0x8] sm:$0xff] %v6854
        %s6859 = sand.u32 %s199, 1
        %s6860 = scalar_lea.sflag [#allocation5], %s6859
        %s6861 = sand.u32 %s199, 1
        %s6862 = smul.addr %s6861, 16
        %s6863 = scalar_lea.vmem [#allocation9], %s6862
        // Predicated region
        $region61: #{tpu_custom_call.1} parent=47 // pred_check
          %p6864 = pneg %p209
        $region62: #{tpu_custom_call.1} parent=47 // pred_check_branch
          %6866 = sbr.rel (%p6864) target = $region64
        $region63: #{tpu_custom_call.1} parent=47 // pred_region
          %s6867 = sadd.s32 %s27, %s28
          %s6869 = ssub.s32 256, 256
          %6870 = vsyncadd %s6860, %s6869
          %s6871 = smul.addr %s6867, 4
          %s6872 = smul.addr %s6871, 64
          %s6873 = scalar_lea.hbm %s7, %s6872
          %s6875 = sshll.u32 %s6863, 4
          %s6876 = int_to_ptr.vmem [resolvable:$true] %s6875
          %6878 = dma.vmem_to_hbm [thread:$0]  %s6876, 256, %s6873, %s6860
        $region64: #{tpu_custom_call.1} parent=47 // pred_fallthru
          _
      $region48: #{tpu_custom_call.1} parent=5 // pred_fallthru
        _
      %p6879 = scmp.le.s32.totalorder 2, %s18
      // Predicated region
      $region65: #{tpu_custom_call.1} parent=5 // pred_check
        %p6880 = pneg %p6879
      $region66: #{tpu_custom_call.1} parent=5 // pred_check_branch
        %6882 = sbr.rel (%p6880) target = $region68
      $region67: #{tpu_custom_call.1} parent=5 // pred_region
        %s6883 = ssub.s32 %s18, 2
        // Predicated region
        $region69: #{tpu_custom_call.1} parent=67 // pred_check
          %p6884 = pneg %p215
        $region70: #{tpu_custom_call.1} parent=67 // pred_check_branch
          %6886 = sbr.rel (%p6884) target = $region72
        $region71: #{tpu_custom_call.1} parent=67 // pred_region
          %s6887 = sand.u32 %s200, 1
          %s6888 = scalar_lea.sflag [#allocation5], %s6887
          %s6889 = sand.u32 %s200, 1
          %s6890 = smul.addr %s6889, 16
          %s6891 = scalar_lea.vmem [#allocation9], %s6890
          %6892 = dma.done %s6888, 256
        $region72: #{tpu_custom_call.1} parent=67 // pred_fallthru
          _
      $region68: #{tpu_custom_call.1} parent=5 // pred_fallthru
        _
    $region6: #{tpu_custom_call.1} parent=1 // loop_footer
      %s22 = sadd.s32 1, %s18
    $region7: #{tpu_custom_call.1} parent=1 // loop_footer_branch
      %17 = sbr.rel target = $region3
    $region8: #{tpu_custom_call.1} parent=1 // loop_exit
      _
    %6893 = vsyncpa [#allocation4], 1
    %s6894 = scalar_lea.sflag [#allocation4], 1
    %6895 = vsyncpa %s6894, 1
    %6896 = vsyncpa [#allocation7], 1
    %6897 = vsyncpa [#allocation5], 1
    %s6898 = scalar_lea.sflag [#allocation5], 1
    %6899 = vsyncpa %s6898, 1

</llo_original>
